<compile_context>
chip_gen: v7x
topology: tpu7x:2x2x1
jax: 0.10.0
libtpu: 0.0.40
codegen_flags: <defaults>
</compile_context>

<pallas_src>
import numpy as np

import jax
import jax.numpy as jnp
from jax.experimental import pallas as pl
from jax.experimental.pallas import tpu as pltpu


# ----------------------------------------------------------------------------
# Static geometry implied by the module (channel=3, hideen=768 => 32x32 input)
# ----------------------------------------------------------------------------
_K = 5                                   # conv kernel size
_IMG = 32                                # input spatial size (32 -> 16 -> 8 -> 8)
_H1 = (_IMG + 2 * 2 - _K) // 2 + 1       # 16
_H2 = (_H1 + 2 * 2 - _K) // 2 + 1        # 8
_H3 = (_H2 + 2 * 2 - _K) // 1 + 1        # 8


# ----------------------------------------------------------------------------
# Host-side packing helpers (run once, outside the jitted forward)
# ----------------------------------------------------------------------------
def _im2col_matrix(h_in, w_in, k, stride, pad):
    """0/1 matrix G (h_in*w_in, k*k*h_out*w_out):  patches = act @ G.

    G[u*w_in+v, (t*h_out+y)*w_out+x] = 1  iff  u = stride*y+i-pad and
    v = stride*x+j-pad are in range, with tap t = i*k+j.  Padding is encoded
    as all-zero columns, so no explicit zero-padding of activations is needed.
    """
    h_out = (h_in + 2 * pad - k) // stride + 1
    w_out = (w_in + 2 * pad - k) // stride + 1
    g = np.zeros((h_in * w_in, k * k * h_out * w_out), np.float32)
    for i in range(k):
        for j in range(k):
            t = i * k + j
            for y in range(h_out):
                u = stride * y + i - pad
                if not 0 <= u < h_in:
                    continue
                for x in range(w_out):
                    v = stride * x + j - pad
                    if 0 <= v < w_in:
                        g[u * w_in + v, (t * h_out + y) * w_out + x] = 1.0
    return g


def init_params(key, channel=3, hideen=768, num_classes=10):
    """Same parameter shapes / init style as the PyTorch LeNet."""
    ks = jax.random.split(key, 8)

    def u(k, shape, fan_in):
        bound = 1.0 / jnp.sqrt(fan_in)
        return jax.random.uniform(k, shape, jnp.float32, -bound, bound)

    return {
        "conv1_w": u(ks[0], (12, channel, _K, _K), channel * _K * _K),
        "conv1_b": u(ks[1], (12,), channel * _K * _K),
        "conv2_w": u(ks[2], (12, 12, _K, _K), 12 * _K * _K),
        "conv2_b": u(ks[3], (12,), 12 * _K * _K),
        "conv3_w": u(ks[4], (12, 12, _K, _K), 12 * _K * _K),
        "conv3_b": u(ks[5], (12,), 12 * _K * _K),
        "fc_w": u(ks[6], (num_classes, hideen), hideen),     # PyTorch layout
        "fc_b": u(ks[7], (num_classes,), hideen),
    }


def pack_params(params):
    """Pack weights into kernel-friendly layouts (bf16) + build gather mats."""
    bf16 = jnp.bfloat16
    cout, cin, k, _ = params["conv1_w"].shape

    def taps(w):  # (Cout, Cin, k, k) -> (k*k, Cout, Cin), tap t = i*k + j
        return jnp.transpose(w, (2, 3, 0, 1)).reshape(k * k, w.shape[0], w.shape[1])

    n_cls, hidden = params["fc_w"].shape
    c3 = params["conv3_w"].shape[0]
    s3 = hidden // c3                                   # 64 spatial positions
    # fcw[c, s, k] = fc_w[k, c*s3 + s]  (matches torch .view flatten order)
    fcw = jnp.transpose(params["fc_w"].reshape(n_cls, c3, s3), (1, 2, 0))

    return dict(
        w1=params["conv1_w"].reshape(cout, cin * k * k).astype(bf16),
        b1=params["conv1_b"].reshape(-1, 1).astype(jnp.float32),
        w2=taps(params["conv2_w"]).astype(bf16),
        b2=params["conv2_b"].reshape(-1, 1).astype(jnp.float32),
        w3=taps(params["conv3_w"]).astype(bf16),
        b3=params["conv3_b"].reshape(-1, 1).astype(jnp.float32),
        fcw=fcw.astype(bf16),
        fcb=params["fc_b"].reshape(1, -1).astype(jnp.float32),
        g2=jnp.asarray(_im2col_matrix(_H1, _H1, _K, 2, 2), bf16),   # (256, 1600)
        g3=jnp.asarray(_im2col_matrix(_H2, _H2, _K, 1, 2), bf16),   # (64, 1600)
    )


# ----------------------------------------------------------------------------
# Wrapper-side conv1 patch extraction (raw input only; one small gather)
# ----------------------------------------------------------------------------
def _conv1_patches(x):
    """x (B, C, 32, 32) -> patches (B, C*25, 256); row c*25 + i*5 + j."""
    B, C, H, W = x.shape
    k, s, p = _K, 2, 2
    ho = (H + 2 * p - k) // s + 1
    wo = (W + 2 * p - k) // s + 1
    t = np.arange(k * k, dtype=np.int32)
    i = (t // k)[:, None]
    j = (t % k)[:, None]
    pos = np.arange(ho * wo, dtype=np.int32)[None, :]
    rows = s * (pos // wo) + i               # (25, ho*wo), padded coordinates
    cols = s * (pos % wo) + j
    xp = jnp.pad(x, ((0, 0), (0, 0), (p, p), (p, p)))
    patches = xp[:, :, rows, cols]           # (B, C, 25, ho*wo)
    return patches.reshape(B, C * k * k, ho * wo)


# ----------------------------------------------------------------------------
# The fused Pallas kernel (one batch element per grid step)
# ----------------------------------------------------------------------------
def _lenet_kernel(p1_ref, w1_ref, b1_ref,
                  g2_ref, w2_ref, b2_ref,
                  g3_ref, w3_ref, b3_ref,
                  fcw_ref, fcb_ref, out_ref):
    f32 = jnp.float32

    def sigmoid(z):                                   # f32 in / f32 out (EUP)
        return pl.reciprocal(1.0 + jnp.exp(-z), approx=True)

    def conv_taps(h, g_ref, w_ref, b_ref):
        # h: (Cin, S_in) bf16, g: (S_in, T*S_out) 0/1, w: (T, Cout, Cin).
        taps = w_ref.shape[0]
        s_out = g_ref.shape[1] // taps
        # im2col for the whole layer: one MXU matmul against a 0/1 constant.
        cols = jnp.dot(h, g_ref[...],
                       preferred_element_type=f32).astype(jnp.bfloat16)
        acc = jnp.zeros((w_ref.shape[1], s_out), f32)
        for t in range(taps):                          # 25 tiny MXU matmuls
            acc = acc + jnp.dot(w_ref[t], cols[:, t * s_out:(t + 1) * s_out],
                                preferred_element_type=f32)
        return sigmoid(acc + b_ref[...]).astype(jnp.bfloat16)

    # conv1: patches for the raw input were built in the wrapper.
    acc1 = jnp.dot(w1_ref[...], p1_ref[0], preferred_element_type=f32)
    h1 = sigmoid(acc1 + b1_ref[...]).astype(jnp.bfloat16)      # (12, 256)

    h2 = conv_taps(h1, g2_ref, w2_ref, b2_ref)                  # (12, 64)
    h3 = conv_taps(h2, g3_ref, w3_ref, b3_ref)                  # (12, 64)

    # fc: logits[k] = fc_b[k] + sum_{c,s} fcw[c,s,k] * h3[c,s]
    logits = fcb_ref[...]                                       # (1, 10) f32
    for c in range(fcw_ref.shape[0]):
        logits = logits + jnp.dot(h3[c:c + 1, :], fcw_ref[c],
                                  preferred_element_type=f32)
    out_ref[0] = logits


def lenet_forward(packed, x):
    B = x.shape[0]
    p1 = _conv1_patches(x).astype(jnp.bfloat16)                 # (B, 75, 256)
    n_cls = packed["fcb"].shape[1]

    out = pl.pallas_call(
        _lenet_kernel,
        out_shape=jax.ShapeDtypeStruct((B, 1, n_cls), jnp.float32),
        grid=(B,),
        in_specs=[
            pl.BlockSpec((1,) + p1.shape[1:], lambda b: (b, 0, 0)),
            pl.BlockSpec(packed["w1"].shape, lambda b: (0, 0)),
            pl.BlockSpec(packed["b1"].shape, lambda b: (0, 0)),
            pl.BlockSpec(packed["g2"].shape, lambda b: (0, 0)),
            pl.BlockSpec(packed["w2"].shape, lambda b: (0, 0, 0)),
            pl.BlockSpec(packed["b2"].shape, lambda b: (0, 0)),
            pl.BlockSpec(packed["g3"].shape, lambda b: (0, 0)),
            pl.BlockSpec(packed["w3"].shape, lambda b: (0, 0, 0)),
            pl.BlockSpec(packed["b3"].shape, lambda b: (0, 0)),
            pl.BlockSpec(packed["fcw"].shape, lambda b: (0, 0, 0)),
            pl.BlockSpec(packed["fcb"].shape, lambda b: (0, 0)),
        ],
        out_specs=pl.BlockSpec((1, 1, n_cls), lambda b: (b, 0, 0)),
        compiler_params=pltpu.CompilerParams(
            dimension_semantics=("parallel",)),
    )(p1, packed["w1"], packed["b1"],
      packed["g2"], packed["w2"], packed["b2"],
      packed["g3"], packed["w3"], packed["b3"],
      packed["fcw"], packed["fcb"])
    return out[:, 0, :]


# ----------------------------------------------------------------------------
# Plain-JAX reference (f32) for a correctness cross-check
# ----------------------------------------------------------------------------
def lenet_reference(params, x):
    hi = jax.lax.Precision.HIGHEST

    def conv(h, w, b, stride):
        out = jax.lax.conv_general_dilated(
            h, w, window_strides=(stride, stride), padding=((2, 2), (2, 2)),
            dimension_numbers=("NCHW", "OIHW", "NCHW"), precision=hi)
        return jax.nn.sigmoid(out + b[None, :, None, None])

    h = conv(x, params["conv1_w"], params["conv1_b"], 2)
    h = conv(h, params["conv2_w"], params["conv2_b"], 2)
    h = conv(h, params["conv3_w"], params["conv3_b"], 1)
    flat = h.reshape(x.shape[0], -1)
    return jnp.dot(flat, params["fc_w"].T, precision=hi) + params["fc_b"]


if __name__ == "__main__":
    key = jax.random.PRNGKey(0)
    pkey, xkey = jax.random.split(key)
    params = init_params(pkey, channel=3, hideen=768, num_classes=10)
    packed = pack_params(params)                     # one-time weight packing

    # CIFAR-like input so the flatten size matches hideen=768: 32 -> 16 -> 8 -> 8
    x = jax.random.normal(xkey, (2, 3, 32, 32), dtype=jnp.float32)

    logits = jax.jit(lenet_forward)(packed, x)
    jax.block_until_ready(logits)
    assert logits.shape == (2, 10), logits.shape

    ref = jax.jit(lenet_reference)(params, x)
    err = float(jnp.max(jnp.abs(logits - ref)))
    assert err < 5e-2, f"kernel / reference mismatch: max abs err = {err}"
    print("KERNEL_OK")
</pallas_src>

<mosaic_0001>
module attributes {stable_mosaic.version = 11 : i64} {
  func.func @_lenet_kernel(%arg0: i32, %arg1: memref<1x75x256xbf16, #tpu.memory_space<vmem>>, %arg2: memref<12x75xbf16, #tpu.memory_space<vmem>>, %arg3: memref<12x1xf32, #tpu.memory_space<vmem>>, %arg4: memref<256x1600xbf16, #tpu.memory_space<vmem>>, %arg5: memref<25x12x12xbf16, #tpu.memory_space<vmem>>, %arg6: memref<12x1xf32, #tpu.memory_space<vmem>>, %arg7: memref<64x1600xbf16, #tpu.memory_space<vmem>>, %arg8: memref<25x12x12xbf16, #tpu.memory_space<vmem>>, %arg9: memref<12x1xf32, #tpu.memory_space<vmem>>, %arg10: memref<12x64x10xbf16, #tpu.memory_space<vmem>>, %arg11: memref<1x10xf32, #tpu.memory_space<vmem>>, %arg12: memref<1x1x10xf32, #tpu.memory_space<vmem>>) attributes {dimension_semantics = [#tpu.dimension_semantics<parallel>], iteration_bounds = array<i64: 2>, scalar_prefetch = 0 : i64, scratch_operands = 0 : i64, tpu.core_type = #tpu.core_type<tc>, window_params = [{transform_indices = @transform_0, window_bounds = array<i64: 1, 75, 256>}, {pipeline_mode = #tpu.pipeline_mode<synchronous>, transform_indices = @transform_1, window_bounds = array<i64: 12, 75>}, {pipeline_mode = #tpu.pipeline_mode<synchronous>, transform_indices = @transform_2, window_bounds = array<i64: 12, 1>}, {pipeline_mode = #tpu.pipeline_mode<synchronous>, transform_indices = @transform_3, window_bounds = array<i64: 256, 1600>}, {pipeline_mode = #tpu.pipeline_mode<synchronous>, transform_indices = @transform_4, window_bounds = array<i64: 25, 12, 12>}, {pipeline_mode = #tpu.pipeline_mode<synchronous>, transform_indices = @transform_5, window_bounds = array<i64: 12, 1>}, {pipeline_mode = #tpu.pipeline_mode<synchronous>, transform_indices = @transform_6, window_bounds = array<i64: 64, 1600>}, {pipeline_mode = #tpu.pipeline_mode<synchronous>, transform_indices = @transform_7, window_bounds = array<i64: 25, 12, 12>}, {pipeline_mode = #tpu.pipeline_mode<synchronous>, transform_indices = @transform_8, window_bounds = array<i64: 12, 1>}, {pipeline_mode = #tpu.pipeline_mode<synchronous>, transform_indices = @transform_9, window_bounds = array<i64: 12, 64, 10>}, {pipeline_mode = #tpu.pipeline_mode<synchronous>, transform_indices = @transform_10, window_bounds = array<i64: 1, 10>}, {transform_indices = @transform_11, window_bounds = array<i64: 1, 1, 10>}]} {
    %c0 = arith.constant 0 : index
    %c0_0 = arith.constant 0 : index
    %0 = vector.load %arg2[%c0, %c0_0] : memref<12x75xbf16, #tpu.memory_space<vmem>>, vector<12x75xbf16>
    %c0_1 = arith.constant 0 : index
    %c0_2 = arith.constant 0 : index
    %c0_3 = arith.constant 0 : index
    %1 = vector.load %arg1[%c0_1, %c0_2, %c0_3] : memref<1x75x256xbf16, #tpu.memory_space<vmem>>, vector<1x75x256xbf16>
    %2 = vector.shape_cast %1 : vector<1x75x256xbf16> to vector<75x256xbf16>
    %cst = arith.constant dense<0.000000e+00> : vector<12x256xf32>
    %3 = tpu.matmul %0, %2, %cst {dimension_numbers = #tpu.dot_dimension_numbers<[1], [0], [0], [1], [0, 0, 1, 1], [], []>} : vector<12x75xbf16>, vector<75x256xbf16>, vector<12x256xf32> -> vector<12x256xf32>
    %c0_4 = arith.constant 0 : index
    %c0_5 = arith.constant 0 : index
    %4 = vector.load %arg3[%c0_4, %c0_5] : memref<12x1xf32, #tpu.memory_space<vmem>>, vector<12x1xf32>
    %5 = vector.broadcast %4 : vector<12x1xf32> to vector<12x256xf32>
    %6 = arith.addf %3, %5 : vector<12x256xf32>
    %cst_6 = arith.constant 0.000000e+00 : f32
    %7 = vector.broadcast %cst_6 : f32 to vector<12x256xf32>
    %8 = arith.subf %7, %6 : vector<12x256xf32>
    %9 = math.exp %8 : vector<12x256xf32>
    %cst_7 = arith.constant 1.000000e+00 : f32
    %10 = vector.broadcast %cst_7 : f32 to vector<12x256xf32>
    %11 = arith.addf %10, %9 : vector<12x256xf32>
    %12 = tpu.reciprocal %11 {approx = true} : vector<12x256xf32> -> vector<12x256xf32>
    %13 = arith.truncf %12 : vector<12x256xf32> to vector<12x256xbf16>
    %c0_8 = arith.constant 0 : index
    %c0_9 = arith.constant 0 : index
    %14 = vector.load %arg4[%c0_8, %c0_9] : memref<256x1600xbf16, #tpu.memory_space<vmem>>, vector<256x1600xbf16>
    %cst_10 = arith.constant dense<0.000000e+00> : vector<12x1600xf32>
    %15 = tpu.matmul %13, %14, %cst_10 {dimension_numbers = #tpu.dot_dimension_numbers<[1], [0], [0], [1], [0, 0, 1, 1], [], []>} : vector<12x256xbf16>, vector<256x1600xbf16>, vector<12x1600xf32> -> vector<12x1600xf32>
    %16 = arith.truncf %15 : vector<12x1600xf32> to vector<12x1600xbf16>
    %cst_11 = arith.constant 0.000000e+00 : f32
    %17 = vector.broadcast %cst_11 : f32 to vector<12x64xf32>
    %c0_12 = arith.constant 0 : index
    %c0_13 = arith.constant 0 : index
    %c0_14 = arith.constant 0 : index
    %18 = vector.load %arg5[%c0_12, %c0_13, %c0_14] : memref<25x12x12xbf16, #tpu.memory_space<vmem>>, vector<1x12x12xbf16>
    %19 = vector.shape_cast %18 : vector<1x12x12xbf16> to vector<12x12xbf16>
    %20 = vector.extract_strided_slice %16 {offsets = [0, 0], sizes = [12, 64], strides = [1, 1]} : vector<12x1600xbf16> to vector<12x64xbf16>
    %cst_15 = arith.constant dense<0.000000e+00> : vector<12x64xf32>
    %21 = tpu.matmul %19, %20, %cst_15 {dimension_numbers = #tpu.dot_dimension_numbers<[1], [0], [0], [1], [0, 0, 1, 1], [], []>} : vector<12x12xbf16>, vector<12x64xbf16>, vector<12x64xf32> -> vector<12x64xf32>
    %22 = arith.addf %17, %21 : vector<12x64xf32>
    %c1 = arith.constant 1 : index
    %c0_16 = arith.constant 0 : index
    %c0_17 = arith.constant 0 : index
    %23 = vector.load %arg5[%c1, %c0_16, %c0_17] : memref<25x12x12xbf16, #tpu.memory_space<vmem>>, vector<1x12x12xbf16>
    %24 = vector.shape_cast %23 : vector<1x12x12xbf16> to vector<12x12xbf16>
    %25 = vector.extract_strided_slice %16 {offsets = [0, 64], sizes = [12, 64], strides = [1, 1]} : vector<12x1600xbf16> to vector<12x64xbf16>
    %cst_18 = arith.constant dense<0.000000e+00> : vector<12x64xf32>
    %26 = tpu.matmul %24, %25, %cst_18 {dimension_numbers = #tpu.dot_dimension_numbers<[1], [0], [0], [1], [0, 0, 1, 1], [], []>} : vector<12x12xbf16>, vector<12x64xbf16>, vector<12x64xf32> -> vector<12x64xf32>
    %27 = arith.addf %22, %26 : vector<12x64xf32>
    %c2 = arith.constant 2 : index
    %c0_19 = arith.constant 0 : index
    %c0_20 = arith.constant 0 : index
    %28 = vector.load %arg5[%c2, %c0_19, %c0_20] : memref<25x12x12xbf16, #tpu.memory_space<vmem>>, vector<1x12x12xbf16>
    %29 = vector.shape_cast %28 : vector<1x12x12xbf16> to vector<12x12xbf16>
    %30 = vector.extract_strided_slice %16 {offsets = [0, 128], sizes = [12, 64], strides = [1, 1]} : vector<12x1600xbf16> to vector<12x64xbf16>
    %cst_21 = arith.constant dense<0.000000e+00> : vector<12x64xf32>
    %31 = tpu.matmul %29, %30, %cst_21 {dimension_numbers = #tpu.dot_dimension_numbers<[1], [0], [0], [1], [0, 0, 1, 1], [], []>} : vector<12x12xbf16>, vector<12x64xbf16>, vector<12x64xf32> -> vector<12x64xf32>
    %32 = arith.addf %27, %31 : vector<12x64xf32>
    %c3 = arith.constant 3 : index
    %c0_22 = arith.constant 0 : index
    %c0_23 = arith.constant 0 : index
    %33 = vector.load %arg5[%c3, %c0_22, %c0_23] : memref<25x12x12xbf16, #tpu.memory_space<vmem>>, vector<1x12x12xbf16>
    %34 = vector.shape_cast %33 : vector<1x12x12xbf16> to vector<12x12xbf16>
    %35 = vector.extract_strided_slice %16 {offsets = [0, 192], sizes = [12, 64], strides = [1, 1]} : vector<12x1600xbf16> to vector<12x64xbf16>
    %cst_24 = arith.constant dense<0.000000e+00> : vector<12x64xf32>
    %36 = tpu.matmul %34, %35, %cst_24 {dimension_numbers = #tpu.dot_dimension_numbers<[1], [0], [0], [1], [0, 0, 1, 1], [], []>} : vector<12x12xbf16>, vector<12x64xbf16>, vector<12x64xf32> -> vector<12x64xf32>
    %37 = arith.addf %32, %36 : vector<12x64xf32>
    %c4 = arith.constant 4 : index
    %c0_25 = arith.constant 0 : index
    %c0_26 = arith.constant 0 : index
    %38 = vector.load %arg5[%c4, %c0_25, %c0_26] : memref<25x12x12xbf16, #tpu.memory_space<vmem>>, vector<1x12x12xbf16>
    %39 = vector.shape_cast %38 : vector<1x12x12xbf16> to vector<12x12xbf16>
    %40 = vector.extract_strided_slice %16 {offsets = [0, 256], sizes = [12, 64], strides = [1, 1]} : vector<12x1600xbf16> to vector<12x64xbf16>
    %cst_27 = arith.constant dense<0.000000e+00> : vector<12x64xf32>
    %41 = tpu.matmul %39, %40, %cst_27 {dimension_numbers = #tpu.dot_dimension_numbers<[1], [0], [0], [1], [0, 0, 1, 1], [], []>} : vector<12x12xbf16>, vector<12x64xbf16>, vector<12x64xf32> -> vector<12x64xf32>
    %42 = arith.addf %37, %41 : vector<12x64xf32>
    %c5 = arith.constant 5 : index
    %c0_28 = arith.constant 0 : index
    %c0_29 = arith.constant 0 : index
    %43 = vector.load %arg5[%c5, %c0_28, %c0_29] : memref<25x12x12xbf16, #tpu.memory_space<vmem>>, vector<1x12x12xbf16>
    %44 = vector.shape_cast %43 : vector<1x12x12xbf16> to vector<12x12xbf16>
    %45 = vector.extract_strided_slice %16 {offsets = [0, 320], sizes = [12, 64], strides = [1, 1]} : vector<12x1600xbf16> to vector<12x64xbf16>
    %cst_30 = arith.constant dense<0.000000e+00> : vector<12x64xf32>
    %46 = tpu.matmul %44, %45, %cst_30 {dimension_numbers = #tpu.dot_dimension_numbers<[1], [0], [0], [1], [0, 0, 1, 1], [], []>} : vector<12x12xbf16>, vector<12x64xbf16>, vector<12x64xf32> -> vector<12x64xf32>
    %47 = arith.addf %42, %46 : vector<12x64xf32>
    %c6 = arith.constant 6 : index
    %c0_31 = arith.constant 0 : index
    %c0_32 = arith.constant 0 : index
    %48 = vector.load %arg5[%c6, %c0_31, %c0_32] : memref<25x12x12xbf16, #tpu.memory_space<vmem>>, vector<1x12x12xbf16>
    %49 = vector.shape_cast %48 : vector<1x12x12xbf16> to vector<12x12xbf16>
    %50 = vector.extract_strided_slice %16 {offsets = [0, 384], sizes = [12, 64], strides = [1, 1]} : vector<12x1600xbf16> to vector<12x64xbf16>
    %cst_33 = arith.constant dense<0.000000e+00> : vector<12x64xf32>
    %51 = tpu.matmul %49, %50, %cst_33 {dimension_numbers = #tpu.dot_dimension_numbers<[1], [0], [0], [1], [0, 0, 1, 1], [], []>} : vector<12x12xbf16>, vector<12x64xbf16>, vector<12x64xf32> -> vector<12x64xf32>
    %52 = arith.addf %47, %51 : vector<12x64xf32>
    %c7 = arith.constant 7 : index
    %c0_34 = arith.constant 0 : index
    %c0_35 = arith.constant 0 : index
    %53 = vector.load %arg5[%c7, %c0_34, %c0_35] : memref<25x12x12xbf16, #tpu.memory_space<vmem>>, vector<1x12x12xbf16>
    %54 = vector.shape_cast %53 : vector<1x12x12xbf16> to vector<12x12xbf16>
    %55 = vector.extract_strided_slice %16 {offsets = [0, 448], sizes = [12, 64], strides = [1, 1]} : vector<12x1600xbf16> to vector<12x64xbf16>
    %cst_36 = arith.constant dense<0.000000e+00> : vector<12x64xf32>
    %56 = tpu.matmul %54, %55, %cst_36 {dimension_numbers = #tpu.dot_dimension_numbers<[1], [0], [0], [1], [0, 0, 1, 1], [], []>} : vector<12x12xbf16>, vector<12x64xbf16>, vector<12x64xf32> -> vector<12x64xf32>
    %57 = arith.addf %52, %56 : vector<12x64xf32>
    %c8 = arith.constant 8 : index
    %c0_37 = arith.constant 0 : index
    %c0_38 = arith.constant 0 : index
    %58 = vector.load %arg5[%c8, %c0_37, %c0_38] : memref<25x12x12xbf16, #tpu.memory_space<vmem>>, vector<1x12x12xbf16>
    %59 = vector.shape_cast %58 : vector<1x12x12xbf16> to vector<12x12xbf16>
    %60 = vector.extract_strided_slice %16 {offsets = [0, 512], sizes = [12, 64], strides = [1, 1]} : vector<12x1600xbf16> to vector<12x64xbf16>
    %cst_39 = arith.constant dense<0.000000e+00> : vector<12x64xf32>
    %61 = tpu.matmul %59, %60, %cst_39 {dimension_numbers = #tpu.dot_dimension_numbers<[1], [0], [0], [1], [0, 0, 1, 1], [], []>} : vector<12x12xbf16>, vector<12x64xbf16>, vector<12x64xf32> -> vector<12x64xf32>
    %62 = arith.addf %57, %61 : vector<12x64xf32>
    %c9 = arith.constant 9 : index
    %c0_40 = arith.constant 0 : index
    %c0_41 = arith.constant 0 : index
    %63 = vector.load %arg5[%c9, %c0_40, %c0_41] : memref<25x12x12xbf16, #tpu.memory_space<vmem>>, vector<1x12x12xbf16>
    %64 = vector.shape_cast %63 : vector<1x12x12xbf16> to vector<12x12xbf16>
    %65 = vector.extract_strided_slice %16 {offsets = [0, 576], sizes = [12, 64], strides = [1, 1]} : vector<12x1600xbf16> to vector<12x64xbf16>
    %cst_42 = arith.constant dense<0.000000e+00> : vector<12x64xf32>
    %66 = tpu.matmul %64, %65, %cst_42 {dimension_numbers = #tpu.dot_dimension_numbers<[1], [0], [0], [1], [0, 0, 1, 1], [], []>} : vector<12x12xbf16>, vector<12x64xbf16>, vector<12x64xf32> -> vector<12x64xf32>
    %67 = arith.addf %62, %66 : vector<12x64xf32>
    %c10 = arith.constant 10 : index
    %c0_43 = arith.constant 0 : index
    %c0_44 = arith.constant 0 : index
    %68 = vector.load %arg5[%c10, %c0_43, %c0_44] : memref<25x12x12xbf16, #tpu.memory_space<vmem>>, vector<1x12x12xbf16>
    %69 = vector.shape_cast %68 : vector<1x12x12xbf16> to vector<12x12xbf16>
    %70 = vector.extract_strided_slice %16 {offsets = [0, 640], sizes = [12, 64], strides = [1, 1]} : vector<12x1600xbf16> to vector<12x64xbf16>
    %cst_45 = arith.constant dense<0.000000e+00> : vector<12x64xf32>
    %71 = tpu.matmul %69, %70, %cst_45 {dimension_numbers = #tpu.dot_dimension_numbers<[1], [0], [0], [1], [0, 0, 1, 1], [], []>} : vector<12x12xbf16>, vector<12x64xbf16>, vector<12x64xf32> -> vector<12x64xf32>
    %72 = arith.addf %67, %71 : vector<12x64xf32>
    %c11 = arith.constant 11 : index
    %c0_46 = arith.constant 0 : index
    %c0_47 = arith.constant 0 : index
    %73 = vector.load %arg5[%c11, %c0_46, %c0_47] : memref<25x12x12xbf16, #tpu.memory_space<vmem>>, vector<1x12x12xbf16>
    %74 = vector.shape_cast %73 : vector<1x12x12xbf16> to vector<12x12xbf16>
    %75 = vector.extract_strided_slice %16 {offsets = [0, 704], sizes = [12, 64], strides = [1, 1]} : vector<12x1600xbf16> to vector<12x64xbf16>
    %cst_48 = arith.constant dense<0.000000e+00> : vector<12x64xf32>
    %76 = tpu.matmul %74, %75, %cst_48 {dimension_numbers = #tpu.dot_dimension_numbers<[1], [0], [0], [1], [0, 0, 1, 1], [], []>} : vector<12x12xbf16>, vector<12x64xbf16>, vector<12x64xf32> -> vector<12x64xf32>
    %77 = arith.addf %72, %76 : vector<12x64xf32>
    %c12 = arith.constant 12 : index
    %c0_49 = arith.constant 0 : index
    %c0_50 = arith.constant 0 : index
    %78 = vector.load %arg5[%c12, %c0_49, %c0_50] : memref<25x12x12xbf16, #tpu.memory_space<vmem>>, vector<1x12x12xbf16>
    %79 = vector.shape_cast %78 : vector<1x12x12xbf16> to vector<12x12xbf16>
    %80 = vector.extract_strided_slice %16 {offsets = [0, 768], sizes = [12, 64], strides = [1, 1]} : vector<12x1600xbf16> to vector<12x64xbf16>
    %cst_51 = arith.constant dense<0.000000e+00> : vector<12x64xf32>
    %81 = tpu.matmul %79, %80, %cst_51 {dimension_numbers = #tpu.dot_dimension_numbers<[1], [0], [0], [1], [0, 0, 1, 1], [], []>} : vector<12x12xbf16>, vector<12x64xbf16>, vector<12x64xf32> -> vector<12x64xf32>
    %82 = arith.addf %77, %81 : vector<12x64xf32>
    %c13 = arith.constant 13 : index
    %c0_52 = arith.constant 0 : index
    %c0_53 = arith.constant 0 : index
    %83 = vector.load %arg5[%c13, %c0_52, %c0_53] : memref<25x12x12xbf16, #tpu.memory_space<vmem>>, vector<1x12x12xbf16>
    %84 = vector.shape_cast %83 : vector<1x12x12xbf16> to vector<12x12xbf16>
    %85 = vector.extract_strided_slice %16 {offsets = [0, 832], sizes = [12, 64], strides = [1, 1]} : vector<12x1600xbf16> to vector<12x64xbf16>
    %cst_54 = arith.constant dense<0.000000e+00> : vector<12x64xf32>
    %86 = tpu.matmul %84, %85, %cst_54 {dimension_numbers = #tpu.dot_dimension_numbers<[1], [0], [0], [1], [0, 0, 1, 1], [], []>} : vector<12x12xbf16>, vector<12x64xbf16>, vector<12x64xf32> -> vector<12x64xf32>
    %87 = arith.addf %82, %86 : vector<12x64xf32>
    %c14 = arith.constant 14 : index
    %c0_55 = arith.constant 0 : index
    %c0_56 = arith.constant 0 : index
    %88 = vector.load %arg5[%c14, %c0_55, %c0_56] : memref<25x12x12xbf16, #tpu.memory_space<vmem>>, vector<1x12x12xbf16>
    %89 = vector.shape_cast %88 : vector<1x12x12xbf16> to vector<12x12xbf16>
    %90 = vector.extract_strided_slice %16 {offsets = [0, 896], sizes = [12, 64], strides = [1, 1]} : vector<12x1600xbf16> to vector<12x64xbf16>
    %cst_57 = arith.constant dense<0.000000e+00> : vector<12x64xf32>
    %91 = tpu.matmul %89, %90, %cst_57 {dimension_numbers = #tpu.dot_dimension_numbers<[1], [0], [0], [1], [0, 0, 1, 1], [], []>} : vector<12x12xbf16>, vector<12x64xbf16>, vector<12x64xf32> -> vector<12x64xf32>
    %92 = arith.addf %87, %91 : vector<12x64xf32>
    %c15 = arith.constant 15 : index
    %c0_58 = arith.constant 0 : index
    %c0_59 = arith.constant 0 : index
    %93 = vector.load %arg5[%c15, %c0_58, %c0_59] : memref<25x12x12xbf16, #tpu.memory_space<vmem>>, vector<1x12x12xbf16>
    %94 = vector.shape_cast %93 : vector<1x12x12xbf16> to vector<12x12xbf16>
    %95 = vector.extract_strided_slice %16 {offsets = [0, 960], sizes = [12, 64], strides = [1, 1]} : vector<12x1600xbf16> to vector<12x64xbf16>
    %cst_60 = arith.constant dense<0.000000e+00> : vector<12x64xf32>
    %96 = tpu.matmul %94, %95, %cst_60 {dimension_numbers = #tpu.dot_dimension_numbers<[1], [0], [0], [1], [0, 0, 1, 1], [], []>} : vector<12x12xbf16>, vector<12x64xbf16>, vector<12x64xf32> -> vector<12x64xf32>
    %97 = arith.addf %92, %96 : vector<12x64xf32>
    %c16 = arith.constant 16 : index
    %c0_61 = arith.constant 0 : index
    %c0_62 = arith.constant 0 : index
    %98 = vector.load %arg5[%c16, %c0_61, %c0_62] : memref<25x12x12xbf16, #tpu.memory_space<vmem>>, vector<1x12x12xbf16>
    %99 = vector.shape_cast %98 : vector<1x12x12xbf16> to vector<12x12xbf16>
    %100 = vector.extract_strided_slice %16 {offsets = [0, 1024], sizes = [12, 64], strides = [1, 1]} : vector<12x1600xbf16> to vector<12x64xbf16>
    %cst_63 = arith.constant dense<0.000000e+00> : vector<12x64xf32>
    %101 = tpu.matmul %99, %100, %cst_63 {dimension_numbers = #tpu.dot_dimension_numbers<[1], [0], [0], [1], [0, 0, 1, 1], [], []>} : vector<12x12xbf16>, vector<12x64xbf16>, vector<12x64xf32> -> vector<12x64xf32>
    %102 = arith.addf %97, %101 : vector<12x64xf32>
    %c17 = arith.constant 17 : index
    %c0_64 = arith.constant 0 : index
    %c0_65 = arith.constant 0 : index
    %103 = vector.load %arg5[%c17, %c0_64, %c0_65] : memref<25x12x12xbf16, #tpu.memory_space<vmem>>, vector<1x12x12xbf16>
    %104 = vector.shape_cast %103 : vector<1x12x12xbf16> to vector<12x12xbf16>
    %105 = vector.extract_strided_slice %16 {offsets = [0, 1088], sizes = [12, 64], strides = [1, 1]} : vector<12x1600xbf16> to vector<12x64xbf16>
    %cst_66 = arith.constant dense<0.000000e+00> : vector<12x64xf32>
    %106 = tpu.matmul %104, %105, %cst_66 {dimension_numbers = #tpu.dot_dimension_numbers<[1], [0], [0], [1], [0, 0, 1, 1], [], []>} : vector<12x12xbf16>, vector<12x64xbf16>, vector<12x64xf32> -> vector<12x64xf32>
    %107 = arith.addf %102, %106 : vector<12x64xf32>
    %c18 = arith.constant 18 : index
    %c0_67 = arith.constant 0 : index
    %c0_68 = arith.constant 0 : index
    %108 = vector.load %arg5[%c18, %c0_67, %c0_68] : memref<25x12x12xbf16, #tpu.memory_space<vmem>>, vector<1x12x12xbf16>
    %109 = vector.shape_cast %108 : vector<1x12x12xbf16> to vector<12x12xbf16>
    %110 = vector.extract_strided_slice %16 {offsets = [0, 1152], sizes = [12, 64], strides = [1, 1]} : vector<12x1600xbf16> to vector<12x64xbf16>
    %cst_69 = arith.constant dense<0.000000e+00> : vector<12x64xf32>
    %111 = tpu.matmul %109, %110, %cst_69 {dimension_numbers = #tpu.dot_dimension_numbers<[1], [0], [0], [1], [0, 0, 1, 1], [], []>} : vector<12x12xbf16>, vector<12x64xbf16>, vector<12x64xf32> -> vector<12x64xf32>
    %112 = arith.addf %107, %111 : vector<12x64xf32>
    %c19 = arith.constant 19 : index
    %c0_70 = arith.constant 0 : index
    %c0_71 = arith.constant 0 : index
    %113 = vector.load %arg5[%c19, %c0_70, %c0_71] : memref<25x12x12xbf16, #tpu.memory_space<vmem>>, vector<1x12x12xbf16>
    %114 = vector.shape_cast %113 : vector<1x12x12xbf16> to vector<12x12xbf16>
    %115 = vector.extract_strided_slice %16 {offsets = [0, 1216], sizes = [12, 64], strides = [1, 1]} : vector<12x1600xbf16> to vector<12x64xbf16>
    %cst_72 = arith.constant dense<0.000000e+00> : vector<12x64xf32>
    %116 = tpu.matmul %114, %115, %cst_72 {dimension_numbers = #tpu.dot_dimension_numbers<[1], [0], [0], [1], [0, 0, 1, 1], [], []>} : vector<12x12xbf16>, vector<12x64xbf16>, vector<12x64xf32> -> vector<12x64xf32>
    %117 = arith.addf %112, %116 : vector<12x64xf32>
    %c20 = arith.constant 20 : index
    %c0_73 = arith.constant 0 : index
    %c0_74 = arith.constant 0 : index
    %118 = vector.load %arg5[%c20, %c0_73, %c0_74] : memref<25x12x12xbf16, #tpu.memory_space<vmem>>, vector<1x12x12xbf16>
    %119 = vector.shape_cast %118 : vector<1x12x12xbf16> to vector<12x12xbf16>
    %120 = vector.extract_strided_slice %16 {offsets = [0, 1280], sizes = [12, 64], strides = [1, 1]} : vector<12x1600xbf16> to vector<12x64xbf16>
    %cst_75 = arith.constant dense<0.000000e+00> : vector<12x64xf32>
    %121 = tpu.matmul %119, %120, %cst_75 {dimension_numbers = #tpu.dot_dimension_numbers<[1], [0], [0], [1], [0, 0, 1, 1], [], []>} : vector<12x12xbf16>, vector<12x64xbf16>, vector<12x64xf32> -> vector<12x64xf32>
    %122 = arith.addf %117, %121 : vector<12x64xf32>
    %c21 = arith.constant 21 : index
    %c0_76 = arith.constant 0 : index
    %c0_77 = arith.constant 0 : index
    %123 = vector.load %arg5[%c21, %c0_76, %c0_77] : memref<25x12x12xbf16, #tpu.memory_space<vmem>>, vector<1x12x12xbf16>
    %124 = vector.shape_cast %123 : vector<1x12x12xbf16> to vector<12x12xbf16>
    %125 = vector.extract_strided_slice %16 {offsets = [0, 1344], sizes = [12, 64], strides = [1, 1]} : vector<12x1600xbf16> to vector<12x64xbf16>
    %cst_78 = arith.constant dense<0.000000e+00> : vector<12x64xf32>
    %126 = tpu.matmul %124, %125, %cst_78 {dimension_numbers = #tpu.dot_dimension_numbers<[1], [0], [0], [1], [0, 0, 1, 1], [], []>} : vector<12x12xbf16>, vector<12x64xbf16>, vector<12x64xf32> -> vector<12x64xf32>
    %127 = arith.addf %122, %126 : vector<12x64xf32>
    %c22 = arith.constant 22 : index
    %c0_79 = arith.constant 0 : index
    %c0_80 = arith.constant 0 : index
    %128 = vector.load %arg5[%c22, %c0_79, %c0_80] : memref<25x12x12xbf16, #tpu.memory_space<vmem>>, vector<1x12x12xbf16>
    %129 = vector.shape_cast %128 : vector<1x12x12xbf16> to vector<12x12xbf16>
    %130 = vector.extract_strided_slice %16 {offsets = [0, 1408], sizes = [12, 64], strides = [1, 1]} : vector<12x1600xbf16> to vector<12x64xbf16>
    %cst_81 = arith.constant dense<0.000000e+00> : vector<12x64xf32>
    %131 = tpu.matmul %129, %130, %cst_81 {dimension_numbers = #tpu.dot_dimension_numbers<[1], [0], [0], [1], [0, 0, 1, 1], [], []>} : vector<12x12xbf16>, vector<12x64xbf16>, vector<12x64xf32> -> vector<12x64xf32>
    %132 = arith.addf %127, %131 : vector<12x64xf32>
    %c23 = arith.constant 23 : index
    %c0_82 = arith.constant 0 : index
    %c0_83 = arith.constant 0 : index
    %133 = vector.load %arg5[%c23, %c0_82, %c0_83] : memref<25x12x12xbf16, #tpu.memory_space<vmem>>, vector<1x12x12xbf16>
    %134 = vector.shape_cast %133 : vector<1x12x12xbf16> to vector<12x12xbf16>
    %135 = vector.extract_strided_slice %16 {offsets = [0, 1472], sizes = [12, 64], strides = [1, 1]} : vector<12x1600xbf16> to vector<12x64xbf16>
    %cst_84 = arith.constant dense<0.000000e+00> : vector<12x64xf32>
    %136 = tpu.matmul %134, %135, %cst_84 {dimension_numbers = #tpu.dot_dimension_numbers<[1], [0], [0], [1], [0, 0, 1, 1], [], []>} : vector<12x12xbf16>, vector<12x64xbf16>, vector<12x64xf32> -> vector<12x64xf32>
    %137 = arith.addf %132, %136 : vector<12x64xf32>
    %c24 = arith.constant 24 : index
    %c0_85 = arith.constant 0 : index
    %c0_86 = arith.constant 0 : index
    %138 = vector.load %arg5[%c24, %c0_85, %c0_86] : memref<25x12x12xbf16, #tpu.memory_space<vmem>>, vector<1x12x12xbf16>
    %139 = vector.shape_cast %138 : vector<1x12x12xbf16> to vector<12x12xbf16>
    %140 = vector.extract_strided_slice %16 {offsets = [0, 1536], sizes = [12, 64], strides = [1, 1]} : vector<12x1600xbf16> to vector<12x64xbf16>
    %cst_87 = arith.constant dense<0.000000e+00> : vector<12x64xf32>
    %141 = tpu.matmul %139, %140, %cst_87 {dimension_numbers = #tpu.dot_dimension_numbers<[1], [0], [0], [1], [0, 0, 1, 1], [], []>} : vector<12x12xbf16>, vector<12x64xbf16>, vector<12x64xf32> -> vector<12x64xf32>
    %142 = arith.addf %137, %141 : vector<12x64xf32>
    %c0_88 = arith.constant 0 : index
    %c0_89 = arith.constant 0 : index
    %143 = vector.load %arg6[%c0_88, %c0_89] : memref<12x1xf32, #tpu.memory_space<vmem>>, vector<12x1xf32>
    %144 = vector.broadcast %143 : vector<12x1xf32> to vector<12x64xf32>
    %145 = arith.addf %142, %144 : vector<12x64xf32>
    %cst_90 = arith.constant 0.000000e+00 : f32
    %146 = vector.broadcast %cst_90 : f32 to vector<12x64xf32>
    %147 = arith.subf %146, %145 : vector<12x64xf32>
    %148 = math.exp %147 : vector<12x64xf32>
    %cst_91 = arith.constant 1.000000e+00 : f32
    %149 = vector.broadcast %cst_91 : f32 to vector<12x64xf32>
    %150 = arith.addf %149, %148 : vector<12x64xf32>
    %151 = tpu.reciprocal %150 {approx = true} : vector<12x64xf32> -> vector<12x64xf32>
    %152 = arith.truncf %151 : vector<12x64xf32> to vector<12x64xbf16>
    %c0_92 = arith.constant 0 : index
    %c0_93 = arith.constant 0 : index
    %153 = vector.load %arg7[%c0_92, %c0_93] : memref<64x1600xbf16, #tpu.memory_space<vmem>>, vector<64x1600xbf16>
    %cst_94 = arith.constant dense<0.000000e+00> : vector<12x1600xf32>
    %154 = tpu.matmul %152, %153, %cst_94 {dimension_numbers = #tpu.dot_dimension_numbers<[1], [0], [0], [1], [0, 0, 1, 1], [], []>} : vector<12x64xbf16>, vector<64x1600xbf16>, vector<12x1600xf32> -> vector<12x1600xf32>
    %155 = arith.truncf %154 : vector<12x1600xf32> to vector<12x1600xbf16>
    %cst_95 = arith.constant 0.000000e+00 : f32
    %156 = vector.broadcast %cst_95 : f32 to vector<12x64xf32>
    %c0_96 = arith.constant 0 : index
    %c0_97 = arith.constant 0 : index
    %c0_98 = arith.constant 0 : index
    %157 = vector.load %arg8[%c0_96, %c0_97, %c0_98] : memref<25x12x12xbf16, #tpu.memory_space<vmem>>, vector<1x12x12xbf16>
    %158 = vector.shape_cast %157 : vector<1x12x12xbf16> to vector<12x12xbf16>
    %159 = vector.extract_strided_slice %155 {offsets = [0, 0], sizes = [12, 64], strides = [1, 1]} : vector<12x1600xbf16> to vector<12x64xbf16>
    %cst_99 = arith.constant dense<0.000000e+00> : vector<12x64xf32>
    %160 = tpu.matmul %158, %159, %cst_99 {dimension_numbers = #tpu.dot_dimension_numbers<[1], [0], [0], [1], [0, 0, 1, 1], [], []>} : vector<12x12xbf16>, vector<12x64xbf16>, vector<12x64xf32> -> vector<12x64xf32>
    %161 = arith.addf %156, %160 : vector<12x64xf32>
    %c1_100 = arith.constant 1 : index
    %c0_101 = arith.constant 0 : index
    %c0_102 = arith.constant 0 : index
    %162 = vector.load %arg8[%c1_100, %c0_101, %c0_102] : memref<25x12x12xbf16, #tpu.memory_space<vmem>>, vector<1x12x12xbf16>
    %163 = vector.shape_cast %162 : vector<1x12x12xbf16> to vector<12x12xbf16>
    %164 = vector.extract_strided_slice %155 {offsets = [0, 64], sizes = [12, 64], strides = [1, 1]} : vector<12x1600xbf16> to vector<12x64xbf16>
    %cst_103 = arith.constant dense<0.000000e+00> : vector<12x64xf32>
    %165 = tpu.matmul %163, %164, %cst_103 {dimension_numbers = #tpu.dot_dimension_numbers<[1], [0], [0], [1], [0, 0, 1, 1], [], []>} : vector<12x12xbf16>, vector<12x64xbf16>, vector<12x64xf32> -> vector<12x64xf32>
    %166 = arith.addf %161, %165 : vector<12x64xf32>
    %c2_104 = arith.constant 2 : index
    %c0_105 = arith.constant 0 : index
    %c0_106 = arith.constant 0 : index
    %167 = vector.load %arg8[%c2_104, %c0_105, %c0_106] : memref<25x12x12xbf16, #tpu.memory_space<vmem>>, vector<1x12x12xbf16>
    %168 = vector.shape_cast %167 : vector<1x12x12xbf16> to vector<12x12xbf16>
    %169 = vector.extract_strided_slice %155 {offsets = [0, 128], sizes = [12, 64], strides = [1, 1]} : vector<12x1600xbf16> to vector<12x64xbf16>
    %cst_107 = arith.constant dense<0.000000e+00> : vector<12x64xf32>
    %170 = tpu.matmul %168, %169, %cst_107 {dimension_numbers = #tpu.dot_dimension_numbers<[1], [0], [0], [1], [0, 0, 1, 1], [], []>} : vector<12x12xbf16>, vector<12x64xbf16>, vector<12x64xf32> -> vector<12x64xf32>
    %171 = arith.addf %166, %170 : vector<12x64xf32>
    %c3_108 = arith.constant 3 : index
    %c0_109 = arith.constant 0 : index
    %c0_110 = arith.constant 0 : index
    %172 = vector.load %arg8[%c3_108, %c0_109, %c0_110] : memref<25x12x12xbf16, #tpu.memory_space<vmem>>, vector<1x12x12xbf16>
    %173 = vector.shape_cast %172 : vector<1x12x12xbf16> to vector<12x12xbf16>
    %174 = vector.extract_strided_slice %155 {offsets = [0, 192], sizes = [12, 64], strides = [1, 1]} : vector<12x1600xbf16> to vector<12x64xbf16>
    %cst_111 = arith.constant dense<0.000000e+00> : vector<12x64xf32>
    %175 = tpu.matmul %173, %174, %cst_111 {dimension_numbers = #tpu.dot_dimension_numbers<[1], [0], [0], [1], [0, 0, 1, 1], [], []>} : vector<12x12xbf16>, vector<12x64xbf16>, vector<12x64xf32> -> vector<12x64xf32>
    %176 = arith.addf %171, %175 : vector<12x64xf32>
    %c4_112 = arith.constant 4 : index
    %c0_113 = arith.constant 0 : index
    %c0_114 = arith.constant 0 : index
    %177 = vector.load %arg8[%c4_112, %c0_113, %c0_114] : memref<25x12x12xbf16, #tpu.memory_space<vmem>>, vector<1x12x12xbf16>
    %178 = vector.shape_cast %177 : vector<1x12x12xbf16> to vector<12x12xbf16>
    %179 = vector.extract_strided_slice %155 {offsets = [0, 256], sizes = [12, 64], strides = [1, 1]} : vector<12x1600xbf16> to vector<12x64xbf16>
    %cst_115 = arith.constant dense<0.000000e+00> : vector<12x64xf32>
    %180 = tpu.matmul %178, %179, %cst_115 {dimension_numbers = #tpu.dot_dimension_numbers<[1], [0], [0], [1], [0, 0, 1, 1], [], []>} : vector<12x12xbf16>, vector<12x64xbf16>, vector<12x64xf32> -> vector<12x64xf32>
    %181 = arith.addf %176, %180 : vector<12x64xf32>
    %c5_116 = arith.constant 5 : index
    %c0_117 = arith.constant 0 : index
    %c0_118 = arith.constant 0 : index
    %182 = vector.load %arg8[%c5_116, %c0_117, %c0_118] : memref<25x12x12xbf16, #tpu.memory_space<vmem>>, vector<1x12x12xbf16>
    %183 = vector.shape_cast %182 : vector<1x12x12xbf16> to vector<12x12xbf16>
    %184 = vector.extract_strided_slice %155 {offsets = [0, 320], sizes = [12, 64], strides = [1, 1]} : vector<12x1600xbf16> to vector<12x64xbf16>
    %cst_119 = arith.constant dense<0.000000e+00> : vector<12x64xf32>
    %185 = tpu.matmul %183, %184, %cst_119 {dimension_numbers = #tpu.dot_dimension_numbers<[1], [0], [0], [1], [0, 0, 1, 1], [], []>} : vector<12x12xbf16>, vector<12x64xbf16>, vector<12x64xf32> -> vector<12x64xf32>
    %186 = arith.addf %181, %185 : vector<12x64xf32>
    %c6_120 = arith.constant 6 : index
    %c0_121 = arith.constant 0 : index
    %c0_122 = arith.constant 0 : index
    %187 = vector.load %arg8[%c6_120, %c0_121, %c0_122] : memref<25x12x12xbf16, #tpu.memory_space<vmem>>, vector<1x12x12xbf16>
    %188 = vector.shape_cast %187 : vector<1x12x12xbf16> to vector<12x12xbf16>
    %189 = vector.extract_strided_slice %155 {offsets = [0, 384], sizes = [12, 64], strides = [1, 1]} : vector<12x1600xbf16> to vector<12x64xbf16>
    %cst_123 = arith.constant dense<0.000000e+00> : vector<12x64xf32>
    %190 = tpu.matmul %188, %189, %cst_123 {dimension_numbers = #tpu.dot_dimension_numbers<[1], [0], [0], [1], [0, 0, 1, 1], [], []>} : vector<12x12xbf16>, vector<12x64xbf16>, vector<12x64xf32> -> vector<12x64xf32>
    %191 = arith.addf %186, %190 : vector<12x64xf32>
    %c7_124 = arith.constant 7 : index
    %c0_125 = arith.constant 0 : index
    %c0_126 = arith.constant 0 : index
    %192 = vector.load %arg8[%c7_124, %c0_125, %c0_126] : memref<25x12x12xbf16, #tpu.memory_space<vmem>>, vector<1x12x12xbf16>
    %193 = vector.shape_cast %192 : vector<1x12x12xbf16> to vector<12x12xbf16>
    %194 = vector.extract_strided_slice %155 {offsets = [0, 448], sizes = [12, 64], strides = [1, 1]} : vector<12x1600xbf16> to vector<12x64xbf16>
    %cst_127 = arith.constant dense<0.000000e+00> : vector<12x64xf32>
    %195 = tpu.matmul %193, %194, %cst_127 {dimension_numbers = #tpu.dot_dimension_numbers<[1], [0], [0], [1], [0, 0, 1, 1], [], []>} : vector<12x12xbf16>, vector<12x64xbf16>, vector<12x64xf32> -> vector<12x64xf32>
    %196 = arith.addf %191, %195 : vector<12x64xf32>
    %c8_128 = arith.constant 8 : index
    %c0_129 = arith.constant 0 : index
    %c0_130 = arith.constant 0 : index
    %197 = vector.load %arg8[%c8_128, %c0_129, %c0_130] : memref<25x12x12xbf16, #tpu.memory_space<vmem>>, vector<1x12x12xbf16>
    %198 = vector.shape_cast %197 : vector<1x12x12xbf16> to vector<12x12xbf16>
    %199 = vector.extract_strided_slice %155 {offsets = [0, 512], sizes = [12, 64], strides = [1, 1]} : vector<12x1600xbf16> to vector<12x64xbf16>
    %cst_131 = arith.constant dense<0.000000e+00> : vector<12x64xf32>
    %200 = tpu.matmul %198, %199, %cst_131 {dimension_numbers = #tpu.dot_dimension_numbers<[1], [0], [0], [1], [0, 0, 1, 1], [], []>} : vector<12x12xbf16>, vector<12x64xbf16>, vector<12x64xf32> -> vector<12x64xf32>
    %201 = arith.addf %196, %200 : vector<12x64xf32>
    %c9_132 = arith.constant 9 : index
    %c0_133 = arith.constant 0 : index
    %c0_134 = arith.constant 0 : index
    %202 = vector.load %arg8[%c9_132, %c0_133, %c0_134] : memref<25x12x12xbf16, #tpu.memory_space<vmem>>, vector<1x12x12xbf16>
    %203 = vector.shape_cast %202 : vector<1x12x12xbf16> to vector<12x12xbf16>
    %204 = vector.extract_strided_slice %155 {offsets = [0, 576], sizes = [12, 64], strides = [1, 1]} : vector<12x1600xbf16> to vector<12x64xbf16>
    %cst_135 = arith.constant dense<0.000000e+00> : vector<12x64xf32>
    %205 = tpu.matmul %203, %204, %cst_135 {dimension_numbers = #tpu.dot_dimension_numbers<[1], [0], [0], [1], [0, 0, 1, 1], [], []>} : vector<12x12xbf16>, vector<12x64xbf16>, vector<12x64xf32> -> vector<12x64xf32>
    %206 = arith.addf %201, %205 : vector<12x64xf32>
    %c10_136 = arith.constant 10 : index
    %c0_137 = arith.constant 0 : index
    %c0_138 = arith.constant 0 : index
    %207 = vector.load %arg8[%c10_136, %c0_137, %c0_138] : memref<25x12x12xbf16, #tpu.memory_space<vmem>>, vector<1x12x12xbf16>
    %208 = vector.shape_cast %207 : vector<1x12x12xbf16> to vector<12x12xbf16>
    %209 = vector.extract_strided_slice %155 {offsets = [0, 640], sizes = [12, 64], strides = [1, 1]} : vector<12x1600xbf16> to vector<12x64xbf16>
    %cst_139 = arith.constant dense<0.000000e+00> : vector<12x64xf32>
    %210 = tpu.matmul %208, %209, %cst_139 {dimension_numbers = #tpu.dot_dimension_numbers<[1], [0], [0], [1], [0, 0, 1, 1], [], []>} : vector<12x12xbf16>, vector<12x64xbf16>, vector<12x64xf32> -> vector<12x64xf32>
    %211 = arith.addf %206, %210 : vector<12x64xf32>
    %c11_140 = arith.constant 11 : index
    %c0_141 = arith.constant 0 : index
    %c0_142 = arith.constant 0 : index
    %212 = vector.load %arg8[%c11_140, %c0_141, %c0_142] : memref<25x12x12xbf16, #tpu.memory_space<vmem>>, vector<1x12x12xbf16>
    %213 = vector.shape_cast %212 : vector<1x12x12xbf16> to vector<12x12xbf16>
    %214 = vector.extract_strided_slice %155 {offsets = [0, 704], sizes = [12, 64], strides = [1, 1]} : vector<12x1600xbf16> to vector<12x64xbf16>
    %cst_143 = arith.constant dense<0.000000e+00> : vector<12x64xf32>
    %215 = tpu.matmul %213, %214, %cst_143 {dimension_numbers = #tpu.dot_dimension_numbers<[1], [0], [0], [1], [0, 0, 1, 1], [], []>} : vector<12x12xbf16>, vector<12x64xbf16>, vector<12x64xf32> -> vector<12x64xf32>
    %216 = arith.addf %211, %215 : vector<12x64xf32>
    %c12_144 = arith.constant 12 : index
    %c0_145 = arith.constant 0 : index
    %c0_146 = arith.constant 0 : index
    %217 = vector.load %arg8[%c12_144, %c0_145, %c0_146] : memref<25x12x12xbf16, #tpu.memory_space<vmem>>, vector<1x12x12xbf16>
    %218 = vector.shape_cast %217 : vector<1x12x12xbf16> to vector<12x12xbf16>
    %219 = vector.extract_strided_slice %155 {offsets = [0, 768], sizes = [12, 64], strides = [1, 1]} : vector<12x1600xbf16> to vector<12x64xbf16>
    %cst_147 = arith.constant dense<0.000000e+00> : vector<12x64xf32>
    %220 = tpu.matmul %218, %219, %cst_147 {dimension_numbers = #tpu.dot_dimension_numbers<[1], [0], [0], [1], [0, 0, 1, 1], [], []>} : vector<12x12xbf16>, vector<12x64xbf16>, vector<12x64xf32> -> vector<12x64xf32>
    %221 = arith.addf %216, %220 : vector<12x64xf32>
    %c13_148 = arith.constant 13 : index
    %c0_149 = arith.constant 0 : index
    %c0_150 = arith.constant 0 : index
    %222 = vector.load %arg8[%c13_148, %c0_149, %c0_150] : memref<25x12x12xbf16, #tpu.memory_space<vmem>>, vector<1x12x12xbf16>
    %223 = vector.shape_cast %222 : vector<1x12x12xbf16> to vector<12x12xbf16>
    %224 = vector.extract_strided_slice %155 {offsets = [0, 832], sizes = [12, 64], strides = [1, 1]} : vector<12x1600xbf16> to vector<12x64xbf16>
    %cst_151 = arith.constant dense<0.000000e+00> : vector<12x64xf32>
    %225 = tpu.matmul %223, %224, %cst_151 {dimension_numbers = #tpu.dot_dimension_numbers<[1], [0], [0], [1], [0, 0, 1, 1], [], []>} : vector<12x12xbf16>, vector<12x64xbf16>, vector<12x64xf32> -> vector<12x64xf32>
    %226 = arith.addf %221, %225 : vector<12x64xf32>
    %c14_152 = arith.constant 14 : index
    %c0_153 = arith.constant 0 : index
    %c0_154 = arith.constant 0 : index
    %227 = vector.load %arg8[%c14_152, %c0_153, %c0_154] : memref<25x12x12xbf16, #tpu.memory_space<vmem>>, vector<1x12x12xbf16>
    %228 = vector.shape_cast %227 : vector<1x12x12xbf16> to vector<12x12xbf16>
    %229 = vector.extract_strided_slice %155 {offsets = [0, 896], sizes = [12, 64], strides = [1, 1]} : vector<12x1600xbf16> to vector<12x64xbf16>
    %cst_155 = arith.constant dense<0.000000e+00> : vector<12x64xf32>
    %230 = tpu.matmul %228, %229, %cst_155 {dimension_numbers = #tpu.dot_dimension_numbers<[1], [0], [0], [1], [0, 0, 1, 1], [], []>} : vector<12x12xbf16>, vector<12x64xbf16>, vector<12x64xf32> -> vector<12x64xf32>
    %231 = arith.addf %226, %230 : vector<12x64xf32>
    %c15_156 = arith.constant 15 : index
    %c0_157 = arith.constant 0 : index
    %c0_158 = arith.constant 0 : index
    %232 = vector.load %arg8[%c15_156, %c0_157, %c0_158] : memref<25x12x12xbf16, #tpu.memory_space<vmem>>, vector<1x12x12xbf16>
    %233 = vector.shape_cast %232 : vector<1x12x12xbf16> to vector<12x12xbf16>
    %234 = vector.extract_strided_slice %155 {offsets = [0, 960], sizes = [12, 64], strides = [1, 1]} : vector<12x1600xbf16> to vector<12x64xbf16>
    %cst_159 = arith.constant dense<0.000000e+00> : vector<12x64xf32>
    %235 = tpu.matmul %233, %234, %cst_159 {dimension_numbers = #tpu.dot_dimension_numbers<[1], [0], [0], [1], [0, 0, 1, 1], [], []>} : vector<12x12xbf16>, vector<12x64xbf16>, vector<12x64xf32> -> vector<12x64xf32>
    %236 = arith.addf %231, %235 : vector<12x64xf32>
    %c16_160 = arith.constant 16 : index
    %c0_161 = arith.constant 0 : index
    %c0_162 = arith.constant 0 : index
    %237 = vector.load %arg8[%c16_160, %c0_161, %c0_162] : memref<25x12x12xbf16, #tpu.memory_space<vmem>>, vector<1x12x12xbf16>
    %238 = vector.shape_cast %237 : vector<1x12x12xbf16> to vector<12x12xbf16>
    %239 = vector.extract_strided_slice %155 {offsets = [0, 1024], sizes = [12, 64], strides = [1, 1]} : vector<12x1600xbf16> to vector<12x64xbf16>
    %cst_163 = arith.constant dense<0.000000e+00> : vector<12x64xf32>
    %240 = tpu.matmul %238, %239, %cst_163 {dimension_numbers = #tpu.dot_dimension_numbers<[1], [0], [0], [1], [0, 0, 1, 1], [], []>} : vector<12x12xbf16>, vector<12x64xbf16>, vector<12x64xf32> -> vector<12x64xf32>
    %241 = arith.addf %236, %240 : vector<12x64xf32>
    %c17_164 = arith.constant 17 : index
    %c0_165 = arith.constant 0 : index
    %c0_166 = arith.constant 0 : index
    %242 = vector.load %arg8[%c17_164, %c0_165, %c0_166] : memref<25x12x12xbf16, #tpu.memory_space<vmem>>, vector<1x12x12xbf16>
    %243 = vector.shape_cast %242 : vector<1x12x12xbf16> to vector<12x12xbf16>
    %244 = vector.extract_strided_slice %155 {offsets = [0, 1088], sizes = [12, 64], strides = [1, 1]} : vector<12x1600xbf16> to vector<12x64xbf16>
    %cst_167 = arith.constant dense<0.000000e+00> : vector<12x64xf32>
    %245 = tpu.matmul %243, %244, %cst_167 {dimension_numbers = #tpu.dot_dimension_numbers<[1], [0], [0], [1], [0, 0, 1, 1], [], []>} : vector<12x12xbf16>, vector<12x64xbf16>, vector<12x64xf32> -> vector<12x64xf32>
    %246 = arith.addf %241, %245 : vector<12x64xf32>
    %c18_168 = arith.constant 18 : index
    %c0_169 = arith.constant 0 : index
    %c0_170 = arith.constant 0 : index
    %247 = vector.load %arg8[%c18_168, %c0_169, %c0_170] : memref<25x12x12xbf16, #tpu.memory_space<vmem>>, vector<1x12x12xbf16>
    %248 = vector.shape_cast %247 : vector<1x12x12xbf16> to vector<12x12xbf16>
    %249 = vector.extract_strided_slice %155 {offsets = [0, 1152], sizes = [12, 64], strides = [1, 1]} : vector<12x1600xbf16> to vector<12x64xbf16>
    %cst_171 = arith.constant dense<0.000000e+00> : vector<12x64xf32>
    %250 = tpu.matmul %248, %249, %cst_171 {dimension_numbers = #tpu.dot_dimension_numbers<[1], [0], [0], [1], [0, 0, 1, 1], [], []>} : vector<12x12xbf16>, vector<12x64xbf16>, vector<12x64xf32> -> vector<12x64xf32>
    %251 = arith.addf %246, %250 : vector<12x64xf32>
    %c19_172 = arith.constant 19 : index
    %c0_173 = arith.constant 0 : index
    %c0_174 = arith.constant 0 : index
    %252 = vector.load %arg8[%c19_172, %c0_173, %c0_174] : memref<25x12x12xbf16, #tpu.memory_space<vmem>>, vector<1x12x12xbf16>
    %253 = vector.shape_cast %252 : vector<1x12x12xbf16> to vector<12x12xbf16>
    %254 = vector.extract_strided_slice %155 {offsets = [0, 1216], sizes = [12, 64], strides = [1, 1]} : vector<12x1600xbf16> to vector<12x64xbf16>
    %cst_175 = arith.constant dense<0.000000e+00> : vector<12x64xf32>
    %255 = tpu.matmul %253, %254, %cst_175 {dimension_numbers = #tpu.dot_dimension_numbers<[1], [0], [0], [1], [0, 0, 1, 1], [], []>} : vector<12x12xbf16>, vector<12x64xbf16>, vector<12x64xf32> -> vector<12x64xf32>
    %256 = arith.addf %251, %255 : vector<12x64xf32>
    %c20_176 = arith.constant 20 : index
    %c0_177 = arith.constant 0 : index
    %c0_178 = arith.constant 0 : index
    %257 = vector.load %arg8[%c20_176, %c0_177, %c0_178] : memref<25x12x12xbf16, #tpu.memory_space<vmem>>, vector<1x12x12xbf16>
    %258 = vector.shape_cast %257 : vector<1x12x12xbf16> to vector<12x12xbf16>
    %259 = vector.extract_strided_slice %155 {offsets = [0, 1280], sizes = [12, 64], strides = [1, 1]} : vector<12x1600xbf16> to vector<12x64xbf16>
    %cst_179 = arith.constant dense<0.000000e+00> : vector<12x64xf32>
    %260 = tpu.matmul %258, %259, %cst_179 {dimension_numbers = #tpu.dot_dimension_numbers<[1], [0], [0], [1], [0, 0, 1, 1], [], []>} : vector<12x12xbf16>, vector<12x64xbf16>, vector<12x64xf32> -> vector<12x64xf32>
    %261 = arith.addf %256, %260 : vector<12x64xf32>
    %c21_180 = arith.constant 21 : index
    %c0_181 = arith.constant 0 : index
    %c0_182 = arith.constant 0 : index
    %262 = vector.load %arg8[%c21_180, %c0_181, %c0_182] : memref<25x12x12xbf16, #tpu.memory_space<vmem>>, vector<1x12x12xbf16>
    %263 = vector.shape_cast %262 : vector<1x12x12xbf16> to vector<12x12xbf16>
    %264 = vector.extract_strided_slice %155 {offsets = [0, 1344], sizes = [12, 64], strides = [1, 1]} : vector<12x1600xbf16> to vector<12x64xbf16>
    %cst_183 = arith.constant dense<0.000000e+00> : vector<12x64xf32>
    %265 = tpu.matmul %263, %264, %cst_183 {dimension_numbers = #tpu.dot_dimension_numbers<[1], [0], [0], [1], [0, 0, 1, 1], [], []>} : vector<12x12xbf16>, vector<12x64xbf16>, vector<12x64xf32> -> vector<12x64xf32>
    %266 = arith.addf %261, %265 : vector<12x64xf32>
    %c22_184 = arith.constant 22 : index
    %c0_185 = arith.constant 0 : index
    %c0_186 = arith.constant 0 : index
    %267 = vector.load %arg8[%c22_184, %c0_185, %c0_186] : memref<25x12x12xbf16, #tpu.memory_space<vmem>>, vector<1x12x12xbf16>
    %268 = vector.shape_cast %267 : vector<1x12x12xbf16> to vector<12x12xbf16>
    %269 = vector.extract_strided_slice %155 {offsets = [0, 1408], sizes = [12, 64], strides = [1, 1]} : vector<12x1600xbf16> to vector<12x64xbf16>
    %cst_187 = arith.constant dense<0.000000e+00> : vector<12x64xf32>
    %270 = tpu.matmul %268, %269, %cst_187 {dimension_numbers = #tpu.dot_dimension_numbers<[1], [0], [0], [1], [0, 0, 1, 1], [], []>} : vector<12x12xbf16>, vector<12x64xbf16>, vector<12x64xf32> -> vector<12x64xf32>
    %271 = arith.addf %266, %270 : vector<12x64xf32>
    %c23_188 = arith.constant 23 : index
    %c0_189 = arith.constant 0 : index
    %c0_190 = arith.constant 0 : index
    %272 = vector.load %arg8[%c23_188, %c0_189, %c0_190] : memref<25x12x12xbf16, #tpu.memory_space<vmem>>, vector<1x12x12xbf16>
    %273 = vector.shape_cast %272 : vector<1x12x12xbf16> to vector<12x12xbf16>
    %274 = vector.extract_strided_slice %155 {offsets = [0, 1472], sizes = [12, 64], strides = [1, 1]} : vector<12x1600xbf16> to vector<12x64xbf16>
    %cst_191 = arith.constant dense<0.000000e+00> : vector<12x64xf32>
    %275 = tpu.matmul %273, %274, %cst_191 {dimension_numbers = #tpu.dot_dimension_numbers<[1], [0], [0], [1], [0, 0, 1, 1], [], []>} : vector<12x12xbf16>, vector<12x64xbf16>, vector<12x64xf32> -> vector<12x64xf32>
    %276 = arith.addf %271, %275 : vector<12x64xf32>
    %c24_192 = arith.constant 24 : index
    %c0_193 = arith.constant 0 : index
    %c0_194 = arith.constant 0 : index
    %277 = vector.load %arg8[%c24_192, %c0_193, %c0_194] : memref<25x12x12xbf16, #tpu.memory_space<vmem>>, vector<1x12x12xbf16>
    %278 = vector.shape_cast %277 : vector<1x12x12xbf16> to vector<12x12xbf16>
    %279 = vector.extract_strided_slice %155 {offsets = [0, 1536], sizes = [12, 64], strides = [1, 1]} : vector<12x1600xbf16> to vector<12x64xbf16>
    %cst_195 = arith.constant dense<0.000000e+00> : vector<12x64xf32>
    %280 = tpu.matmul %278, %279, %cst_195 {dimension_numbers = #tpu.dot_dimension_numbers<[1], [0], [0], [1], [0, 0, 1, 1], [], []>} : vector<12x12xbf16>, vector<12x64xbf16>, vector<12x64xf32> -> vector<12x64xf32>
    %281 = arith.addf %276, %280 : vector<12x64xf32>
    %c0_196 = arith.constant 0 : index
    %c0_197 = arith.constant 0 : index
    %282 = vector.load %arg9[%c0_196, %c0_197] : memref<12x1xf32, #tpu.memory_space<vmem>>, vector<12x1xf32>
    %283 = vector.broadcast %282 : vector<12x1xf32> to vector<12x64xf32>
    %284 = arith.addf %281, %283 : vector<12x64xf32>
    %cst_198 = arith.constant 0.000000e+00 : f32
    %285 = vector.broadcast %cst_198 : f32 to vector<12x64xf32>
    %286 = arith.subf %285, %284 : vector<12x64xf32>
    %287 = math.exp %286 : vector<12x64xf32>
    %cst_199 = arith.constant 1.000000e+00 : f32
    %288 = vector.broadcast %cst_199 : f32 to vector<12x64xf32>
    %289 = arith.addf %288, %287 : vector<12x64xf32>
    %290 = tpu.reciprocal %289 {approx = true} : vector<12x64xf32> -> vector<12x64xf32>
    %291 = arith.truncf %290 : vector<12x64xf32> to vector<12x64xbf16>
    %c0_200 = arith.constant 0 : index
    %c0_201 = arith.constant 0 : index
    %292 = vector.load %arg11[%c0_200, %c0_201] : memref<1x10xf32, #tpu.memory_space<vmem>>, vector<1x10xf32>
    %293 = vector.extract_strided_slice %291 {offsets = [0, 0], sizes = [1, 64], strides = [1, 1]} : vector<12x64xbf16> to vector<1x64xbf16>
    %c0_202 = arith.constant 0 : index
    %c0_203 = arith.constant 0 : index
    %c0_204 = arith.constant 0 : index
    %294 = vector.load %arg10[%c0_202, %c0_203, %c0_204] : memref<12x64x10xbf16, #tpu.memory_space<vmem>>, vector<1x64x10xbf16>
    %295 = vector.shape_cast %294 : vector<1x64x10xbf16> to vector<64x10xbf16>
    %cst_205 = arith.constant dense<0.000000e+00> : vector<1x10xf32>
    %296 = tpu.matmul %293, %295, %cst_205 {dimension_numbers = #tpu.dot_dimension_numbers<[1], [0], [0], [1], [0, 0, 1, 1], [], []>} : vector<1x64xbf16>, vector<64x10xbf16>, vector<1x10xf32> -> vector<1x10xf32>
    %297 = arith.addf %292, %296 : vector<1x10xf32>
    %298 = vector.extract_strided_slice %291 {offsets = [1, 0], sizes = [1, 64], strides = [1, 1]} : vector<12x64xbf16> to vector<1x64xbf16>
    %c1_206 = arith.constant 1 : index
    %c0_207 = arith.constant 0 : index
    %c0_208 = arith.constant 0 : index
    %299 = vector.load %arg10[%c1_206, %c0_207, %c0_208] : memref<12x64x10xbf16, #tpu.memory_space<vmem>>, vector<1x64x10xbf16>
    %300 = vector.shape_cast %299 : vector<1x64x10xbf16> to vector<64x10xbf16>
    %cst_209 = arith.constant dense<0.000000e+00> : vector<1x10xf32>
    %301 = tpu.matmul %298, %300, %cst_209 {dimension_numbers = #tpu.dot_dimension_numbers<[1], [0], [0], [1], [0, 0, 1, 1], [], []>} : vector<1x64xbf16>, vector<64x10xbf16>, vector<1x10xf32> -> vector<1x10xf32>
    %302 = arith.addf %297, %301 : vector<1x10xf32>
    %303 = vector.extract_strided_slice %291 {offsets = [2, 0], sizes = [1, 64], strides = [1, 1]} : vector<12x64xbf16> to vector<1x64xbf16>
    %c2_210 = arith.constant 2 : index
    %c0_211 = arith.constant 0 : index
    %c0_212 = arith.constant 0 : index
    %304 = vector.load %arg10[%c2_210, %c0_211, %c0_212] : memref<12x64x10xbf16, #tpu.memory_space<vmem>>, vector<1x64x10xbf16>
    %305 = vector.shape_cast %304 : vector<1x64x10xbf16> to vector<64x10xbf16>
    %cst_213 = arith.constant dense<0.000000e+00> : vector<1x10xf32>
    %306 = tpu.matmul %303, %305, %cst_213 {dimension_numbers = #tpu.dot_dimension_numbers<[1], [0], [0], [1], [0, 0, 1, 1], [], []>} : vector<1x64xbf16>, vector<64x10xbf16>, vector<1x10xf32> -> vector<1x10xf32>
    %307 = arith.addf %302, %306 : vector<1x10xf32>
    %308 = vector.extract_strided_slice %291 {offsets = [3, 0], sizes = [1, 64], strides = [1, 1]} : vector<12x64xbf16> to vector<1x64xbf16>
    %c3_214 = arith.constant 3 : index
    %c0_215 = arith.constant 0 : index
    %c0_216 = arith.constant 0 : index
    %309 = vector.load %arg10[%c3_214, %c0_215, %c0_216] : memref<12x64x10xbf16, #tpu.memory_space<vmem>>, vector<1x64x10xbf16>
    %310 = vector.shape_cast %309 : vector<1x64x10xbf16> to vector<64x10xbf16>
    %cst_217 = arith.constant dense<0.000000e+00> : vector<1x10xf32>
    %311 = tpu.matmul %308, %310, %cst_217 {dimension_numbers = #tpu.dot_dimension_numbers<[1], [0], [0], [1], [0, 0, 1, 1], [], []>} : vector<1x64xbf16>, vector<64x10xbf16>, vector<1x10xf32> -> vector<1x10xf32>
    %312 = arith.addf %307, %311 : vector<1x10xf32>
    %313 = vector.extract_strided_slice %291 {offsets = [4, 0], sizes = [1, 64], strides = [1, 1]} : vector<12x64xbf16> to vector<1x64xbf16>
    %c4_218 = arith.constant 4 : index
    %c0_219 = arith.constant 0 : index
    %c0_220 = arith.constant 0 : index
    %314 = vector.load %arg10[%c4_218, %c0_219, %c0_220] : memref<12x64x10xbf16, #tpu.memory_space<vmem>>, vector<1x64x10xbf16>
    %315 = vector.shape_cast %314 : vector<1x64x10xbf16> to vector<64x10xbf16>
    %cst_221 = arith.constant dense<0.000000e+00> : vector<1x10xf32>
    %316 = tpu.matmul %313, %315, %cst_221 {dimension_numbers = #tpu.dot_dimension_numbers<[1], [0], [0], [1], [0, 0, 1, 1], [], []>} : vector<1x64xbf16>, vector<64x10xbf16>, vector<1x10xf32> -> vector<1x10xf32>
    %317 = arith.addf %312, %316 : vector<1x10xf32>
    %318 = vector.extract_strided_slice %291 {offsets = [5, 0], sizes = [1, 64], strides = [1, 1]} : vector<12x64xbf16> to vector<1x64xbf16>
    %c5_222 = arith.constant 5 : index
    %c0_223 = arith.constant 0 : index
    %c0_224 = arith.constant 0 : index
    %319 = vector.load %arg10[%c5_222, %c0_223, %c0_224] : memref<12x64x10xbf16, #tpu.memory_space<vmem>>, vector<1x64x10xbf16>
    %320 = vector.shape_cast %319 : vector<1x64x10xbf16> to vector<64x10xbf16>
    %cst_225 = arith.constant dense<0.000000e+00> : vector<1x10xf32>
    %321 = tpu.matmul %318, %320, %cst_225 {dimension_numbers = #tpu.dot_dimension_numbers<[1], [0], [0], [1], [0, 0, 1, 1], [], []>} : vector<1x64xbf16>, vector<64x10xbf16>, vector<1x10xf32> -> vector<1x10xf32>
    %322 = arith.addf %317, %321 : vector<1x10xf32>
    %323 = vector.extract_strided_slice %291 {offsets = [6, 0], sizes = [1, 64], strides = [1, 1]} : vector<12x64xbf16> to vector<1x64xbf16>
    %c6_226 = arith.constant 6 : index
    %c0_227 = arith.constant 0 : index
    %c0_228 = arith.constant 0 : index
    %324 = vector.load %arg10[%c6_226, %c0_227, %c0_228] : memref<12x64x10xbf16, #tpu.memory_space<vmem>>, vector<1x64x10xbf16>
    %325 = vector.shape_cast %324 : vector<1x64x10xbf16> to vector<64x10xbf16>
    %cst_229 = arith.constant dense<0.000000e+00> : vector<1x10xf32>
    %326 = tpu.matmul %323, %325, %cst_229 {dimension_numbers = #tpu.dot_dimension_numbers<[1], [0], [0], [1], [0, 0, 1, 1], [], []>} : vector<1x64xbf16>, vector<64x10xbf16>, vector<1x10xf32> -> vector<1x10xf32>
    %327 = arith.addf %322, %326 : vector<1x10xf32>
    %328 = vector.extract_strided_slice %291 {offsets = [7, 0], sizes = [1, 64], strides = [1, 1]} : vector<12x64xbf16> to vector<1x64xbf16>
    %c7_230 = arith.constant 7 : index
    %c0_231 = arith.constant 0 : index
    %c0_232 = arith.constant 0 : index
    %329 = vector.load %arg10[%c7_230, %c0_231, %c0_232] : memref<12x64x10xbf16, #tpu.memory_space<vmem>>, vector<1x64x10xbf16>
    %330 = vector.shape_cast %329 : vector<1x64x10xbf16> to vector<64x10xbf16>
    %cst_233 = arith.constant dense<0.000000e+00> : vector<1x10xf32>
    %331 = tpu.matmul %328, %330, %cst_233 {dimension_numbers = #tpu.dot_dimension_numbers<[1], [0], [0], [1], [0, 0, 1, 1], [], []>} : vector<1x64xbf16>, vector<64x10xbf16>, vector<1x10xf32> -> vector<1x10xf32>
    %332 = arith.addf %327, %331 : vector<1x10xf32>
    %333 = vector.extract_strided_slice %291 {offsets = [8, 0], sizes = [1, 64], strides = [1, 1]} : vector<12x64xbf16> to vector<1x64xbf16>
    %c8_234 = arith.constant 8 : index
    %c0_235 = arith.constant 0 : index
    %c0_236 = arith.constant 0 : index
    %334 = vector.load %arg10[%c8_234, %c0_235, %c0_236] : memref<12x64x10xbf16, #tpu.memory_space<vmem>>, vector<1x64x10xbf16>
    %335 = vector.shape_cast %334 : vector<1x64x10xbf16> to vector<64x10xbf16>
    %cst_237 = arith.constant dense<0.000000e+00> : vector<1x10xf32>
    %336 = tpu.matmul %333, %335, %cst_237 {dimension_numbers = #tpu.dot_dimension_numbers<[1], [0], [0], [1], [0, 0, 1, 1], [], []>} : vector<1x64xbf16>, vector<64x10xbf16>, vector<1x10xf32> -> vector<1x10xf32>
    %337 = arith.addf %332, %336 : vector<1x10xf32>
    %338 = vector.extract_strided_slice %291 {offsets = [9, 0], sizes = [1, 64], strides = [1, 1]} : vector<12x64xbf16> to vector<1x64xbf16>
    %c9_238 = arith.constant 9 : index
    %c0_239 = arith.constant 0 : index
    %c0_240 = arith.constant 0 : index
    %339 = vector.load %arg10[%c9_238, %c0_239, %c0_240] : memref<12x64x10xbf16, #tpu.memory_space<vmem>>, vector<1x64x10xbf16>
    %340 = vector.shape_cast %339 : vector<1x64x10xbf16> to vector<64x10xbf16>
    %cst_241 = arith.constant dense<0.000000e+00> : vector<1x10xf32>
    %341 = tpu.matmul %338, %340, %cst_241 {dimension_numbers = #tpu.dot_dimension_numbers<[1], [0], [0], [1], [0, 0, 1, 1], [], []>} : vector<1x64xbf16>, vector<64x10xbf16>, vector<1x10xf32> -> vector<1x10xf32>
    %342 = arith.addf %337, %341 : vector<1x10xf32>
    %343 = vector.extract_strided_slice %291 {offsets = [10, 0], sizes = [1, 64], strides = [1, 1]} : vector<12x64xbf16> to vector<1x64xbf16>
    %c10_242 = arith.constant 10 : index
    %c0_243 = arith.constant 0 : index
    %c0_244 = arith.constant 0 : index
    %344 = vector.load %arg10[%c10_242, %c0_243, %c0_244] : memref<12x64x10xbf16, #tpu.memory_space<vmem>>, vector<1x64x10xbf16>
    %345 = vector.shape_cast %344 : vector<1x64x10xbf16> to vector<64x10xbf16>
    %cst_245 = arith.constant dense<0.000000e+00> : vector<1x10xf32>
    %346 = tpu.matmul %343, %345, %cst_245 {dimension_numbers = #tpu.dot_dimension_numbers<[1], [0], [0], [1], [0, 0, 1, 1], [], []>} : vector<1x64xbf16>, vector<64x10xbf16>, vector<1x10xf32> -> vector<1x10xf32>
    %347 = arith.addf %342, %346 : vector<1x10xf32>
    %348 = vector.extract_strided_slice %291 {offsets = [11, 0], sizes = [1, 64], strides = [1, 1]} : vector<12x64xbf16> to vector<1x64xbf16>
    %c11_246 = arith.constant 11 : index
    %c0_247 = arith.constant 0 : index
    %c0_248 = arith.constant 0 : index
    %349 = vector.load %arg10[%c11_246, %c0_247, %c0_248] : memref<12x64x10xbf16, #tpu.memory_space<vmem>>, vector<1x64x10xbf16>
    %350 = vector.shape_cast %349 : vector<1x64x10xbf16> to vector<64x10xbf16>
    %cst_249 = arith.constant dense<0.000000e+00> : vector<1x10xf32>
    %351 = tpu.matmul %348, %350, %cst_249 {dimension_numbers = #tpu.dot_dimension_numbers<[1], [0], [0], [1], [0, 0, 1, 1], [], []>} : vector<1x64xbf16>, vector<64x10xbf16>, vector<1x10xf32> -> vector<1x10xf32>
    %352 = arith.addf %347, %351 : vector<1x10xf32>
    %c0_250 = arith.constant 0 : index
    %c0_251 = arith.constant 0 : index
    %c0_252 = arith.constant 0 : index
    %353 = vector.load %arg12[%c0_250, %c0_251, %c0_252] : memref<1x1x10xf32, #tpu.memory_space<vmem>>, vector<1x1x10xf32>
    %354 = vector.shape_cast %353 : vector<1x1x10xf32> to vector<1x10xf32>
    %355 = vector.shape_cast %352 : vector<1x10xf32> to vector<1x1x10xf32>
    tpu.vector_store %arg12[%c0_250, %c0_251, %c0_252], %355 {strides = array<i32>} : memref<1x1x10xf32, #tpu.memory_space<vmem>>, vector<1x1x10xf32>,
    return
  }
  func.func @transform_0(%arg0: i32) -> (i32, i32, i32) {
    %c0_i32 = arith.constant 0 : i32
    %c0_i32_0 = arith.constant 0 : i32
    %c0_i32_1 = arith.constant 0 : i32
    return %arg0, %c0_i32, %c0_i32_0 : i32, i32, i32
  }
  func.func @transform_1(%arg0: i32) -> (i32, i32) {
    %c0_i32 = arith.constant 0 : i32
    %c0_i32_0 = arith.constant 0 : i32
    %c0_i32_1 = arith.constant 0 : i32
    return %c0_i32, %c0_i32_0 : i32, i32
  }
  func.func @transform_2(%arg0: i32) -> (i32, i32) {
    %c0_i32 = arith.constant 0 : i32
    %c0_i32_0 = arith.constant 0 : i32
    %c0_i32_1 = arith.constant 0 : i32
    return %c0_i32, %c0_i32_0 : i32, i32
  }
  func.func @transform_3(%arg0: i32) -> (i32, i32) {
    %c0_i32 = arith.constant 0 : i32
    %c0_i32_0 = arith.constant 0 : i32
    %c0_i32_1 = arith.constant 0 : i32
    return %c0_i32, %c0_i32_0 : i32, i32
  }
  func.func @transform_4(%arg0: i32) -> (i32, i32, i32) {
    %c0_i32 = arith.constant 0 : i32
    %c0_i32_0 = arith.constant 0 : i32
    %c0_i32_1 = arith.constant 0 : i32
    %c0_i32_2 = arith.constant 0 : i32
    return %c0_i32, %c0_i32_0, %c0_i32_1 : i32, i32, i32
  }
  func.func @transform_5(%arg0: i32) -> (i32, i32) {
    %c0_i32 = arith.constant 0 : i32
    %c0_i32_0 = arith.constant 0 : i32
    %c0_i32_1 = arith.constant 0 : i32
    return %c0_i32, %c0_i32_0 : i32, i32
  }
  func.func @transform_6(%arg0: i32) -> (i32, i32) {
    %c0_i32 = arith.constant 0 : i32
    %c0_i32_0 = arith.constant 0 : i32
    %c0_i32_1 = arith.constant 0 : i32
    return %c0_i32, %c0_i32_0 : i32, i32
  }
  func.func @transform_7(%arg0: i32) -> (i32, i32, i32) {
    %c0_i32 = arith.constant 0 : i32
    %c0_i32_0 = arith.constant 0 : i32
    %c0_i32_1 = arith.constant 0 : i32
    %c0_i32_2 = arith.constant 0 : i32
    return %c0_i32, %c0_i32_0, %c0_i32_1 : i32, i32, i32
  }
  func.func @transform_8(%arg0: i32) -> (i32, i32) {
    %c0_i32 = arith.constant 0 : i32
    %c0_i32_0 = arith.constant 0 : i32
    %c0_i32_1 = arith.constant 0 : i32
    return %c0_i32, %c0_i32_0 : i32, i32
  }
  func.func @transform_9(%arg0: i32) -> (i32, i32, i32) {
    %c0_i32 = arith.constant 0 : i32
    %c0_i32_0 = arith.constant 0 : i32
    %c0_i32_1 = arith.constant 0 : i32
    %c0_i32_2 = arith.constant 0 : i32
    return %c0_i32, %c0_i32_0, %c0_i32_1 : i32, i32, i32
  }
  func.func @transform_10(%arg0: i32) -> (i32, i32) {
    %c0_i32 = arith.constant 0 : i32
    %c0_i32_0 = arith.constant 0 : i32
    %c0_i32_1 = arith.constant 0 : i32
    return %c0_i32, %c0_i32_0 : i32, i32
  }
  func.func @transform_11(%arg0: i32) -> (i32, i32, i32) {
    %c0_i32 = arith.constant 0 : i32
    %c0_i32_0 = arith.constant 0 : i32
    %c0_i32_1 = arith.constant 0 : i32
    return %arg0, %c0_i32, %c0_i32_0 : i32, i32, i32
  }
}

</mosaic_0001>

<llo_original>
// kernel: lenet_forward.1
$region0: #{lenet_forward.1}
  #allocation0 [shape = 'u32[]', space=smem, size = 0x4, offset = 0x4, fixed_abs, tag = 'smem constant byte address 0x4 - core index']
  #allocation1 [shape = 'u32[144,128]{1,0:T(1,128)}', space=vmem, size = 0x12000, scoped, tag = 'internal scratch']
  %s0 = inlined_call_operand.vmem [shape: bf16[2,75,256], index: 0, kind: input, shape index: {}]
  %s1 = inlined_call_operand.vmem [shape: bf16[12,75], index: 1, kind: input, shape index: {}]
  %s2 = inlined_call_operand.vmem [shape: f32[12,1], index: 2, kind: input, shape index: {}]
  %s3 = inlined_call_operand.vmem [shape: bf16[256,1600], index: 3, kind: input, shape index: {}]
  %s4 = inlined_call_operand.vmem [shape: bf16[25,12,12], index: 4, kind: input, shape index: {}]
  %s5 = inlined_call_operand.vmem [shape: f32[12,1], index: 5, kind: input, shape index: {}]
  %s6 = inlined_call_operand.vmem [shape: bf16[64,1600], index: 6, kind: input, shape index: {}]
  %s7 = inlined_call_operand.vmem [shape: bf16[25,12,12], index: 7, kind: input, shape index: {}]
  %s8 = inlined_call_operand.vmem [shape: f32[12,1], index: 8, kind: input, shape index: {}]
  %s9 = inlined_call_operand.vmem [shape: bf16[12,64,10], index: 9, kind: input, shape index: {}]
  %s10 = inlined_call_operand.vmem [shape: f32[1,10], index: 10, kind: input, shape index: {}]
  %s11 = inlined_call_operand.hbm [shape: f32[2,1,10], index: 11, kind: output, shape index: {}]
  %s12 = sld [smem:[#allocation0]]
  $region77: #{lenet_forward.1} parent=0
    _
  %s14 = ssub.s32 1, %s12
  %s15 = scalar_select 0, %s14, %s12
  $region1: #{lenet_forward.1} parent=0
    #allocation2 [shape = 'u8[1024]{0}', space=vmem, size = 0x400, scoped, tag = 'output window, operand 0']
    #allocation3 [shape = 's32[2]{0}', space=sflag, size = 0x8, scoped, tag = 'scoped memory for lenet_forward.1']
    %16 = vsyncpa [#allocation3], 0
    %s17 = scalar_lea.sflag [#allocation3], 1
    %18 = vsyncpa %s17, 0
    loop: start=0, step=1, limit=4
    $region2: #{lenet_forward.1} parent=1 // loop_pre_header
      _
    $region3: #{lenet_forward.1} parent=1 // loop_header
      %s20 = sphi 0, %s24
      %p21 = scmp.ge.s32.totalorder %s20, 4
      %s30 = sphi 0, %s32
      %s33 = sphi 0, %s30
      %s34 = sphi 0, %s33
      %s50 = sphi 0, %s34
      %s54 = sphi 0, %s54
      %s56 = sphi 0, %s54
      %s57 = sphi 0, %s56
      %s71 = sphi 0, %s57
      %s75 = sphi 0, %s75
      %s77 = sphi 0, %s75
      %s78 = sphi 0, %s77
      %s92 = sphi 0, %s78
      %s96 = sphi 0, %s96
      %s98 = sphi 0, %s96
      %s99 = sphi 0, %s98
      %s113 = sphi 0, %s99
      %s117 = sphi 0, %s117
      %s119 = sphi 0, %s117
      %s120 = sphi 0, %s119
      %s134 = sphi 0, %s120
      %s138 = sphi 0, %s138
      %s140 = sphi 0, %s138
      %s141 = sphi 0, %s140
      %s155 = sphi 0, %s141
      %s159 = sphi 0, %s159
      %s161 = sphi 0, %s159
      %s162 = sphi 0, %s161
      %s176 = sphi 0, %s162
      %s180 = sphi 0, %s180
      %s182 = sphi 0, %s180
      %s183 = sphi 0, %s182
      %s197 = sphi 0, %s183
      %s201 = sphi 0, %s201
      %s203 = sphi 0, %s201
      %s204 = sphi 0, %s203
      %s218 = sphi 0, %s204
      %s222 = sphi 0, %s222
      %s224 = sphi 0, %s222
      %s225 = sphi 0, %s224
      %s239 = sphi 0, %s225
      %s243 = sphi 0, %s243
      %s245 = sphi 0, %s243
      %s246 = sphi 0, %s245
      %s260 = sphi 0, %s246
      %s266 = sphi 0, %s268
      %s269 = sphi 0, %s266
      %s270 = sphi 0, %s269
      %s286 = sphi 0, %s270
    $region4: #{lenet_forward.1} parent=1 // loop_header_branch
      %23 = sbr.rel (%p21) target = $region8
    $region5: #{lenet_forward.1} parent=1 // loop_body
      %s25 = ssub.s32 %s20, 1
      %s26 = ssub.s32 %s20, 2
      %s27 = sadd.s32 %s20, 1
      %s28 = ssub.s32 %s20, %s27
      %p29 = scmp.eq.s32.totalorder %s28, 0
      %s31 = sadd.s32 %s30, 1
      %s32 = scalar_select %p29, %s30, %s31
      %p35 = pneg %p29
      %p36 = scmp.eq.s32.totalorder %s20, 1
      %p37 = por %p35, %p36
      %p38 = scmp.ne.s32.totalorder %s30, %s33
      %p39 = scmp.eq.s32.totalorder %s20, 0
      %p40 = por %p38, %p39
      %p41 = scmp.ne.s32.totalorder %s30, %s33
      %p42 = scmp.eq.s32.totalorder %s25, 1
      %p43 = por %p41, %p42
      %p44 = scmp.ne.s32.totalorder %s33, %s34
      %p45 = scmp.eq.s32.totalorder %s25, 0
      %p46 = por %p44, %p45
      %p47 = scmp.ne.s32.totalorder %s33, %s34
      %p48 = scmp.eq.s32.totalorder %s26, 1
      %p49 = por %p47, %p48
      %p51 = scmp.ne.s32.totalorder %s34, %s50
      %p52 = scmp.eq.s32.totalorder %s26, 0
      %p53 = por %p51, %p52
      %s55 = sadd.s32 %s54, 1
      %p58 = scmp.eq.s32.totalorder %s20, 1
      %p59 = scmp.ne.s32.totalorder %s54, %s56
      %p60 = scmp.eq.s32.totalorder %s20, 0
      %p61 = por %p59, %p60
      %p62 = scmp.ne.s32.totalorder %s54, %s56
      %p63 = scmp.eq.s32.totalorder %s25, 1
      %p64 = por %p62, %p63
      %p65 = scmp.ne.s32.totalorder %s56, %s57
      %p66 = scmp.eq.s32.totalorder %s25, 0
      %p67 = por %p65, %p66
      %p68 = scmp.ne.s32.totalorder %s56, %s57
      %p69 = scmp.eq.s32.totalorder %s26, 1
      %p70 = por %p68, %p69
      %p72 = scmp.ne.s32.totalorder %s57, %s71
      %p73 = scmp.eq.s32.totalorder %s26, 0
      %p74 = por %p72, %p73
      %s76 = sadd.s32 %s75, 1
      %p79 = scmp.eq.s32.totalorder %s20, 1
      %p80 = scmp.ne.s32.totalorder %s75, %s77
      %p81 = scmp.eq.s32.totalorder %s20, 0
      %p82 = por %p80, %p81
      %p83 = scmp.ne.s32.totalorder %s75, %s77
      %p84 = scmp.eq.s32.totalorder %s25, 1
      %p85 = por %p83, %p84
      %p86 = scmp.ne.s32.totalorder %s77, %s78
      %p87 = scmp.eq.s32.totalorder %s25, 0
      %p88 = por %p86, %p87
      %p89 = scmp.ne.s32.totalorder %s77, %s78
      %p90 = scmp.eq.s32.totalorder %s26, 1
      %p91 = por %p89, %p90
      %p93 = scmp.ne.s32.totalorder %s78, %s92
      %p94 = scmp.eq.s32.totalorder %s26, 0
      %p95 = por %p93, %p94
      %s97 = sadd.s32 %s96, 1
      %p100 = scmp.eq.s32.totalorder %s20, 1
      %p101 = scmp.ne.s32.totalorder %s96, %s98
      %p102 = scmp.eq.s32.totalorder %s20, 0
      %p103 = por %p101, %p102
      %p104 = scmp.ne.s32.totalorder %s96, %s98
      %p105 = scmp.eq.s32.totalorder %s25, 1
      %p106 = por %p104, %p105
      %p107 = scmp.ne.s32.totalorder %s98, %s99
      %p108 = scmp.eq.s32.totalorder %s25, 0
      %p109 = por %p107, %p108
      %p110 = scmp.ne.s32.totalorder %s98, %s99
      %p111 = scmp.eq.s32.totalorder %s26, 1
      %p112 = por %p110, %p111
      %p114 = scmp.ne.s32.totalorder %s99, %s113
      %p115 = scmp.eq.s32.totalorder %s26, 0
      %p116 = por %p114, %p115
      %s118 = sadd.s32 %s117, 1
      %p121 = scmp.eq.s32.totalorder %s20, 1
      %p122 = scmp.ne.s32.totalorder %s117, %s119
      %p123 = scmp.eq.s32.totalorder %s20, 0
      %p124 = por %p122, %p123
      %p125 = scmp.ne.s32.totalorder %s117, %s119
      %p126 = scmp.eq.s32.totalorder %s25, 1
      %p127 = por %p125, %p126
      %p128 = scmp.ne.s32.totalorder %s119, %s120
      %p129 = scmp.eq.s32.totalorder %s25, 0
      %p130 = por %p128, %p129
      %p131 = scmp.ne.s32.totalorder %s119, %s120
      %p132 = scmp.eq.s32.totalorder %s26, 1
      %p133 = por %p131, %p132
      %p135 = scmp.ne.s32.totalorder %s120, %s134
      %p136 = scmp.eq.s32.totalorder %s26, 0
      %p137 = por %p135, %p136
      %s139 = sadd.s32 %s138, 1
      %p142 = scmp.eq.s32.totalorder %s20, 1
      %p143 = scmp.ne.s32.totalorder %s138, %s140
      %p144 = scmp.eq.s32.totalorder %s20, 0
      %p145 = por %p143, %p144
      %p146 = scmp.ne.s32.totalorder %s138, %s140
      %p147 = scmp.eq.s32.totalorder %s25, 1
      %p148 = por %p146, %p147
      %p149 = scmp.ne.s32.totalorder %s140, %s141
      %p150 = scmp.eq.s32.totalorder %s25, 0
      %p151 = por %p149, %p150
      %p152 = scmp.ne.s32.totalorder %s140, %s141
      %p153 = scmp.eq.s32.totalorder %s26, 1
      %p154 = por %p152, %p153
      %p156 = scmp.ne.s32.totalorder %s141, %s155
      %p157 = scmp.eq.s32.totalorder %s26, 0
      %p158 = por %p156, %p157
      %s160 = sadd.s32 %s159, 1
      %p163 = scmp.eq.s32.totalorder %s20, 1
      %p164 = scmp.ne.s32.totalorder %s159, %s161
      %p165 = scmp.eq.s32.totalorder %s20, 0
      %p166 = por %p164, %p165
      %p167 = scmp.ne.s32.totalorder %s159, %s161
      %p168 = scmp.eq.s32.totalorder %s25, 1
      %p169 = por %p167, %p168
      %p170 = scmp.ne.s32.totalorder %s161, %s162
      %p171 = scmp.eq.s32.totalorder %s25, 0
      %p172 = por %p170, %p171
      %p173 = scmp.ne.s32.totalorder %s161, %s162
      %p174 = scmp.eq.s32.totalorder %s26, 1
      %p175 = por %p173, %p174
      %p177 = scmp.ne.s32.totalorder %s162, %s176
      %p178 = scmp.eq.s32.totalorder %s26, 0
      %p179 = por %p177, %p178
      %s181 = sadd.s32 %s180, 1
      %p184 = scmp.eq.s32.totalorder %s20, 1
      %p185 = scmp.ne.s32.totalorder %s180, %s182
      %p186 = scmp.eq.s32.totalorder %s20, 0
      %p187 = por %p185, %p186
      %p188 = scmp.ne.s32.totalorder %s180, %s182
      %p189 = scmp.eq.s32.totalorder %s25, 1
      %p190 = por %p188, %p189
      %p191 = scmp.ne.s32.totalorder %s182, %s183
      %p192 = scmp.eq.s32.totalorder %s25, 0
      %p193 = por %p191, %p192
      %p194 = scmp.ne.s32.totalorder %s182, %s183
      %p195 = scmp.eq.s32.totalorder %s26, 1
      %p196 = por %p194, %p195
      %p198 = scmp.ne.s32.totalorder %s183, %s197
      %p199 = scmp.eq.s32.totalorder %s26, 0
      %p200 = por %p198, %p199
      %s202 = sadd.s32 %s201, 1
      %p205 = scmp.eq.s32.totalorder %s20, 1
      %p206 = scmp.ne.s32.totalorder %s201, %s203
      %p207 = scmp.eq.s32.totalorder %s20, 0
      %p208 = por %p206, %p207
      %p209 = scmp.ne.s32.totalorder %s201, %s203
      %p210 = scmp.eq.s32.totalorder %s25, 1
      %p211 = por %p209, %p210
      %p212 = scmp.ne.s32.totalorder %s203, %s204
      %p213 = scmp.eq.s32.totalorder %s25, 0
      %p214 = por %p212, %p213
      %p215 = scmp.ne.s32.totalorder %s203, %s204
      %p216 = scmp.eq.s32.totalorder %s26, 1
      %p217 = por %p215, %p216
      %p219 = scmp.ne.s32.totalorder %s204, %s218
      %p220 = scmp.eq.s32.totalorder %s26, 0
      %p221 = por %p219, %p220
      %s223 = sadd.s32 %s222, 1
      %p226 = scmp.eq.s32.totalorder %s20, 1
      %p227 = scmp.ne.s32.totalorder %s222, %s224
      %p228 = scmp.eq.s32.totalorder %s20, 0
      %p229 = por %p227, %p228
      %p230 = scmp.ne.s32.totalorder %s222, %s224
      %p231 = scmp.eq.s32.totalorder %s25, 1
      %p232 = por %p230, %p231
      %p233 = scmp.ne.s32.totalorder %s224, %s225
      %p234 = scmp.eq.s32.totalorder %s25, 0
      %p235 = por %p233, %p234
      %p236 = scmp.ne.s32.totalorder %s224, %s225
      %p237 = scmp.eq.s32.totalorder %s26, 1
      %p238 = por %p236, %p237
      %p240 = scmp.ne.s32.totalorder %s225, %s239
      %p241 = scmp.eq.s32.totalorder %s26, 0
      %p242 = por %p240, %p241
      %s244 = sadd.s32 %s243, 1
      %p247 = scmp.eq.s32.totalorder %s20, 1
      %p248 = scmp.ne.s32.totalorder %s243, %s245
      %p249 = scmp.eq.s32.totalorder %s20, 0
      %p250 = por %p248, %p249
      %p251 = scmp.ne.s32.totalorder %s243, %s245
      %p252 = scmp.eq.s32.totalorder %s25, 1
      %p253 = por %p251, %p252
      %p254 = scmp.ne.s32.totalorder %s245, %s246
      %p255 = scmp.eq.s32.totalorder %s25, 0
      %p256 = por %p254, %p255
      %p257 = scmp.ne.s32.totalorder %s245, %s246
      %p258 = scmp.eq.s32.totalorder %s26, 1
      %p259 = por %p257, %p258
      %p261 = scmp.ne.s32.totalorder %s246, %s260
      %p262 = scmp.eq.s32.totalorder %s26, 0
      %p263 = por %p261, %p262
      %s264 = ssub.s32 %s20, %s27
      %p265 = scmp.eq.s32.totalorder %s264, 0
      %s267 = sadd.s32 %s266, 1
      %s268 = scalar_select %p265, %s266, %s267
      %p271 = pneg %p265
      %p272 = scmp.eq.s32.totalorder %s20, 1
      %p273 = por %p271, %p272
      %p274 = scmp.ne.s32.totalorder %s266, %s269
      %p275 = scmp.eq.s32.totalorder %s20, 0
      %p276 = por %p274, %p275
      %p277 = scmp.ne.s32.totalorder %s266, %s269
      %p278 = scmp.eq.s32.totalorder %s25, 1
      %p279 = por %p277, %p278
      %p280 = scmp.ne.s32.totalorder %s269, %s270
      %p281 = scmp.eq.s32.totalorder %s25, 0
      %p282 = por %p280, %p281
      %p283 = scmp.ne.s32.totalorder %s269, %s270
      %p284 = scmp.eq.s32.totalorder %s26, 1
      %p285 = por %p283, %p284
      %p287 = scmp.ne.s32.totalorder %s270, %s286
      %p288 = scmp.eq.s32.totalorder %s26, 0
      %p289 = por %p287, %p288
      %p290 = scmp.le.s32.totalorder 1, %s20
      %p291 = scmp.lt.s32.totalorder %s20, 3
      %p292 = pnand %p290, %p291
      %p293 = pneg %p292
      // Predicated region
      $region9: #{lenet_forward.1} parent=5 // pred_check
        _
      $region10: #{lenet_forward.1} parent=5 // pred_check_branch
        %295 = sbr.rel (%p292) target = $region12
      $region11: #{lenet_forward.1} parent=5 // pred_region
        %s296 = ssub.s32 %s20, 1
        // Predicated region
        $region13: #{lenet_forward.1} parent=11 // pred_check
          %p297 = pneg %p67
        $region14: #{lenet_forward.1} parent=11 // pred_check_branch
          %299 = sbr.rel (%p297) target = $region16
        $region15: #{lenet_forward.1} parent=11 // pred_region
          _
        $region16: #{lenet_forward.1} parent=11 // pred_fallthru
          _
        // Predicated region
        $region17: #{lenet_forward.1} parent=11 // pred_check
          %p300 = pneg %p88
        $region18: #{lenet_forward.1} parent=11 // pred_check_branch
          %302 = sbr.rel (%p300) target = $region20
        $region19: #{lenet_forward.1} parent=11 // pred_region
          _
        $region20: #{lenet_forward.1} parent=11 // pred_fallthru
          _
        // Predicated region
        $region21: #{lenet_forward.1} parent=11 // pred_check
          %p303 = pneg %p109
        $region22: #{lenet_forward.1} parent=11 // pred_check_branch
          %305 = sbr.rel (%p303) target = $region24
        $region23: #{lenet_forward.1} parent=11 // pred_region
          _
        $region24: #{lenet_forward.1} parent=11 // pred_fallthru
          _
        // Predicated region
        $region25: #{lenet_forward.1} parent=11 // pred_check
          %p306 = pneg %p130
        $region26: #{lenet_forward.1} parent=11 // pred_check_branch
          %308 = sbr.rel (%p306) target = $region28
        $region27: #{lenet_forward.1} parent=11 // pred_region
          _
        $region28: #{lenet_forward.1} parent=11 // pred_fallthru
          _
        // Predicated region
        $region29: #{lenet_forward.1} parent=11 // pred_check
          %p309 = pneg %p151
        $region30: #{lenet_forward.1} parent=11 // pred_check_branch
          %311 = sbr.rel (%p309) target = $region32
        $region31: #{lenet_forward.1} parent=11 // pred_region
          _
        $region32: #{lenet_forward.1} parent=11 // pred_fallthru
          _
        // Predicated region
        $region33: #{lenet_forward.1} parent=11 // pred_check
          %p312 = pneg %p172
        $region34: #{lenet_forward.1} parent=11 // pred_check_branch
          %314 = sbr.rel (%p312) target = $region36
        $region35: #{lenet_forward.1} parent=11 // pred_region
          _
        $region36: #{lenet_forward.1} parent=11 // pred_fallthru
          _
        // Predicated region
        $region37: #{lenet_forward.1} parent=11 // pred_check
          %p315 = pneg %p193
        $region38: #{lenet_forward.1} parent=11 // pred_check_branch
          %317 = sbr.rel (%p315) target = $region40
        $region39: #{lenet_forward.1} parent=11 // pred_region
          _
        $region40: #{lenet_forward.1} parent=11 // pred_fallthru
          _
        // Predicated region
        $region41: #{lenet_forward.1} parent=11 // pred_check
          %p318 = pneg %p214
        $region42: #{lenet_forward.1} parent=11 // pred_check_branch
          %320 = sbr.rel (%p318) target = $region44
        $region43: #{lenet_forward.1} parent=11 // pred_region
          _
        $region44: #{lenet_forward.1} parent=11 // pred_fallthru
          _
        // Predicated region
        $region45: #{lenet_forward.1} parent=11 // pred_check
          %p321 = pneg %p235
        $region46: #{lenet_forward.1} parent=11 // pred_check_branch
          %323 = sbr.rel (%p321) target = $region48
        $region47: #{lenet_forward.1} parent=11 // pred_region
          _
        $region48: #{lenet_forward.1} parent=11 // pred_fallthru
          _
        // Predicated region
        $region49: #{lenet_forward.1} parent=11 // pred_check
          %p324 = pneg %p256
        $region50: #{lenet_forward.1} parent=11 // pred_check_branch
          %326 = sbr.rel (%p324) target = $region52
        $region51: #{lenet_forward.1} parent=11 // pred_region
          _
        $region52: #{lenet_forward.1} parent=11 // pred_fallthru
          _
      $region12: #{lenet_forward.1} parent=5 // pred_fallthru
        _
      %p327 = scmp.lt.s32.totalorder %s20, 2
      // Predicated region
      $region53: #{lenet_forward.1} parent=5 // pred_check
        %p328 = pneg %p327
      $region54: #{lenet_forward.1} parent=5 // pred_check_branch
        %330 = sbr.rel (%p328) target = $region56
      $region55: #{lenet_forward.1} parent=5 // pred_region
        // Predicated region
        $region57: #{lenet_forward.1} parent=55 // pred_check
          %p331 = pneg %p40
        $region58: #{lenet_forward.1} parent=55 // pred_check_branch
          %333 = sbr.rel (%p331) target = $region60
        $region59: #{lenet_forward.1} parent=55 // pred_region
          %p334 = scmp.lt.s32.totalorder %s20, 1
          %s335 = scalar_select %p334, %s20, 1
          %s336 = smul.addr %s335, 20
          %s337 = smul.addr %s336, 4
          %s338 = scalar_lea.vmem %s0, %s337
        $region60: #{lenet_forward.1} parent=55 // pred_fallthru
          _
      $region56: #{lenet_forward.1} parent=5 // pred_fallthru
        _
      %p339 = scmp.le.s32.totalorder 1, %s20
      %p340 = scmp.lt.s32.totalorder %s20, 3
      %p341 = pnand %p339, %p340
      %p342 = pneg %p341
      // Predicated region
      $region61: #{lenet_forward.1} parent=5 // pred_check
        _
      $region62: #{lenet_forward.1} parent=5 // pred_check_branch
        %344 = sbr.rel (%p341) target = $region64
      $region63: #{lenet_forward.1} parent=5 // pred_region
        %s345 = ssub.s32 %s20, 1
        %p346 = scmp.lt.s32.totalorder %s25, 1
        %s347 = scalar_select %p346, %s25, 1
        %s348 = smul.addr %s347, 20
        %s349 = smul.addr %s348, 4
        %s350 = scalar_lea.vmem %s0, %s349
        %p351 = pneg %p46
        %p352 = pneg %p43
        %p353 = pneg %p67
        %p354 = pneg %p64
        %p355 = pneg %p88
        %p356 = pneg %p85
        %p357 = pneg %p109
        %p358 = pneg %p106
        %p359 = pneg %p130
        %p360 = pneg %p127
        %p361 = pneg %p151
        %p362 = pneg %p148
        %p363 = pneg %p172
        %p364 = pneg %p169
        %p365 = pneg %p193
        %p366 = pneg %p190
        %p367 = pneg %p214
        %p368 = pneg %p211
        %p369 = pneg %p235
        %p370 = pneg %p232
        %p371 = pneg %p256
        %p372 = pneg %p253
        %p373 = pneg %p282
        %p374 = pneg %p279
        %s375 = sand.u32 %s269, 1
        %s376 = scalar_lea.sflag [#allocation3], %s375
        %s377 = sand.u32 %s269, 1
        %s378 = scalar_lea.vmem [#allocation2], %s377
        %p379 = scmp.lt.s32.totalorder %s25, 1
        %s380 = scalar_select %p379, %s25, 1
        %s381 = smul.addr %s380, 20
        %s382 = smul.addr %s381, 4
        %s383 = scalar_lea.vmem %s0, %s382
        %v385 = vld [vmem:[%s1] sm:$0xf]
        %v386 = vld [vmem:[%s1 + $0x4] sm:$0x3]
        %v387 = vld [vmem:[%s383] sm:$0xff]
        %v388 = vld [vmem:[%s383 + $0x8] sm:$0xff]
        %v389 = vld [vmem:[%s383 + $0x10] sm:$0xff]
        %v390 = vld [vmem:[%s383 + $0x18] sm:$0xff]
        %v391 = vld [vmem:[%s383 + $0x20] sm:$0xff]
        %v392 = vld [vmem:[%s383 + $0x28] sm:$0xff]
        %v393 = vld [vmem:[%s383 + $0x30] sm:$0xff]
        %v394 = vld [vmem:[%s383 + $0x38] sm:$0xff]
        %v395 = vld [vmem:[%s383 + $0x40] sm:$0xff]
        %v396 = vld [vmem:[%s383 + $0x48] sm:$0x33]
        %v397 = vld [vmem:[%s2] sm:$0xff]
        %v398 = vld [vmem:[%s2 + $0x8] sm:$0xf]
        %400 = vset.pattern.permute.xlu0 0
        %401 = vperm.xlu0 %400, %v397
        %v402 = vpop.permute.xlu0 %401
        %405 = vset.pattern.permute.xlu0 0
        %406 = vperm.xlu0 %405, %v398
        %v407 = vpop.permute.xlu0 %406
        %v411 = vunpack.c.l.b16 %v385
        %v412 = vunpack.c.l.b16 %v386
        %v413 = vpack.c.b16 %v412, %v411
        %v424 = vunpack.c.l.b16 %v387
        %v425 = vunpack.c.h.b16 %v387
        %v426 = vunpack.c.l.b16 %v388
        %v427 = vunpack.c.h.b16 %v388
        %v428 = vunpack.c.l.b16 %v389
        %v429 = vunpack.c.h.b16 %v389
        %v430 = vunpack.c.l.b16 %v390
        %v431 = vunpack.c.h.b16 %v390
        %v432 = vunpack.c.l.b16 %v391
        %v433 = vunpack.c.h.b16 %v391
        %v434 = vunpack.c.l.b16 %v392
        %v435 = vunpack.c.h.b16 %v392
        %v436 = vunpack.c.l.b16 %v393
        %v437 = vunpack.c.h.b16 %v393
        %v438 = vunpack.c.l.b16 %v394
        %v439 = vunpack.c.h.b16 %v394
        %v440 = vunpack.c.l.b16 %v395
        %v441 = vunpack.c.h.b16 %v395
        %v442 = vunpack.c.l.b16 %v396
        %v443 = vunpack.c.h.b16 %v396
        %v444 = vpack.c.b16 %v426, %v424
        %v445 = vpack.c.b16 %v427, %v425
        %v446 = vpack.c.b16 %v430, %v428
        %v447 = vpack.c.b16 %v431, %v429
        %v448 = vpack.c.b16 %v434, %v432
        %v449 = vpack.c.b16 %v435, %v433
        %v450 = vpack.c.b16 %v438, %v436
        %v451 = vpack.c.b16 %v439, %v437
        %v452 = vpack.c.b16 %v442, %v440
        %v453 = vpack.c.b16 %v443, %v441
        %vm462 = vcmask 613376
        %v464 = vsel %vm462, %v413, 0
        %vm466 = vcmask 1044480
        %vm467 = vcmask 1045504
        %v468 = vsel %vm466, 4294967295, 65535
        %v469 = vsel %vm467, %v468, 0
        %v471 = vand.u32 %v452, %v469
        %v474 = vand.u32 %v453, %v469
        %476 = vmatprep.subr.bf16.mxu0 %v445
        %477 = vmatpush1.bf16.msra.mxu0 %v444
        %478 = vmatprep.subr.bf16.mxu0 %v447
        %479 = vmatpush1.bf16.msra.mxu0 %v446
        %480 = vmatprep.subr.bf16.mxu0 %v449
        %481 = vmatpush1.bf16.msra.mxu0 %v448
        %482 = vmatprep.subr.bf16.mxu0 %v451
        %483 = vmatpush1.bf16.msra.mxu0 %v450
        %484 = vmatprep.subr.bf16.mxu0 %v474
        %485 = vmatpush1.bf16.msra.mxu0 %v471
        %486 = vmatprep.subr.bf16.mxu0 0
        %487 = vmatpush1.bf16.msra.mxu0 0
        %488 = vmatprep.subr.bf16.mxu0 0
        %489 = vmatpush1.bf16.msra.mxu0 0
        %490 = vmatprep.subr.bf16.mxu0 0
        %491 = vmatpush1.bf16.msra.mxu0 0
        %492 = vmatprep.subr.bf16.mxu0 0
        %493 = vmatpush1.bf16.msra.mxu0 0
        %494 = vmatprep.subr.bf16.mxu0 0
        %495 = vmatpush1.bf16.msra.mxu0 0
        %496 = vmatprep.subr.bf16.mxu0 0
        %497 = vmatpush1.bf16.msra.mxu0 0
        %498 = vmatprep.subr.bf16.mxu0 0
        %499 = vmatpush1.bf16.msra.mxu0 0
        %500 = vmatprep.subr.bf16.mxu0 0
        %501 = vmatpush1.bf16.msra.mxu0 0
        %502 = vmatprep.subr.bf16.mxu0 0
        %503 = vmatpush1.bf16.msra.mxu0 0
        %504 = vmatprep.subr.bf16.mxu0 0
        %505 = vmatpush1.bf16.msra.mxu0 0
        %506 = vmatprep.subr.bf16.mxu0 0
        %507 = vmatpush1.bf16.msra.mxu0 0
        %508 = vmatprep.mubr.bf16.mxu0 0
        %509 = vmatmul.mubr.bf16.gmra.mrb[0].mxu0 %v464
        %v510 = vpop.f32.mrb[0].mxu0
        %v511 = vadd.f32 %v402, %v510
        %v512 = vpop.f32.mrb[0].mxu0
        %v513 = vadd.f32 %v402, %v512
        %v514 = vpop.f32.mrb[0].mxu0
        %v515 = vadd.f32 %v407, %v514
        %v516 = vpop.f32.mrb[0].mxu0
        %v517 = vadd.f32 %v407, %v516
        %518 = vdwg.mxu0
        %v519 = vsub.f32 0.0, %v511
        %v520 = vsub.f32 0.0, %v513
        %v521 = vsub.f32 0.0, %v515
        %v522 = vsub.f32 0.0, %v517
        %v523 = vmul.f32 %v519, 1.442695
        %v524 = vpow.pop %v523
        %v525 = vmul.f32 %v520, 1.442695
        %v526 = vpow.pop %v525
        %v527 = vmul.f32 %v521, 1.442695
        %v528 = vpow.pop %v527
        %v529 = vmul.f32 %v522, 1.442695
        %v530 = vpow.pop %v529
        %v531 = vadd.f32 %v524, 1.0
        %v532 = vadd.f32 %v526, 1.0
        %v533 = vadd.f32 %v528, 1.0
        %v534 = vadd.f32 %v530, 1.0
        %v535 = vrcp.pop %v531
        %v536 = vrcp.pop %v532
        %v537 = vrcp.pop %v533
        %v538 = vrcp.pop %v534
        %v539 = vpack.c.bf16 %v537, %v535
        %v540 = vpack.c.bf16 %v538, %v536
        %v541 = vld [vmem:[%s3] sm:$0xff]
        %v542 = vld [vmem:[%s3 + $0x8] sm:$0xff]
        %v543 = vld [vmem:[%s3 + $0x10] sm:$0xff]
        %v544 = vld [vmem:[%s3 + $0x18] sm:$0xff]
        %v545 = vld [vmem:[%s3 + $0x20] sm:$0xff]
        %v546 = vld [vmem:[%s3 + $0x28] sm:$0xff]
        %v547 = vld [vmem:[%s3 + $0x30] sm:$0xf]
        %v548 = vld [vmem:[%s3 + $0x34] sm:$0xff]
        %v549 = vld [vmem:[%s3 + $0x3c] sm:$0xff]
        %v550 = vld [vmem:[%s3 + $0x44] sm:$0xff]
        %v551 = vld [vmem:[%s3 + $0x4c] sm:$0xff]
        %v552 = vld [vmem:[%s3 + $0x54] sm:$0xff]
        %v553 = vld [vmem:[%s3 + $0x5c] sm:$0xff]
        %v554 = vld [vmem:[%s3 + $0x64] sm:$0xf]
        %v555 = vld [vmem:[%s3 + $0x68] sm:$0xff]
        %v556 = vld [vmem:[%s3 + $0x70] sm:$0xff]
        %v557 = vld [vmem:[%s3 + $0x78] sm:$0xff]
        %v558 = vld [vmem:[%s3 + $0x80] sm:$0xff]
        %v559 = vld [vmem:[%s3 + $0x88] sm:$0xff]
        %v560 = vld [vmem:[%s3 + $0x90] sm:$0xff]
        %v561 = vld [vmem:[%s3 + $0x98] sm:$0xf]
        %v562 = vld [vmem:[%s3 + $0x9c] sm:$0xff]
        %v563 = vld [vmem:[%s3 + $0xa4] sm:$0xff]
        %v564 = vld [vmem:[%s3 + $0xac] sm:$0xff]
        %v565 = vld [vmem:[%s3 + $0xb4] sm:$0xff]
        %v566 = vld [vmem:[%s3 + $0xbc] sm:$0xff]
        %v567 = vld [vmem:[%s3 + $0xc4] sm:$0xff]
        %v568 = vld [vmem:[%s3 + $0xcc] sm:$0xf]
        %v569 = vld [vmem:[%s3 + $0xd0] sm:$0xff]
        %v570 = vld [vmem:[%s3 + $0xd8] sm:$0xff]
        %v571 = vld [vmem:[%s3 + $0xe0] sm:$0xff]
        %v572 = vld [vmem:[%s3 + $0xe8] sm:$0xff]
        %v573 = vld [vmem:[%s3 + $0xf0] sm:$0xff]
        %v574 = vld [vmem:[%s3 + $0xf8] sm:$0xff]
        %v575 = vld [vmem:[%s3 + $0x100] sm:$0xf]
        %v576 = vld [vmem:[%s3 + $0x104] sm:$0xff]
        %v577 = vld [vmem:[%s3 + $0x10c] sm:$0xff]
        %v578 = vld [vmem:[%s3 + $0x114] sm:$0xff]
        %v579 = vld [vmem:[%s3 + $0x11c] sm:$0xff]
        %v580 = vld [vmem:[%s3 + $0x124] sm:$0xff]
        %v581 = vld [vmem:[%s3 + $0x12c] sm:$0xff]
        %v582 = vld [vmem:[%s3 + $0x134] sm:$0xf]
        %v583 = vld [vmem:[%s3 + $0x138] sm:$0xff]
        %v584 = vld [vmem:[%s3 + $0x140] sm:$0xff]
        %v585 = vld [vmem:[%s3 + $0x148] sm:$0xff]
        %v586 = vld [vmem:[%s3 + $0x150] sm:$0xff]
        %v587 = vld [vmem:[%s3 + $0x158] sm:$0xff]
        %v588 = vld [vmem:[%s3 + $0x160] sm:$0xff]
        %v589 = vld [vmem:[%s3 + $0x168] sm:$0xf]
        %v590 = vld [vmem:[%s3 + $0x16c] sm:$0xff]
        %v591 = vld [vmem:[%s3 + $0x174] sm:$0xff]
        %v592 = vld [vmem:[%s3 + $0x17c] sm:$0xff]
        %v593 = vld [vmem:[%s3 + $0x184] sm:$0xff]
        %v594 = vld [vmem:[%s3 + $0x18c] sm:$0xff]
        %v595 = vld [vmem:[%s3 + $0x194] sm:$0xff]
        %v596 = vld [vmem:[%s3 + $0x19c] sm:$0xf]
        %v597 = vld [vmem:[%s3 + $0x1a0] sm:$0xff]
        %v598 = vld [vmem:[%s3 + $0x1a8] sm:$0xff]
        %v599 = vld [vmem:[%s3 + $0x1b0] sm:$0xff]
        %v600 = vld [vmem:[%s3 + $0x1b8] sm:$0xff]
        %v601 = vld [vmem:[%s3 + $0x1c0] sm:$0xff]
        %v602 = vld [vmem:[%s3 + $0x1c8] sm:$0xff]
        %v603 = vld [vmem:[%s3 + $0x1d0] sm:$0xf]
        %v604 = vld [vmem:[%s3 + $0x1d4] sm:$0xff]
        %v605 = vld [vmem:[%s3 + $0x1dc] sm:$0xff]
        %v606 = vld [vmem:[%s3 + $0x1e4] sm:$0xff]
        %v607 = vld [vmem:[%s3 + $0x1ec] sm:$0xff]
        %v608 = vld [vmem:[%s3 + $0x1f4] sm:$0xff]
        %v609 = vld [vmem:[%s3 + $0x1fc] sm:$0xff]
        %v610 = vld [vmem:[%s3 + $0x204] sm:$0xf]
        %v611 = vld [vmem:[%s3 + $0x208] sm:$0xff]
        %v612 = vld [vmem:[%s3 + $0x210] sm:$0xff]
        %v613 = vld [vmem:[%s3 + $0x218] sm:$0xff]
        %v614 = vld [vmem:[%s3 + $0x220] sm:$0xff]
        %v615 = vld [vmem:[%s3 + $0x228] sm:$0xff]
        %v616 = vld [vmem:[%s3 + $0x230] sm:$0xff]
        %v617 = vld [vmem:[%s3 + $0x238] sm:$0xf]
        %v618 = vld [vmem:[%s3 + $0x23c] sm:$0xff]
        %v619 = vld [vmem:[%s3 + $0x244] sm:$0xff]
        %v620 = vld [vmem:[%s3 + $0x24c] sm:$0xff]
        %v621 = vld [vmem:[%s3 + $0x254] sm:$0xff]
        %v622 = vld [vmem:[%s3 + $0x25c] sm:$0xff]
        %v623 = vld [vmem:[%s3 + $0x264] sm:$0xff]
        %v624 = vld [vmem:[%s3 + $0x26c] sm:$0xf]
        %v625 = vld [vmem:[%s3 + $0x270] sm:$0xff]
        %v626 = vld [vmem:[%s3 + $0x278] sm:$0xff]
        %v627 = vld [vmem:[%s3 + $0x280] sm:$0xff]
        %v628 = vld [vmem:[%s3 + $0x288] sm:$0xff]
        %v629 = vld [vmem:[%s3 + $0x290] sm:$0xff]
        %v630 = vld [vmem:[%s3 + $0x298] sm:$0xff]
        %v631 = vld [vmem:[%s3 + $0x2a0] sm:$0xf]
        %v632 = vld [vmem:[%s3 + $0x2a4] sm:$0xff]
        %v633 = vld [vmem:[%s3 + $0x2ac] sm:$0xff]
        %v634 = vld [vmem:[%s3 + $0x2b4] sm:$0xff]
        %v635 = vld [vmem:[%s3 + $0x2bc] sm:$0xff]
        %v636 = vld [vmem:[%s3 + $0x2c4] sm:$0xff]
        %v637 = vld [vmem:[%s3 + $0x2cc] sm:$0xff]
        %v638 = vld [vmem:[%s3 + $0x2d4] sm:$0xf]
        %v639 = vld [vmem:[%s3 + $0x2d8] sm:$0xff]
        %v640 = vld [vmem:[%s3 + $0x2e0] sm:$0xff]
        %v641 = vld [vmem:[%s3 + $0x2e8] sm:$0xff]
        %v642 = vld [vmem:[%s3 + $0x2f0] sm:$0xff]
        %v643 = vld [vmem:[%s3 + $0x2f8] sm:$0xff]
        %v644 = vld [vmem:[%s3 + $0x300] sm:$0xff]
        %v645 = vld [vmem:[%s3 + $0x308] sm:$0xf]
        %v646 = vld [vmem:[%s3 + $0x30c] sm:$0xff]
        %v647 = vld [vmem:[%s3 + $0x314] sm:$0xff]
        %v648 = vld [vmem:[%s3 + $0x31c] sm:$0xff]
        %v649 = vld [vmem:[%s3 + $0x324] sm:$0xff]
        %v650 = vld [vmem:[%s3 + $0x32c] sm:$0xff]
        %v651 = vld [vmem:[%s3 + $0x334] sm:$0xff]
        %v652 = vld [vmem:[%s3 + $0x33c] sm:$0xf]
        %v653 = vld [vmem:[%s3 + $0x340] sm:$0xff]
        %v654 = vld [vmem:[%s3 + $0x348] sm:$0xff]
        %v655 = vld [vmem:[%s3 + $0x350] sm:$0xff]
        %v656 = vld [vmem:[%s3 + $0x358] sm:$0xff]
        %v657 = vld [vmem:[%s3 + $0x360] sm:$0xff]
        %v658 = vld [vmem:[%s3 + $0x368] sm:$0xff]
        %v659 = vld [vmem:[%s3 + $0x370] sm:$0xf]
        %v660 = vld [vmem:[%s3 + $0x374] sm:$0xff]
        %v661 = vld [vmem:[%s3 + $0x37c] sm:$0xff]
        %v662 = vld [vmem:[%s3 + $0x384] sm:$0xff]
        %v663 = vld [vmem:[%s3 + $0x38c] sm:$0xff]
        %v664 = vld [vmem:[%s3 + $0x394] sm:$0xff]
        %v665 = vld [vmem:[%s3 + $0x39c] sm:$0xff]
        %v666 = vld [vmem:[%s3 + $0x3a4] sm:$0xf]
        %v667 = vld [vmem:[%s3 + $0x3a8] sm:$0xff]
        %v668 = vld [vmem:[%s3 + $0x3b0] sm:$0xff]
        %v669 = vld [vmem:[%s3 + $0x3b8] sm:$0xff]
        %v670 = vld [vmem:[%s3 + $0x3c0] sm:$0xff]
        %v671 = vld [vmem:[%s3 + $0x3c8] sm:$0xff]
        %v672 = vld [vmem:[%s3 + $0x3d0] sm:$0xff]
        %v673 = vld [vmem:[%s3 + $0x3d8] sm:$0xf]
        %v674 = vld [vmem:[%s3 + $0x3dc] sm:$0xff]
        %v675 = vld [vmem:[%s3 + $0x3e4] sm:$0xff]
        %v676 = vld [vmem:[%s3 + $0x3ec] sm:$0xff]
        %v677 = vld [vmem:[%s3 + $0x3f4] sm:$0xff]
        %v678 = vld [vmem:[%s3 + $0x3fc] sm:$0xff]
        %v679 = vld [vmem:[%s3 + $0x404] sm:$0xff]
        %v680 = vld [vmem:[%s3 + $0x40c] sm:$0xf]
        %v681 = vld [vmem:[%s3 + $0x410] sm:$0xff]
        %v682 = vld [vmem:[%s3 + $0x418] sm:$0xff]
        %v683 = vld [vmem:[%s3 + $0x420] sm:$0xff]
        %v684 = vld [vmem:[%s3 + $0x428] sm:$0xff]
        %v685 = vld [vmem:[%s3 + $0x430] sm:$0xff]
        %v686 = vld [vmem:[%s3 + $0x438] sm:$0xff]
        %v687 = vld [vmem:[%s3 + $0x440] sm:$0xf]
        %v688 = vld [vmem:[%s3 + $0x444] sm:$0xff]
        %v689 = vld [vmem:[%s3 + $0x44c] sm:$0xff]
        %v690 = vld [vmem:[%s3 + $0x454] sm:$0xff]
        %v691 = vld [vmem:[%s3 + $0x45c] sm:$0xff]
        %v692 = vld [vmem:[%s3 + $0x464] sm:$0xff]
        %v693 = vld [vmem:[%s3 + $0x46c] sm:$0xff]
        %v694 = vld [vmem:[%s3 + $0x474] sm:$0xf]
        %v695 = vld [vmem:[%s3 + $0x478] sm:$0xff]
        %v696 = vld [vmem:[%s3 + $0x480] sm:$0xff]
        %v697 = vld [vmem:[%s3 + $0x488] sm:$0xff]
        %v698 = vld [vmem:[%s3 + $0x490] sm:$0xff]
        %v699 = vld [vmem:[%s3 + $0x498] sm:$0xff]
        %v700 = vld [vmem:[%s3 + $0x4a0] sm:$0xff]
        %v701 = vld [vmem:[%s3 + $0x4a8] sm:$0xf]
        %v702 = vld [vmem:[%s3 + $0x4ac] sm:$0xff]
        %v703 = vld [vmem:[%s3 + $0x4b4] sm:$0xff]
        %v704 = vld [vmem:[%s3 + $0x4bc] sm:$0xff]
        %v705 = vld [vmem:[%s3 + $0x4c4] sm:$0xff]
        %v706 = vld [vmem:[%s3 + $0x4cc] sm:$0xff]
        %v707 = vld [vmem:[%s3 + $0x4d4] sm:$0xff]
        %v708 = vld [vmem:[%s3 + $0x4dc] sm:$0xf]
        %v709 = vld [vmem:[%s3 + $0x4e0] sm:$0xff]
        %v710 = vld [vmem:[%s3 + $0x4e8] sm:$0xff]
        %v711 = vld [vmem:[%s3 + $0x4f0] sm:$0xff]
        %v712 = vld [vmem:[%s3 + $0x4f8] sm:$0xff]
        %v713 = vld [vmem:[%s3 + $0x500] sm:$0xff]
        %v714 = vld [vmem:[%s3 + $0x508] sm:$0xff]
        %v715 = vld [vmem:[%s3 + $0x510] sm:$0xf]
        %v716 = vld [vmem:[%s3 + $0x514] sm:$0xff]
        %v717 = vld [vmem:[%s3 + $0x51c] sm:$0xff]
        %v718 = vld [vmem:[%s3 + $0x524] sm:$0xff]
        %v719 = vld [vmem:[%s3 + $0x52c] sm:$0xff]
        %v720 = vld [vmem:[%s3 + $0x534] sm:$0xff]
        %v721 = vld [vmem:[%s3 + $0x53c] sm:$0xff]
        %v722 = vld [vmem:[%s3 + $0x544] sm:$0xf]
        %v723 = vld [vmem:[%s3 + $0x548] sm:$0xff]
        %v724 = vld [vmem:[%s3 + $0x550] sm:$0xff]
        %v725 = vld [vmem:[%s3 + $0x558] sm:$0xff]
        %v726 = vld [vmem:[%s3 + $0x560] sm:$0xff]
        %v727 = vld [vmem:[%s3 + $0x568] sm:$0xff]
        %v728 = vld [vmem:[%s3 + $0x570] sm:$0xff]
        %v729 = vld [vmem:[%s3 + $0x578] sm:$0xf]
        %v730 = vld [vmem:[%s3 + $0x57c] sm:$0xff]
        %v731 = vld [vmem:[%s3 + $0x584] sm:$0xff]
        %v732 = vld [vmem:[%s3 + $0x58c] sm:$0xff]
        %v733 = vld [vmem:[%s3 + $0x594] sm:$0xff]
        %v734 = vld [vmem:[%s3 + $0x59c] sm:$0xff]
        %v735 = vld [vmem:[%s3 + $0x5a4] sm:$0xff]
        %v736 = vld [vmem:[%s3 + $0x5ac] sm:$0xf]
        %v737 = vld [vmem:[%s3 + $0x5b0] sm:$0xff]
        %v738 = vld [vmem:[%s3 + $0x5b8] sm:$0xff]
        %v739 = vld [vmem:[%s3 + $0x5c0] sm:$0xff]
        %v740 = vld [vmem:[%s3 + $0x5c8] sm:$0xff]
        %v741 = vld [vmem:[%s3 + $0x5d0] sm:$0xff]
        %v742 = vld [vmem:[%s3 + $0x5d8] sm:$0xff]
        %v743 = vld [vmem:[%s3 + $0x5e0] sm:$0xf]
        %v744 = vld [vmem:[%s3 + $0x5e4] sm:$0xff]
        %v745 = vld [vmem:[%s3 + $0x5ec] sm:$0xff]
        %v746 = vld [vmem:[%s3 + $0x5f4] sm:$0xff]
        %v747 = vld [vmem:[%s3 + $0x5fc] sm:$0xff]
        %v748 = vld [vmem:[%s3 + $0x604] sm:$0xff]
        %v749 = vld [vmem:[%s3 + $0x60c] sm:$0xff]
        %v750 = vld [vmem:[%s3 + $0x614] sm:$0xf]
        %v751 = vld [vmem:[%s3 + $0x618] sm:$0xff]
        %v752 = vld [vmem:[%s3 + $0x620] sm:$0xff]
        %v753 = vld [vmem:[%s3 + $0x628] sm:$0xff]
        %v754 = vld [vmem:[%s3 + $0x630] sm:$0xff]
        %v755 = vld [vmem:[%s3 + $0x638] sm:$0xff]
        %v756 = vld [vmem:[%s3 + $0x640] sm:$0xff]
        %v757 = vld [vmem:[%s3 + $0x648] sm:$0xf]
        %v758 = vld [vmem:[%s3 + $0x64c] sm:$0xff]
        %v759 = vld [vmem:[%s3 + $0x654] sm:$0xff]
        %v760 = vld [vmem:[%s3 + $0x65c] sm:$0xff]
        %v761 = vld [vmem:[%s3 + $0x664] sm:$0xff]
        %v762 = vld [vmem:[%s3 + $0x66c] sm:$0xff]
        %v763 = vld [vmem:[%s3 + $0x674] sm:$0xff]
        %v764 = vld [vmem:[%s3 + $0x67c] sm:$0xf]
        %v989 = vunpack.c.l.b16 %v541
        %v990 = vunpack.c.h.b16 %v541
        %v991 = vunpack.c.l.b16 %v542
        %v992 = vunpack.c.h.b16 %v542
        %v993 = vunpack.c.l.b16 %v543
        %v994 = vunpack.c.h.b16 %v543
        %v995 = vunpack.c.l.b16 %v544
        %v996 = vunpack.c.h.b16 %v544
        %v997 = vunpack.c.l.b16 %v545
        %v998 = vunpack.c.h.b16 %v545
        %v999 = vunpack.c.l.b16 %v546
        %v1000 = vunpack.c.h.b16 %v546
        %v1001 = vunpack.c.l.b16 %v547
        %v1002 = vunpack.c.l.b16 %v548
        %v1003 = vunpack.c.h.b16 %v548
        %v1004 = vunpack.c.l.b16 %v549
        %v1005 = vunpack.c.h.b16 %v549
        %v1006 = vunpack.c.l.b16 %v550
        %v1007 = vunpack.c.h.b16 %v550
        %v1008 = vunpack.c.l.b16 %v551
        %v1009 = vunpack.c.h.b16 %v551
        %v1010 = vunpack.c.l.b16 %v552
        %v1011 = vunpack.c.h.b16 %v552
        %v1012 = vunpack.c.l.b16 %v553
        %v1013 = vunpack.c.h.b16 %v553
        %v1014 = vunpack.c.l.b16 %v554
        %v1015 = vunpack.c.l.b16 %v555
        %v1016 = vunpack.c.h.b16 %v555
        %v1017 = vunpack.c.l.b16 %v556
        %v1018 = vunpack.c.h.b16 %v556
        %v1019 = vunpack.c.l.b16 %v557
        %v1020 = vunpack.c.h.b16 %v557
        %v1021 = vunpack.c.l.b16 %v558
        %v1022 = vunpack.c.h.b16 %v558
        %v1023 = vunpack.c.l.b16 %v559
        %v1024 = vunpack.c.h.b16 %v559
        %v1025 = vunpack.c.l.b16 %v560
        %v1026 = vunpack.c.h.b16 %v560
        %v1027 = vunpack.c.l.b16 %v561
        %v1028 = vunpack.c.l.b16 %v562
        %v1029 = vunpack.c.h.b16 %v562
        %v1030 = vunpack.c.l.b16 %v563
        %v1031 = vunpack.c.h.b16 %v563
        %v1032 = vunpack.c.l.b16 %v564
        %v1033 = vunpack.c.h.b16 %v564
        %v1034 = vunpack.c.l.b16 %v565
        %v1035 = vunpack.c.h.b16 %v565
        %v1036 = vunpack.c.l.b16 %v566
        %v1037 = vunpack.c.h.b16 %v566
        %v1038 = vunpack.c.l.b16 %v567
        %v1039 = vunpack.c.h.b16 %v567
        %v1040 = vunpack.c.l.b16 %v568
        %v1041 = vunpack.c.l.b16 %v569
        %v1042 = vunpack.c.h.b16 %v569
        %v1043 = vunpack.c.l.b16 %v570
        %v1044 = vunpack.c.h.b16 %v570
        %v1045 = vunpack.c.l.b16 %v571
        %v1046 = vunpack.c.h.b16 %v571
        %v1047 = vunpack.c.l.b16 %v572
        %v1048 = vunpack.c.h.b16 %v572
        %v1049 = vunpack.c.l.b16 %v573
        %v1050 = vunpack.c.h.b16 %v573
        %v1051 = vunpack.c.l.b16 %v574
        %v1052 = vunpack.c.h.b16 %v574
        %v1053 = vunpack.c.l.b16 %v575
        %v1054 = vunpack.c.l.b16 %v576
        %v1055 = vunpack.c.h.b16 %v576
        %v1056 = vunpack.c.l.b16 %v577
        %v1057 = vunpack.c.h.b16 %v577
        %v1058 = vunpack.c.l.b16 %v578
        %v1059 = vunpack.c.h.b16 %v578
        %v1060 = vunpack.c.l.b16 %v579
        %v1061 = vunpack.c.h.b16 %v579
        %v1062 = vunpack.c.l.b16 %v580
        %v1063 = vunpack.c.h.b16 %v580
        %v1064 = vunpack.c.l.b16 %v581
        %v1065 = vunpack.c.h.b16 %v581
        %v1066 = vunpack.c.l.b16 %v582
        %v1067 = vunpack.c.l.b16 %v583
        %v1068 = vunpack.c.h.b16 %v583
        %v1069 = vunpack.c.l.b16 %v584
        %v1070 = vunpack.c.h.b16 %v584
        %v1071 = vunpack.c.l.b16 %v585
        %v1072 = vunpack.c.h.b16 %v585
        %v1073 = vunpack.c.l.b16 %v586
        %v1074 = vunpack.c.h.b16 %v586
        %v1075 = vunpack.c.l.b16 %v587
        %v1076 = vunpack.c.h.b16 %v587
        %v1077 = vunpack.c.l.b16 %v588
        %v1078 = vunpack.c.h.b16 %v588
        %v1079 = vunpack.c.l.b16 %v589
        %v1080 = vunpack.c.l.b16 %v590
        %v1081 = vunpack.c.h.b16 %v590
        %v1082 = vunpack.c.l.b16 %v591
        %v1083 = vunpack.c.h.b16 %v591
        %v1084 = vunpack.c.l.b16 %v592
        %v1085 = vunpack.c.h.b16 %v592
        %v1086 = vunpack.c.l.b16 %v593
        %v1087 = vunpack.c.h.b16 %v593
        %v1088 = vunpack.c.l.b16 %v594
        %v1089 = vunpack.c.h.b16 %v594
        %v1090 = vunpack.c.l.b16 %v595
        %v1091 = vunpack.c.h.b16 %v595
        %v1092 = vunpack.c.l.b16 %v596
        %v1093 = vunpack.c.l.b16 %v597
        %v1094 = vunpack.c.h.b16 %v597
        %v1095 = vunpack.c.l.b16 %v598
        %v1096 = vunpack.c.h.b16 %v598
        %v1097 = vunpack.c.l.b16 %v599
        %v1098 = vunpack.c.h.b16 %v599
        %v1099 = vunpack.c.l.b16 %v600
        %v1100 = vunpack.c.h.b16 %v600
        %v1101 = vunpack.c.l.b16 %v601
        %v1102 = vunpack.c.h.b16 %v601
        %v1103 = vunpack.c.l.b16 %v602
        %v1104 = vunpack.c.h.b16 %v602
        %v1105 = vunpack.c.l.b16 %v603
        %v1106 = vunpack.c.l.b16 %v604
        %v1107 = vunpack.c.h.b16 %v604
        %v1108 = vunpack.c.l.b16 %v605
        %v1109 = vunpack.c.h.b16 %v605
        %v1110 = vunpack.c.l.b16 %v606
        %v1111 = vunpack.c.h.b16 %v606
        %v1112 = vunpack.c.l.b16 %v607
        %v1113 = vunpack.c.h.b16 %v607
        %v1114 = vunpack.c.l.b16 %v608
        %v1115 = vunpack.c.h.b16 %v608
        %v1116 = vunpack.c.l.b16 %v609
        %v1117 = vunpack.c.h.b16 %v609
        %v1118 = vunpack.c.l.b16 %v610
        %v1119 = vunpack.c.l.b16 %v611
        %v1120 = vunpack.c.h.b16 %v611
        %v1121 = vunpack.c.l.b16 %v612
        %v1122 = vunpack.c.h.b16 %v612
        %v1123 = vunpack.c.l.b16 %v613
        %v1124 = vunpack.c.h.b16 %v613
        %v1125 = vunpack.c.l.b16 %v614
        %v1126 = vunpack.c.h.b16 %v614
        %v1127 = vunpack.c.l.b16 %v615
        %v1128 = vunpack.c.h.b16 %v615
        %v1129 = vunpack.c.l.b16 %v616
        %v1130 = vunpack.c.h.b16 %v616
        %v1131 = vunpack.c.l.b16 %v617
        %v1132 = vunpack.c.l.b16 %v618
        %v1133 = vunpack.c.h.b16 %v618
        %v1134 = vunpack.c.l.b16 %v619
        %v1135 = vunpack.c.h.b16 %v619
        %v1136 = vunpack.c.l.b16 %v620
        %v1137 = vunpack.c.h.b16 %v620
        %v1138 = vunpack.c.l.b16 %v621
        %v1139 = vunpack.c.h.b16 %v621
        %v1140 = vunpack.c.l.b16 %v622
        %v1141 = vunpack.c.h.b16 %v622
        %v1142 = vunpack.c.l.b16 %v623
        %v1143 = vunpack.c.h.b16 %v623
        %v1144 = vunpack.c.l.b16 %v624
        %v1145 = vunpack.c.l.b16 %v625
        %v1146 = vunpack.c.h.b16 %v625
        %v1147 = vunpack.c.l.b16 %v626
        %v1148 = vunpack.c.h.b16 %v626
        %v1149 = vunpack.c.l.b16 %v627
        %v1150 = vunpack.c.h.b16 %v627
        %v1151 = vunpack.c.l.b16 %v628
        %v1152 = vunpack.c.h.b16 %v628
        %v1153 = vunpack.c.l.b16 %v629
        %v1154 = vunpack.c.h.b16 %v629
        %v1155 = vunpack.c.l.b16 %v630
        %v1156 = vunpack.c.h.b16 %v630
        %v1157 = vunpack.c.l.b16 %v631
        %v1158 = vunpack.c.l.b16 %v632
        %v1159 = vunpack.c.h.b16 %v632
        %v1160 = vunpack.c.l.b16 %v633
        %v1161 = vunpack.c.h.b16 %v633
        %v1162 = vunpack.c.l.b16 %v634
        %v1163 = vunpack.c.h.b16 %v634
        %v1164 = vunpack.c.l.b16 %v635
        %v1165 = vunpack.c.h.b16 %v635
        %v1166 = vunpack.c.l.b16 %v636
        %v1167 = vunpack.c.h.b16 %v636
        %v1168 = vunpack.c.l.b16 %v637
        %v1169 = vunpack.c.h.b16 %v637
        %v1170 = vunpack.c.l.b16 %v638
        %v1171 = vunpack.c.l.b16 %v639
        %v1172 = vunpack.c.h.b16 %v639
        %v1173 = vunpack.c.l.b16 %v640
        %v1174 = vunpack.c.h.b16 %v640
        %v1175 = vunpack.c.l.b16 %v641
        %v1176 = vunpack.c.h.b16 %v641
        %v1177 = vunpack.c.l.b16 %v642
        %v1178 = vunpack.c.h.b16 %v642
        %v1179 = vunpack.c.l.b16 %v643
        %v1180 = vunpack.c.h.b16 %v643
        %v1181 = vunpack.c.l.b16 %v644
        %v1182 = vunpack.c.h.b16 %v644
        %v1183 = vunpack.c.l.b16 %v645
        %v1184 = vunpack.c.l.b16 %v646
        %v1185 = vunpack.c.h.b16 %v646
        %v1186 = vunpack.c.l.b16 %v647
        %v1187 = vunpack.c.h.b16 %v647
        %v1188 = vunpack.c.l.b16 %v648
        %v1189 = vunpack.c.h.b16 %v648
        %v1190 = vunpack.c.l.b16 %v649
        %v1191 = vunpack.c.h.b16 %v649
        %v1192 = vunpack.c.l.b16 %v650
        %v1193 = vunpack.c.h.b16 %v650
        %v1194 = vunpack.c.l.b16 %v651
        %v1195 = vunpack.c.h.b16 %v651
        %v1196 = vunpack.c.l.b16 %v652
        %v1197 = vunpack.c.l.b16 %v653
        %v1198 = vunpack.c.h.b16 %v653
        %v1199 = vunpack.c.l.b16 %v654
        %v1200 = vunpack.c.h.b16 %v654
        %v1201 = vunpack.c.l.b16 %v655
        %v1202 = vunpack.c.h.b16 %v655
        %v1203 = vunpack.c.l.b16 %v656
        %v1204 = vunpack.c.h.b16 %v656
        %v1205 = vunpack.c.l.b16 %v657
        %v1206 = vunpack.c.h.b16 %v657
        %v1207 = vunpack.c.l.b16 %v658
        %v1208 = vunpack.c.h.b16 %v658
        %v1209 = vunpack.c.l.b16 %v659
        %v1210 = vunpack.c.l.b16 %v660
        %v1211 = vunpack.c.h.b16 %v660
        %v1212 = vunpack.c.l.b16 %v661
        %v1213 = vunpack.c.h.b16 %v661
        %v1214 = vunpack.c.l.b16 %v662
        %v1215 = vunpack.c.h.b16 %v662
        %v1216 = vunpack.c.l.b16 %v663
        %v1217 = vunpack.c.h.b16 %v663
        %v1218 = vunpack.c.l.b16 %v664
        %v1219 = vunpack.c.h.b16 %v664
        %v1220 = vunpack.c.l.b16 %v665
        %v1221 = vunpack.c.h.b16 %v665
        %v1222 = vunpack.c.l.b16 %v666
        %v1223 = vunpack.c.l.b16 %v667
        %v1224 = vunpack.c.h.b16 %v667
        %v1225 = vunpack.c.l.b16 %v668
        %v1226 = vunpack.c.h.b16 %v668
        %v1227 = vunpack.c.l.b16 %v669
        %v1228 = vunpack.c.h.b16 %v669
        %v1229 = vunpack.c.l.b16 %v670
        %v1230 = vunpack.c.h.b16 %v670
        %v1231 = vunpack.c.l.b16 %v671
        %v1232 = vunpack.c.h.b16 %v671
        %v1233 = vunpack.c.l.b16 %v672
        %v1234 = vunpack.c.h.b16 %v672
        %v1235 = vunpack.c.l.b16 %v673
        %v1236 = vunpack.c.l.b16 %v674
        %v1237 = vunpack.c.h.b16 %v674
        %v1238 = vunpack.c.l.b16 %v675
        %v1239 = vunpack.c.h.b16 %v675
        %v1240 = vunpack.c.l.b16 %v676
        %v1241 = vunpack.c.h.b16 %v676
        %v1242 = vunpack.c.l.b16 %v677
        %v1243 = vunpack.c.h.b16 %v677
        %v1244 = vunpack.c.l.b16 %v678
        %v1245 = vunpack.c.h.b16 %v678
        %v1246 = vunpack.c.l.b16 %v679
        %v1247 = vunpack.c.h.b16 %v679
        %v1248 = vunpack.c.l.b16 %v680
        %v1249 = vunpack.c.l.b16 %v681
        %v1250 = vunpack.c.h.b16 %v681
        %v1251 = vunpack.c.l.b16 %v682
        %v1252 = vunpack.c.h.b16 %v682
        %v1253 = vunpack.c.l.b16 %v683
        %v1254 = vunpack.c.h.b16 %v683
        %v1255 = vunpack.c.l.b16 %v684
        %v1256 = vunpack.c.h.b16 %v684
        %v1257 = vunpack.c.l.b16 %v685
        %v1258 = vunpack.c.h.b16 %v685
        %v1259 = vunpack.c.l.b16 %v686
        %v1260 = vunpack.c.h.b16 %v686
        %v1261 = vunpack.c.l.b16 %v687
        %v1262 = vunpack.c.l.b16 %v688
        %v1263 = vunpack.c.h.b16 %v688
        %v1264 = vunpack.c.l.b16 %v689
        %v1265 = vunpack.c.h.b16 %v689
        %v1266 = vunpack.c.l.b16 %v690
        %v1267 = vunpack.c.h.b16 %v690
        %v1268 = vunpack.c.l.b16 %v691
        %v1269 = vunpack.c.h.b16 %v691
        %v1270 = vunpack.c.l.b16 %v692
        %v1271 = vunpack.c.h.b16 %v692
        %v1272 = vunpack.c.l.b16 %v693
        %v1273 = vunpack.c.h.b16 %v693
        %v1274 = vunpack.c.l.b16 %v694
        %v1275 = vunpack.c.l.b16 %v695
        %v1276 = vunpack.c.h.b16 %v695
        %v1277 = vunpack.c.l.b16 %v696
        %v1278 = vunpack.c.h.b16 %v696
        %v1279 = vunpack.c.l.b16 %v697
        %v1280 = vunpack.c.h.b16 %v697
        %v1281 = vunpack.c.l.b16 %v698
        %v1282 = vunpack.c.h.b16 %v698
        %v1283 = vunpack.c.l.b16 %v699
        %v1284 = vunpack.c.h.b16 %v699
        %v1285 = vunpack.c.l.b16 %v700
        %v1286 = vunpack.c.h.b16 %v700
        %v1287 = vunpack.c.l.b16 %v701
        %v1288 = vunpack.c.l.b16 %v702
        %v1289 = vunpack.c.h.b16 %v702
        %v1290 = vunpack.c.l.b16 %v703
        %v1291 = vunpack.c.h.b16 %v703
        %v1292 = vunpack.c.l.b16 %v704
        %v1293 = vunpack.c.h.b16 %v704
        %v1294 = vunpack.c.l.b16 %v705
        %v1295 = vunpack.c.h.b16 %v705
        %v1296 = vunpack.c.l.b16 %v706
        %v1297 = vunpack.c.h.b16 %v706
        %v1298 = vunpack.c.l.b16 %v707
        %v1299 = vunpack.c.h.b16 %v707
        %v1300 = vunpack.c.l.b16 %v708
        %v1301 = vunpack.c.l.b16 %v709
        %v1302 = vunpack.c.h.b16 %v709
        %v1303 = vunpack.c.l.b16 %v710
        %v1304 = vunpack.c.h.b16 %v710
        %v1305 = vunpack.c.l.b16 %v711
        %v1306 = vunpack.c.h.b16 %v711
        %v1307 = vunpack.c.l.b16 %v712
        %v1308 = vunpack.c.h.b16 %v712
        %v1309 = vunpack.c.l.b16 %v713
        %v1310 = vunpack.c.h.b16 %v713
        %v1311 = vunpack.c.l.b16 %v714
        %v1312 = vunpack.c.h.b16 %v714
        %v1313 = vunpack.c.l.b16 %v715
        %v1314 = vunpack.c.l.b16 %v716
        %v1315 = vunpack.c.h.b16 %v716
        %v1316 = vunpack.c.l.b16 %v717
        %v1317 = vunpack.c.h.b16 %v717
        %v1318 = vunpack.c.l.b16 %v718
        %v1319 = vunpack.c.h.b16 %v718
        %v1320 = vunpack.c.l.b16 %v719
        %v1321 = vunpack.c.h.b16 %v719
        %v1322 = vunpack.c.l.b16 %v720
        %v1323 = vunpack.c.h.b16 %v720
        %v1324 = vunpack.c.l.b16 %v721
        %v1325 = vunpack.c.h.b16 %v721
        %v1326 = vunpack.c.l.b16 %v722
        %v1327 = vunpack.c.l.b16 %v723
        %v1328 = vunpack.c.h.b16 %v723
        %v1329 = vunpack.c.l.b16 %v724
        %v1330 = vunpack.c.h.b16 %v724
        %v1331 = vunpack.c.l.b16 %v725
        %v1332 = vunpack.c.h.b16 %v725
        %v1333 = vunpack.c.l.b16 %v726
        %v1334 = vunpack.c.h.b16 %v726
        %v1335 = vunpack.c.l.b16 %v727
        %v1336 = vunpack.c.h.b16 %v727
        %v1337 = vunpack.c.l.b16 %v728
        %v1338 = vunpack.c.h.b16 %v728
        %v1339 = vunpack.c.l.b16 %v729
        %v1340 = vunpack.c.l.b16 %v730
        %v1341 = vunpack.c.h.b16 %v730
        %v1342 = vunpack.c.l.b16 %v731
        %v1343 = vunpack.c.h.b16 %v731
        %v1344 = vunpack.c.l.b16 %v732
        %v1345 = vunpack.c.h.b16 %v732
        %v1346 = vunpack.c.l.b16 %v733
        %v1347 = vunpack.c.h.b16 %v733
        %v1348 = vunpack.c.l.b16 %v734
        %v1349 = vunpack.c.h.b16 %v734
        %v1350 = vunpack.c.l.b16 %v735
        %v1351 = vunpack.c.h.b16 %v735
        %v1352 = vunpack.c.l.b16 %v736
        %v1353 = vunpack.c.l.b16 %v737
        %v1354 = vunpack.c.h.b16 %v737
        %v1355 = vunpack.c.l.b16 %v738
        %v1356 = vunpack.c.h.b16 %v738
        %v1357 = vunpack.c.l.b16 %v739
        %v1358 = vunpack.c.h.b16 %v739
        %v1359 = vunpack.c.l.b16 %v740
        %v1360 = vunpack.c.h.b16 %v740
        %v1361 = vunpack.c.l.b16 %v741
        %v1362 = vunpack.c.h.b16 %v741
        %v1363 = vunpack.c.l.b16 %v742
        %v1364 = vunpack.c.h.b16 %v742
        %v1365 = vunpack.c.l.b16 %v743
        %v1366 = vunpack.c.l.b16 %v744
        %v1367 = vunpack.c.h.b16 %v744
        %v1368 = vunpack.c.l.b16 %v745
        %v1369 = vunpack.c.h.b16 %v745
        %v1370 = vunpack.c.l.b16 %v746
        %v1371 = vunpack.c.h.b16 %v746
        %v1372 = vunpack.c.l.b16 %v747
        %v1373 = vunpack.c.h.b16 %v747
        %v1374 = vunpack.c.l.b16 %v748
        %v1375 = vunpack.c.h.b16 %v748
        %v1376 = vunpack.c.l.b16 %v749
        %v1377 = vunpack.c.h.b16 %v749
        %v1378 = vunpack.c.l.b16 %v750
        %v1379 = vunpack.c.l.b16 %v751
        %v1380 = vunpack.c.h.b16 %v751
        %v1381 = vunpack.c.l.b16 %v752
        %v1382 = vunpack.c.h.b16 %v752
        %v1383 = vunpack.c.l.b16 %v753
        %v1384 = vunpack.c.h.b16 %v753
        %v1385 = vunpack.c.l.b16 %v754
        %v1386 = vunpack.c.h.b16 %v754
        %v1387 = vunpack.c.l.b16 %v755
        %v1388 = vunpack.c.h.b16 %v755
        %v1389 = vunpack.c.l.b16 %v756
        %v1390 = vunpack.c.h.b16 %v756
        %v1391 = vunpack.c.l.b16 %v757
        %v1392 = vunpack.c.l.b16 %v758
        %v1393 = vunpack.c.h.b16 %v758
        %v1394 = vunpack.c.l.b16 %v759
        %v1395 = vunpack.c.h.b16 %v759
        %v1396 = vunpack.c.l.b16 %v760
        %v1397 = vunpack.c.h.b16 %v760
        %v1398 = vunpack.c.l.b16 %v761
        %v1399 = vunpack.c.h.b16 %v761
        %v1400 = vunpack.c.l.b16 %v762
        %v1401 = vunpack.c.h.b16 %v762
        %v1402 = vunpack.c.l.b16 %v763
        %v1403 = vunpack.c.h.b16 %v763
        %v1404 = vunpack.c.l.b16 %v764
        %v1405 = vpack.c.b16 %v1002, %v989
        %v1406 = vpack.c.b16 %v1003, %v990
        %v1407 = vpack.c.b16 %v1004, %v991
        %v1408 = vpack.c.b16 %v1005, %v992
        %v1409 = vpack.c.b16 %v1006, %v993
        %v1410 = vpack.c.b16 %v1007, %v994
        %v1411 = vpack.c.b16 %v1008, %v995
        %v1412 = vpack.c.b16 %v1009, %v996
        %v1413 = vpack.c.b16 %v1010, %v997
        %v1414 = vpack.c.b16 %v1011, %v998
        %v1415 = vpack.c.b16 %v1012, %v999
        %v1416 = vpack.c.b16 %v1013, %v1000
        %v1417 = vpack.c.b16 %v1014, %v1001
        %v1418 = vpack.c.b16 %v1028, %v1015
        %v1419 = vpack.c.b16 %v1029, %v1016
        %v1420 = vpack.c.b16 %v1030, %v1017
        %v1421 = vpack.c.b16 %v1031, %v1018
        %v1422 = vpack.c.b16 %v1032, %v1019
        %v1423 = vpack.c.b16 %v1033, %v1020
        %v1424 = vpack.c.b16 %v1034, %v1021
        %v1425 = vpack.c.b16 %v1035, %v1022
        %v1426 = vpack.c.b16 %v1036, %v1023
        %v1427 = vpack.c.b16 %v1037, %v1024
        %v1428 = vpack.c.b16 %v1038, %v1025
        %v1429 = vpack.c.b16 %v1039, %v1026
        %v1430 = vpack.c.b16 %v1040, %v1027
        %v1431 = vpack.c.b16 %v1054, %v1041
        %v1432 = vpack.c.b16 %v1055, %v1042
        %v1433 = vpack.c.b16 %v1056, %v1043
        %v1434 = vpack.c.b16 %v1057, %v1044
        %v1435 = vpack.c.b16 %v1058, %v1045
        %v1436 = vpack.c.b16 %v1059, %v1046
        %v1437 = vpack.c.b16 %v1060, %v1047
        %v1438 = vpack.c.b16 %v1061, %v1048
        %v1439 = vpack.c.b16 %v1062, %v1049
        %v1440 = vpack.c.b16 %v1063, %v1050
        %v1441 = vpack.c.b16 %v1064, %v1051
        %v1442 = vpack.c.b16 %v1065, %v1052
        %v1443 = vpack.c.b16 %v1066, %v1053
        %v1444 = vpack.c.b16 %v1080, %v1067
        %v1445 = vpack.c.b16 %v1081, %v1068
        %v1446 = vpack.c.b16 %v1082, %v1069
        %v1447 = vpack.c.b16 %v1083, %v1070
        %v1448 = vpack.c.b16 %v1084, %v1071
        %v1449 = vpack.c.b16 %v1085, %v1072
        %v1450 = vpack.c.b16 %v1086, %v1073
        %v1451 = vpack.c.b16 %v1087, %v1074
        %v1452 = vpack.c.b16 %v1088, %v1075
        %v1453 = vpack.c.b16 %v1089, %v1076
        %v1454 = vpack.c.b16 %v1090, %v1077
        %v1455 = vpack.c.b16 %v1091, %v1078
        %v1456 = vpack.c.b16 %v1092, %v1079
        %v1457 = vpack.c.b16 %v1106, %v1093
        %v1458 = vpack.c.b16 %v1107, %v1094
        %v1459 = vpack.c.b16 %v1108, %v1095
        %v1460 = vpack.c.b16 %v1109, %v1096
        %v1461 = vpack.c.b16 %v1110, %v1097
        %v1462 = vpack.c.b16 %v1111, %v1098
        %v1463 = vpack.c.b16 %v1112, %v1099
        %v1464 = vpack.c.b16 %v1113, %v1100
        %v1465 = vpack.c.b16 %v1114, %v1101
        %v1466 = vpack.c.b16 %v1115, %v1102
        %v1467 = vpack.c.b16 %v1116, %v1103
        %v1468 = vpack.c.b16 %v1117, %v1104
        %v1469 = vpack.c.b16 %v1118, %v1105
        %v1470 = vpack.c.b16 %v1132, %v1119
        %v1471 = vpack.c.b16 %v1133, %v1120
        %v1472 = vpack.c.b16 %v1134, %v1121
        %v1473 = vpack.c.b16 %v1135, %v1122
        %v1474 = vpack.c.b16 %v1136, %v1123
        %v1475 = vpack.c.b16 %v1137, %v1124
        %v1476 = vpack.c.b16 %v1138, %v1125
        %v1477 = vpack.c.b16 %v1139, %v1126
        %v1478 = vpack.c.b16 %v1140, %v1127
        %v1479 = vpack.c.b16 %v1141, %v1128
        %v1480 = vpack.c.b16 %v1142, %v1129
        %v1481 = vpack.c.b16 %v1143, %v1130
        %v1482 = vpack.c.b16 %v1144, %v1131
        %v1483 = vpack.c.b16 %v1158, %v1145
        %v1484 = vpack.c.b16 %v1159, %v1146
        %v1485 = vpack.c.b16 %v1160, %v1147
        %v1486 = vpack.c.b16 %v1161, %v1148
        %v1487 = vpack.c.b16 %v1162, %v1149
        %v1488 = vpack.c.b16 %v1163, %v1150
        %v1489 = vpack.c.b16 %v1164, %v1151
        %v1490 = vpack.c.b16 %v1165, %v1152
        %v1491 = vpack.c.b16 %v1166, %v1153
        %v1492 = vpack.c.b16 %v1167, %v1154
        %v1493 = vpack.c.b16 %v1168, %v1155
        %v1494 = vpack.c.b16 %v1169, %v1156
        %v1495 = vpack.c.b16 %v1170, %v1157
        %v1496 = vpack.c.b16 %v1184, %v1171
        %v1497 = vpack.c.b16 %v1185, %v1172
        %v1498 = vpack.c.b16 %v1186, %v1173
        %v1499 = vpack.c.b16 %v1187, %v1174
        %v1500 = vpack.c.b16 %v1188, %v1175
        %v1501 = vpack.c.b16 %v1189, %v1176
        %v1502 = vpack.c.b16 %v1190, %v1177
        %v1503 = vpack.c.b16 %v1191, %v1178
        %v1504 = vpack.c.b16 %v1192, %v1179
        %v1505 = vpack.c.b16 %v1193, %v1180
        %v1506 = vpack.c.b16 %v1194, %v1181
        %v1507 = vpack.c.b16 %v1195, %v1182
        %v1508 = vpack.c.b16 %v1196, %v1183
        %v1509 = vpack.c.b16 %v1210, %v1197
        %v1510 = vpack.c.b16 %v1211, %v1198
        %v1511 = vpack.c.b16 %v1212, %v1199
        %v1512 = vpack.c.b16 %v1213, %v1200
        %v1513 = vpack.c.b16 %v1214, %v1201
        %v1514 = vpack.c.b16 %v1215, %v1202
        %v1515 = vpack.c.b16 %v1216, %v1203
        %v1516 = vpack.c.b16 %v1217, %v1204
        %v1517 = vpack.c.b16 %v1218, %v1205
        %v1518 = vpack.c.b16 %v1219, %v1206
        %v1519 = vpack.c.b16 %v1220, %v1207
        %v1520 = vpack.c.b16 %v1221, %v1208
        %v1521 = vpack.c.b16 %v1222, %v1209
        %v1522 = vpack.c.b16 %v1236, %v1223
        %v1523 = vpack.c.b16 %v1237, %v1224
        %v1524 = vpack.c.b16 %v1238, %v1225
        %v1525 = vpack.c.b16 %v1239, %v1226
        %v1526 = vpack.c.b16 %v1240, %v1227
        %v1527 = vpack.c.b16 %v1241, %v1228
        %v1528 = vpack.c.b16 %v1242, %v1229
        %v1529 = vpack.c.b16 %v1243, %v1230
        %v1530 = vpack.c.b16 %v1244, %v1231
        %v1531 = vpack.c.b16 %v1245, %v1232
        %v1532 = vpack.c.b16 %v1246, %v1233
        %v1533 = vpack.c.b16 %v1247, %v1234
        %v1534 = vpack.c.b16 %v1248, %v1235
        %v1535 = vpack.c.b16 %v1262, %v1249
        %v1536 = vpack.c.b16 %v1263, %v1250
        %v1537 = vpack.c.b16 %v1264, %v1251
        %v1538 = vpack.c.b16 %v1265, %v1252
        %v1539 = vpack.c.b16 %v1266, %v1253
        %v1540 = vpack.c.b16 %v1267, %v1254
        %v1541 = vpack.c.b16 %v1268, %v1255
        %v1542 = vpack.c.b16 %v1269, %v1256
        %v1543 = vpack.c.b16 %v1270, %v1257
        %v1544 = vpack.c.b16 %v1271, %v1258
        %v1545 = vpack.c.b16 %v1272, %v1259
        %v1546 = vpack.c.b16 %v1273, %v1260
        %v1547 = vpack.c.b16 %v1274, %v1261
        %v1548 = vpack.c.b16 %v1288, %v1275
        %v1549 = vpack.c.b16 %v1289, %v1276
        %v1550 = vpack.c.b16 %v1290, %v1277
        %v1551 = vpack.c.b16 %v1291, %v1278
        %v1552 = vpack.c.b16 %v1292, %v1279
        %v1553 = vpack.c.b16 %v1293, %v1280
        %v1554 = vpack.c.b16 %v1294, %v1281
        %v1555 = vpack.c.b16 %v1295, %v1282
        %v1556 = vpack.c.b16 %v1296, %v1283
        %v1557 = vpack.c.b16 %v1297, %v1284
        %v1558 = vpack.c.b16 %v1298, %v1285
        %v1559 = vpack.c.b16 %v1299, %v1286
        %v1560 = vpack.c.b16 %v1300, %v1287
        %v1561 = vpack.c.b16 %v1314, %v1301
        %v1562 = vpack.c.b16 %v1315, %v1302
        %v1563 = vpack.c.b16 %v1316, %v1303
        %v1564 = vpack.c.b16 %v1317, %v1304
        %v1565 = vpack.c.b16 %v1318, %v1305
        %v1566 = vpack.c.b16 %v1319, %v1306
        %v1567 = vpack.c.b16 %v1320, %v1307
        %v1568 = vpack.c.b16 %v1321, %v1308
        %v1569 = vpack.c.b16 %v1322, %v1309
        %v1570 = vpack.c.b16 %v1323, %v1310
        %v1571 = vpack.c.b16 %v1324, %v1311
        %v1572 = vpack.c.b16 %v1325, %v1312
        %v1573 = vpack.c.b16 %v1326, %v1313
        %v1574 = vpack.c.b16 %v1340, %v1327
        %v1575 = vpack.c.b16 %v1341, %v1328
        %v1576 = vpack.c.b16 %v1342, %v1329
        %v1577 = vpack.c.b16 %v1343, %v1330
        %v1578 = vpack.c.b16 %v1344, %v1331
        %v1579 = vpack.c.b16 %v1345, %v1332
        %v1580 = vpack.c.b16 %v1346, %v1333
        %v1581 = vpack.c.b16 %v1347, %v1334
        %v1582 = vpack.c.b16 %v1348, %v1335
        %v1583 = vpack.c.b16 %v1349, %v1336
        %v1584 = vpack.c.b16 %v1350, %v1337
        %v1585 = vpack.c.b16 %v1351, %v1338
        %v1586 = vpack.c.b16 %v1352, %v1339
        %v1587 = vpack.c.b16 %v1366, %v1353
        %v1588 = vpack.c.b16 %v1367, %v1354
        %v1589 = vpack.c.b16 %v1368, %v1355
        %v1590 = vpack.c.b16 %v1369, %v1356
        %v1591 = vpack.c.b16 %v1370, %v1357
        %v1592 = vpack.c.b16 %v1371, %v1358
        %v1593 = vpack.c.b16 %v1372, %v1359
        %v1594 = vpack.c.b16 %v1373, %v1360
        %v1595 = vpack.c.b16 %v1374, %v1361
        %v1596 = vpack.c.b16 %v1375, %v1362
        %v1597 = vpack.c.b16 %v1376, %v1363
        %v1598 = vpack.c.b16 %v1377, %v1364
        %v1599 = vpack.c.b16 %v1378, %v1365
        %v1600 = vpack.c.b16 %v1392, %v1379
        %v1601 = vpack.c.b16 %v1393, %v1380
        %v1602 = vpack.c.b16 %v1394, %v1381
        %v1603 = vpack.c.b16 %v1395, %v1382
        %v1604 = vpack.c.b16 %v1396, %v1383
        %v1605 = vpack.c.b16 %v1397, %v1384
        %v1606 = vpack.c.b16 %v1398, %v1385
        %v1607 = vpack.c.b16 %v1399, %v1386
        %v1608 = vpack.c.b16 %v1400, %v1387
        %v1609 = vpack.c.b16 %v1401, %v1388
        %v1610 = vpack.c.b16 %v1402, %v1389
        %v1611 = vpack.c.b16 %v1403, %v1390
        %v1612 = vpack.c.b16 %v1404, %v1391
        %1821 = vmatprep.subr.bf16.mxu0 %v1406
        %1822 = vmatpush1.bf16.msra.mxu0 %v1405
        %1823 = vmatprep.subr.bf16.mxu0 %v1419
        %1824 = vmatpush1.bf16.msra.mxu0 %v1418
        %1825 = vmatprep.subr.bf16.mxu0 %v1432
        %1826 = vmatpush1.bf16.msra.mxu0 %v1431
        %1827 = vmatprep.subr.bf16.mxu0 %v1445
        %1828 = vmatpush1.bf16.msra.mxu0 %v1444
        %1829 = vmatprep.subr.bf16.mxu0 %v1458
        %1830 = vmatpush1.bf16.msra.mxu0 %v1457
        %1831 = vmatprep.subr.bf16.mxu0 %v1471
        %1832 = vmatpush1.bf16.msra.mxu0 %v1470
        %1833 = vmatprep.subr.bf16.mxu0 %v1484
        %1834 = vmatpush1.bf16.msra.mxu0 %v1483
        %1835 = vmatprep.subr.bf16.mxu0 %v1497
        %1836 = vmatpush1.bf16.msra.mxu0 %v1496
        %1837 = vmatprep.subr.bf16.mxu0 %v1510
        %1838 = vmatpush1.bf16.msra.mxu0 %v1509
        %1839 = vmatprep.subr.bf16.mxu0 %v1523
        %1840 = vmatpush1.bf16.msra.mxu0 %v1522
        %1841 = vmatprep.subr.bf16.mxu0 %v1536
        %1842 = vmatpush1.bf16.msra.mxu0 %v1535
        %1843 = vmatprep.subr.bf16.mxu0 %v1549
        %1844 = vmatpush1.bf16.msra.mxu0 %v1548
        %1845 = vmatprep.subr.bf16.mxu0 %v1562
        %1846 = vmatpush1.bf16.msra.mxu0 %v1561
        %1847 = vmatprep.subr.bf16.mxu0 %v1575
        %1848 = vmatpush1.bf16.msra.mxu0 %v1574
        %1849 = vmatprep.subr.bf16.mxu0 %v1588
        %1850 = vmatpush1.bf16.msra.mxu0 %v1587
        %1851 = vmatprep.subr.bf16.mxu0 %v1601
        %1852 = vmatpush1.bf16.msra.mxu0 %v1600
        %1853 = vmatprep.mubr.bf16.mxu0 %v540
        %1854 = vmatmul.mubr.bf16.gmra.mrb[0].mxu0 %v539
        %v1855 = vpop.f32.mrb[0].mxu0
        %v1856 = vadd.f32 0.0, %v1855
        %v1857 = vpop.f32.mrb[0].mxu0
        %v1858 = vadd.f32 0.0, %v1857
        %v1859 = vpop.f32.mrb[0].mxu0
        %v1860 = vadd.f32 0.0, %v1859
        %v1861 = vpop.f32.mrb[0].mxu0
        %v1862 = vadd.f32 0.0, %v1861
        %1863 = vdwg.mxu0
        %1864 = vmatprep.subr.bf16.mxu0 %v1408
        %1865 = vmatpush1.bf16.msra.mxu0 %v1407
        %1866 = vmatprep.subr.bf16.mxu0 %v1421
        %1867 = vmatpush1.bf16.msra.mxu0 %v1420
        %1868 = vmatprep.subr.bf16.mxu0 %v1434
        %1869 = vmatpush1.bf16.msra.mxu0 %v1433
        %1870 = vmatprep.subr.bf16.mxu0 %v1447
        %1871 = vmatpush1.bf16.msra.mxu0 %v1446
        %1872 = vmatprep.subr.bf16.mxu0 %v1460
        %1873 = vmatpush1.bf16.msra.mxu0 %v1459
        %1874 = vmatprep.subr.bf16.mxu0 %v1473
        %1875 = vmatpush1.bf16.msra.mxu0 %v1472
        %1876 = vmatprep.subr.bf16.mxu0 %v1486
        %1877 = vmatpush1.bf16.msra.mxu0 %v1485
        %1878 = vmatprep.subr.bf16.mxu0 %v1499
        %1879 = vmatpush1.bf16.msra.mxu0 %v1498
        %1880 = vmatprep.subr.bf16.mxu0 %v1512
        %1881 = vmatpush1.bf16.msra.mxu0 %v1511
        %1882 = vmatprep.subr.bf16.mxu0 %v1525
        %1883 = vmatpush1.bf16.msra.mxu0 %v1524
        %1884 = vmatprep.subr.bf16.mxu0 %v1538
        %1885 = vmatpush1.bf16.msra.mxu0 %v1537
        %1886 = vmatprep.subr.bf16.mxu0 %v1551
        %1887 = vmatpush1.bf16.msra.mxu0 %v1550
        %1888 = vmatprep.subr.bf16.mxu0 %v1564
        %1889 = vmatpush1.bf16.msra.mxu0 %v1563
        %1890 = vmatprep.subr.bf16.mxu0 %v1577
        %1891 = vmatpush1.bf16.msra.mxu0 %v1576
        %1892 = vmatprep.subr.bf16.mxu0 %v1590
        %1893 = vmatpush1.bf16.msra.mxu0 %v1589
        %1894 = vmatprep.subr.bf16.mxu0 %v1603
        %1895 = vmatpush1.bf16.msra.mxu0 %v1602
        %1896 = vmatprep.mubr.bf16.mxu0 %v540
        %1897 = vmatmul.mubr.bf16.gmra.mrb[0].mxu0 %v539
        %v1898 = vpop.f32.mrb[0].mxu0
        %v1899 = vadd.f32 0.0, %v1898
        %v1900 = vpop.f32.mrb[0].mxu0
        %v1901 = vadd.f32 0.0, %v1900
        %v1902 = vpop.f32.mrb[0].mxu0
        %v1903 = vadd.f32 0.0, %v1902
        %v1904 = vpop.f32.mrb[0].mxu0
        %v1905 = vadd.f32 0.0, %v1904
        %1906 = vdwg.mxu0
        %1907 = vmatprep.subr.bf16.mxu0 %v1410
        %1908 = vmatpush1.bf16.msra.mxu0 %v1409
        %1909 = vmatprep.subr.bf16.mxu0 %v1423
        %1910 = vmatpush1.bf16.msra.mxu0 %v1422
        %1911 = vmatprep.subr.bf16.mxu0 %v1436
        %1912 = vmatpush1.bf16.msra.mxu0 %v1435
        %1913 = vmatprep.subr.bf16.mxu0 %v1449
        %1914 = vmatpush1.bf16.msra.mxu0 %v1448
        %1915 = vmatprep.subr.bf16.mxu0 %v1462
        %1916 = vmatpush1.bf16.msra.mxu0 %v1461
        %1917 = vmatprep.subr.bf16.mxu0 %v1475
        %1918 = vmatpush1.bf16.msra.mxu0 %v1474
        %1919 = vmatprep.subr.bf16.mxu0 %v1488
        %1920 = vmatpush1.bf16.msra.mxu0 %v1487
        %1921 = vmatprep.subr.bf16.mxu0 %v1501
        %1922 = vmatpush1.bf16.msra.mxu0 %v1500
        %1923 = vmatprep.subr.bf16.mxu0 %v1514
        %1924 = vmatpush1.bf16.msra.mxu0 %v1513
        %1925 = vmatprep.subr.bf16.mxu0 %v1527
        %1926 = vmatpush1.bf16.msra.mxu0 %v1526
        %1927 = vmatprep.subr.bf16.mxu0 %v1540
        %1928 = vmatpush1.bf16.msra.mxu0 %v1539
        %1929 = vmatprep.subr.bf16.mxu0 %v1553
        %1930 = vmatpush1.bf16.msra.mxu0 %v1552
        %1931 = vmatprep.subr.bf16.mxu0 %v1566
        %1932 = vmatpush1.bf16.msra.mxu0 %v1565
        %1933 = vmatprep.subr.bf16.mxu0 %v1579
        %1934 = vmatpush1.bf16.msra.mxu0 %v1578
        %1935 = vmatprep.subr.bf16.mxu0 %v1592
        %1936 = vmatpush1.bf16.msra.mxu0 %v1591
        %1937 = vmatprep.subr.bf16.mxu0 %v1605
        %1938 = vmatpush1.bf16.msra.mxu0 %v1604
        %1939 = vmatprep.mubr.bf16.mxu0 %v540
        %1940 = vmatmul.mubr.bf16.gmra.mrb[0].mxu0 %v539
        %v1941 = vpop.f32.mrb[0].mxu0
        %v1942 = vadd.f32 0.0, %v1941
        %v1943 = vpop.f32.mrb[0].mxu0
        %v1944 = vadd.f32 0.0, %v1943
        %v1945 = vpop.f32.mrb[0].mxu0
        %v1946 = vadd.f32 0.0, %v1945
        %v1947 = vpop.f32.mrb[0].mxu0
        %v1948 = vadd.f32 0.0, %v1947
        %1949 = vdwg.mxu0
        %1950 = vmatprep.subr.bf16.mxu0 %v1412
        %1951 = vmatpush1.bf16.msra.mxu0 %v1411
        %1952 = vmatprep.subr.bf16.mxu0 %v1425
        %1953 = vmatpush1.bf16.msra.mxu0 %v1424
        %1954 = vmatprep.subr.bf16.mxu0 %v1438
        %1955 = vmatpush1.bf16.msra.mxu0 %v1437
        %1956 = vmatprep.subr.bf16.mxu0 %v1451
        %1957 = vmatpush1.bf16.msra.mxu0 %v1450
        %1958 = vmatprep.subr.bf16.mxu0 %v1464
        %1959 = vmatpush1.bf16.msra.mxu0 %v1463
        %1960 = vmatprep.subr.bf16.mxu0 %v1477
        %1961 = vmatpush1.bf16.msra.mxu0 %v1476
        %1962 = vmatprep.subr.bf16.mxu0 %v1490
        %1963 = vmatpush1.bf16.msra.mxu0 %v1489
        %1964 = vmatprep.subr.bf16.mxu0 %v1503
        %1965 = vmatpush1.bf16.msra.mxu0 %v1502
        %1966 = vmatprep.subr.bf16.mxu0 %v1516
        %1967 = vmatpush1.bf16.msra.mxu0 %v1515
        %1968 = vmatprep.subr.bf16.mxu0 %v1529
        %1969 = vmatpush1.bf16.msra.mxu0 %v1528
        %1970 = vmatprep.subr.bf16.mxu0 %v1542
        %1971 = vmatpush1.bf16.msra.mxu0 %v1541
        %1972 = vmatprep.subr.bf16.mxu0 %v1555
        %1973 = vmatpush1.bf16.msra.mxu0 %v1554
        %1974 = vmatprep.subr.bf16.mxu0 %v1568
        %1975 = vmatpush1.bf16.msra.mxu0 %v1567
        %1976 = vmatprep.subr.bf16.mxu0 %v1581
        %1977 = vmatpush1.bf16.msra.mxu0 %v1580
        %1978 = vmatprep.subr.bf16.mxu0 %v1594
        %1979 = vmatpush1.bf16.msra.mxu0 %v1593
        %1980 = vmatprep.subr.bf16.mxu0 %v1607
        %1981 = vmatpush1.bf16.msra.mxu0 %v1606
        %1982 = vmatprep.mubr.bf16.mxu0 %v540
        %1983 = vmatmul.mubr.bf16.gmra.mrb[0].mxu0 %v539
        %v1984 = vpop.f32.mrb[0].mxu0
        %v1985 = vadd.f32 0.0, %v1984
        %v1986 = vpop.f32.mrb[0].mxu0
        %v1987 = vadd.f32 0.0, %v1986
        %v1988 = vpop.f32.mrb[0].mxu0
        %v1989 = vadd.f32 0.0, %v1988
        %v1990 = vpop.f32.mrb[0].mxu0
        %v1991 = vadd.f32 0.0, %v1990
        %1992 = vdwg.mxu0
        %1993 = vmatprep.subr.bf16.mxu0 %v1414
        %1994 = vmatpush1.bf16.msra.mxu0 %v1413
        %1995 = vmatprep.subr.bf16.mxu0 %v1427
        %1996 = vmatpush1.bf16.msra.mxu0 %v1426
        %1997 = vmatprep.subr.bf16.mxu0 %v1440
        %1998 = vmatpush1.bf16.msra.mxu0 %v1439
        %1999 = vmatprep.subr.bf16.mxu0 %v1453
        %2000 = vmatpush1.bf16.msra.mxu0 %v1452
        %2001 = vmatprep.subr.bf16.mxu0 %v1466
        %2002 = vmatpush1.bf16.msra.mxu0 %v1465
        %2003 = vmatprep.subr.bf16.mxu0 %v1479
        %2004 = vmatpush1.bf16.msra.mxu0 %v1478
        %2005 = vmatprep.subr.bf16.mxu0 %v1492
        %2006 = vmatpush1.bf16.msra.mxu0 %v1491
        %2007 = vmatprep.subr.bf16.mxu0 %v1505
        %2008 = vmatpush1.bf16.msra.mxu0 %v1504
        %2009 = vmatprep.subr.bf16.mxu0 %v1518
        %2010 = vmatpush1.bf16.msra.mxu0 %v1517
        %2011 = vmatprep.subr.bf16.mxu0 %v1531
        %2012 = vmatpush1.bf16.msra.mxu0 %v1530
        %2013 = vmatprep.subr.bf16.mxu0 %v1544
        %2014 = vmatpush1.bf16.msra.mxu0 %v1543
        %2015 = vmatprep.subr.bf16.mxu0 %v1557
        %2016 = vmatpush1.bf16.msra.mxu0 %v1556
        %2017 = vmatprep.subr.bf16.mxu0 %v1570
        %2018 = vmatpush1.bf16.msra.mxu0 %v1569
        %2019 = vmatprep.subr.bf16.mxu0 %v1583
        %2020 = vmatpush1.bf16.msra.mxu0 %v1582
        %2021 = vmatprep.subr.bf16.mxu0 %v1596
        %2022 = vmatpush1.bf16.msra.mxu0 %v1595
        %2023 = vmatprep.subr.bf16.mxu0 %v1609
        %2024 = vmatpush1.bf16.msra.mxu0 %v1608
        %2025 = vmatprep.mubr.bf16.mxu0 %v540
        %2026 = vmatmul.mubr.bf16.gmra.mrb[0].mxu0 %v539
        %v2027 = vpop.f32.mrb[0].mxu0
        %v2028 = vadd.f32 0.0, %v2027
        %v2029 = vpop.f32.mrb[0].mxu0
        %v2030 = vadd.f32 0.0, %v2029
        %v2031 = vpop.f32.mrb[0].mxu0
        %v2032 = vadd.f32 0.0, %v2031
        %v2033 = vpop.f32.mrb[0].mxu0
        %v2034 = vadd.f32 0.0, %v2033
        %2035 = vdwg.mxu0
        %2036 = vmatprep.subr.bf16.mxu0 %v1416
        %2037 = vmatpush1.bf16.msra.mxu0 %v1415
        %2038 = vmatprep.subr.bf16.mxu0 %v1429
        %2039 = vmatpush1.bf16.msra.mxu0 %v1428
        %2040 = vmatprep.subr.bf16.mxu0 %v1442
        %2041 = vmatpush1.bf16.msra.mxu0 %v1441
        %2042 = vmatprep.subr.bf16.mxu0 %v1455
        %2043 = vmatpush1.bf16.msra.mxu0 %v1454
        %2044 = vmatprep.subr.bf16.mxu0 %v1468
        %2045 = vmatpush1.bf16.msra.mxu0 %v1467
        %2046 = vmatprep.subr.bf16.mxu0 %v1481
        %2047 = vmatpush1.bf16.msra.mxu0 %v1480
        %2048 = vmatprep.subr.bf16.mxu0 %v1494
        %2049 = vmatpush1.bf16.msra.mxu0 %v1493
        %2050 = vmatprep.subr.bf16.mxu0 %v1507
        %2051 = vmatpush1.bf16.msra.mxu0 %v1506
        %2052 = vmatprep.subr.bf16.mxu0 %v1520
        %2053 = vmatpush1.bf16.msra.mxu0 %v1519
        %2054 = vmatprep.subr.bf16.mxu0 %v1533
        %2055 = vmatpush1.bf16.msra.mxu0 %v1532
        %2056 = vmatprep.subr.bf16.mxu0 %v1546
        %2057 = vmatpush1.bf16.msra.mxu0 %v1545
        %2058 = vmatprep.subr.bf16.mxu0 %v1559
        %2059 = vmatpush1.bf16.msra.mxu0 %v1558
        %2060 = vmatprep.subr.bf16.mxu0 %v1572
        %2061 = vmatpush1.bf16.msra.mxu0 %v1571
        %2062 = vmatprep.subr.bf16.mxu0 %v1585
        %2063 = vmatpush1.bf16.msra.mxu0 %v1584
        %2064 = vmatprep.subr.bf16.mxu0 %v1598
        %2065 = vmatpush1.bf16.msra.mxu0 %v1597
        %2066 = vmatprep.subr.bf16.mxu0 %v1611
        %2067 = vmatpush1.bf16.msra.mxu0 %v1610
        %2068 = vmatprep.mubr.bf16.mxu0 %v540
        %2069 = vmatmul.mubr.bf16.gmra.mrb[0].mxu0 %v539
        %v2070 = vpop.f32.mrb[0].mxu0
        %v2071 = vadd.f32 0.0, %v2070
        %v2072 = vpop.f32.mrb[0].mxu0
        %v2073 = vadd.f32 0.0, %v2072
        %v2074 = vpop.f32.mrb[0].mxu0
        %v2075 = vadd.f32 0.0, %v2074
        %v2076 = vpop.f32.mrb[0].mxu0
        %v2077 = vadd.f32 0.0, %v2076
        %2078 = vdwg.mxu0
        %2079 = vmatprep.subr.bf16.mxu0 0
        %2080 = vmatpush1.bf16.msra.mxu0 %v1417
        %2081 = vmatprep.subr.bf16.mxu0 0
        %2082 = vmatpush1.bf16.msra.mxu0 %v1430
        %2083 = vmatprep.subr.bf16.mxu0 0
        %2084 = vmatpush1.bf16.msra.mxu0 %v1443
        %2085 = vmatprep.subr.bf16.mxu0 0
        %2086 = vmatpush1.bf16.msra.mxu0 %v1456
        %2087 = vmatprep.subr.bf16.mxu0 0
        %2088 = vmatpush1.bf16.msra.mxu0 %v1469
        %2089 = vmatprep.subr.bf16.mxu0 0
        %2090 = vmatpush1.bf16.msra.mxu0 %v1482
        %2091 = vmatprep.subr.bf16.mxu0 0
        %2092 = vmatpush1.bf16.msra.mxu0 %v1495
        %2093 = vmatprep.subr.bf16.mxu0 0
        %2094 = vmatpush1.bf16.msra.mxu0 %v1508
        %2095 = vmatprep.subr.bf16.mxu0 0
        %2096 = vmatpush1.bf16.msra.mxu0 %v1521
        %2097 = vmatprep.subr.bf16.mxu0 0
        %2098 = vmatpush1.bf16.msra.mxu0 %v1534
        %2099 = vmatprep.subr.bf16.mxu0 0
        %2100 = vmatpush1.bf16.msra.mxu0 %v1547
        %2101 = vmatprep.subr.bf16.mxu0 0
        %2102 = vmatpush1.bf16.msra.mxu0 %v1560
        %2103 = vmatprep.subr.bf16.mxu0 0
        %2104 = vmatpush1.bf16.msra.mxu0 %v1573
        %2105 = vmatprep.subr.bf16.mxu0 0
        %2106 = vmatpush1.bf16.msra.mxu0 %v1586
        %2107 = vmatprep.subr.bf16.mxu0 0
        %2108 = vmatpush1.bf16.msra.mxu0 %v1599
        %2109 = vmatprep.subr.bf16.mxu0 0
        %2110 = vmatpush1.bf16.msra.mxu0 %v1612
        %2111 = vmatprep.mubr.bf16.mxu0 %v540
        %2112 = vmatmul.mubr.bf16.gmra.mrb[0].mxu0 %v539
        %v2113 = vpop.f32.mrb[0].mxu0
        %v2114 = vadd.f32 0.0, %v2113
        %v2115 = vpop.f32.mrb[0].mxu0
        %v2116 = vpop.f32.mrb[0].mxu0
        %v2117 = vadd.f32 0.0, %v2116
        %v2118 = vpop.f32.mrb[0].mxu0
        %2119 = vdwg.mxu0
        %v2120 = vpack.c.bf16 %v1860, %v1856
        %v2121 = vpack.c.bf16 %v1862, %v1858
        %v2122 = vpack.c.bf16 %v1903, %v1899
        %v2123 = vpack.c.bf16 %v1905, %v1901
        %v2124 = vpack.c.bf16 %v1946, %v1942
        %v2125 = vpack.c.bf16 %v1948, %v1944
        %v2126 = vpack.c.bf16 %v1989, %v1985
        %v2127 = vpack.c.bf16 %v1991, %v1987
        %v2128 = vpack.c.bf16 %v2032, %v2028
        %v2129 = vpack.c.bf16 %v2034, %v2030
        %v2130 = vpack.c.bf16 %v2075, %v2071
        %v2131 = vpack.c.bf16 %v2077, %v2073
        %v2132 = vpack.c.bf16 %v2117, %v2114
        %v2133 = vld [vmem:[%s4] sm:$0xf]
        %v2134 = vld [vmem:[%s4 + $0x4] sm:$0x3]
        %s2135 = scalar_lea.vmem %s4, 8
        %v2136 = vld [vmem:[%s2135] sm:$0xf]
        %v2137 = vld [vmem:[%s2135 + $0x4] sm:$0x3]
        %v2140 = vunpack.c.l.b16 %v2136
        %v2141 = vunpack.c.l.b16 %v2137
        %v2142 = vpack.c.b16 %v2141, %v2140
        %2144 = vrot.lane.b32.xlu0 %v2120, 64
        %v2145 = vpop.permute.xlu0 %2144
        %vm2146 = vcmask 97280
        %v2148 = vsel %vm2146, %v2142, 0
        %v2151 = vsel %vm467, %v2145, 0
        %2153 = vmatprep.subr.bf16.mxu0 0
        %2154 = vmatpush1.bf16.msra.mxu0 %v2151
        %2155 = vmatprep.subr.bf16.mxu0 0
        %2156 = vmatpush1.bf16.msra.mxu0 0
        %2157 = vmatprep.subr.bf16.mxu0 0
        %2158 = vmatpush1.bf16.msra.mxu0 0
        %2159 = vmatprep.subr.bf16.mxu0 0
        %2160 = vmatpush1.bf16.msra.mxu0 0
        %2161 = vmatprep.subr.bf16.mxu0 0
        %2162 = vmatpush1.bf16.msra.mxu0 0
        %2163 = vmatprep.subr.bf16.mxu0 0
        %2164 = vmatpush1.bf16.msra.mxu0 0
        %2165 = vmatprep.subr.bf16.mxu0 0
        %2166 = vmatpush1.bf16.msra.mxu0 0
        %2167 = vmatprep.subr.bf16.mxu0 0
        %2168 = vmatpush1.bf16.msra.mxu0 0
        %2169 = vmatprep.subr.bf16.mxu0 0
        %2170 = vmatpush1.bf16.msra.mxu0 0
        %2171 = vmatprep.subr.bf16.mxu0 0
        %2172 = vmatpush1.bf16.msra.mxu0 0
        %2173 = vmatprep.subr.bf16.mxu0 0
        %2174 = vmatpush1.bf16.msra.mxu0 0
        %2175 = vmatprep.subr.bf16.mxu0 0
        %2176 = vmatpush1.bf16.msra.mxu0 0
        %2177 = vmatprep.subr.bf16.mxu0 0
        %2178 = vmatpush1.bf16.msra.mxu0 0
        %2179 = vmatprep.subr.bf16.mxu0 0
        %2180 = vmatpush1.bf16.msra.mxu0 0
        %2181 = vmatprep.subr.bf16.mxu0 0
        %2182 = vmatpush1.bf16.msra.mxu0 0
        %2183 = vmatprep.subr.bf16.mxu0 0
        %2184 = vmatpush1.bf16.msra.mxu0 0
        %2185 = vmatprep.mubr.bf16.mxu0 0
        %2186 = vmatmul.mubr.bf16.gmra.mrb[0].mxu0 %v2148
        %v2187 = vpop.f32.mrb[0].mxu0
        %v2188 = vadd.f32 0.0, %v2187
        %v2189 = vpop.f32.mrb[0].mxu0
        %v2190 = vpop.f32.mrb[0].mxu0
        %v2191 = vadd.f32 0.0, %v2190
        %v2192 = vpop.f32.mrb[0].mxu0
        %2193 = vdwg.mxu0
        %v2196 = vunpack.c.l.b16 %v2133
        %v2197 = vunpack.c.l.b16 %v2134
        %v2198 = vpack.c.b16 %v2197, %v2196
        %v2200 = vsel %vm2146, %v2198, 0
        %v2203 = vsel %vm467, %v2120, 0
        %2205 = vmatprep.subr.bf16.mxu0 0
        %2206 = vmatpush1.bf16.msra.mxu0 %v2203
        %2207 = vmatprep.subr.bf16.mxu0 0
        %2208 = vmatpush1.bf16.msra.mxu0 0
        %2209 = vmatprep.subr.bf16.mxu0 0
        %2210 = vmatpush1.bf16.msra.mxu0 0
        %2211 = vmatprep.subr.bf16.mxu0 0
        %2212 = vmatpush1.bf16.msra.mxu0 0
        %2213 = vmatprep.subr.bf16.mxu0 0
        %2214 = vmatpush1.bf16.msra.mxu0 0
        %2215 = vmatprep.subr.bf16.mxu0 0
        %2216 = vmatpush1.bf16.msra.mxu0 0
        %2217 = vmatprep.subr.bf16.mxu0 0
        %2218 = vmatpush1.bf16.msra.mxu0 0
        %2219 = vmatprep.subr.bf16.mxu0 0
        %2220 = vmatpush1.bf16.msra.mxu0 0
        %2221 = vmatprep.subr.bf16.mxu0 0
        %2222 = vmatpush1.bf16.msra.mxu0 0
        %2223 = vmatprep.subr.bf16.mxu0 0
        %2224 = vmatpush1.bf16.msra.mxu0 0
        %2225 = vmatprep.subr.bf16.mxu0 0
        %2226 = vmatpush1.bf16.msra.mxu0 0
        %2227 = vmatprep.subr.bf16.mxu0 0
        %2228 = vmatpush1.bf16.msra.mxu0 0
        %2229 = vmatprep.subr.bf16.mxu0 0
        %2230 = vmatpush1.bf16.msra.mxu0 0
        %2231 = vmatprep.subr.bf16.mxu0 0
        %2232 = vmatpush1.bf16.msra.mxu0 0
        %2233 = vmatprep.subr.bf16.mxu0 0
        %2234 = vmatpush1.bf16.msra.mxu0 0
        %2235 = vmatprep.subr.bf16.mxu0 0
        %2236 = vmatpush1.bf16.msra.mxu0 0
        %2237 = vmatprep.mubr.bf16.mxu0 0
        %2238 = vmatmul.mubr.bf16.gmra.mrb[0].mxu0 %v2200
        %v2239 = vpop.f32.mrb[0].mxu0
        %v2240 = vadd.f32 %v2188, %v2239
        %v2241 = vpop.f32.mrb[0].mxu0
        %v2242 = vpop.f32.mrb[0].mxu0
        %v2243 = vadd.f32 %v2191, %v2242
        %v2244 = vpop.f32.mrb[0].mxu0
        %2245 = vdwg.mxu0
        %s2246 = scalar_lea.vmem %s4, 16
        %v2247 = vld [vmem:[%s2246] sm:$0xf]
        %v2248 = vld [vmem:[%s2246 + $0x4] sm:$0x3]
        %v2251 = vunpack.c.l.b16 %v2247
        %v2252 = vunpack.c.l.b16 %v2248
        %v2253 = vpack.c.b16 %v2252, %v2251
        %v2255 = vsel %vm2146, %v2253, 0
        %v2258 = vsel %vm467, %v2121, 0
        %2260 = vmatprep.subr.bf16.mxu0 0
        %2261 = vmatpush1.bf16.msra.mxu0 %v2258
        %2262 = vmatprep.subr.bf16.mxu0 0
        %2263 = vmatpush1.bf16.msra.mxu0 0
        %2264 = vmatprep.subr.bf16.mxu0 0
        %2265 = vmatpush1.bf16.msra.mxu0 0
        %2266 = vmatprep.subr.bf16.mxu0 0
        %2267 = vmatpush1.bf16.msra.mxu0 0
        %2268 = vmatprep.subr.bf16.mxu0 0
        %2269 = vmatpush1.bf16.msra.mxu0 0
        %2270 = vmatprep.subr.bf16.mxu0 0
        %2271 = vmatpush1.bf16.msra.mxu0 0
        %2272 = vmatprep.subr.bf16.mxu0 0
        %2273 = vmatpush1.bf16.msra.mxu0 0
        %2274 = vmatprep.subr.bf16.mxu0 0
        %2275 = vmatpush1.bf16.msra.mxu0 0
        %2276 = vmatprep.subr.bf16.mxu0 0
        %2277 = vmatpush1.bf16.msra.mxu0 0
        %2278 = vmatprep.subr.bf16.mxu0 0
        %2279 = vmatpush1.bf16.msra.mxu0 0
        %2280 = vmatprep.subr.bf16.mxu0 0
        %2281 = vmatpush1.bf16.msra.mxu0 0
        %2282 = vmatprep.subr.bf16.mxu0 0
        %2283 = vmatpush1.bf16.msra.mxu0 0
        %2284 = vmatprep.subr.bf16.mxu0 0
        %2285 = vmatpush1.bf16.msra.mxu0 0
        %2286 = vmatprep.subr.bf16.mxu0 0
        %2287 = vmatpush1.bf16.msra.mxu0 0
        %2288 = vmatprep.subr.bf16.mxu0 0
        %2289 = vmatpush1.bf16.msra.mxu0 0
        %2290 = vmatprep.subr.bf16.mxu0 0
        %2291 = vmatpush1.bf16.msra.mxu0 0
        %2292 = vmatprep.mubr.bf16.mxu0 0
        %2293 = vmatmul.mubr.bf16.gmra.mrb[0].mxu0 %v2255
        %v2294 = vpop.f32.mrb[0].mxu0
        %v2295 = vadd.f32 0.0, %v2294
        %v2296 = vpop.f32.mrb[0].mxu0
        %v2297 = vpop.f32.mrb[0].mxu0
        %v2298 = vadd.f32 0.0, %v2297
        %v2299 = vpop.f32.mrb[0].mxu0
        %2300 = vdwg.mxu0
        %v2301 = vadd.f32 %v2240, %v2295
        %v2302 = vadd.f32 %v2243, %v2298
        %s2303 = scalar_lea.vmem %s4, 24
        %v2304 = vld [vmem:[%s2303] sm:$0xf]
        %v2305 = vld [vmem:[%s2303 + $0x4] sm:$0x3]
        %v2308 = vunpack.c.l.b16 %v2304
        %v2309 = vunpack.c.l.b16 %v2305
        %v2310 = vpack.c.b16 %v2309, %v2308
        %2312 = vrot.lane.b32.xlu0 %v2121, 64
        %v2313 = vpop.permute.xlu0 %2312
        %v2315 = vsel %vm2146, %v2310, 0
        %v2318 = vsel %vm467, %v2313, 0
        %2320 = vmatprep.subr.bf16.mxu0 0
        %2321 = vmatpush1.bf16.msra.mxu0 %v2318
        %2322 = vmatprep.subr.bf16.mxu0 0
        %2323 = vmatpush1.bf16.msra.mxu0 0
        %2324 = vmatprep.subr.bf16.mxu0 0
        %2325 = vmatpush1.bf16.msra.mxu0 0
        %2326 = vmatprep.subr.bf16.mxu0 0
        %2327 = vmatpush1.bf16.msra.mxu0 0
        %2328 = vmatprep.subr.bf16.mxu0 0
        %2329 = vmatpush1.bf16.msra.mxu0 0
        %2330 = vmatprep.subr.bf16.mxu0 0
        %2331 = vmatpush1.bf16.msra.mxu0 0
        %2332 = vmatprep.subr.bf16.mxu0 0
        %2333 = vmatpush1.bf16.msra.mxu0 0
        %2334 = vmatprep.subr.bf16.mxu0 0
        %2335 = vmatpush1.bf16.msra.mxu0 0
        %2336 = vmatprep.subr.bf16.mxu0 0
        %2337 = vmatpush1.bf16.msra.mxu0 0
        %2338 = vmatprep.subr.bf16.mxu0 0
        %2339 = vmatpush1.bf16.msra.mxu0 0
        %2340 = vmatprep.subr.bf16.mxu0 0
        %2341 = vmatpush1.bf16.msra.mxu0 0
        %2342 = vmatprep.subr.bf16.mxu0 0
        %2343 = vmatpush1.bf16.msra.mxu0 0
        %2344 = vmatprep.subr.bf16.mxu0 0
        %2345 = vmatpush1.bf16.msra.mxu0 0
        %2346 = vmatprep.subr.bf16.mxu0 0
        %2347 = vmatpush1.bf16.msra.mxu0 0
        %2348 = vmatprep.subr.bf16.mxu0 0
        %2349 = vmatpush1.bf16.msra.mxu0 0
        %2350 = vmatprep.subr.bf16.mxu0 0
        %2351 = vmatpush1.bf16.msra.mxu0 0
        %2352 = vmatprep.mubr.bf16.mxu0 0
        %2353 = vmatmul.mubr.bf16.gmra.mrb[0].mxu0 %v2315
        %v2354 = vpop.f32.mrb[0].mxu0
        %v2355 = vadd.f32 0.0, %v2354
        %v2356 = vpop.f32.mrb[0].mxu0
        %v2357 = vpop.f32.mrb[0].mxu0
        %v2358 = vadd.f32 0.0, %v2357
        %v2359 = vpop.f32.mrb[0].mxu0
        %2360 = vdwg.mxu0
        %v2361 = vadd.f32 %v2301, %v2355
        %v2362 = vadd.f32 %v2302, %v2358
        %s2363 = scalar_lea.vmem %s4, 32
        %v2364 = vld [vmem:[%s2363] sm:$0xf]
        %v2365 = vld [vmem:[%s2363 + $0x4] sm:$0x3]
        %v2368 = vunpack.c.l.b16 %v2364
        %v2369 = vunpack.c.l.b16 %v2365
        %v2370 = vpack.c.b16 %v2369, %v2368
        %v2372 = vsel %vm2146, %v2370, 0
        %v2375 = vsel %vm467, %v2122, 0
        %2377 = vmatprep.subr.bf16.mxu0 0
        %2378 = vmatpush1.bf16.msra.mxu0 %v2375
        %2379 = vmatprep.subr.bf16.mxu0 0
        %2380 = vmatpush1.bf16.msra.mxu0 0
        %2381 = vmatprep.subr.bf16.mxu0 0
        %2382 = vmatpush1.bf16.msra.mxu0 0
        %2383 = vmatprep.subr.bf16.mxu0 0
        %2384 = vmatpush1.bf16.msra.mxu0 0
        %2385 = vmatprep.subr.bf16.mxu0 0
        %2386 = vmatpush1.bf16.msra.mxu0 0
        %2387 = vmatprep.subr.bf16.mxu0 0
        %2388 = vmatpush1.bf16.msra.mxu0 0
        %2389 = vmatprep.subr.bf16.mxu0 0
        %2390 = vmatpush1.bf16.msra.mxu0 0
        %2391 = vmatprep.subr.bf16.mxu0 0
        %2392 = vmatpush1.bf16.msra.mxu0 0
        %2393 = vmatprep.subr.bf16.mxu0 0
        %2394 = vmatpush1.bf16.msra.mxu0 0
        %2395 = vmatprep.subr.bf16.mxu0 0
        %2396 = vmatpush1.bf16.msra.mxu0 0
        %2397 = vmatprep.subr.bf16.mxu0 0
        %2398 = vmatpush1.bf16.msra.mxu0 0
        %2399 = vmatprep.subr.bf16.mxu0 0
        %2400 = vmatpush1.bf16.msra.mxu0 0
        %2401 = vmatprep.subr.bf16.mxu0 0
        %2402 = vmatpush1.bf16.msra.mxu0 0
        %2403 = vmatprep.subr.bf16.mxu0 0
        %2404 = vmatpush1.bf16.msra.mxu0 0
        %2405 = vmatprep.subr.bf16.mxu0 0
        %2406 = vmatpush1.bf16.msra.mxu0 0
        %2407 = vmatprep.subr.bf16.mxu0 0
        %2408 = vmatpush1.bf16.msra.mxu0 0
        %2409 = vmatprep.mubr.bf16.mxu0 0
        %2410 = vmatmul.mubr.bf16.gmra.mrb[0].mxu0 %v2372
        %v2411 = vpop.f32.mrb[0].mxu0
        %v2412 = vadd.f32 0.0, %v2411
        %v2413 = vpop.f32.mrb[0].mxu0
        %v2414 = vpop.f32.mrb[0].mxu0
        %v2415 = vadd.f32 0.0, %v2414
        %v2416 = vpop.f32.mrb[0].mxu0
        %2417 = vdwg.mxu0
        %v2418 = vadd.f32 %v2361, %v2412
        %v2419 = vadd.f32 %v2362, %v2415
        %s2420 = scalar_lea.vmem %s4, 40
        %v2421 = vld [vmem:[%s2420] sm:$0xf]
        %v2422 = vld [vmem:[%s2420 + $0x4] sm:$0x3]
        %v2425 = vunpack.c.l.b16 %v2421
        %v2426 = vunpack.c.l.b16 %v2422
        %v2427 = vpack.c.b16 %v2426, %v2425
        %2429 = vrot.lane.b32.xlu0 %v2122, 64
        %v2430 = vpop.permute.xlu0 %2429
        %v2432 = vsel %vm2146, %v2427, 0
        %v2435 = vsel %vm467, %v2430, 0
        %2437 = vmatprep.subr.bf16.mxu0 0
        %2438 = vmatpush1.bf16.msra.mxu0 %v2435
        %2439 = vmatprep.subr.bf16.mxu0 0
        %2440 = vmatpush1.bf16.msra.mxu0 0
        %2441 = vmatprep.subr.bf16.mxu0 0
        %2442 = vmatpush1.bf16.msra.mxu0 0
        %2443 = vmatprep.subr.bf16.mxu0 0
        %2444 = vmatpush1.bf16.msra.mxu0 0
        %2445 = vmatprep.subr.bf16.mxu0 0
        %2446 = vmatpush1.bf16.msra.mxu0 0
        %2447 = vmatprep.subr.bf16.mxu0 0
        %2448 = vmatpush1.bf16.msra.mxu0 0
        %2449 = vmatprep.subr.bf16.mxu0 0
        %2450 = vmatpush1.bf16.msra.mxu0 0
        %2451 = vmatprep.subr.bf16.mxu0 0
        %2452 = vmatpush1.bf16.msra.mxu0 0
        %2453 = vmatprep.subr.bf16.mxu0 0
        %2454 = vmatpush1.bf16.msra.mxu0 0
        %2455 = vmatprep.subr.bf16.mxu0 0
        %2456 = vmatpush1.bf16.msra.mxu0 0
        %2457 = vmatprep.subr.bf16.mxu0 0
        %2458 = vmatpush1.bf16.msra.mxu0 0
        %2459 = vmatprep.subr.bf16.mxu0 0
        %2460 = vmatpush1.bf16.msra.mxu0 0
        %2461 = vmatprep.subr.bf16.mxu0 0
        %2462 = vmatpush1.bf16.msra.mxu0 0
        %2463 = vmatprep.subr.bf16.mxu0 0
        %2464 = vmatpush1.bf16.msra.mxu0 0
        %2465 = vmatprep.subr.bf16.mxu0 0
        %2466 = vmatpush1.bf16.msra.mxu0 0
        %2467 = vmatprep.subr.bf16.mxu0 0
        %2468 = vmatpush1.bf16.msra.mxu0 0
        %2469 = vmatprep.mubr.bf16.mxu0 0
        %2470 = vmatmul.mubr.bf16.gmra.mrb[0].mxu0 %v2432
        %v2471 = vpop.f32.mrb[0].mxu0
        %v2472 = vadd.f32 0.0, %v2471
        %v2473 = vpop.f32.mrb[0].mxu0
        %v2474 = vpop.f32.mrb[0].mxu0
        %v2475 = vadd.f32 0.0, %v2474
        %v2476 = vpop.f32.mrb[0].mxu0
        %2477 = vdwg.mxu0
        %v2478 = vadd.f32 %v2418, %v2472
        %v2479 = vadd.f32 %v2419, %v2475
        %s2480 = scalar_lea.vmem %s4, 48
        %v2481 = vld [vmem:[%s2480] sm:$0xf]
        %v2482 = vld [vmem:[%s2480 + $0x4] sm:$0x3]
        %v2485 = vunpack.c.l.b16 %v2481
        %v2486 = vunpack.c.l.b16 %v2482
        %v2487 = vpack.c.b16 %v2486, %v2485
        %v2489 = vsel %vm2146, %v2487, 0
        %v2492 = vsel %vm467, %v2123, 0
        %2494 = vmatprep.subr.bf16.mxu0 0
        %2495 = vmatpush1.bf16.msra.mxu0 %v2492
        %2496 = vmatprep.subr.bf16.mxu0 0
        %2497 = vmatpush1.bf16.msra.mxu0 0
        %2498 = vmatprep.subr.bf16.mxu0 0
        %2499 = vmatpush1.bf16.msra.mxu0 0
        %2500 = vmatprep.subr.bf16.mxu0 0
        %2501 = vmatpush1.bf16.msra.mxu0 0
        %2502 = vmatprep.subr.bf16.mxu0 0
        %2503 = vmatpush1.bf16.msra.mxu0 0
        %2504 = vmatprep.subr.bf16.mxu0 0
        %2505 = vmatpush1.bf16.msra.mxu0 0
        %2506 = vmatprep.subr.bf16.mxu0 0
        %2507 = vmatpush1.bf16.msra.mxu0 0
        %2508 = vmatprep.subr.bf16.mxu0 0
        %2509 = vmatpush1.bf16.msra.mxu0 0
        %2510 = vmatprep.subr.bf16.mxu0 0
        %2511 = vmatpush1.bf16.msra.mxu0 0
        %2512 = vmatprep.subr.bf16.mxu0 0
        %2513 = vmatpush1.bf16.msra.mxu0 0
        %2514 = vmatprep.subr.bf16.mxu0 0
        %2515 = vmatpush1.bf16.msra.mxu0 0
        %2516 = vmatprep.subr.bf16.mxu0 0
        %2517 = vmatpush1.bf16.msra.mxu0 0
        %2518 = vmatprep.subr.bf16.mxu0 0
        %2519 = vmatpush1.bf16.msra.mxu0 0
        %2520 = vmatprep.subr.bf16.mxu0 0
        %2521 = vmatpush1.bf16.msra.mxu0 0
        %2522 = vmatprep.subr.bf16.mxu0 0
        %2523 = vmatpush1.bf16.msra.mxu0 0
        %2524 = vmatprep.subr.bf16.mxu0 0
        %2525 = vmatpush1.bf16.msra.mxu0 0
        %2526 = vmatprep.mubr.bf16.mxu0 0
        %2527 = vmatmul.mubr.bf16.gmra.mrb[0].mxu0 %v2489
        %v2528 = vpop.f32.mrb[0].mxu0
        %v2529 = vadd.f32 0.0, %v2528
        %v2530 = vpop.f32.mrb[0].mxu0
        %v2531 = vpop.f32.mrb[0].mxu0
        %v2532 = vadd.f32 0.0, %v2531
        %v2533 = vpop.f32.mrb[0].mxu0
        %2534 = vdwg.mxu0
        %v2535 = vadd.f32 %v2478, %v2529
        %v2536 = vadd.f32 %v2479, %v2532
        %s2537 = scalar_lea.vmem %s4, 56
        %v2538 = vld [vmem:[%s2537] sm:$0xf]
        %v2539 = vld [vmem:[%s2537 + $0x4] sm:$0x3]
        %v2542 = vunpack.c.l.b16 %v2538
        %v2543 = vunpack.c.l.b16 %v2539
        %v2544 = vpack.c.b16 %v2543, %v2542
        %2546 = vrot.lane.b32.xlu0 %v2123, 64
        %v2547 = vpop.permute.xlu0 %2546
        %v2549 = vsel %vm2146, %v2544, 0
        %v2552 = vsel %vm467, %v2547, 0
        %2554 = vmatprep.subr.bf16.mxu0 0
        %2555 = vmatpush1.bf16.msra.mxu0 %v2552
        %2556 = vmatprep.subr.bf16.mxu0 0
        %2557 = vmatpush1.bf16.msra.mxu0 0
        %2558 = vmatprep.subr.bf16.mxu0 0
        %2559 = vmatpush1.bf16.msra.mxu0 0
        %2560 = vmatprep.subr.bf16.mxu0 0
        %2561 = vmatpush1.bf16.msra.mxu0 0
        %2562 = vmatprep.subr.bf16.mxu0 0
        %2563 = vmatpush1.bf16.msra.mxu0 0
        %2564 = vmatprep.subr.bf16.mxu0 0
        %2565 = vmatpush1.bf16.msra.mxu0 0
        %2566 = vmatprep.subr.bf16.mxu0 0
        %2567 = vmatpush1.bf16.msra.mxu0 0
        %2568 = vmatprep.subr.bf16.mxu0 0
        %2569 = vmatpush1.bf16.msra.mxu0 0
        %2570 = vmatprep.subr.bf16.mxu0 0
        %2571 = vmatpush1.bf16.msra.mxu0 0
        %2572 = vmatprep.subr.bf16.mxu0 0
        %2573 = vmatpush1.bf16.msra.mxu0 0
        %2574 = vmatprep.subr.bf16.mxu0 0
        %2575 = vmatpush1.bf16.msra.mxu0 0
        %2576 = vmatprep.subr.bf16.mxu0 0
        %2577 = vmatpush1.bf16.msra.mxu0 0
        %2578 = vmatprep.subr.bf16.mxu0 0
        %2579 = vmatpush1.bf16.msra.mxu0 0
        %2580 = vmatprep.subr.bf16.mxu0 0
        %2581 = vmatpush1.bf16.msra.mxu0 0
        %2582 = vmatprep.subr.bf16.mxu0 0
        %2583 = vmatpush1.bf16.msra.mxu0 0
        %2584 = vmatprep.subr.bf16.mxu0 0
        %2585 = vmatpush1.bf16.msra.mxu0 0
        %2586 = vmatprep.mubr.bf16.mxu0 0
        %2587 = vmatmul.mubr.bf16.gmra.mrb[0].mxu0 %v2549
        %v2588 = vpop.f32.mrb[0].mxu0
        %v2589 = vadd.f32 0.0, %v2588
        %v2590 = vpop.f32.mrb[0].mxu0
        %v2591 = vpop.f32.mrb[0].mxu0
        %v2592 = vadd.f32 0.0, %v2591
        %v2593 = vpop.f32.mrb[0].mxu0
        %2594 = vdwg.mxu0
        %v2595 = vadd.f32 %v2535, %v2589
        %v2596 = vadd.f32 %v2536, %v2592
        %s2597 = scalar_lea.vmem %s4, 64
        %v2598 = vld [vmem:[%s2597] sm:$0xf]
        %v2599 = vld [vmem:[%s2597 + $0x4] sm:$0x3]
        %v2602 = vunpack.c.l.b16 %v2598
        %v2603 = vunpack.c.l.b16 %v2599
        %v2604 = vpack.c.b16 %v2603, %v2602
        %v2606 = vsel %vm2146, %v2604, 0
        %v2609 = vsel %vm467, %v2124, 0
        %2611 = vmatprep.subr.bf16.mxu0 0
        %2612 = vmatpush1.bf16.msra.mxu0 %v2609
        %2613 = vmatprep.subr.bf16.mxu0 0
        %2614 = vmatpush1.bf16.msra.mxu0 0
        %2615 = vmatprep.subr.bf16.mxu0 0
        %2616 = vmatpush1.bf16.msra.mxu0 0
        %2617 = vmatprep.subr.bf16.mxu0 0
        %2618 = vmatpush1.bf16.msra.mxu0 0
        %2619 = vmatprep.subr.bf16.mxu0 0
        %2620 = vmatpush1.bf16.msra.mxu0 0
        %2621 = vmatprep.subr.bf16.mxu0 0
        %2622 = vmatpush1.bf16.msra.mxu0 0
        %2623 = vmatprep.subr.bf16.mxu0 0
        %2624 = vmatpush1.bf16.msra.mxu0 0
        %2625 = vmatprep.subr.bf16.mxu0 0
        %2626 = vmatpush1.bf16.msra.mxu0 0
        %2627 = vmatprep.subr.bf16.mxu0 0
        %2628 = vmatpush1.bf16.msra.mxu0 0
        %2629 = vmatprep.subr.bf16.mxu0 0
        %2630 = vmatpush1.bf16.msra.mxu0 0
        %2631 = vmatprep.subr.bf16.mxu0 0
        %2632 = vmatpush1.bf16.msra.mxu0 0
        %2633 = vmatprep.subr.bf16.mxu0 0
        %2634 = vmatpush1.bf16.msra.mxu0 0
        %2635 = vmatprep.subr.bf16.mxu0 0
        %2636 = vmatpush1.bf16.msra.mxu0 0
        %2637 = vmatprep.subr.bf16.mxu0 0
        %2638 = vmatpush1.bf16.msra.mxu0 0
        %2639 = vmatprep.subr.bf16.mxu0 0
        %2640 = vmatpush1.bf16.msra.mxu0 0
        %2641 = vmatprep.subr.bf16.mxu0 0
        %2642 = vmatpush1.bf16.msra.mxu0 0
        %2643 = vmatprep.mubr.bf16.mxu0 0
        %2644 = vmatmul.mubr.bf16.gmra.mrb[0].mxu0 %v2606
        %v2645 = vpop.f32.mrb[0].mxu0
        %v2646 = vadd.f32 0.0, %v2645
        %v2647 = vpop.f32.mrb[0].mxu0
        %v2648 = vpop.f32.mrb[0].mxu0
        %v2649 = vadd.f32 0.0, %v2648
        %v2650 = vpop.f32.mrb[0].mxu0
        %2651 = vdwg.mxu0
        %v2652 = vadd.f32 %v2595, %v2646
        %v2653 = vadd.f32 %v2596, %v2649
        %s2654 = scalar_lea.vmem %s4, 72
        %v2655 = vld [vmem:[%s2654] sm:$0xf]
        %v2656 = vld [vmem:[%s2654 + $0x4] sm:$0x3]
        %v2659 = vunpack.c.l.b16 %v2655
        %v2660 = vunpack.c.l.b16 %v2656
        %v2661 = vpack.c.b16 %v2660, %v2659
        %2663 = vrot.lane.b32.xlu0 %v2124, 64
        %v2664 = vpop.permute.xlu0 %2663
        %v2666 = vsel %vm2146, %v2661, 0
        %v2669 = vsel %vm467, %v2664, 0
        %2671 = vmatprep.subr.bf16.mxu0 0
        %2672 = vmatpush1.bf16.msra.mxu0 %v2669
        %2673 = vmatprep.subr.bf16.mxu0 0
        %2674 = vmatpush1.bf16.msra.mxu0 0
        %2675 = vmatprep.subr.bf16.mxu0 0
        %2676 = vmatpush1.bf16.msra.mxu0 0
        %2677 = vmatprep.subr.bf16.mxu0 0
        %2678 = vmatpush1.bf16.msra.mxu0 0
        %2679 = vmatprep.subr.bf16.mxu0 0
        %2680 = vmatpush1.bf16.msra.mxu0 0
        %2681 = vmatprep.subr.bf16.mxu0 0
        %2682 = vmatpush1.bf16.msra.mxu0 0
        %2683 = vmatprep.subr.bf16.mxu0 0
        %2684 = vmatpush1.bf16.msra.mxu0 0
        %2685 = vmatprep.subr.bf16.mxu0 0
        %2686 = vmatpush1.bf16.msra.mxu0 0
        %2687 = vmatprep.subr.bf16.mxu0 0
        %2688 = vmatpush1.bf16.msra.mxu0 0
        %2689 = vmatprep.subr.bf16.mxu0 0
        %2690 = vmatpush1.bf16.msra.mxu0 0
        %2691 = vmatprep.subr.bf16.mxu0 0
        %2692 = vmatpush1.bf16.msra.mxu0 0
        %2693 = vmatprep.subr.bf16.mxu0 0
        %2694 = vmatpush1.bf16.msra.mxu0 0
        %2695 = vmatprep.subr.bf16.mxu0 0
        %2696 = vmatpush1.bf16.msra.mxu0 0
        %2697 = vmatprep.subr.bf16.mxu0 0
        %2698 = vmatpush1.bf16.msra.mxu0 0
        %2699 = vmatprep.subr.bf16.mxu0 0
        %2700 = vmatpush1.bf16.msra.mxu0 0
        %2701 = vmatprep.subr.bf16.mxu0 0
        %2702 = vmatpush1.bf16.msra.mxu0 0
        %2703 = vmatprep.mubr.bf16.mxu0 0
        %2704 = vmatmul.mubr.bf16.gmra.mrb[0].mxu0 %v2666
        %v2705 = vpop.f32.mrb[0].mxu0
        %v2706 = vadd.f32 0.0, %v2705
        %v2707 = vpop.f32.mrb[0].mxu0
        %v2708 = vpop.f32.mrb[0].mxu0
        %v2709 = vadd.f32 0.0, %v2708
        %v2710 = vpop.f32.mrb[0].mxu0
        %2711 = vdwg.mxu0
        %v2712 = vadd.f32 %v2652, %v2706
        %v2713 = vadd.f32 %v2653, %v2709
        %s2714 = scalar_lea.vmem %s4, 80
        %v2715 = vld [vmem:[%s2714] sm:$0xf]
        %v2716 = vld [vmem:[%s2714 + $0x4] sm:$0x3]
        %v2719 = vunpack.c.l.b16 %v2715
        %v2720 = vunpack.c.l.b16 %v2716
        %v2721 = vpack.c.b16 %v2720, %v2719
        %v2723 = vsel %vm2146, %v2721, 0
        %v2726 = vsel %vm467, %v2125, 0
        %2728 = vmatprep.subr.bf16.mxu0 0
        %2729 = vmatpush1.bf16.msra.mxu0 %v2726
        %2730 = vmatprep.subr.bf16.mxu0 0
        %2731 = vmatpush1.bf16.msra.mxu0 0
        %2732 = vmatprep.subr.bf16.mxu0 0
        %2733 = vmatpush1.bf16.msra.mxu0 0
        %2734 = vmatprep.subr.bf16.mxu0 0
        %2735 = vmatpush1.bf16.msra.mxu0 0
        %2736 = vmatprep.subr.bf16.mxu0 0
        %2737 = vmatpush1.bf16.msra.mxu0 0
        %2738 = vmatprep.subr.bf16.mxu0 0
        %2739 = vmatpush1.bf16.msra.mxu0 0
        %2740 = vmatprep.subr.bf16.mxu0 0
        %2741 = vmatpush1.bf16.msra.mxu0 0
        %2742 = vmatprep.subr.bf16.mxu0 0
        %2743 = vmatpush1.bf16.msra.mxu0 0
        %2744 = vmatprep.subr.bf16.mxu0 0
        %2745 = vmatpush1.bf16.msra.mxu0 0
        %2746 = vmatprep.subr.bf16.mxu0 0
        %2747 = vmatpush1.bf16.msra.mxu0 0
        %2748 = vmatprep.subr.bf16.mxu0 0
        %2749 = vmatpush1.bf16.msra.mxu0 0
        %2750 = vmatprep.subr.bf16.mxu0 0
        %2751 = vmatpush1.bf16.msra.mxu0 0
        %2752 = vmatprep.subr.bf16.mxu0 0
        %2753 = vmatpush1.bf16.msra.mxu0 0
        %2754 = vmatprep.subr.bf16.mxu0 0
        %2755 = vmatpush1.bf16.msra.mxu0 0
        %2756 = vmatprep.subr.bf16.mxu0 0
        %2757 = vmatpush1.bf16.msra.mxu0 0
        %2758 = vmatprep.subr.bf16.mxu0 0
        %2759 = vmatpush1.bf16.msra.mxu0 0
        %2760 = vmatprep.mubr.bf16.mxu0 0
        %2761 = vmatmul.mubr.bf16.gmra.mrb[0].mxu0 %v2723
        %v2762 = vpop.f32.mrb[0].mxu0
        %v2763 = vadd.f32 0.0, %v2762
        %v2764 = vpop.f32.mrb[0].mxu0
        %v2765 = vpop.f32.mrb[0].mxu0
        %v2766 = vadd.f32 0.0, %v2765
        %v2767 = vpop.f32.mrb[0].mxu0
        %2768 = vdwg.mxu0
        %v2769 = vadd.f32 %v2712, %v2763
        %v2770 = vadd.f32 %v2713, %v2766
        %s2771 = scalar_lea.vmem %s4, 88
        %v2772 = vld [vmem:[%s2771] sm:$0xf]
        %v2773 = vld [vmem:[%s2771 + $0x4] sm:$0x3]
        %v2776 = vunpack.c.l.b16 %v2772
        %v2777 = vunpack.c.l.b16 %v2773
        %v2778 = vpack.c.b16 %v2777, %v2776
        %2780 = vrot.lane.b32.xlu0 %v2125, 64
        %v2781 = vpop.permute.xlu0 %2780
        %v2783 = vsel %vm2146, %v2778, 0
        %v2786 = vsel %vm467, %v2781, 0
        %2788 = vmatprep.subr.bf16.mxu0 0
        %2789 = vmatpush1.bf16.msra.mxu0 %v2786
        %2790 = vmatprep.subr.bf16.mxu0 0
        %2791 = vmatpush1.bf16.msra.mxu0 0
        %2792 = vmatprep.subr.bf16.mxu0 0
        %2793 = vmatpush1.bf16.msra.mxu0 0
        %2794 = vmatprep.subr.bf16.mxu0 0
        %2795 = vmatpush1.bf16.msra.mxu0 0
        %2796 = vmatprep.subr.bf16.mxu0 0
        %2797 = vmatpush1.bf16.msra.mxu0 0
        %2798 = vmatprep.subr.bf16.mxu0 0
        %2799 = vmatpush1.bf16.msra.mxu0 0
        %2800 = vmatprep.subr.bf16.mxu0 0
        %2801 = vmatpush1.bf16.msra.mxu0 0
        %2802 = vmatprep.subr.bf16.mxu0 0
        %2803 = vmatpush1.bf16.msra.mxu0 0
        %2804 = vmatprep.subr.bf16.mxu0 0
        %2805 = vmatpush1.bf16.msra.mxu0 0
        %2806 = vmatprep.subr.bf16.mxu0 0
        %2807 = vmatpush1.bf16.msra.mxu0 0
        %2808 = vmatprep.subr.bf16.mxu0 0
        %2809 = vmatpush1.bf16.msra.mxu0 0
        %2810 = vmatprep.subr.bf16.mxu0 0
        %2811 = vmatpush1.bf16.msra.mxu0 0
        %2812 = vmatprep.subr.bf16.mxu0 0
        %2813 = vmatpush1.bf16.msra.mxu0 0
        %2814 = vmatprep.subr.bf16.mxu0 0
        %2815 = vmatpush1.bf16.msra.mxu0 0
        %2816 = vmatprep.subr.bf16.mxu0 0
        %2817 = vmatpush1.bf16.msra.mxu0 0
        %2818 = vmatprep.subr.bf16.mxu0 0
        %2819 = vmatpush1.bf16.msra.mxu0 0
        %2820 = vmatprep.mubr.bf16.mxu0 0
        %2821 = vmatmul.mubr.bf16.gmra.mrb[0].mxu0 %v2783
        %v2822 = vpop.f32.mrb[0].mxu0
        %v2823 = vadd.f32 0.0, %v2822
        %v2824 = vpop.f32.mrb[0].mxu0
        %v2825 = vpop.f32.mrb[0].mxu0
        %v2826 = vadd.f32 0.0, %v2825
        %v2827 = vpop.f32.mrb[0].mxu0
        %2828 = vdwg.mxu0
        %v2829 = vadd.f32 %v2769, %v2823
        %v2830 = vadd.f32 %v2770, %v2826
        %s2831 = scalar_lea.vmem %s4, 96
        %v2832 = vld [vmem:[%s2831] sm:$0xf]
        %v2833 = vld [vmem:[%s2831 + $0x4] sm:$0x3]
        %v2836 = vunpack.c.l.b16 %v2832
        %v2837 = vunpack.c.l.b16 %v2833
        %v2838 = vpack.c.b16 %v2837, %v2836
        %v2840 = vsel %vm2146, %v2838, 0
        %v2843 = vsel %vm467, %v2126, 0
        %2845 = vmatprep.subr.bf16.mxu0 0
        %2846 = vmatpush1.bf16.msra.mxu0 %v2843
        %2847 = vmatprep.subr.bf16.mxu0 0
        %2848 = vmatpush1.bf16.msra.mxu0 0
        %2849 = vmatprep.subr.bf16.mxu0 0
        %2850 = vmatpush1.bf16.msra.mxu0 0
        %2851 = vmatprep.subr.bf16.mxu0 0
        %2852 = vmatpush1.bf16.msra.mxu0 0
        %2853 = vmatprep.subr.bf16.mxu0 0
        %2854 = vmatpush1.bf16.msra.mxu0 0
        %2855 = vmatprep.subr.bf16.mxu0 0
        %2856 = vmatpush1.bf16.msra.mxu0 0
        %2857 = vmatprep.subr.bf16.mxu0 0
        %2858 = vmatpush1.bf16.msra.mxu0 0
        %2859 = vmatprep.subr.bf16.mxu0 0
        %2860 = vmatpush1.bf16.msra.mxu0 0
        %2861 = vmatprep.subr.bf16.mxu0 0
        %2862 = vmatpush1.bf16.msra.mxu0 0
        %2863 = vmatprep.subr.bf16.mxu0 0
        %2864 = vmatpush1.bf16.msra.mxu0 0
        %2865 = vmatprep.subr.bf16.mxu0 0
        %2866 = vmatpush1.bf16.msra.mxu0 0
        %2867 = vmatprep.subr.bf16.mxu0 0
        %2868 = vmatpush1.bf16.msra.mxu0 0
        %2869 = vmatprep.subr.bf16.mxu0 0
        %2870 = vmatpush1.bf16.msra.mxu0 0
        %2871 = vmatprep.subr.bf16.mxu0 0
        %2872 = vmatpush1.bf16.msra.mxu0 0
        %2873 = vmatprep.subr.bf16.mxu0 0
        %2874 = vmatpush1.bf16.msra.mxu0 0
        %2875 = vmatprep.subr.bf16.mxu0 0
        %2876 = vmatpush1.bf16.msra.mxu0 0
        %2877 = vmatprep.mubr.bf16.mxu0 0
        %2878 = vmatmul.mubr.bf16.gmra.mrb[0].mxu0 %v2840
        %v2879 = vpop.f32.mrb[0].mxu0
        %v2880 = vadd.f32 0.0, %v2879
        %v2881 = vpop.f32.mrb[0].mxu0
        %v2882 = vpop.f32.mrb[0].mxu0
        %v2883 = vadd.f32 0.0, %v2882
        %v2884 = vpop.f32.mrb[0].mxu0
        %2885 = vdwg.mxu0
        %v2886 = vadd.f32 %v2829, %v2880
        %v2887 = vadd.f32 %v2830, %v2883
        %s2888 = scalar_lea.vmem %s4, 104
        %v2889 = vld [vmem:[%s2888] sm:$0xf]
        %v2890 = vld [vmem:[%s2888 + $0x4] sm:$0x3]
        %v2893 = vunpack.c.l.b16 %v2889
        %v2894 = vunpack.c.l.b16 %v2890
        %v2895 = vpack.c.b16 %v2894, %v2893
        %2897 = vrot.lane.b32.xlu0 %v2126, 64
        %v2898 = vpop.permute.xlu0 %2897
        %v2900 = vsel %vm2146, %v2895, 0
        %v2903 = vsel %vm467, %v2898, 0
        %2905 = vmatprep.subr.bf16.mxu0 0
        %2906 = vmatpush1.bf16.msra.mxu0 %v2903
        %2907 = vmatprep.subr.bf16.mxu0 0
        %2908 = vmatpush1.bf16.msra.mxu0 0
        %2909 = vmatprep.subr.bf16.mxu0 0
        %2910 = vmatpush1.bf16.msra.mxu0 0
        %2911 = vmatprep.subr.bf16.mxu0 0
        %2912 = vmatpush1.bf16.msra.mxu0 0
        %2913 = vmatprep.subr.bf16.mxu0 0
        %2914 = vmatpush1.bf16.msra.mxu0 0
        %2915 = vmatprep.subr.bf16.mxu0 0
        %2916 = vmatpush1.bf16.msra.mxu0 0
        %2917 = vmatprep.subr.bf16.mxu0 0
        %2918 = vmatpush1.bf16.msra.mxu0 0
        %2919 = vmatprep.subr.bf16.mxu0 0
        %2920 = vmatpush1.bf16.msra.mxu0 0
        %2921 = vmatprep.subr.bf16.mxu0 0
        %2922 = vmatpush1.bf16.msra.mxu0 0
        %2923 = vmatprep.subr.bf16.mxu0 0
        %2924 = vmatpush1.bf16.msra.mxu0 0
        %2925 = vmatprep.subr.bf16.mxu0 0
        %2926 = vmatpush1.bf16.msra.mxu0 0
        %2927 = vmatprep.subr.bf16.mxu0 0
        %2928 = vmatpush1.bf16.msra.mxu0 0
        %2929 = vmatprep.subr.bf16.mxu0 0
        %2930 = vmatpush1.bf16.msra.mxu0 0
        %2931 = vmatprep.subr.bf16.mxu0 0
        %2932 = vmatpush1.bf16.msra.mxu0 0
        %2933 = vmatprep.subr.bf16.mxu0 0
        %2934 = vmatpush1.bf16.msra.mxu0 0
        %2935 = vmatprep.subr.bf16.mxu0 0
        %2936 = vmatpush1.bf16.msra.mxu0 0
        %2937 = vmatprep.mubr.bf16.mxu0 0
        %2938 = vmatmul.mubr.bf16.gmra.mrb[0].mxu0 %v2900
        %v2939 = vpop.f32.mrb[0].mxu0
        %v2940 = vadd.f32 0.0, %v2939
        %v2941 = vpop.f32.mrb[0].mxu0
        %v2942 = vpop.f32.mrb[0].mxu0
        %v2943 = vadd.f32 0.0, %v2942
        %v2944 = vpop.f32.mrb[0].mxu0
        %2945 = vdwg.mxu0
        %v2946 = vadd.f32 %v2886, %v2940
        %v2947 = vadd.f32 %v2887, %v2943
        %s2948 = scalar_lea.vmem %s4, 112
        %v2949 = vld [vmem:[%s2948] sm:$0xf]
        %v2950 = vld [vmem:[%s2948 + $0x4] sm:$0x3]
        %v2953 = vunpack.c.l.b16 %v2949
        %v2954 = vunpack.c.l.b16 %v2950
        %v2955 = vpack.c.b16 %v2954, %v2953
        %v2957 = vsel %vm2146, %v2955, 0
        %v2960 = vsel %vm467, %v2127, 0
        %2962 = vmatprep.subr.bf16.mxu0 0
        %2963 = vmatpush1.bf16.msra.mxu0 %v2960
        %2964 = vmatprep.subr.bf16.mxu0 0
        %2965 = vmatpush1.bf16.msra.mxu0 0
        %2966 = vmatprep.subr.bf16.mxu0 0
        %2967 = vmatpush1.bf16.msra.mxu0 0
        %2968 = vmatprep.subr.bf16.mxu0 0
        %2969 = vmatpush1.bf16.msra.mxu0 0
        %2970 = vmatprep.subr.bf16.mxu0 0
        %2971 = vmatpush1.bf16.msra.mxu0 0
        %2972 = vmatprep.subr.bf16.mxu0 0
        %2973 = vmatpush1.bf16.msra.mxu0 0
        %2974 = vmatprep.subr.bf16.mxu0 0
        %2975 = vmatpush1.bf16.msra.mxu0 0
        %2976 = vmatprep.subr.bf16.mxu0 0
        %2977 = vmatpush1.bf16.msra.mxu0 0
        %2978 = vmatprep.subr.bf16.mxu0 0
        %2979 = vmatpush1.bf16.msra.mxu0 0
        %2980 = vmatprep.subr.bf16.mxu0 0
        %2981 = vmatpush1.bf16.msra.mxu0 0
        %2982 = vmatprep.subr.bf16.mxu0 0
        %2983 = vmatpush1.bf16.msra.mxu0 0
        %2984 = vmatprep.subr.bf16.mxu0 0
        %2985 = vmatpush1.bf16.msra.mxu0 0
        %2986 = vmatprep.subr.bf16.mxu0 0
        %2987 = vmatpush1.bf16.msra.mxu0 0
        %2988 = vmatprep.subr.bf16.mxu0 0
        %2989 = vmatpush1.bf16.msra.mxu0 0
        %2990 = vmatprep.subr.bf16.mxu0 0
        %2991 = vmatpush1.bf16.msra.mxu0 0
        %2992 = vmatprep.subr.bf16.mxu0 0
        %2993 = vmatpush1.bf16.msra.mxu0 0
        %2994 = vmatprep.mubr.bf16.mxu0 0
        %2995 = vmatmul.mubr.bf16.gmra.mrb[0].mxu0 %v2957
        %v2996 = vpop.f32.mrb[0].mxu0
        %v2997 = vadd.f32 0.0, %v2996
        %v2998 = vpop.f32.mrb[0].mxu0
        %v2999 = vpop.f32.mrb[0].mxu0
        %v3000 = vadd.f32 0.0, %v2999
        %v3001 = vpop.f32.mrb[0].mxu0
        %3002 = vdwg.mxu0
        %v3003 = vadd.f32 %v2946, %v2997
        %v3004 = vadd.f32 %v2947, %v3000
        %s3005 = scalar_lea.vmem %s4, 120
        %v3006 = vld [vmem:[%s3005] sm:$0xf]
        %v3007 = vld [vmem:[%s3005 + $0x4] sm:$0x3]
        %v3010 = vunpack.c.l.b16 %v3006
        %v3011 = vunpack.c.l.b16 %v3007
        %v3012 = vpack.c.b16 %v3011, %v3010
        %3014 = vrot.lane.b32.xlu0 %v2127, 64
        %v3015 = vpop.permute.xlu0 %3014
        %v3017 = vsel %vm2146, %v3012, 0
        %v3020 = vsel %vm467, %v3015, 0
        %3022 = vmatprep.subr.bf16.mxu0 0
        %3023 = vmatpush1.bf16.msra.mxu0 %v3020
        %3024 = vmatprep.subr.bf16.mxu0 0
        %3025 = vmatpush1.bf16.msra.mxu0 0
        %3026 = vmatprep.subr.bf16.mxu0 0
        %3027 = vmatpush1.bf16.msra.mxu0 0
        %3028 = vmatprep.subr.bf16.mxu0 0
        %3029 = vmatpush1.bf16.msra.mxu0 0
        %3030 = vmatprep.subr.bf16.mxu0 0
        %3031 = vmatpush1.bf16.msra.mxu0 0
        %3032 = vmatprep.subr.bf16.mxu0 0
        %3033 = vmatpush1.bf16.msra.mxu0 0
        %3034 = vmatprep.subr.bf16.mxu0 0
        %3035 = vmatpush1.bf16.msra.mxu0 0
        %3036 = vmatprep.subr.bf16.mxu0 0
        %3037 = vmatpush1.bf16.msra.mxu0 0
        %3038 = vmatprep.subr.bf16.mxu0 0
        %3039 = vmatpush1.bf16.msra.mxu0 0
        %3040 = vmatprep.subr.bf16.mxu0 0
        %3041 = vmatpush1.bf16.msra.mxu0 0
        %3042 = vmatprep.subr.bf16.mxu0 0
        %3043 = vmatpush1.bf16.msra.mxu0 0
        %3044 = vmatprep.subr.bf16.mxu0 0
        %3045 = vmatpush1.bf16.msra.mxu0 0
        %3046 = vmatprep.subr.bf16.mxu0 0
        %3047 = vmatpush1.bf16.msra.mxu0 0
        %3048 = vmatprep.subr.bf16.mxu0 0
        %3049 = vmatpush1.bf16.msra.mxu0 0
        %3050 = vmatprep.subr.bf16.mxu0 0
        %3051 = vmatpush1.bf16.msra.mxu0 0
        %3052 = vmatprep.subr.bf16.mxu0 0
        %3053 = vmatpush1.bf16.msra.mxu0 0
        %3054 = vmatprep.mubr.bf16.mxu0 0
        %3055 = vmatmul.mubr.bf16.gmra.mrb[0].mxu0 %v3017
        %v3056 = vpop.f32.mrb[0].mxu0
        %v3057 = vadd.f32 0.0, %v3056
        %v3058 = vpop.f32.mrb[0].mxu0
        %v3059 = vpop.f32.mrb[0].mxu0
        %v3060 = vadd.f32 0.0, %v3059
        %v3061 = vpop.f32.mrb[0].mxu0
        %3062 = vdwg.mxu0
        %v3063 = vadd.f32 %v3003, %v3057
        %v3064 = vadd.f32 %v3004, %v3060
        %s3065 = scalar_lea.vmem %s4, 128
        %v3066 = vld [vmem:[%s3065] sm:$0xf]
        %v3067 = vld [vmem:[%s3065 + $0x4] sm:$0x3]
        %v3070 = vunpack.c.l.b16 %v3066
        %v3071 = vunpack.c.l.b16 %v3067
        %v3072 = vpack.c.b16 %v3071, %v3070
        %v3074 = vsel %vm2146, %v3072, 0
        %v3077 = vsel %vm467, %v2128, 0
        %3079 = vmatprep.subr.bf16.mxu0 0
        %3080 = vmatpush1.bf16.msra.mxu0 %v3077
        %3081 = vmatprep.subr.bf16.mxu0 0
        %3082 = vmatpush1.bf16.msra.mxu0 0
        %3083 = vmatprep.subr.bf16.mxu0 0
        %3084 = vmatpush1.bf16.msra.mxu0 0
        %3085 = vmatprep.subr.bf16.mxu0 0
        %3086 = vmatpush1.bf16.msra.mxu0 0
        %3087 = vmatprep.subr.bf16.mxu0 0
        %3088 = vmatpush1.bf16.msra.mxu0 0
        %3089 = vmatprep.subr.bf16.mxu0 0
        %3090 = vmatpush1.bf16.msra.mxu0 0
        %3091 = vmatprep.subr.bf16.mxu0 0
        %3092 = vmatpush1.bf16.msra.mxu0 0
        %3093 = vmatprep.subr.bf16.mxu0 0
        %3094 = vmatpush1.bf16.msra.mxu0 0
        %3095 = vmatprep.subr.bf16.mxu0 0
        %3096 = vmatpush1.bf16.msra.mxu0 0
        %3097 = vmatprep.subr.bf16.mxu0 0
        %3098 = vmatpush1.bf16.msra.mxu0 0
        %3099 = vmatprep.subr.bf16.mxu0 0
        %3100 = vmatpush1.bf16.msra.mxu0 0
        %3101 = vmatprep.subr.bf16.mxu0 0
        %3102 = vmatpush1.bf16.msra.mxu0 0
        %3103 = vmatprep.subr.bf16.mxu0 0
        %3104 = vmatpush1.bf16.msra.mxu0 0
        %3105 = vmatprep.subr.bf16.mxu0 0
        %3106 = vmatpush1.bf16.msra.mxu0 0
        %3107 = vmatprep.subr.bf16.mxu0 0
        %3108 = vmatpush1.bf16.msra.mxu0 0
        %3109 = vmatprep.subr.bf16.mxu0 0
        %3110 = vmatpush1.bf16.msra.mxu0 0
        %3111 = vmatprep.mubr.bf16.mxu0 0
        %3112 = vmatmul.mubr.bf16.gmra.mrb[0].mxu0 %v3074
        %v3113 = vpop.f32.mrb[0].mxu0
        %v3114 = vadd.f32 0.0, %v3113
        %v3115 = vpop.f32.mrb[0].mxu0
        %v3116 = vpop.f32.mrb[0].mxu0
        %v3117 = vadd.f32 0.0, %v3116
        %v3118 = vpop.f32.mrb[0].mxu0
        %3119 = vdwg.mxu0
        %v3120 = vadd.f32 %v3063, %v3114
        %v3121 = vadd.f32 %v3064, %v3117
        %s3122 = scalar_lea.vmem %s4, 136
        %v3123 = vld [vmem:[%s3122] sm:$0xf]
        %v3124 = vld [vmem:[%s3122 + $0x4] sm:$0x3]
        %v3127 = vunpack.c.l.b16 %v3123
        %v3128 = vunpack.c.l.b16 %v3124
        %v3129 = vpack.c.b16 %v3128, %v3127
        %3131 = vrot.lane.b32.xlu0 %v2128, 64
        %v3132 = vpop.permute.xlu0 %3131
        %v3134 = vsel %vm2146, %v3129, 0
        %v3137 = vsel %vm467, %v3132, 0
        %3139 = vmatprep.subr.bf16.mxu0 0
        %3140 = vmatpush1.bf16.msra.mxu0 %v3137
        %3141 = vmatprep.subr.bf16.mxu0 0
        %3142 = vmatpush1.bf16.msra.mxu0 0
        %3143 = vmatprep.subr.bf16.mxu0 0
        %3144 = vmatpush1.bf16.msra.mxu0 0
        %3145 = vmatprep.subr.bf16.mxu0 0
        %3146 = vmatpush1.bf16.msra.mxu0 0
        %3147 = vmatprep.subr.bf16.mxu0 0
        %3148 = vmatpush1.bf16.msra.mxu0 0
        %3149 = vmatprep.subr.bf16.mxu0 0
        %3150 = vmatpush1.bf16.msra.mxu0 0
        %3151 = vmatprep.subr.bf16.mxu0 0
        %3152 = vmatpush1.bf16.msra.mxu0 0
        %3153 = vmatprep.subr.bf16.mxu0 0
        %3154 = vmatpush1.bf16.msra.mxu0 0
        %3155 = vmatprep.subr.bf16.mxu0 0
        %3156 = vmatpush1.bf16.msra.mxu0 0
        %3157 = vmatprep.subr.bf16.mxu0 0
        %3158 = vmatpush1.bf16.msra.mxu0 0
        %3159 = vmatprep.subr.bf16.mxu0 0
        %3160 = vmatpush1.bf16.msra.mxu0 0
        %3161 = vmatprep.subr.bf16.mxu0 0
        %3162 = vmatpush1.bf16.msra.mxu0 0
        %3163 = vmatprep.subr.bf16.mxu0 0
        %3164 = vmatpush1.bf16.msra.mxu0 0
        %3165 = vmatprep.subr.bf16.mxu0 0
        %3166 = vmatpush1.bf16.msra.mxu0 0
        %3167 = vmatprep.subr.bf16.mxu0 0
        %3168 = vmatpush1.bf16.msra.mxu0 0
        %3169 = vmatprep.subr.bf16.mxu0 0
        %3170 = vmatpush1.bf16.msra.mxu0 0
        %3171 = vmatprep.mubr.bf16.mxu0 0
        %3172 = vmatmul.mubr.bf16.gmra.mrb[0].mxu0 %v3134
        %v3173 = vpop.f32.mrb[0].mxu0
        %v3174 = vadd.f32 0.0, %v3173
        %v3175 = vpop.f32.mrb[0].mxu0
        %v3176 = vpop.f32.mrb[0].mxu0
        %v3177 = vadd.f32 0.0, %v3176
        %v3178 = vpop.f32.mrb[0].mxu0
        %3179 = vdwg.mxu0
        %v3180 = vadd.f32 %v3120, %v3174
        %v3181 = vadd.f32 %v3121, %v3177
        %s3182 = scalar_lea.vmem %s4, 144
        %v3183 = vld [vmem:[%s3182] sm:$0xf]
        %v3184 = vld [vmem:[%s3182 + $0x4] sm:$0x3]
        %v3187 = vunpack.c.l.b16 %v3183
        %v3188 = vunpack.c.l.b16 %v3184
        %v3189 = vpack.c.b16 %v3188, %v3187
        %v3191 = vsel %vm2146, %v3189, 0
        %v3194 = vsel %vm467, %v2129, 0
        %3196 = vmatprep.subr.bf16.mxu0 0
        %3197 = vmatpush1.bf16.msra.mxu0 %v3194
        %3198 = vmatprep.subr.bf16.mxu0 0
        %3199 = vmatpush1.bf16.msra.mxu0 0
        %3200 = vmatprep.subr.bf16.mxu0 0
        %3201 = vmatpush1.bf16.msra.mxu0 0
        %3202 = vmatprep.subr.bf16.mxu0 0
        %3203 = vmatpush1.bf16.msra.mxu0 0
        %3204 = vmatprep.subr.bf16.mxu0 0
        %3205 = vmatpush1.bf16.msra.mxu0 0
        %3206 = vmatprep.subr.bf16.mxu0 0
        %3207 = vmatpush1.bf16.msra.mxu0 0
        %3208 = vmatprep.subr.bf16.mxu0 0
        %3209 = vmatpush1.bf16.msra.mxu0 0
        %3210 = vmatprep.subr.bf16.mxu0 0
        %3211 = vmatpush1.bf16.msra.mxu0 0
        %3212 = vmatprep.subr.bf16.mxu0 0
        %3213 = vmatpush1.bf16.msra.mxu0 0
        %3214 = vmatprep.subr.bf16.mxu0 0
        %3215 = vmatpush1.bf16.msra.mxu0 0
        %3216 = vmatprep.subr.bf16.mxu0 0
        %3217 = vmatpush1.bf16.msra.mxu0 0
        %3218 = vmatprep.subr.bf16.mxu0 0
        %3219 = vmatpush1.bf16.msra.mxu0 0
        %3220 = vmatprep.subr.bf16.mxu0 0
        %3221 = vmatpush1.bf16.msra.mxu0 0
        %3222 = vmatprep.subr.bf16.mxu0 0
        %3223 = vmatpush1.bf16.msra.mxu0 0
        %3224 = vmatprep.subr.bf16.mxu0 0
        %3225 = vmatpush1.bf16.msra.mxu0 0
        %3226 = vmatprep.subr.bf16.mxu0 0
        %3227 = vmatpush1.bf16.msra.mxu0 0
        %3228 = vmatprep.mubr.bf16.mxu0 0
        %3229 = vmatmul.mubr.bf16.gmra.mrb[0].mxu0 %v3191
        %v3230 = vpop.f32.mrb[0].mxu0
        %v3231 = vadd.f32 0.0, %v3230
        %v3232 = vpop.f32.mrb[0].mxu0
        %v3233 = vpop.f32.mrb[0].mxu0
        %v3234 = vadd.f32 0.0, %v3233
        %v3235 = vpop.f32.mrb[0].mxu0
        %3236 = vdwg.mxu0
        %v3237 = vadd.f32 %v3180, %v3231
        %v3238 = vadd.f32 %v3181, %v3234
        %s3239 = scalar_lea.vmem %s4, 152
        %v3240 = vld [vmem:[%s3239] sm:$0xf]
        %v3241 = vld [vmem:[%s3239 + $0x4] sm:$0x3]
        %v3244 = vunpack.c.l.b16 %v3240
        %v3245 = vunpack.c.l.b16 %v3241
        %v3246 = vpack.c.b16 %v3245, %v3244
        %3248 = vrot.lane.b32.xlu0 %v2129, 64
        %v3249 = vpop.permute.xlu0 %3248
        %v3251 = vsel %vm2146, %v3246, 0
        %v3254 = vsel %vm467, %v3249, 0
        %3256 = vmatprep.subr.bf16.mxu0 0
        %3257 = vmatpush1.bf16.msra.mxu0 %v3254
        %3258 = vmatprep.subr.bf16.mxu0 0
        %3259 = vmatpush1.bf16.msra.mxu0 0
        %3260 = vmatprep.subr.bf16.mxu0 0
        %3261 = vmatpush1.bf16.msra.mxu0 0
        %3262 = vmatprep.subr.bf16.mxu0 0
        %3263 = vmatpush1.bf16.msra.mxu0 0
        %3264 = vmatprep.subr.bf16.mxu0 0
        %3265 = vmatpush1.bf16.msra.mxu0 0
        %3266 = vmatprep.subr.bf16.mxu0 0
        %3267 = vmatpush1.bf16.msra.mxu0 0
        %3268 = vmatprep.subr.bf16.mxu0 0
        %3269 = vmatpush1.bf16.msra.mxu0 0
        %3270 = vmatprep.subr.bf16.mxu0 0
        %3271 = vmatpush1.bf16.msra.mxu0 0
        %3272 = vmatprep.subr.bf16.mxu0 0
        %3273 = vmatpush1.bf16.msra.mxu0 0
        %3274 = vmatprep.subr.bf16.mxu0 0
        %3275 = vmatpush1.bf16.msra.mxu0 0
        %3276 = vmatprep.subr.bf16.mxu0 0
        %3277 = vmatpush1.bf16.msra.mxu0 0
        %3278 = vmatprep.subr.bf16.mxu0 0
        %3279 = vmatpush1.bf16.msra.mxu0 0
        %3280 = vmatprep.subr.bf16.mxu0 0
        %3281 = vmatpush1.bf16.msra.mxu0 0
        %3282 = vmatprep.subr.bf16.mxu0 0
        %3283 = vmatpush1.bf16.msra.mxu0 0
        %3284 = vmatprep.subr.bf16.mxu0 0
        %3285 = vmatpush1.bf16.msra.mxu0 0
        %3286 = vmatprep.subr.bf16.mxu0 0
        %3287 = vmatpush1.bf16.msra.mxu0 0
        %3288 = vmatprep.mubr.bf16.mxu0 0
        %3289 = vmatmul.mubr.bf16.gmra.mrb[0].mxu0 %v3251
        %v3290 = vpop.f32.mrb[0].mxu0
        %v3291 = vadd.f32 0.0, %v3290
        %v3292 = vpop.f32.mrb[0].mxu0
        %v3293 = vpop.f32.mrb[0].mxu0
        %v3294 = vadd.f32 0.0, %v3293
        %v3295 = vpop.f32.mrb[0].mxu0
        %3296 = vdwg.mxu0
        %v3297 = vadd.f32 %v3237, %v3291
        %v3298 = vadd.f32 %v3238, %v3294
        %s3299 = scalar_lea.vmem %s4, 160
        %v3300 = vld [vmem:[%s3299] sm:$0xf]
        %v3301 = vld [vmem:[%s3299 + $0x4] sm:$0x3]
        %v3304 = vunpack.c.l.b16 %v3300
        %v3305 = vunpack.c.l.b16 %v3301
        %v3306 = vpack.c.b16 %v3305, %v3304
        %v3308 = vsel %vm2146, %v3306, 0
        %v3311 = vsel %vm467, %v2130, 0
        %3313 = vmatprep.subr.bf16.mxu0 0
        %3314 = vmatpush1.bf16.msra.mxu0 %v3311
        %3315 = vmatprep.subr.bf16.mxu0 0
        %3316 = vmatpush1.bf16.msra.mxu0 0
        %3317 = vmatprep.subr.bf16.mxu0 0
        %3318 = vmatpush1.bf16.msra.mxu0 0
        %3319 = vmatprep.subr.bf16.mxu0 0
        %3320 = vmatpush1.bf16.msra.mxu0 0
        %3321 = vmatprep.subr.bf16.mxu0 0
        %3322 = vmatpush1.bf16.msra.mxu0 0
        %3323 = vmatprep.subr.bf16.mxu0 0
        %3324 = vmatpush1.bf16.msra.mxu0 0
        %3325 = vmatprep.subr.bf16.mxu0 0
        %3326 = vmatpush1.bf16.msra.mxu0 0
        %3327 = vmatprep.subr.bf16.mxu0 0
        %3328 = vmatpush1.bf16.msra.mxu0 0
        %3329 = vmatprep.subr.bf16.mxu0 0
        %3330 = vmatpush1.bf16.msra.mxu0 0
        %3331 = vmatprep.subr.bf16.mxu0 0
        %3332 = vmatpush1.bf16.msra.mxu0 0
        %3333 = vmatprep.subr.bf16.mxu0 0
        %3334 = vmatpush1.bf16.msra.mxu0 0
        %3335 = vmatprep.subr.bf16.mxu0 0
        %3336 = vmatpush1.bf16.msra.mxu0 0
        %3337 = vmatprep.subr.bf16.mxu0 0
        %3338 = vmatpush1.bf16.msra.mxu0 0
        %3339 = vmatprep.subr.bf16.mxu0 0
        %3340 = vmatpush1.bf16.msra.mxu0 0
        %3341 = vmatprep.subr.bf16.mxu0 0
        %3342 = vmatpush1.bf16.msra.mxu0 0
        %3343 = vmatprep.subr.bf16.mxu0 0
        %3344 = vmatpush1.bf16.msra.mxu0 0
        %3345 = vmatprep.mubr.bf16.mxu0 0
        %3346 = vmatmul.mubr.bf16.gmra.mrb[0].mxu0 %v3308
        %v3347 = vpop.f32.mrb[0].mxu0
        %v3348 = vadd.f32 0.0, %v3347
        %v3349 = vpop.f32.mrb[0].mxu0
        %v3350 = vpop.f32.mrb[0].mxu0
        %v3351 = vadd.f32 0.0, %v3350
        %v3352 = vpop.f32.mrb[0].mxu0
        %3353 = vdwg.mxu0
        %v3354 = vadd.f32 %v3297, %v3348
        %v3355 = vadd.f32 %v3298, %v3351
        %s3356 = scalar_lea.vmem %s4, 168
        %v3357 = vld [vmem:[%s3356] sm:$0xf]
        %v3358 = vld [vmem:[%s3356 + $0x4] sm:$0x3]
        %v3361 = vunpack.c.l.b16 %v3357
        %v3362 = vunpack.c.l.b16 %v3358
        %v3363 = vpack.c.b16 %v3362, %v3361
        %3365 = vrot.lane.b32.xlu0 %v2130, 64
        %v3366 = vpop.permute.xlu0 %3365
        %v3368 = vsel %vm2146, %v3363, 0
        %v3371 = vsel %vm467, %v3366, 0
        %3373 = vmatprep.subr.bf16.mxu0 0
        %3374 = vmatpush1.bf16.msra.mxu0 %v3371
        %3375 = vmatprep.subr.bf16.mxu0 0
        %3376 = vmatpush1.bf16.msra.mxu0 0
        %3377 = vmatprep.subr.bf16.mxu0 0
        %3378 = vmatpush1.bf16.msra.mxu0 0
        %3379 = vmatprep.subr.bf16.mxu0 0
        %3380 = vmatpush1.bf16.msra.mxu0 0
        %3381 = vmatprep.subr.bf16.mxu0 0
        %3382 = vmatpush1.bf16.msra.mxu0 0
        %3383 = vmatprep.subr.bf16.mxu0 0
        %3384 = vmatpush1.bf16.msra.mxu0 0
        %3385 = vmatprep.subr.bf16.mxu0 0
        %3386 = vmatpush1.bf16.msra.mxu0 0
        %3387 = vmatprep.subr.bf16.mxu0 0
        %3388 = vmatpush1.bf16.msra.mxu0 0
        %3389 = vmatprep.subr.bf16.mxu0 0
        %3390 = vmatpush1.bf16.msra.mxu0 0
        %3391 = vmatprep.subr.bf16.mxu0 0
        %3392 = vmatpush1.bf16.msra.mxu0 0
        %3393 = vmatprep.subr.bf16.mxu0 0
        %3394 = vmatpush1.bf16.msra.mxu0 0
        %3395 = vmatprep.subr.bf16.mxu0 0
        %3396 = vmatpush1.bf16.msra.mxu0 0
        %3397 = vmatprep.subr.bf16.mxu0 0
        %3398 = vmatpush1.bf16.msra.mxu0 0
        %3399 = vmatprep.subr.bf16.mxu0 0
        %3400 = vmatpush1.bf16.msra.mxu0 0
        %3401 = vmatprep.subr.bf16.mxu0 0
        %3402 = vmatpush1.bf16.msra.mxu0 0
        %3403 = vmatprep.subr.bf16.mxu0 0
        %3404 = vmatpush1.bf16.msra.mxu0 0
        %3405 = vmatprep.mubr.bf16.mxu0 0
        %3406 = vmatmul.mubr.bf16.gmra.mrb[0].mxu0 %v3368
        %v3407 = vpop.f32.mrb[0].mxu0
        %v3408 = vadd.f32 0.0, %v3407
        %v3409 = vpop.f32.mrb[0].mxu0
        %v3410 = vpop.f32.mrb[0].mxu0
        %v3411 = vadd.f32 0.0, %v3410
        %v3412 = vpop.f32.mrb[0].mxu0
        %3413 = vdwg.mxu0
        %v3414 = vadd.f32 %v3354, %v3408
        %v3415 = vadd.f32 %v3355, %v3411
        %s3416 = scalar_lea.vmem %s4, 176
        %v3417 = vld [vmem:[%s3416] sm:$0xf]
        %v3418 = vld [vmem:[%s3416 + $0x4] sm:$0x3]
        %v3421 = vunpack.c.l.b16 %v3417
        %v3422 = vunpack.c.l.b16 %v3418
        %v3423 = vpack.c.b16 %v3422, %v3421
        %v3425 = vsel %vm2146, %v3423, 0
        %v3428 = vsel %vm467, %v2131, 0
        %3430 = vmatprep.subr.bf16.mxu0 0
        %3431 = vmatpush1.bf16.msra.mxu0 %v3428
        %3432 = vmatprep.subr.bf16.mxu0 0
        %3433 = vmatpush1.bf16.msra.mxu0 0
        %3434 = vmatprep.subr.bf16.mxu0 0
        %3435 = vmatpush1.bf16.msra.mxu0 0
        %3436 = vmatprep.subr.bf16.mxu0 0
        %3437 = vmatpush1.bf16.msra.mxu0 0
        %3438 = vmatprep.subr.bf16.mxu0 0
        %3439 = vmatpush1.bf16.msra.mxu0 0
        %3440 = vmatprep.subr.bf16.mxu0 0
        %3441 = vmatpush1.bf16.msra.mxu0 0
        %3442 = vmatprep.subr.bf16.mxu0 0
        %3443 = vmatpush1.bf16.msra.mxu0 0
        %3444 = vmatprep.subr.bf16.mxu0 0
        %3445 = vmatpush1.bf16.msra.mxu0 0
        %3446 = vmatprep.subr.bf16.mxu0 0
        %3447 = vmatpush1.bf16.msra.mxu0 0
        %3448 = vmatprep.subr.bf16.mxu0 0
        %3449 = vmatpush1.bf16.msra.mxu0 0
        %3450 = vmatprep.subr.bf16.mxu0 0
        %3451 = vmatpush1.bf16.msra.mxu0 0
        %3452 = vmatprep.subr.bf16.mxu0 0
        %3453 = vmatpush1.bf16.msra.mxu0 0
        %3454 = vmatprep.subr.bf16.mxu0 0
        %3455 = vmatpush1.bf16.msra.mxu0 0
        %3456 = vmatprep.subr.bf16.mxu0 0
        %3457 = vmatpush1.bf16.msra.mxu0 0
        %3458 = vmatprep.subr.bf16.mxu0 0
        %3459 = vmatpush1.bf16.msra.mxu0 0
        %3460 = vmatprep.subr.bf16.mxu0 0
        %3461 = vmatpush1.bf16.msra.mxu0 0
        %3462 = vmatprep.mubr.bf16.mxu0 0
        %3463 = vmatmul.mubr.bf16.gmra.mrb[0].mxu0 %v3425
        %v3464 = vpop.f32.mrb[0].mxu0
        %v3465 = vadd.f32 0.0, %v3464
        %v3466 = vpop.f32.mrb[0].mxu0
        %v3467 = vpop.f32.mrb[0].mxu0
        %v3468 = vadd.f32 0.0, %v3467
        %v3469 = vpop.f32.mrb[0].mxu0
        %3470 = vdwg.mxu0
        %v3471 = vadd.f32 %v3414, %v3465
        %v3472 = vadd.f32 %v3415, %v3468
        %s3473 = scalar_lea.vmem %s4, 184
        %v3474 = vld [vmem:[%s3473] sm:$0xf]
        %v3475 = vld [vmem:[%s3473 + $0x4] sm:$0x3]
        %v3478 = vunpack.c.l.b16 %v3474
        %v3479 = vunpack.c.l.b16 %v3475
        %v3480 = vpack.c.b16 %v3479, %v3478
        %3482 = vrot.lane.b32.xlu0 %v2131, 64
        %v3483 = vpop.permute.xlu0 %3482
        %v3485 = vsel %vm2146, %v3480, 0
        %v3488 = vsel %vm467, %v3483, 0
        %3490 = vmatprep.subr.bf16.mxu0 0
        %3491 = vmatpush1.bf16.msra.mxu0 %v3488
        %3492 = vmatprep.subr.bf16.mxu0 0
        %3493 = vmatpush1.bf16.msra.mxu0 0
        %3494 = vmatprep.subr.bf16.mxu0 0
        %3495 = vmatpush1.bf16.msra.mxu0 0
        %3496 = vmatprep.subr.bf16.mxu0 0
        %3497 = vmatpush1.bf16.msra.mxu0 0
        %3498 = vmatprep.subr.bf16.mxu0 0
        %3499 = vmatpush1.bf16.msra.mxu0 0
        %3500 = vmatprep.subr.bf16.mxu0 0
        %3501 = vmatpush1.bf16.msra.mxu0 0
        %3502 = vmatprep.subr.bf16.mxu0 0
        %3503 = vmatpush1.bf16.msra.mxu0 0
        %3504 = vmatprep.subr.bf16.mxu0 0
        %3505 = vmatpush1.bf16.msra.mxu0 0
        %3506 = vmatprep.subr.bf16.mxu0 0
        %3507 = vmatpush1.bf16.msra.mxu0 0
        %3508 = vmatprep.subr.bf16.mxu0 0
        %3509 = vmatpush1.bf16.msra.mxu0 0
        %3510 = vmatprep.subr.bf16.mxu0 0
        %3511 = vmatpush1.bf16.msra.mxu0 0
        %3512 = vmatprep.subr.bf16.mxu0 0
        %3513 = vmatpush1.bf16.msra.mxu0 0
        %3514 = vmatprep.subr.bf16.mxu0 0
        %3515 = vmatpush1.bf16.msra.mxu0 0
        %3516 = vmatprep.subr.bf16.mxu0 0
        %3517 = vmatpush1.bf16.msra.mxu0 0
        %3518 = vmatprep.subr.bf16.mxu0 0
        %3519 = vmatpush1.bf16.msra.mxu0 0
        %3520 = vmatprep.subr.bf16.mxu0 0
        %3521 = vmatpush1.bf16.msra.mxu0 0
        %3522 = vmatprep.mubr.bf16.mxu0 0
        %3523 = vmatmul.mubr.bf16.gmra.mrb[0].mxu0 %v3485
        %v3524 = vpop.f32.mrb[0].mxu0
        %v3525 = vadd.f32 0.0, %v3524
        %v3526 = vpop.f32.mrb[0].mxu0
        %v3527 = vpop.f32.mrb[0].mxu0
        %v3528 = vadd.f32 0.0, %v3527
        %v3529 = vpop.f32.mrb[0].mxu0
        %3530 = vdwg.mxu0
        %v3531 = vadd.f32 %v3471, %v3525
        %v3532 = vadd.f32 %v3472, %v3528
        %s3533 = scalar_lea.vmem %s4, 192
        %v3534 = vld [vmem:[%s3533] sm:$0xf]
        %v3535 = vld [vmem:[%s3533 + $0x4] sm:$0x3]
        %v3538 = vunpack.c.l.b16 %v3534
        %v3539 = vunpack.c.l.b16 %v3535
        %v3540 = vpack.c.b16 %v3539, %v3538
        %v3542 = vsel %vm2146, %v3540, 0
        %v3545 = vsel %vm467, %v2132, 0
        %3547 = vmatprep.subr.bf16.mxu0 0
        %3548 = vmatpush1.bf16.msra.mxu0 %v3545
        %3549 = vmatprep.subr.bf16.mxu0 0
        %3550 = vmatpush1.bf16.msra.mxu0 0
        %3551 = vmatprep.subr.bf16.mxu0 0
        %3552 = vmatpush1.bf16.msra.mxu0 0
        %3553 = vmatprep.subr.bf16.mxu0 0
        %3554 = vmatpush1.bf16.msra.mxu0 0
        %3555 = vmatprep.subr.bf16.mxu0 0
        %3556 = vmatpush1.bf16.msra.mxu0 0
        %3557 = vmatprep.subr.bf16.mxu0 0
        %3558 = vmatpush1.bf16.msra.mxu0 0
        %3559 = vmatprep.subr.bf16.mxu0 0
        %3560 = vmatpush1.bf16.msra.mxu0 0
        %3561 = vmatprep.subr.bf16.mxu0 0
        %3562 = vmatpush1.bf16.msra.mxu0 0
        %3563 = vmatprep.subr.bf16.mxu0 0
        %3564 = vmatpush1.bf16.msra.mxu0 0
        %3565 = vmatprep.subr.bf16.mxu0 0
        %3566 = vmatpush1.bf16.msra.mxu0 0
        %3567 = vmatprep.subr.bf16.mxu0 0
        %3568 = vmatpush1.bf16.msra.mxu0 0
        %3569 = vmatprep.subr.bf16.mxu0 0
        %3570 = vmatpush1.bf16.msra.mxu0 0
        %3571 = vmatprep.subr.bf16.mxu0 0
        %3572 = vmatpush1.bf16.msra.mxu0 0
        %3573 = vmatprep.subr.bf16.mxu0 0
        %3574 = vmatpush1.bf16.msra.mxu0 0
        %3575 = vmatprep.subr.bf16.mxu0 0
        %3576 = vmatpush1.bf16.msra.mxu0 0
        %3577 = vmatprep.subr.bf16.mxu0 0
        %3578 = vmatpush1.bf16.msra.mxu0 0
        %3579 = vmatprep.mubr.bf16.mxu0 0
        %3580 = vmatmul.mubr.bf16.gmra.mrb[0].mxu0 %v3542
        %v3581 = vpop.f32.mrb[0].mxu0
        %v3582 = vadd.f32 0.0, %v3581
        %v3583 = vpop.f32.mrb[0].mxu0
        %v3584 = vpop.f32.mrb[0].mxu0
        %v3585 = vadd.f32 0.0, %v3584
        %v3586 = vpop.f32.mrb[0].mxu0
        %3587 = vdwg.mxu0
        %v3588 = vadd.f32 %v3531, %v3582
        %v3589 = vadd.f32 %v3532, %v3585
        %v3590 = vld [vmem:[%s5] sm:$0xff]
        %v3591 = vld [vmem:[%s5 + $0x8] sm:$0xf]
        %3593 = vset.pattern.permute.xlu0 0
        %3594 = vperm.xlu0 %3593, %v3590
        %v3595 = vpop.permute.xlu0 %3594
        %3598 = vset.pattern.permute.xlu0 0
        %3599 = vperm.xlu0 %3598, %v3591
        %v3600 = vpop.permute.xlu0 %3599
        %v3602 = vadd.f32 %v3588, %v3595
        %v3603 = vadd.f32 %v3589, %v3600
        %v3604 = vsub.f32 0.0, %v3602
        %v3605 = vsub.f32 0.0, %v3603
        %v3606 = vmul.f32 %v3604, 1.442695
        %v3607 = vpow.pop %v3606
        %v3608 = vmul.f32 %v3605, 1.442695
        %v3609 = vpow.pop %v3608
        %v3610 = vadd.f32 %v3607, 1.0
        %v3611 = vadd.f32 %v3609, 1.0
        %v3612 = vrcp.pop %v3610
        %v3613 = vrcp.pop %v3611
        %v3614 = vpack.c.bf16 %v3613, %v3612
        %v3615 = vld [vmem:[%s6] sm:$0xff]
        %v3616 = vld [vmem:[%s6 + $0x8] sm:$0xff]
        %v3617 = vld [vmem:[%s6 + $0x10] sm:$0xff]
        %v3618 = vld [vmem:[%s6 + $0x18] sm:$0xff]
        %v3619 = vld [vmem:[%s6 + $0x20] sm:$0xff]
        %v3620 = vld [vmem:[%s6 + $0x28] sm:$0xff]
        %v3621 = vld [vmem:[%s6 + $0x30] sm:$0xf]
        %v3622 = vld [vmem:[%s6 + $0x34] sm:$0xff]
        %v3623 = vld [vmem:[%s6 + $0x3c] sm:$0xff]
        %v3624 = vld [vmem:[%s6 + $0x44] sm:$0xff]
        %v3625 = vld [vmem:[%s6 + $0x4c] sm:$0xff]
        %v3626 = vld [vmem:[%s6 + $0x54] sm:$0xff]
        %v3627 = vld [vmem:[%s6 + $0x5c] sm:$0xff]
        %v3628 = vld [vmem:[%s6 + $0x64] sm:$0xf]
        %v3629 = vld [vmem:[%s6 + $0x68] sm:$0xff]
        %v3630 = vld [vmem:[%s6 + $0x70] sm:$0xff]
        %v3631 = vld [vmem:[%s6 + $0x78] sm:$0xff]
        %v3632 = vld [vmem:[%s6 + $0x80] sm:$0xff]
        %v3633 = vld [vmem:[%s6 + $0x88] sm:$0xff]
        %v3634 = vld [vmem:[%s6 + $0x90] sm:$0xff]
        %v3635 = vld [vmem:[%s6 + $0x98] sm:$0xf]
        %v3636 = vld [vmem:[%s6 + $0x9c] sm:$0xff]
        %v3637 = vld [vmem:[%s6 + $0xa4] sm:$0xff]
        %v3638 = vld [vmem:[%s6 + $0xac] sm:$0xff]
        %v3639 = vld [vmem:[%s6 + $0xb4] sm:$0xff]
        %v3640 = vld [vmem:[%s6 + $0xbc] sm:$0xff]
        %v3641 = vld [vmem:[%s6 + $0xc4] sm:$0xff]
        %v3642 = vld [vmem:[%s6 + $0xcc] sm:$0xf]
        %v3643 = vld [vmem:[%s6 + $0xd0] sm:$0xff]
        %v3644 = vld [vmem:[%s6 + $0xd8] sm:$0xff]
        %v3645 = vld [vmem:[%s6 + $0xe0] sm:$0xff]
        %v3646 = vld [vmem:[%s6 + $0xe8] sm:$0xff]
        %v3647 = vld [vmem:[%s6 + $0xf0] sm:$0xff]
        %v3648 = vld [vmem:[%s6 + $0xf8] sm:$0xff]
        %v3649 = vld [vmem:[%s6 + $0x100] sm:$0xf]
        %v3650 = vld [vmem:[%s6 + $0x104] sm:$0xff]
        %v3651 = vld [vmem:[%s6 + $0x10c] sm:$0xff]
        %v3652 = vld [vmem:[%s6 + $0x114] sm:$0xff]
        %v3653 = vld [vmem:[%s6 + $0x11c] sm:$0xff]
        %v3654 = vld [vmem:[%s6 + $0x124] sm:$0xff]
        %v3655 = vld [vmem:[%s6 + $0x12c] sm:$0xff]
        %v3656 = vld [vmem:[%s6 + $0x134] sm:$0xf]
        %v3657 = vld [vmem:[%s6 + $0x138] sm:$0xff]
        %v3658 = vld [vmem:[%s6 + $0x140] sm:$0xff]
        %v3659 = vld [vmem:[%s6 + $0x148] sm:$0xff]
        %v3660 = vld [vmem:[%s6 + $0x150] sm:$0xff]
        %v3661 = vld [vmem:[%s6 + $0x158] sm:$0xff]
        %v3662 = vld [vmem:[%s6 + $0x160] sm:$0xff]
        %v3663 = vld [vmem:[%s6 + $0x168] sm:$0xf]
        %v3664 = vld [vmem:[%s6 + $0x16c] sm:$0xff]
        %v3665 = vld [vmem:[%s6 + $0x174] sm:$0xff]
        %v3666 = vld [vmem:[%s6 + $0x17c] sm:$0xff]
        %v3667 = vld [vmem:[%s6 + $0x184] sm:$0xff]
        %v3668 = vld [vmem:[%s6 + $0x18c] sm:$0xff]
        %v3669 = vld [vmem:[%s6 + $0x194] sm:$0xff]
        %v3670 = vld [vmem:[%s6 + $0x19c] sm:$0xf]
        %v3727 = vunpack.c.l.b16 %v3615
        %v3728 = vunpack.c.h.b16 %v3615
        %v3729 = vunpack.c.l.b16 %v3616
        %v3730 = vunpack.c.h.b16 %v3616
        %v3731 = vunpack.c.l.b16 %v3617
        %v3732 = vunpack.c.h.b16 %v3617
        %v3733 = vunpack.c.l.b16 %v3618
        %v3734 = vunpack.c.h.b16 %v3618
        %v3735 = vunpack.c.l.b16 %v3619
        %v3736 = vunpack.c.h.b16 %v3619
        %v3737 = vunpack.c.l.b16 %v3620
        %v3738 = vunpack.c.h.b16 %v3620
        %v3739 = vunpack.c.l.b16 %v3621
        %v3740 = vunpack.c.l.b16 %v3622
        %v3741 = vunpack.c.h.b16 %v3622
        %v3742 = vunpack.c.l.b16 %v3623
        %v3743 = vunpack.c.h.b16 %v3623
        %v3744 = vunpack.c.l.b16 %v3624
        %v3745 = vunpack.c.h.b16 %v3624
        %v3746 = vunpack.c.l.b16 %v3625
        %v3747 = vunpack.c.h.b16 %v3625
        %v3748 = vunpack.c.l.b16 %v3626
        %v3749 = vunpack.c.h.b16 %v3626
        %v3750 = vunpack.c.l.b16 %v3627
        %v3751 = vunpack.c.h.b16 %v3627
        %v3752 = vunpack.c.l.b16 %v3628
        %v3753 = vunpack.c.l.b16 %v3629
        %v3754 = vunpack.c.h.b16 %v3629
        %v3755 = vunpack.c.l.b16 %v3630
        %v3756 = vunpack.c.h.b16 %v3630
        %v3757 = vunpack.c.l.b16 %v3631
        %v3758 = vunpack.c.h.b16 %v3631
        %v3759 = vunpack.c.l.b16 %v3632
        %v3760 = vunpack.c.h.b16 %v3632
        %v3761 = vunpack.c.l.b16 %v3633
        %v3762 = vunpack.c.h.b16 %v3633
        %v3763 = vunpack.c.l.b16 %v3634
        %v3764 = vunpack.c.h.b16 %v3634
        %v3765 = vunpack.c.l.b16 %v3635
        %v3766 = vunpack.c.l.b16 %v3636
        %v3767 = vunpack.c.h.b16 %v3636
        %v3768 = vunpack.c.l.b16 %v3637
        %v3769 = vunpack.c.h.b16 %v3637
        %v3770 = vunpack.c.l.b16 %v3638
        %v3771 = vunpack.c.h.b16 %v3638
        %v3772 = vunpack.c.l.b16 %v3639
        %v3773 = vunpack.c.h.b16 %v3639
        %v3774 = vunpack.c.l.b16 %v3640
        %v3775 = vunpack.c.h.b16 %v3640
        %v3776 = vunpack.c.l.b16 %v3641
        %v3777 = vunpack.c.h.b16 %v3641
        %v3778 = vunpack.c.l.b16 %v3642
        %v3779 = vunpack.c.l.b16 %v3643
        %v3780 = vunpack.c.h.b16 %v3643
        %v3781 = vunpack.c.l.b16 %v3644
        %v3782 = vunpack.c.h.b16 %v3644
        %v3783 = vunpack.c.l.b16 %v3645
        %v3784 = vunpack.c.h.b16 %v3645
        %v3785 = vunpack.c.l.b16 %v3646
        %v3786 = vunpack.c.h.b16 %v3646
        %v3787 = vunpack.c.l.b16 %v3647
        %v3788 = vunpack.c.h.b16 %v3647
        %v3789 = vunpack.c.l.b16 %v3648
        %v3790 = vunpack.c.h.b16 %v3648
        %v3791 = vunpack.c.l.b16 %v3649
        %v3792 = vunpack.c.l.b16 %v3650
        %v3793 = vunpack.c.h.b16 %v3650
        %v3794 = vunpack.c.l.b16 %v3651
        %v3795 = vunpack.c.h.b16 %v3651
        %v3796 = vunpack.c.l.b16 %v3652
        %v3797 = vunpack.c.h.b16 %v3652
        %v3798 = vunpack.c.l.b16 %v3653
        %v3799 = vunpack.c.h.b16 %v3653
        %v3800 = vunpack.c.l.b16 %v3654
        %v3801 = vunpack.c.h.b16 %v3654
        %v3802 = vunpack.c.l.b16 %v3655
        %v3803 = vunpack.c.h.b16 %v3655
        %v3804 = vunpack.c.l.b16 %v3656
        %v3805 = vunpack.c.l.b16 %v3657
        %v3806 = vunpack.c.h.b16 %v3657
        %v3807 = vunpack.c.l.b16 %v3658
        %v3808 = vunpack.c.h.b16 %v3658
        %v3809 = vunpack.c.l.b16 %v3659
        %v3810 = vunpack.c.h.b16 %v3659
        %v3811 = vunpack.c.l.b16 %v3660
        %v3812 = vunpack.c.h.b16 %v3660
        %v3813 = vunpack.c.l.b16 %v3661
        %v3814 = vunpack.c.h.b16 %v3661
        %v3815 = vunpack.c.l.b16 %v3662
        %v3816 = vunpack.c.h.b16 %v3662
        %v3817 = vunpack.c.l.b16 %v3663
        %v3818 = vunpack.c.l.b16 %v3664
        %v3819 = vunpack.c.h.b16 %v3664
        %v3820 = vunpack.c.l.b16 %v3665
        %v3821 = vunpack.c.h.b16 %v3665
        %v3822 = vunpack.c.l.b16 %v3666
        %v3823 = vunpack.c.h.b16 %v3666
        %v3824 = vunpack.c.l.b16 %v3667
        %v3825 = vunpack.c.h.b16 %v3667
        %v3826 = vunpack.c.l.b16 %v3668
        %v3827 = vunpack.c.h.b16 %v3668
        %v3828 = vunpack.c.l.b16 %v3669
        %v3829 = vunpack.c.h.b16 %v3669
        %v3830 = vunpack.c.l.b16 %v3670
        %v3831 = vpack.c.b16 %v3740, %v3727
        %v3832 = vpack.c.b16 %v3741, %v3728
        %v3833 = vpack.c.b16 %v3742, %v3729
        %v3834 = vpack.c.b16 %v3743, %v3730
        %v3835 = vpack.c.b16 %v3744, %v3731
        %v3836 = vpack.c.b16 %v3745, %v3732
        %v3837 = vpack.c.b16 %v3746, %v3733
        %v3838 = vpack.c.b16 %v3747, %v3734
        %v3839 = vpack.c.b16 %v3748, %v3735
        %v3840 = vpack.c.b16 %v3749, %v3736
        %v3841 = vpack.c.b16 %v3750, %v3737
        %v3842 = vpack.c.b16 %v3751, %v3738
        %v3843 = vpack.c.b16 %v3752, %v3739
        %v3844 = vpack.c.b16 %v3766, %v3753
        %v3845 = vpack.c.b16 %v3767, %v3754
        %v3846 = vpack.c.b16 %v3768, %v3755
        %v3847 = vpack.c.b16 %v3769, %v3756
        %v3848 = vpack.c.b16 %v3770, %v3757
        %v3849 = vpack.c.b16 %v3771, %v3758
        %v3850 = vpack.c.b16 %v3772, %v3759
        %v3851 = vpack.c.b16 %v3773, %v3760
        %v3852 = vpack.c.b16 %v3774, %v3761
        %v3853 = vpack.c.b16 %v3775, %v3762
        %v3854 = vpack.c.b16 %v3776, %v3763
        %v3855 = vpack.c.b16 %v3777, %v3764
        %v3856 = vpack.c.b16 %v3778, %v3765
        %v3857 = vpack.c.b16 %v3792, %v3779
        %v3858 = vpack.c.b16 %v3793, %v3780
        %v3859 = vpack.c.b16 %v3794, %v3781
        %v3860 = vpack.c.b16 %v3795, %v3782
        %v3861 = vpack.c.b16 %v3796, %v3783
        %v3862 = vpack.c.b16 %v3797, %v3784
        %v3863 = vpack.c.b16 %v3798, %v3785
        %v3864 = vpack.c.b16 %v3799, %v3786
        %v3865 = vpack.c.b16 %v3800, %v3787
        %v3866 = vpack.c.b16 %v3801, %v3788
        %v3867 = vpack.c.b16 %v3802, %v3789
        %v3868 = vpack.c.b16 %v3803, %v3790
        %v3869 = vpack.c.b16 %v3804, %v3791
        %v3870 = vpack.c.b16 %v3818, %v3805
        %v3871 = vpack.c.b16 %v3819, %v3806
        %v3872 = vpack.c.b16 %v3820, %v3807
        %v3873 = vpack.c.b16 %v3821, %v3808
        %v3874 = vpack.c.b16 %v3822, %v3809
        %v3875 = vpack.c.b16 %v3823, %v3810
        %v3876 = vpack.c.b16 %v3824, %v3811
        %v3877 = vpack.c.b16 %v3825, %v3812
        %v3878 = vpack.c.b16 %v3826, %v3813
        %v3879 = vpack.c.b16 %v3827, %v3814
        %v3880 = vpack.c.b16 %v3828, %v3815
        %v3881 = vpack.c.b16 %v3829, %v3816
        %v3882 = vpack.c.b16 %v3830, %v3817
        %vm3935 = vcmask 523264
        %v3937 = vsel %vm3935, %v3614, 0
        %3939 = vmatprep.subr.bf16.mxu0 %v3832
        %3940 = vmatpush1.bf16.msra.mxu0 %v3831
        %3941 = vmatprep.subr.bf16.mxu0 %v3845
        %3942 = vmatpush1.bf16.msra.mxu0 %v3844
        %3943 = vmatprep.subr.bf16.mxu0 %v3858
        %3944 = vmatpush1.bf16.msra.mxu0 %v3857
        %3945 = vmatprep.subr.bf16.mxu0 %v3871
        %3946 = vmatpush1.bf16.msra.mxu0 %v3870
        %3947 = vmatprep.subr.bf16.mxu0 0
        %3948 = vmatpush1.bf16.msra.mxu0 0
        %3949 = vmatprep.subr.bf16.mxu0 0
        %3950 = vmatpush1.bf16.msra.mxu0 0
        %3951 = vmatprep.subr.bf16.mxu0 0
        %3952 = vmatpush1.bf16.msra.mxu0 0
        %3953 = vmatprep.subr.bf16.mxu0 0
        %3954 = vmatpush1.bf16.msra.mxu0 0
        %3955 = vmatprep.subr.bf16.mxu0 0
        %3956 = vmatpush1.bf16.msra.mxu0 0
        %3957 = vmatprep.subr.bf16.mxu0 0
        %3958 = vmatpush1.bf16.msra.mxu0 0
        %3959 = vmatprep.subr.bf16.mxu0 0
        %3960 = vmatpush1.bf16.msra.mxu0 0
        %3961 = vmatprep.subr.bf16.mxu0 0
        %3962 = vmatpush1.bf16.msra.mxu0 0
        %3963 = vmatprep.subr.bf16.mxu0 0
        %3964 = vmatpush1.bf16.msra.mxu0 0
        %3965 = vmatprep.subr.bf16.mxu0 0
        %3966 = vmatpush1.bf16.msra.mxu0 0
        %3967 = vmatprep.subr.bf16.mxu0 0
        %3968 = vmatpush1.bf16.msra.mxu0 0
        %3969 = vmatprep.subr.bf16.mxu0 0
        %3970 = vmatpush1.bf16.msra.mxu0 0
        %3971 = vmatprep.mubr.bf16.mxu0 0
        %3972 = vmatmul.mubr.bf16.gmra.mrb[0].mxu0 %v3937
        %v3973 = vpop.f32.mrb[0].mxu0
        %v3974 = vadd.f32 0.0, %v3973
        %v3975 = vpop.f32.mrb[0].mxu0
        %v3976 = vadd.f32 0.0, %v3975
        %v3977 = vpop.f32.mrb[0].mxu0
        %v3978 = vadd.f32 0.0, %v3977
        %v3979 = vpop.f32.mrb[0].mxu0
        %v3980 = vadd.f32 0.0, %v3979
        %3981 = vdwg.mxu0
        %3982 = vmatprep.subr.bf16.mxu0 %v3834
        %3983 = vmatpush1.bf16.msra.mxu0 %v3833
        %3984 = vmatprep.subr.bf16.mxu0 %v3847
        %3985 = vmatpush1.bf16.msra.mxu0 %v3846
        %3986 = vmatprep.subr.bf16.mxu0 %v3860
        %3987 = vmatpush1.bf16.msra.mxu0 %v3859
        %3988 = vmatprep.subr.bf16.mxu0 %v3873
        %3989 = vmatpush1.bf16.msra.mxu0 %v3872
        %3990 = vmatprep.subr.bf16.mxu0 0
        %3991 = vmatpush1.bf16.msra.mxu0 0
        %3992 = vmatprep.subr.bf16.mxu0 0
        %3993 = vmatpush1.bf16.msra.mxu0 0
        %3994 = vmatprep.subr.bf16.mxu0 0
        %3995 = vmatpush1.bf16.msra.mxu0 0
        %3996 = vmatprep.subr.bf16.mxu0 0
        %3997 = vmatpush1.bf16.msra.mxu0 0
        %3998 = vmatprep.subr.bf16.mxu0 0
        %3999 = vmatpush1.bf16.msra.mxu0 0
        %4000 = vmatprep.subr.bf16.mxu0 0
        %4001 = vmatpush1.bf16.msra.mxu0 0
        %4002 = vmatprep.subr.bf16.mxu0 0
        %4003 = vmatpush1.bf16.msra.mxu0 0
        %4004 = vmatprep.subr.bf16.mxu0 0
        %4005 = vmatpush1.bf16.msra.mxu0 0
        %4006 = vmatprep.subr.bf16.mxu0 0
        %4007 = vmatpush1.bf16.msra.mxu0 0
        %4008 = vmatprep.subr.bf16.mxu0 0
        %4009 = vmatpush1.bf16.msra.mxu0 0
        %4010 = vmatprep.subr.bf16.mxu0 0
        %4011 = vmatpush1.bf16.msra.mxu0 0
        %4012 = vmatprep.subr.bf16.mxu0 0
        %4013 = vmatpush1.bf16.msra.mxu0 0
        %4014 = vmatprep.mubr.bf16.mxu0 0
        %4015 = vmatmul.mubr.bf16.gmra.mrb[0].mxu0 %v3937
        %v4016 = vpop.f32.mrb[0].mxu0
        %v4017 = vadd.f32 0.0, %v4016
        %v4018 = vpop.f32.mrb[0].mxu0
        %v4019 = vadd.f32 0.0, %v4018
        %v4020 = vpop.f32.mrb[0].mxu0
        %v4021 = vadd.f32 0.0, %v4020
        %v4022 = vpop.f32.mrb[0].mxu0
        %v4023 = vadd.f32 0.0, %v4022
        %4024 = vdwg.mxu0
        %4025 = vmatprep.subr.bf16.mxu0 %v3836
        %4026 = vmatpush1.bf16.msra.mxu0 %v3835
        %4027 = vmatprep.subr.bf16.mxu0 %v3849
        %4028 = vmatpush1.bf16.msra.mxu0 %v3848
        %4029 = vmatprep.subr.bf16.mxu0 %v3862
        %4030 = vmatpush1.bf16.msra.mxu0 %v3861
        %4031 = vmatprep.subr.bf16.mxu0 %v3875
        %4032 = vmatpush1.bf16.msra.mxu0 %v3874
        %4033 = vmatprep.subr.bf16.mxu0 0
        %4034 = vmatpush1.bf16.msra.mxu0 0
        %4035 = vmatprep.subr.bf16.mxu0 0
        %4036 = vmatpush1.bf16.msra.mxu0 0
        %4037 = vmatprep.subr.bf16.mxu0 0
        %4038 = vmatpush1.bf16.msra.mxu0 0
        %4039 = vmatprep.subr.bf16.mxu0 0
        %4040 = vmatpush1.bf16.msra.mxu0 0
        %4041 = vmatprep.subr.bf16.mxu0 0
        %4042 = vmatpush1.bf16.msra.mxu0 0
        %4043 = vmatprep.subr.bf16.mxu0 0
        %4044 = vmatpush1.bf16.msra.mxu0 0
        %4045 = vmatprep.subr.bf16.mxu0 0
        %4046 = vmatpush1.bf16.msra.mxu0 0
        %4047 = vmatprep.subr.bf16.mxu0 0
        %4048 = vmatpush1.bf16.msra.mxu0 0
        %4049 = vmatprep.subr.bf16.mxu0 0
        %4050 = vmatpush1.bf16.msra.mxu0 0
        %4051 = vmatprep.subr.bf16.mxu0 0
        %4052 = vmatpush1.bf16.msra.mxu0 0
        %4053 = vmatprep.subr.bf16.mxu0 0
        %4054 = vmatpush1.bf16.msra.mxu0 0
        %4055 = vmatprep.subr.bf16.mxu0 0
        %4056 = vmatpush1.bf16.msra.mxu0 0
        %4057 = vmatprep.mubr.bf16.mxu0 0
        %4058 = vmatmul.mubr.bf16.gmra.mrb[0].mxu0 %v3937
        %v4059 = vpop.f32.mrb[0].mxu0
        %v4060 = vadd.f32 0.0, %v4059
        %v4061 = vpop.f32.mrb[0].mxu0
        %v4062 = vadd.f32 0.0, %v4061
        %v4063 = vpop.f32.mrb[0].mxu0
        %v4064 = vadd.f32 0.0, %v4063
        %v4065 = vpop.f32.mrb[0].mxu0
        %v4066 = vadd.f32 0.0, %v4065
        %4067 = vdwg.mxu0
        %4068 = vmatprep.subr.bf16.mxu0 %v3838
        %4069 = vmatpush1.bf16.msra.mxu0 %v3837
        %4070 = vmatprep.subr.bf16.mxu0 %v3851
        %4071 = vmatpush1.bf16.msra.mxu0 %v3850
        %4072 = vmatprep.subr.bf16.mxu0 %v3864
        %4073 = vmatpush1.bf16.msra.mxu0 %v3863
        %4074 = vmatprep.subr.bf16.mxu0 %v3877
        %4075 = vmatpush1.bf16.msra.mxu0 %v3876
        %4076 = vmatprep.subr.bf16.mxu0 0
        %4077 = vmatpush1.bf16.msra.mxu0 0
        %4078 = vmatprep.subr.bf16.mxu0 0
        %4079 = vmatpush1.bf16.msra.mxu0 0
        %4080 = vmatprep.subr.bf16.mxu0 0
        %4081 = vmatpush1.bf16.msra.mxu0 0
        %4082 = vmatprep.subr.bf16.mxu0 0
        %4083 = vmatpush1.bf16.msra.mxu0 0
        %4084 = vmatprep.subr.bf16.mxu0 0
        %4085 = vmatpush1.bf16.msra.mxu0 0
        %4086 = vmatprep.subr.bf16.mxu0 0
        %4087 = vmatpush1.bf16.msra.mxu0 0
        %4088 = vmatprep.subr.bf16.mxu0 0
        %4089 = vmatpush1.bf16.msra.mxu0 0
        %4090 = vmatprep.subr.bf16.mxu0 0
        %4091 = vmatpush1.bf16.msra.mxu0 0
        %4092 = vmatprep.subr.bf16.mxu0 0
        %4093 = vmatpush1.bf16.msra.mxu0 0
        %4094 = vmatprep.subr.bf16.mxu0 0
        %4095 = vmatpush1.bf16.msra.mxu0 0
        %4096 = vmatprep.subr.bf16.mxu0 0
        %4097 = vmatpush1.bf16.msra.mxu0 0
        %4098 = vmatprep.subr.bf16.mxu0 0
        %4099 = vmatpush1.bf16.msra.mxu0 0
        %4100 = vmatprep.mubr.bf16.mxu0 0
        %4101 = vmatmul.mubr.bf16.gmra.mrb[0].mxu0 %v3937
        %v4102 = vpop.f32.mrb[0].mxu0
        %v4103 = vadd.f32 0.0, %v4102
        %v4104 = vpop.f32.mrb[0].mxu0
        %v4105 = vadd.f32 0.0, %v4104
        %v4106 = vpop.f32.mrb[0].mxu0
        %v4107 = vadd.f32 0.0, %v4106
        %v4108 = vpop.f32.mrb[0].mxu0
        %v4109 = vadd.f32 0.0, %v4108
        %4110 = vdwg.mxu0
        %4111 = vmatprep.subr.bf16.mxu0 %v3840
        %4112 = vmatpush1.bf16.msra.mxu0 %v3839
        %4113 = vmatprep.subr.bf16.mxu0 %v3853
        %4114 = vmatpush1.bf16.msra.mxu0 %v3852
        %4115 = vmatprep.subr.bf16.mxu0 %v3866
        %4116 = vmatpush1.bf16.msra.mxu0 %v3865
        %4117 = vmatprep.subr.bf16.mxu0 %v3879
        %4118 = vmatpush1.bf16.msra.mxu0 %v3878
        %4119 = vmatprep.subr.bf16.mxu0 0
        %4120 = vmatpush1.bf16.msra.mxu0 0
        %4121 = vmatprep.subr.bf16.mxu0 0
        %4122 = vmatpush1.bf16.msra.mxu0 0
        %4123 = vmatprep.subr.bf16.mxu0 0
        %4124 = vmatpush1.bf16.msra.mxu0 0
        %4125 = vmatprep.subr.bf16.mxu0 0
        %4126 = vmatpush1.bf16.msra.mxu0 0
        %4127 = vmatprep.subr.bf16.mxu0 0
        %4128 = vmatpush1.bf16.msra.mxu0 0
        %4129 = vmatprep.subr.bf16.mxu0 0
        %4130 = vmatpush1.bf16.msra.mxu0 0
        %4131 = vmatprep.subr.bf16.mxu0 0
        %4132 = vmatpush1.bf16.msra.mxu0 0
        %4133 = vmatprep.subr.bf16.mxu0 0
        %4134 = vmatpush1.bf16.msra.mxu0 0
        %4135 = vmatprep.subr.bf16.mxu0 0
        %4136 = vmatpush1.bf16.msra.mxu0 0
        %4137 = vmatprep.subr.bf16.mxu0 0
        %4138 = vmatpush1.bf16.msra.mxu0 0
        %4139 = vmatprep.subr.bf16.mxu0 0
        %4140 = vmatpush1.bf16.msra.mxu0 0
        %4141 = vmatprep.subr.bf16.mxu0 0
        %4142 = vmatpush1.bf16.msra.mxu0 0
        %4143 = vmatprep.mubr.bf16.mxu0 0
        %4144 = vmatmul.mubr.bf16.gmra.mrb[0].mxu0 %v3937
        %v4145 = vpop.f32.mrb[0].mxu0
        %v4146 = vadd.f32 0.0, %v4145
        %v4147 = vpop.f32.mrb[0].mxu0
        %v4148 = vadd.f32 0.0, %v4147
        %v4149 = vpop.f32.mrb[0].mxu0
        %v4150 = vadd.f32 0.0, %v4149
        %v4151 = vpop.f32.mrb[0].mxu0
        %v4152 = vadd.f32 0.0, %v4151
        %4153 = vdwg.mxu0
        %4154 = vmatprep.subr.bf16.mxu0 %v3842
        %4155 = vmatpush1.bf16.msra.mxu0 %v3841
        %4156 = vmatprep.subr.bf16.mxu0 %v3855
        %4157 = vmatpush1.bf16.msra.mxu0 %v3854
        %4158 = vmatprep.subr.bf16.mxu0 %v3868
        %4159 = vmatpush1.bf16.msra.mxu0 %v3867
        %4160 = vmatprep.subr.bf16.mxu0 %v3881
        %4161 = vmatpush1.bf16.msra.mxu0 %v3880
        %4162 = vmatprep.subr.bf16.mxu0 0
        %4163 = vmatpush1.bf16.msra.mxu0 0
        %4164 = vmatprep.subr.bf16.mxu0 0
        %4165 = vmatpush1.bf16.msra.mxu0 0
        %4166 = vmatprep.subr.bf16.mxu0 0
        %4167 = vmatpush1.bf16.msra.mxu0 0
        %4168 = vmatprep.subr.bf16.mxu0 0
        %4169 = vmatpush1.bf16.msra.mxu0 0
        %4170 = vmatprep.subr.bf16.mxu0 0
        %4171 = vmatpush1.bf16.msra.mxu0 0
        %4172 = vmatprep.subr.bf16.mxu0 0
        %4173 = vmatpush1.bf16.msra.mxu0 0
        %4174 = vmatprep.subr.bf16.mxu0 0
        %4175 = vmatpush1.bf16.msra.mxu0 0
        %4176 = vmatprep.subr.bf16.mxu0 0
        %4177 = vmatpush1.bf16.msra.mxu0 0
        %4178 = vmatprep.subr.bf16.mxu0 0
        %4179 = vmatpush1.bf16.msra.mxu0 0
        %4180 = vmatprep.subr.bf16.mxu0 0
        %4181 = vmatpush1.bf16.msra.mxu0 0
        %4182 = vmatprep.subr.bf16.mxu0 0
        %4183 = vmatpush1.bf16.msra.mxu0 0
        %4184 = vmatprep.subr.bf16.mxu0 0
        %4185 = vmatpush1.bf16.msra.mxu0 0
        %4186 = vmatprep.mubr.bf16.mxu0 0
        %4187 = vmatmul.mubr.bf16.gmra.mrb[0].mxu0 %v3937
        %v4188 = vpop.f32.mrb[0].mxu0
        %v4189 = vadd.f32 0.0, %v4188
        %v4190 = vpop.f32.mrb[0].mxu0
        %v4191 = vadd.f32 0.0, %v4190
        %v4192 = vpop.f32.mrb[0].mxu0
        %v4193 = vadd.f32 0.0, %v4192
        %v4194 = vpop.f32.mrb[0].mxu0
        %v4195 = vadd.f32 0.0, %v4194
        %4196 = vdwg.mxu0
        %4197 = vmatprep.subr.bf16.mxu0 0
        %4198 = vmatpush1.bf16.msra.mxu0 %v3843
        %4199 = vmatprep.subr.bf16.mxu0 0
        %4200 = vmatpush1.bf16.msra.mxu0 %v3856
        %4201 = vmatprep.subr.bf16.mxu0 0
        %4202 = vmatpush1.bf16.msra.mxu0 %v3869
        %4203 = vmatprep.subr.bf16.mxu0 0
        %4204 = vmatpush1.bf16.msra.mxu0 %v3882
        %4205 = vmatprep.subr.bf16.mxu0 0
        %4206 = vmatpush1.bf16.msra.mxu0 0
        %4207 = vmatprep.subr.bf16.mxu0 0
        %4208 = vmatpush1.bf16.msra.mxu0 0
        %4209 = vmatprep.subr.bf16.mxu0 0
        %4210 = vmatpush1.bf16.msra.mxu0 0
        %4211 = vmatprep.subr.bf16.mxu0 0
        %4212 = vmatpush1.bf16.msra.mxu0 0
        %4213 = vmatprep.subr.bf16.mxu0 0
        %4214 = vmatpush1.bf16.msra.mxu0 0
        %4215 = vmatprep.subr.bf16.mxu0 0
        %4216 = vmatpush1.bf16.msra.mxu0 0
        %4217 = vmatprep.subr.bf16.mxu0 0
        %4218 = vmatpush1.bf16.msra.mxu0 0
        %4219 = vmatprep.subr.bf16.mxu0 0
        %4220 = vmatpush1.bf16.msra.mxu0 0
        %4221 = vmatprep.subr.bf16.mxu0 0
        %4222 = vmatpush1.bf16.msra.mxu0 0
        %4223 = vmatprep.subr.bf16.mxu0 0
        %4224 = vmatpush1.bf16.msra.mxu0 0
        %4225 = vmatprep.subr.bf16.mxu0 0
        %4226 = vmatpush1.bf16.msra.mxu0 0
        %4227 = vmatprep.subr.bf16.mxu0 0
        %4228 = vmatpush1.bf16.msra.mxu0 0
        %4229 = vmatprep.mubr.bf16.mxu0 0
        %4230 = vmatmul.mubr.bf16.gmra.mrb[0].mxu0 %v3937
        %v4231 = vpop.f32.mrb[0].mxu0
        %v4232 = vadd.f32 0.0, %v4231
        %v4233 = vpop.f32.mrb[0].mxu0
        %v4234 = vpop.f32.mrb[0].mxu0
        %v4235 = vadd.f32 0.0, %v4234
        %v4236 = vpop.f32.mrb[0].mxu0
        %4237 = vdwg.mxu0
        %v4238 = vpack.c.bf16 %v3978, %v3974
        %v4239 = vpack.c.bf16 %v3980, %v3976
        %v4240 = vpack.c.bf16 %v4021, %v4017
        %v4241 = vpack.c.bf16 %v4023, %v4019
        %v4242 = vpack.c.bf16 %v4064, %v4060
        %v4243 = vpack.c.bf16 %v4066, %v4062
        %v4244 = vpack.c.bf16 %v4107, %v4103
        %v4245 = vpack.c.bf16 %v4109, %v4105
        %v4246 = vpack.c.bf16 %v4150, %v4146
        %v4247 = vpack.c.bf16 %v4152, %v4148
        %v4248 = vpack.c.bf16 %v4193, %v4189
        %v4249 = vpack.c.bf16 %v4195, %v4191
        %v4250 = vpack.c.bf16 %v4235, %v4232
        %v4251 = vld [vmem:[%s7] sm:$0xf]
        %v4252 = vld [vmem:[%s7 + $0x4] sm:$0x3]
        %s4253 = scalar_lea.vmem %s7, 8
        %v4254 = vld [vmem:[%s4253] sm:$0xf]
        %v4255 = vld [vmem:[%s4253 + $0x4] sm:$0x3]
        %v4258 = vunpack.c.l.b16 %v4254
        %v4259 = vunpack.c.l.b16 %v4255
        %v4260 = vpack.c.b16 %v4259, %v4258
        %4262 = vrot.lane.b32.xlu0 %v4238, 64
        %v4263 = vpop.permute.xlu0 %4262
        %v4265 = vsel %vm2146, %v4260, 0
        %v4268 = vsel %vm467, %v4263, 0
        %4270 = vmatprep.subr.bf16.mxu0 0
        %4271 = vmatpush1.bf16.msra.mxu0 %v4268
        %4272 = vmatprep.subr.bf16.mxu0 0
        %4273 = vmatpush1.bf16.msra.mxu0 0
        %4274 = vmatprep.subr.bf16.mxu0 0
        %4275 = vmatpush1.bf16.msra.mxu0 0
        %4276 = vmatprep.subr.bf16.mxu0 0
        %4277 = vmatpush1.bf16.msra.mxu0 0
        %4278 = vmatprep.subr.bf16.mxu0 0
        %4279 = vmatpush1.bf16.msra.mxu0 0
        %4280 = vmatprep.subr.bf16.mxu0 0
        %4281 = vmatpush1.bf16.msra.mxu0 0
        %4282 = vmatprep.subr.bf16.mxu0 0
        %4283 = vmatpush1.bf16.msra.mxu0 0
        %4284 = vmatprep.subr.bf16.mxu0 0
        %4285 = vmatpush1.bf16.msra.mxu0 0
        %4286 = vmatprep.subr.bf16.mxu0 0
        %4287 = vmatpush1.bf16.msra.mxu0 0
        %4288 = vmatprep.subr.bf16.mxu0 0
        %4289 = vmatpush1.bf16.msra.mxu0 0
        %4290 = vmatprep.subr.bf16.mxu0 0
        %4291 = vmatpush1.bf16.msra.mxu0 0
        %4292 = vmatprep.subr.bf16.mxu0 0
        %4293 = vmatpush1.bf16.msra.mxu0 0
        %4294 = vmatprep.subr.bf16.mxu0 0
        %4295 = vmatpush1.bf16.msra.mxu0 0
        %4296 = vmatprep.subr.bf16.mxu0 0
        %4297 = vmatpush1.bf16.msra.mxu0 0
        %4298 = vmatprep.subr.bf16.mxu0 0
        %4299 = vmatpush1.bf16.msra.mxu0 0
        %4300 = vmatprep.subr.bf16.mxu0 0
        %4301 = vmatpush1.bf16.msra.mxu0 0
        %4302 = vmatprep.mubr.bf16.mxu0 0
        %4303 = vmatmul.mubr.bf16.gmra.mrb[0].mxu0 %v4265
        %v4304 = vpop.f32.mrb[0].mxu0
        %v4305 = vadd.f32 0.0, %v4304
        %v4306 = vpop.f32.mrb[0].mxu0
        %v4307 = vpop.f32.mrb[0].mxu0
        %v4308 = vadd.f32 0.0, %v4307
        %v4309 = vpop.f32.mrb[0].mxu0
        %4310 = vdwg.mxu0
        %v4313 = vunpack.c.l.b16 %v4251
        %v4314 = vunpack.c.l.b16 %v4252
        %v4315 = vpack.c.b16 %v4314, %v4313
        %v4317 = vsel %vm2146, %v4315, 0
        %v4320 = vsel %vm467, %v4238, 0
        %4322 = vmatprep.subr.bf16.mxu0 0
        %4323 = vmatpush1.bf16.msra.mxu0 %v4320
        %4324 = vmatprep.subr.bf16.mxu0 0
        %4325 = vmatpush1.bf16.msra.mxu0 0
        %4326 = vmatprep.subr.bf16.mxu0 0
        %4327 = vmatpush1.bf16.msra.mxu0 0
        %4328 = vmatprep.subr.bf16.mxu0 0
        %4329 = vmatpush1.bf16.msra.mxu0 0
        %4330 = vmatprep.subr.bf16.mxu0 0
        %4331 = vmatpush1.bf16.msra.mxu0 0
        %4332 = vmatprep.subr.bf16.mxu0 0
        %4333 = vmatpush1.bf16.msra.mxu0 0
        %4334 = vmatprep.subr.bf16.mxu0 0
        %4335 = vmatpush1.bf16.msra.mxu0 0
        %4336 = vmatprep.subr.bf16.mxu0 0
        %4337 = vmatpush1.bf16.msra.mxu0 0
        %4338 = vmatprep.subr.bf16.mxu0 0
        %4339 = vmatpush1.bf16.msra.mxu0 0
        %4340 = vmatprep.subr.bf16.mxu0 0
        %4341 = vmatpush1.bf16.msra.mxu0 0
        %4342 = vmatprep.subr.bf16.mxu0 0
        %4343 = vmatpush1.bf16.msra.mxu0 0
        %4344 = vmatprep.subr.bf16.mxu0 0
        %4345 = vmatpush1.bf16.msra.mxu0 0
        %4346 = vmatprep.subr.bf16.mxu0 0
        %4347 = vmatpush1.bf16.msra.mxu0 0
        %4348 = vmatprep.subr.bf16.mxu0 0
        %4349 = vmatpush1.bf16.msra.mxu0 0
        %4350 = vmatprep.subr.bf16.mxu0 0
        %4351 = vmatpush1.bf16.msra.mxu0 0
        %4352 = vmatprep.subr.bf16.mxu0 0
        %4353 = vmatpush1.bf16.msra.mxu0 0
        %4354 = vmatprep.mubr.bf16.mxu0 0
        %4355 = vmatmul.mubr.bf16.gmra.mrb[0].mxu0 %v4317
        %v4356 = vpop.f32.mrb[0].mxu0
        %v4357 = vadd.f32 %v4305, %v4356
        %v4358 = vpop.f32.mrb[0].mxu0
        %v4359 = vpop.f32.mrb[0].mxu0
        %v4360 = vadd.f32 %v4308, %v4359
        %v4361 = vpop.f32.mrb[0].mxu0
        %4362 = vdwg.mxu0
        %s4363 = scalar_lea.vmem %s7, 16
        %v4364 = vld [vmem:[%s4363] sm:$0xf]
        %v4365 = vld [vmem:[%s4363 + $0x4] sm:$0x3]
        %v4368 = vunpack.c.l.b16 %v4364
        %v4369 = vunpack.c.l.b16 %v4365
        %v4370 = vpack.c.b16 %v4369, %v4368
        %v4372 = vsel %vm2146, %v4370, 0
        %v4375 = vsel %vm467, %v4239, 0
        %4377 = vmatprep.subr.bf16.mxu0 0
        %4378 = vmatpush1.bf16.msra.mxu0 %v4375
        %4379 = vmatprep.subr.bf16.mxu0 0
        %4380 = vmatpush1.bf16.msra.mxu0 0
        %4381 = vmatprep.subr.bf16.mxu0 0
        %4382 = vmatpush1.bf16.msra.mxu0 0
        %4383 = vmatprep.subr.bf16.mxu0 0
        %4384 = vmatpush1.bf16.msra.mxu0 0
        %4385 = vmatprep.subr.bf16.mxu0 0
        %4386 = vmatpush1.bf16.msra.mxu0 0
        %4387 = vmatprep.subr.bf16.mxu0 0
        %4388 = vmatpush1.bf16.msra.mxu0 0
        %4389 = vmatprep.subr.bf16.mxu0 0
        %4390 = vmatpush1.bf16.msra.mxu0 0
        %4391 = vmatprep.subr.bf16.mxu0 0
        %4392 = vmatpush1.bf16.msra.mxu0 0
        %4393 = vmatprep.subr.bf16.mxu0 0
        %4394 = vmatpush1.bf16.msra.mxu0 0
        %4395 = vmatprep.subr.bf16.mxu0 0
        %4396 = vmatpush1.bf16.msra.mxu0 0
        %4397 = vmatprep.subr.bf16.mxu0 0
        %4398 = vmatpush1.bf16.msra.mxu0 0
        %4399 = vmatprep.subr.bf16.mxu0 0
        %4400 = vmatpush1.bf16.msra.mxu0 0
        %4401 = vmatprep.subr.bf16.mxu0 0
        %4402 = vmatpush1.bf16.msra.mxu0 0
        %4403 = vmatprep.subr.bf16.mxu0 0
        %4404 = vmatpush1.bf16.msra.mxu0 0
        %4405 = vmatprep.subr.bf16.mxu0 0
        %4406 = vmatpush1.bf16.msra.mxu0 0
        %4407 = vmatprep.subr.bf16.mxu0 0
        %4408 = vmatpush1.bf16.msra.mxu0 0
        %4409 = vmatprep.mubr.bf16.mxu0 0
        %4410 = vmatmul.mubr.bf16.gmra.mrb[0].mxu0 %v4372
        %v4411 = vpop.f32.mrb[0].mxu0
        %v4412 = vadd.f32 0.0, %v4411
        %v4413 = vpop.f32.mrb[0].mxu0
        %v4414 = vpop.f32.mrb[0].mxu0
        %v4415 = vadd.f32 0.0, %v4414
        %v4416 = vpop.f32.mrb[0].mxu0
        %4417 = vdwg.mxu0
        %v4418 = vadd.f32 %v4357, %v4412
        %v4419 = vadd.f32 %v4360, %v4415
        %s4420 = scalar_lea.vmem %s7, 24
        %v4421 = vld [vmem:[%s4420] sm:$0xf]
        %v4422 = vld [vmem:[%s4420 + $0x4] sm:$0x3]
        %v4425 = vunpack.c.l.b16 %v4421
        %v4426 = vunpack.c.l.b16 %v4422
        %v4427 = vpack.c.b16 %v4426, %v4425
        %4429 = vrot.lane.b32.xlu0 %v4239, 64
        %v4430 = vpop.permute.xlu0 %4429
        %v4432 = vsel %vm2146, %v4427, 0
        %v4435 = vsel %vm467, %v4430, 0
        %4437 = vmatprep.subr.bf16.mxu0 0
        %4438 = vmatpush1.bf16.msra.mxu0 %v4435
        %4439 = vmatprep.subr.bf16.mxu0 0
        %4440 = vmatpush1.bf16.msra.mxu0 0
        %4441 = vmatprep.subr.bf16.mxu0 0
        %4442 = vmatpush1.bf16.msra.mxu0 0
        %4443 = vmatprep.subr.bf16.mxu0 0
        %4444 = vmatpush1.bf16.msra.mxu0 0
        %4445 = vmatprep.subr.bf16.mxu0 0
        %4446 = vmatpush1.bf16.msra.mxu0 0
        %4447 = vmatprep.subr.bf16.mxu0 0
        %4448 = vmatpush1.bf16.msra.mxu0 0
        %4449 = vmatprep.subr.bf16.mxu0 0
        %4450 = vmatpush1.bf16.msra.mxu0 0
        %4451 = vmatprep.subr.bf16.mxu0 0
        %4452 = vmatpush1.bf16.msra.mxu0 0
        %4453 = vmatprep.subr.bf16.mxu0 0
        %4454 = vmatpush1.bf16.msra.mxu0 0
        %4455 = vmatprep.subr.bf16.mxu0 0
        %4456 = vmatpush1.bf16.msra.mxu0 0
        %4457 = vmatprep.subr.bf16.mxu0 0
        %4458 = vmatpush1.bf16.msra.mxu0 0
        %4459 = vmatprep.subr.bf16.mxu0 0
        %4460 = vmatpush1.bf16.msra.mxu0 0
        %4461 = vmatprep.subr.bf16.mxu0 0
        %4462 = vmatpush1.bf16.msra.mxu0 0
        %4463 = vmatprep.subr.bf16.mxu0 0
        %4464 = vmatpush1.bf16.msra.mxu0 0
        %4465 = vmatprep.subr.bf16.mxu0 0
        %4466 = vmatpush1.bf16.msra.mxu0 0
        %4467 = vmatprep.subr.bf16.mxu0 0
        %4468 = vmatpush1.bf16.msra.mxu0 0
        %4469 = vmatprep.mubr.bf16.mxu0 0
        %4470 = vmatmul.mubr.bf16.gmra.mrb[0].mxu0 %v4432
        %v4471 = vpop.f32.mrb[0].mxu0
        %v4472 = vadd.f32 0.0, %v4471
        %v4473 = vpop.f32.mrb[0].mxu0
        %v4474 = vpop.f32.mrb[0].mxu0
        %v4475 = vadd.f32 0.0, %v4474
        %v4476 = vpop.f32.mrb[0].mxu0
        %4477 = vdwg.mxu0
        %v4478 = vadd.f32 %v4418, %v4472
        %v4479 = vadd.f32 %v4419, %v4475
        %s4480 = scalar_lea.vmem %s7, 32
        %v4481 = vld [vmem:[%s4480] sm:$0xf]
        %v4482 = vld [vmem:[%s4480 + $0x4] sm:$0x3]
        %v4485 = vunpack.c.l.b16 %v4481
        %v4486 = vunpack.c.l.b16 %v4482
        %v4487 = vpack.c.b16 %v4486, %v4485
        %v4489 = vsel %vm2146, %v4487, 0
        %v4492 = vsel %vm467, %v4240, 0
        %4494 = vmatprep.subr.bf16.mxu0 0
        %4495 = vmatpush1.bf16.msra.mxu0 %v4492
        %4496 = vmatprep.subr.bf16.mxu0 0
        %4497 = vmatpush1.bf16.msra.mxu0 0
        %4498 = vmatprep.subr.bf16.mxu0 0
        %4499 = vmatpush1.bf16.msra.mxu0 0
        %4500 = vmatprep.subr.bf16.mxu0 0
        %4501 = vmatpush1.bf16.msra.mxu0 0
        %4502 = vmatprep.subr.bf16.mxu0 0
        %4503 = vmatpush1.bf16.msra.mxu0 0
        %4504 = vmatprep.subr.bf16.mxu0 0
        %4505 = vmatpush1.bf16.msra.mxu0 0
        %4506 = vmatprep.subr.bf16.mxu0 0
        %4507 = vmatpush1.bf16.msra.mxu0 0
        %4508 = vmatprep.subr.bf16.mxu0 0
        %4509 = vmatpush1.bf16.msra.mxu0 0
        %4510 = vmatprep.subr.bf16.mxu0 0
        %4511 = vmatpush1.bf16.msra.mxu0 0
        %4512 = vmatprep.subr.bf16.mxu0 0
        %4513 = vmatpush1.bf16.msra.mxu0 0
        %4514 = vmatprep.subr.bf16.mxu0 0
        %4515 = vmatpush1.bf16.msra.mxu0 0
        %4516 = vmatprep.subr.bf16.mxu0 0
        %4517 = vmatpush1.bf16.msra.mxu0 0
        %4518 = vmatprep.subr.bf16.mxu0 0
        %4519 = vmatpush1.bf16.msra.mxu0 0
        %4520 = vmatprep.subr.bf16.mxu0 0
        %4521 = vmatpush1.bf16.msra.mxu0 0
        %4522 = vmatprep.subr.bf16.mxu0 0
        %4523 = vmatpush1.bf16.msra.mxu0 0
        %4524 = vmatprep.subr.bf16.mxu0 0
        %4525 = vmatpush1.bf16.msra.mxu0 0
        %4526 = vmatprep.mubr.bf16.mxu0 0
        %4527 = vmatmul.mubr.bf16.gmra.mrb[0].mxu0 %v4489
        %v4528 = vpop.f32.mrb[0].mxu0
        %v4529 = vadd.f32 0.0, %v4528
        %v4530 = vpop.f32.mrb[0].mxu0
        %v4531 = vpop.f32.mrb[0].mxu0
        %v4532 = vadd.f32 0.0, %v4531
        %v4533 = vpop.f32.mrb[0].mxu0
        %4534 = vdwg.mxu0
        %v4535 = vadd.f32 %v4478, %v4529
        %v4536 = vadd.f32 %v4479, %v4532
        %s4537 = scalar_lea.vmem %s7, 40
        %v4538 = vld [vmem:[%s4537] sm:$0xf]
        %v4539 = vld [vmem:[%s4537 + $0x4] sm:$0x3]
        %v4542 = vunpack.c.l.b16 %v4538
        %v4543 = vunpack.c.l.b16 %v4539
        %v4544 = vpack.c.b16 %v4543, %v4542
        %4546 = vrot.lane.b32.xlu0 %v4240, 64
        %v4547 = vpop.permute.xlu0 %4546
        %v4549 = vsel %vm2146, %v4544, 0
        %v4552 = vsel %vm467, %v4547, 0
        %4554 = vmatprep.subr.bf16.mxu0 0
        %4555 = vmatpush1.bf16.msra.mxu0 %v4552
        %4556 = vmatprep.subr.bf16.mxu0 0
        %4557 = vmatpush1.bf16.msra.mxu0 0
        %4558 = vmatprep.subr.bf16.mxu0 0
        %4559 = vmatpush1.bf16.msra.mxu0 0
        %4560 = vmatprep.subr.bf16.mxu0 0
        %4561 = vmatpush1.bf16.msra.mxu0 0
        %4562 = vmatprep.subr.bf16.mxu0 0
        %4563 = vmatpush1.bf16.msra.mxu0 0
        %4564 = vmatprep.subr.bf16.mxu0 0
        %4565 = vmatpush1.bf16.msra.mxu0 0
        %4566 = vmatprep.subr.bf16.mxu0 0
        %4567 = vmatpush1.bf16.msra.mxu0 0
        %4568 = vmatprep.subr.bf16.mxu0 0
        %4569 = vmatpush1.bf16.msra.mxu0 0
        %4570 = vmatprep.subr.bf16.mxu0 0
        %4571 = vmatpush1.bf16.msra.mxu0 0
        %4572 = vmatprep.subr.bf16.mxu0 0
        %4573 = vmatpush1.bf16.msra.mxu0 0
        %4574 = vmatprep.subr.bf16.mxu0 0
        %4575 = vmatpush1.bf16.msra.mxu0 0
        %4576 = vmatprep.subr.bf16.mxu0 0
        %4577 = vmatpush1.bf16.msra.mxu0 0
        %4578 = vmatprep.subr.bf16.mxu0 0
        %4579 = vmatpush1.bf16.msra.mxu0 0
        %4580 = vmatprep.subr.bf16.mxu0 0
        %4581 = vmatpush1.bf16.msra.mxu0 0
        %4582 = vmatprep.subr.bf16.mxu0 0
        %4583 = vmatpush1.bf16.msra.mxu0 0
        %4584 = vmatprep.subr.bf16.mxu0 0
        %4585 = vmatpush1.bf16.msra.mxu0 0
        %4586 = vmatprep.mubr.bf16.mxu0 0
        %4587 = vmatmul.mubr.bf16.gmra.mrb[0].mxu0 %v4549
        %v4588 = vpop.f32.mrb[0].mxu0
        %v4589 = vadd.f32 0.0, %v4588
        %v4590 = vpop.f32.mrb[0].mxu0
        %v4591 = vpop.f32.mrb[0].mxu0
        %v4592 = vadd.f32 0.0, %v4591
        %v4593 = vpop.f32.mrb[0].mxu0
        %4594 = vdwg.mxu0
        %v4595 = vadd.f32 %v4535, %v4589
        %v4596 = vadd.f32 %v4536, %v4592
        %s4597 = scalar_lea.vmem %s7, 48
        %v4598 = vld [vmem:[%s4597] sm:$0xf]
        %v4599 = vld [vmem:[%s4597 + $0x4] sm:$0x3]
        %v4602 = vunpack.c.l.b16 %v4598
        %v4603 = vunpack.c.l.b16 %v4599
        %v4604 = vpack.c.b16 %v4603, %v4602
        %v4606 = vsel %vm2146, %v4604, 0
        %v4609 = vsel %vm467, %v4241, 0
        %4611 = vmatprep.subr.bf16.mxu0 0
        %4612 = vmatpush1.bf16.msra.mxu0 %v4609
        %4613 = vmatprep.subr.bf16.mxu0 0
        %4614 = vmatpush1.bf16.msra.mxu0 0
        %4615 = vmatprep.subr.bf16.mxu0 0
        %4616 = vmatpush1.bf16.msra.mxu0 0
        %4617 = vmatprep.subr.bf16.mxu0 0
        %4618 = vmatpush1.bf16.msra.mxu0 0
        %4619 = vmatprep.subr.bf16.mxu0 0
        %4620 = vmatpush1.bf16.msra.mxu0 0
        %4621 = vmatprep.subr.bf16.mxu0 0
        %4622 = vmatpush1.bf16.msra.mxu0 0
        %4623 = vmatprep.subr.bf16.mxu0 0
        %4624 = vmatpush1.bf16.msra.mxu0 0
        %4625 = vmatprep.subr.bf16.mxu0 0
        %4626 = vmatpush1.bf16.msra.mxu0 0
        %4627 = vmatprep.subr.bf16.mxu0 0
        %4628 = vmatpush1.bf16.msra.mxu0 0
        %4629 = vmatprep.subr.bf16.mxu0 0
        %4630 = vmatpush1.bf16.msra.mxu0 0
        %4631 = vmatprep.subr.bf16.mxu0 0
        %4632 = vmatpush1.bf16.msra.mxu0 0
        %4633 = vmatprep.subr.bf16.mxu0 0
        %4634 = vmatpush1.bf16.msra.mxu0 0
        %4635 = vmatprep.subr.bf16.mxu0 0
        %4636 = vmatpush1.bf16.msra.mxu0 0
        %4637 = vmatprep.subr.bf16.mxu0 0
        %4638 = vmatpush1.bf16.msra.mxu0 0
        %4639 = vmatprep.subr.bf16.mxu0 0
        %4640 = vmatpush1.bf16.msra.mxu0 0
        %4641 = vmatprep.subr.bf16.mxu0 0
        %4642 = vmatpush1.bf16.msra.mxu0 0
        %4643 = vmatprep.mubr.bf16.mxu0 0
        %4644 = vmatmul.mubr.bf16.gmra.mrb[0].mxu0 %v4606
        %v4645 = vpop.f32.mrb[0].mxu0
        %v4646 = vadd.f32 0.0, %v4645
        %v4647 = vpop.f32.mrb[0].mxu0
        %v4648 = vpop.f32.mrb[0].mxu0
        %v4649 = vadd.f32 0.0, %v4648
        %v4650 = vpop.f32.mrb[0].mxu0
        %4651 = vdwg.mxu0
        %v4652 = vadd.f32 %v4595, %v4646
        %v4653 = vadd.f32 %v4596, %v4649
        %s4654 = scalar_lea.vmem %s7, 56
        %v4655 = vld [vmem:[%s4654] sm:$0xf]
        %v4656 = vld [vmem:[%s4654 + $0x4] sm:$0x3]
        %v4659 = vunpack.c.l.b16 %v4655
        %v4660 = vunpack.c.l.b16 %v4656
        %v4661 = vpack.c.b16 %v4660, %v4659
        %4663 = vrot.lane.b32.xlu0 %v4241, 64
        %v4664 = vpop.permute.xlu0 %4663
        %v4666 = vsel %vm2146, %v4661, 0
        %v4669 = vsel %vm467, %v4664, 0
        %4671 = vmatprep.subr.bf16.mxu0 0
        %4672 = vmatpush1.bf16.msra.mxu0 %v4669
        %4673 = vmatprep.subr.bf16.mxu0 0
        %4674 = vmatpush1.bf16.msra.mxu0 0
        %4675 = vmatprep.subr.bf16.mxu0 0
        %4676 = vmatpush1.bf16.msra.mxu0 0
        %4677 = vmatprep.subr.bf16.mxu0 0
        %4678 = vmatpush1.bf16.msra.mxu0 0
        %4679 = vmatprep.subr.bf16.mxu0 0
        %4680 = vmatpush1.bf16.msra.mxu0 0
        %4681 = vmatprep.subr.bf16.mxu0 0
        %4682 = vmatpush1.bf16.msra.mxu0 0
        %4683 = vmatprep.subr.bf16.mxu0 0
        %4684 = vmatpush1.bf16.msra.mxu0 0
        %4685 = vmatprep.subr.bf16.mxu0 0
        %4686 = vmatpush1.bf16.msra.mxu0 0
        %4687 = vmatprep.subr.bf16.mxu0 0
        %4688 = vmatpush1.bf16.msra.mxu0 0
        %4689 = vmatprep.subr.bf16.mxu0 0
        %4690 = vmatpush1.bf16.msra.mxu0 0
        %4691 = vmatprep.subr.bf16.mxu0 0
        %4692 = vmatpush1.bf16.msra.mxu0 0
        %4693 = vmatprep.subr.bf16.mxu0 0
        %4694 = vmatpush1.bf16.msra.mxu0 0
        %4695 = vmatprep.subr.bf16.mxu0 0
        %4696 = vmatpush1.bf16.msra.mxu0 0
        %4697 = vmatprep.subr.bf16.mxu0 0
        %4698 = vmatpush1.bf16.msra.mxu0 0
        %4699 = vmatprep.subr.bf16.mxu0 0
        %4700 = vmatpush1.bf16.msra.mxu0 0
        %4701 = vmatprep.subr.bf16.mxu0 0
        %4702 = vmatpush1.bf16.msra.mxu0 0
        %4703 = vmatprep.mubr.bf16.mxu0 0
        %4704 = vmatmul.mubr.bf16.gmra.mrb[0].mxu0 %v4666
        %v4705 = vpop.f32.mrb[0].mxu0
        %v4706 = vadd.f32 0.0, %v4705
        %v4707 = vpop.f32.mrb[0].mxu0
        %v4708 = vpop.f32.mrb[0].mxu0
        %v4709 = vadd.f32 0.0, %v4708
        %v4710 = vpop.f32.mrb[0].mxu0
        %4711 = vdwg.mxu0
        %v4712 = vadd.f32 %v4652, %v4706
        %v4713 = vadd.f32 %v4653, %v4709
        %s4714 = scalar_lea.vmem %s7, 64
        %v4715 = vld [vmem:[%s4714] sm:$0xf]
        %v4716 = vld [vmem:[%s4714 + $0x4] sm:$0x3]
        %v4719 = vunpack.c.l.b16 %v4715
        %v4720 = vunpack.c.l.b16 %v4716
        %v4721 = vpack.c.b16 %v4720, %v4719
        %v4723 = vsel %vm2146, %v4721, 0
        %v4726 = vsel %vm467, %v4242, 0
        %4728 = vmatprep.subr.bf16.mxu0 0
        %4729 = vmatpush1.bf16.msra.mxu0 %v4726
        %4730 = vmatprep.subr.bf16.mxu0 0
        %4731 = vmatpush1.bf16.msra.mxu0 0
        %4732 = vmatprep.subr.bf16.mxu0 0
        %4733 = vmatpush1.bf16.msra.mxu0 0
        %4734 = vmatprep.subr.bf16.mxu0 0
        %4735 = vmatpush1.bf16.msra.mxu0 0
        %4736 = vmatprep.subr.bf16.mxu0 0
        %4737 = vmatpush1.bf16.msra.mxu0 0
        %4738 = vmatprep.subr.bf16.mxu0 0
        %4739 = vmatpush1.bf16.msra.mxu0 0
        %4740 = vmatprep.subr.bf16.mxu0 0
        %4741 = vmatpush1.bf16.msra.mxu0 0
        %4742 = vmatprep.subr.bf16.mxu0 0
        %4743 = vmatpush1.bf16.msra.mxu0 0
        %4744 = vmatprep.subr.bf16.mxu0 0
        %4745 = vmatpush1.bf16.msra.mxu0 0
        %4746 = vmatprep.subr.bf16.mxu0 0
        %4747 = vmatpush1.bf16.msra.mxu0 0
        %4748 = vmatprep.subr.bf16.mxu0 0
        %4749 = vmatpush1.bf16.msra.mxu0 0
        %4750 = vmatprep.subr.bf16.mxu0 0
        %4751 = vmatpush1.bf16.msra.mxu0 0
        %4752 = vmatprep.subr.bf16.mxu0 0
        %4753 = vmatpush1.bf16.msra.mxu0 0
        %4754 = vmatprep.subr.bf16.mxu0 0
        %4755 = vmatpush1.bf16.msra.mxu0 0
        %4756 = vmatprep.subr.bf16.mxu0 0
        %4757 = vmatpush1.bf16.msra.mxu0 0
        %4758 = vmatprep.subr.bf16.mxu0 0
        %4759 = vmatpush1.bf16.msra.mxu0 0
        %4760 = vmatprep.mubr.bf16.mxu0 0
        %4761 = vmatmul.mubr.bf16.gmra.mrb[0].mxu0 %v4723
        %v4762 = vpop.f32.mrb[0].mxu0
        %v4763 = vadd.f32 0.0, %v4762
        %v4764 = vpop.f32.mrb[0].mxu0
        %v4765 = vpop.f32.mrb[0].mxu0
        %v4766 = vadd.f32 0.0, %v4765
        %v4767 = vpop.f32.mrb[0].mxu0
        %4768 = vdwg.mxu0
        %v4769 = vadd.f32 %v4712, %v4763
        %v4770 = vadd.f32 %v4713, %v4766
        %s4771 = scalar_lea.vmem %s7, 72
        %v4772 = vld [vmem:[%s4771] sm:$0xf]
        %v4773 = vld [vmem:[%s4771 + $0x4] sm:$0x3]
        %v4776 = vunpack.c.l.b16 %v4772
        %v4777 = vunpack.c.l.b16 %v4773
        %v4778 = vpack.c.b16 %v4777, %v4776
        %4780 = vrot.lane.b32.xlu0 %v4242, 64
        %v4781 = vpop.permute.xlu0 %4780
        %v4783 = vsel %vm2146, %v4778, 0
        %v4786 = vsel %vm467, %v4781, 0
        %4788 = vmatprep.subr.bf16.mxu0 0
        %4789 = vmatpush1.bf16.msra.mxu0 %v4786
        %4790 = vmatprep.subr.bf16.mxu0 0
        %4791 = vmatpush1.bf16.msra.mxu0 0
        %4792 = vmatprep.subr.bf16.mxu0 0
        %4793 = vmatpush1.bf16.msra.mxu0 0
        %4794 = vmatprep.subr.bf16.mxu0 0
        %4795 = vmatpush1.bf16.msra.mxu0 0
        %4796 = vmatprep.subr.bf16.mxu0 0
        %4797 = vmatpush1.bf16.msra.mxu0 0
        %4798 = vmatprep.subr.bf16.mxu0 0
        %4799 = vmatpush1.bf16.msra.mxu0 0
        %4800 = vmatprep.subr.bf16.mxu0 0
        %4801 = vmatpush1.bf16.msra.mxu0 0
        %4802 = vmatprep.subr.bf16.mxu0 0
        %4803 = vmatpush1.bf16.msra.mxu0 0
        %4804 = vmatprep.subr.bf16.mxu0 0
        %4805 = vmatpush1.bf16.msra.mxu0 0
        %4806 = vmatprep.subr.bf16.mxu0 0
        %4807 = vmatpush1.bf16.msra.mxu0 0
        %4808 = vmatprep.subr.bf16.mxu0 0
        %4809 = vmatpush1.bf16.msra.mxu0 0
        %4810 = vmatprep.subr.bf16.mxu0 0
        %4811 = vmatpush1.bf16.msra.mxu0 0
        %4812 = vmatprep.subr.bf16.mxu0 0
        %4813 = vmatpush1.bf16.msra.mxu0 0
        %4814 = vmatprep.subr.bf16.mxu0 0
        %4815 = vmatpush1.bf16.msra.mxu0 0
        %4816 = vmatprep.subr.bf16.mxu0 0
        %4817 = vmatpush1.bf16.msra.mxu0 0
        %4818 = vmatprep.subr.bf16.mxu0 0
        %4819 = vmatpush1.bf16.msra.mxu0 0
        %4820 = vmatprep.mubr.bf16.mxu0 0
        %4821 = vmatmul.mubr.bf16.gmra.mrb[0].mxu0 %v4783
        %v4822 = vpop.f32.mrb[0].mxu0
        %v4823 = vadd.f32 0.0, %v4822
        %v4824 = vpop.f32.mrb[0].mxu0
        %v4825 = vpop.f32.mrb[0].mxu0
        %v4826 = vadd.f32 0.0, %v4825
        %v4827 = vpop.f32.mrb[0].mxu0
        %4828 = vdwg.mxu0
        %v4829 = vadd.f32 %v4769, %v4823
        %v4830 = vadd.f32 %v4770, %v4826
        %s4831 = scalar_lea.vmem %s7, 80
        %v4832 = vld [vmem:[%s4831] sm:$0xf]
        %v4833 = vld [vmem:[%s4831 + $0x4] sm:$0x3]
        %v4836 = vunpack.c.l.b16 %v4832
        %v4837 = vunpack.c.l.b16 %v4833
        %v4838 = vpack.c.b16 %v4837, %v4836
        %v4840 = vsel %vm2146, %v4838, 0
        %v4843 = vsel %vm467, %v4243, 0
        %4845 = vmatprep.subr.bf16.mxu0 0
        %4846 = vmatpush1.bf16.msra.mxu0 %v4843
        %4847 = vmatprep.subr.bf16.mxu0 0
        %4848 = vmatpush1.bf16.msra.mxu0 0
        %4849 = vmatprep.subr.bf16.mxu0 0
        %4850 = vmatpush1.bf16.msra.mxu0 0
        %4851 = vmatprep.subr.bf16.mxu0 0
        %4852 = vmatpush1.bf16.msra.mxu0 0
        %4853 = vmatprep.subr.bf16.mxu0 0
        %4854 = vmatpush1.bf16.msra.mxu0 0
        %4855 = vmatprep.subr.bf16.mxu0 0
        %4856 = vmatpush1.bf16.msra.mxu0 0
        %4857 = vmatprep.subr.bf16.mxu0 0
        %4858 = vmatpush1.bf16.msra.mxu0 0
        %4859 = vmatprep.subr.bf16.mxu0 0
        %4860 = vmatpush1.bf16.msra.mxu0 0
        %4861 = vmatprep.subr.bf16.mxu0 0
        %4862 = vmatpush1.bf16.msra.mxu0 0
        %4863 = vmatprep.subr.bf16.mxu0 0
        %4864 = vmatpush1.bf16.msra.mxu0 0
        %4865 = vmatprep.subr.bf16.mxu0 0
        %4866 = vmatpush1.bf16.msra.mxu0 0
        %4867 = vmatprep.subr.bf16.mxu0 0
        %4868 = vmatpush1.bf16.msra.mxu0 0
        %4869 = vmatprep.subr.bf16.mxu0 0
        %4870 = vmatpush1.bf16.msra.mxu0 0
        %4871 = vmatprep.subr.bf16.mxu0 0
        %4872 = vmatpush1.bf16.msra.mxu0 0
        %4873 = vmatprep.subr.bf16.mxu0 0
        %4874 = vmatpush1.bf16.msra.mxu0 0
        %4875 = vmatprep.subr.bf16.mxu0 0
        %4876 = vmatpush1.bf16.msra.mxu0 0
        %4877 = vmatprep.mubr.bf16.mxu0 0
        %4878 = vmatmul.mubr.bf16.gmra.mrb[0].mxu0 %v4840
        %v4879 = vpop.f32.mrb[0].mxu0
        %v4880 = vadd.f32 0.0, %v4879
        %v4881 = vpop.f32.mrb[0].mxu0
        %v4882 = vpop.f32.mrb[0].mxu0
        %v4883 = vadd.f32 0.0, %v4882
        %v4884 = vpop.f32.mrb[0].mxu0
        %4885 = vdwg.mxu0
        %v4886 = vadd.f32 %v4829, %v4880
        %v4887 = vadd.f32 %v4830, %v4883
        %s4888 = scalar_lea.vmem %s7, 88
        %v4889 = vld [vmem:[%s4888] sm:$0xf]
        %v4890 = vld [vmem:[%s4888 + $0x4] sm:$0x3]
        %v4893 = vunpack.c.l.b16 %v4889
        %v4894 = vunpack.c.l.b16 %v4890
        %v4895 = vpack.c.b16 %v4894, %v4893
        %4897 = vrot.lane.b32.xlu0 %v4243, 64
        %v4898 = vpop.permute.xlu0 %4897
        %v4900 = vsel %vm2146, %v4895, 0
        %v4903 = vsel %vm467, %v4898, 0
        %4905 = vmatprep.subr.bf16.mxu0 0
        %4906 = vmatpush1.bf16.msra.mxu0 %v4903
        %4907 = vmatprep.subr.bf16.mxu0 0
        %4908 = vmatpush1.bf16.msra.mxu0 0
        %4909 = vmatprep.subr.bf16.mxu0 0
        %4910 = vmatpush1.bf16.msra.mxu0 0
        %4911 = vmatprep.subr.bf16.mxu0 0
        %4912 = vmatpush1.bf16.msra.mxu0 0
        %4913 = vmatprep.subr.bf16.mxu0 0
        %4914 = vmatpush1.bf16.msra.mxu0 0
        %4915 = vmatprep.subr.bf16.mxu0 0
        %4916 = vmatpush1.bf16.msra.mxu0 0
        %4917 = vmatprep.subr.bf16.mxu0 0
        %4918 = vmatpush1.bf16.msra.mxu0 0
        %4919 = vmatprep.subr.bf16.mxu0 0
        %4920 = vmatpush1.bf16.msra.mxu0 0
        %4921 = vmatprep.subr.bf16.mxu0 0
        %4922 = vmatpush1.bf16.msra.mxu0 0
        %4923 = vmatprep.subr.bf16.mxu0 0
        %4924 = vmatpush1.bf16.msra.mxu0 0
        %4925 = vmatprep.subr.bf16.mxu0 0
        %4926 = vmatpush1.bf16.msra.mxu0 0
        %4927 = vmatprep.subr.bf16.mxu0 0
        %4928 = vmatpush1.bf16.msra.mxu0 0
        %4929 = vmatprep.subr.bf16.mxu0 0
        %4930 = vmatpush1.bf16.msra.mxu0 0
        %4931 = vmatprep.subr.bf16.mxu0 0
        %4932 = vmatpush1.bf16.msra.mxu0 0
        %4933 = vmatprep.subr.bf16.mxu0 0
        %4934 = vmatpush1.bf16.msra.mxu0 0
        %4935 = vmatprep.subr.bf16.mxu0 0
        %4936 = vmatpush1.bf16.msra.mxu0 0
        %4937 = vmatprep.mubr.bf16.mxu0 0
        %4938 = vmatmul.mubr.bf16.gmra.mrb[0].mxu0 %v4900
        %v4939 = vpop.f32.mrb[0].mxu0
        %v4940 = vadd.f32 0.0, %v4939
        %v4941 = vpop.f32.mrb[0].mxu0
        %v4942 = vpop.f32.mrb[0].mxu0
        %v4943 = vadd.f32 0.0, %v4942
        %v4944 = vpop.f32.mrb[0].mxu0
        %4945 = vdwg.mxu0
        %v4946 = vadd.f32 %v4886, %v4940
        %v4947 = vadd.f32 %v4887, %v4943
        %s4948 = scalar_lea.vmem %s7, 96
        %v4949 = vld [vmem:[%s4948] sm:$0xf]
        %v4950 = vld [vmem:[%s4948 + $0x4] sm:$0x3]
        %v4953 = vunpack.c.l.b16 %v4949
        %v4954 = vunpack.c.l.b16 %v4950
        %v4955 = vpack.c.b16 %v4954, %v4953
        %v4957 = vsel %vm2146, %v4955, 0
        %v4960 = vsel %vm467, %v4244, 0
        %4962 = vmatprep.subr.bf16.mxu0 0
        %4963 = vmatpush1.bf16.msra.mxu0 %v4960
        %4964 = vmatprep.subr.bf16.mxu0 0
        %4965 = vmatpush1.bf16.msra.mxu0 0
        %4966 = vmatprep.subr.bf16.mxu0 0
        %4967 = vmatpush1.bf16.msra.mxu0 0
        %4968 = vmatprep.subr.bf16.mxu0 0
        %4969 = vmatpush1.bf16.msra.mxu0 0
        %4970 = vmatprep.subr.bf16.mxu0 0
        %4971 = vmatpush1.bf16.msra.mxu0 0
        %4972 = vmatprep.subr.bf16.mxu0 0
        %4973 = vmatpush1.bf16.msra.mxu0 0
        %4974 = vmatprep.subr.bf16.mxu0 0
        %4975 = vmatpush1.bf16.msra.mxu0 0
        %4976 = vmatprep.subr.bf16.mxu0 0
        %4977 = vmatpush1.bf16.msra.mxu0 0
        %4978 = vmatprep.subr.bf16.mxu0 0
        %4979 = vmatpush1.bf16.msra.mxu0 0
        %4980 = vmatprep.subr.bf16.mxu0 0
        %4981 = vmatpush1.bf16.msra.mxu0 0
        %4982 = vmatprep.subr.bf16.mxu0 0
        %4983 = vmatpush1.bf16.msra.mxu0 0
        %4984 = vmatprep.subr.bf16.mxu0 0
        %4985 = vmatpush1.bf16.msra.mxu0 0
        %4986 = vmatprep.subr.bf16.mxu0 0
        %4987 = vmatpush1.bf16.msra.mxu0 0
        %4988 = vmatprep.subr.bf16.mxu0 0
        %4989 = vmatpush1.bf16.msra.mxu0 0
        %4990 = vmatprep.subr.bf16.mxu0 0
        %4991 = vmatpush1.bf16.msra.mxu0 0
        %4992 = vmatprep.subr.bf16.mxu0 0
        %4993 = vmatpush1.bf16.msra.mxu0 0
        %4994 = vmatprep.mubr.bf16.mxu0 0
        %4995 = vmatmul.mubr.bf16.gmra.mrb[0].mxu0 %v4957
        %v4996 = vpop.f32.mrb[0].mxu0
        %v4997 = vadd.f32 0.0, %v4996
        %v4998 = vpop.f32.mrb[0].mxu0
        %v4999 = vpop.f32.mrb[0].mxu0
        %v5000 = vadd.f32 0.0, %v4999
        %v5001 = vpop.f32.mrb[0].mxu0
        %5002 = vdwg.mxu0
        %v5003 = vadd.f32 %v4946, %v4997
        %v5004 = vadd.f32 %v4947, %v5000
        %s5005 = scalar_lea.vmem %s7, 104
        %v5006 = vld [vmem:[%s5005] sm:$0xf]
        %v5007 = vld [vmem:[%s5005 + $0x4] sm:$0x3]
        %v5010 = vunpack.c.l.b16 %v5006
        %v5011 = vunpack.c.l.b16 %v5007
        %v5012 = vpack.c.b16 %v5011, %v5010
        %5014 = vrot.lane.b32.xlu0 %v4244, 64
        %v5015 = vpop.permute.xlu0 %5014
        %v5017 = vsel %vm2146, %v5012, 0
        %v5020 = vsel %vm467, %v5015, 0
        %5022 = vmatprep.subr.bf16.mxu0 0
        %5023 = vmatpush1.bf16.msra.mxu0 %v5020
        %5024 = vmatprep.subr.bf16.mxu0 0
        %5025 = vmatpush1.bf16.msra.mxu0 0
        %5026 = vmatprep.subr.bf16.mxu0 0
        %5027 = vmatpush1.bf16.msra.mxu0 0
        %5028 = vmatprep.subr.bf16.mxu0 0
        %5029 = vmatpush1.bf16.msra.mxu0 0
        %5030 = vmatprep.subr.bf16.mxu0 0
        %5031 = vmatpush1.bf16.msra.mxu0 0
        %5032 = vmatprep.subr.bf16.mxu0 0
        %5033 = vmatpush1.bf16.msra.mxu0 0
        %5034 = vmatprep.subr.bf16.mxu0 0
        %5035 = vmatpush1.bf16.msra.mxu0 0
        %5036 = vmatprep.subr.bf16.mxu0 0
        %5037 = vmatpush1.bf16.msra.mxu0 0
        %5038 = vmatprep.subr.bf16.mxu0 0
        %5039 = vmatpush1.bf16.msra.mxu0 0
        %5040 = vmatprep.subr.bf16.mxu0 0
        %5041 = vmatpush1.bf16.msra.mxu0 0
        %5042 = vmatprep.subr.bf16.mxu0 0
        %5043 = vmatpush1.bf16.msra.mxu0 0
        %5044 = vmatprep.subr.bf16.mxu0 0
        %5045 = vmatpush1.bf16.msra.mxu0 0
        %5046 = vmatprep.subr.bf16.mxu0 0
        %5047 = vmatpush1.bf16.msra.mxu0 0
        %5048 = vmatprep.subr.bf16.mxu0 0
        %5049 = vmatpush1.bf16.msra.mxu0 0
        %5050 = vmatprep.subr.bf16.mxu0 0
        %5051 = vmatpush1.bf16.msra.mxu0 0
        %5052 = vmatprep.subr.bf16.mxu0 0
        %5053 = vmatpush1.bf16.msra.mxu0 0
        %5054 = vmatprep.mubr.bf16.mxu0 0
        %5055 = vmatmul.mubr.bf16.gmra.mrb[0].mxu0 %v5017
        %v5056 = vpop.f32.mrb[0].mxu0
        %v5057 = vadd.f32 0.0, %v5056
        %v5058 = vpop.f32.mrb[0].mxu0
        %v5059 = vpop.f32.mrb[0].mxu0
        %v5060 = vadd.f32 0.0, %v5059
        %v5061 = vpop.f32.mrb[0].mxu0
        %5062 = vdwg.mxu0
        %v5063 = vadd.f32 %v5003, %v5057
        %v5064 = vadd.f32 %v5004, %v5060
        %s5065 = scalar_lea.vmem %s7, 112
        %v5066 = vld [vmem:[%s5065] sm:$0xf]
        %v5067 = vld [vmem:[%s5065 + $0x4] sm:$0x3]
        %v5070 = vunpack.c.l.b16 %v5066
        %v5071 = vunpack.c.l.b16 %v5067
        %v5072 = vpack.c.b16 %v5071, %v5070
        %v5074 = vsel %vm2146, %v5072, 0
        %v5077 = vsel %vm467, %v4245, 0
        %5079 = vmatprep.subr.bf16.mxu0 0
        %5080 = vmatpush1.bf16.msra.mxu0 %v5077
        %5081 = vmatprep.subr.bf16.mxu0 0
        %5082 = vmatpush1.bf16.msra.mxu0 0
        %5083 = vmatprep.subr.bf16.mxu0 0
        %5084 = vmatpush1.bf16.msra.mxu0 0
        %5085 = vmatprep.subr.bf16.mxu0 0
        %5086 = vmatpush1.bf16.msra.mxu0 0
        %5087 = vmatprep.subr.bf16.mxu0 0
        %5088 = vmatpush1.bf16.msra.mxu0 0
        %5089 = vmatprep.subr.bf16.mxu0 0
        %5090 = vmatpush1.bf16.msra.mxu0 0
        %5091 = vmatprep.subr.bf16.mxu0 0
        %5092 = vmatpush1.bf16.msra.mxu0 0
        %5093 = vmatprep.subr.bf16.mxu0 0
        %5094 = vmatpush1.bf16.msra.mxu0 0
        %5095 = vmatprep.subr.bf16.mxu0 0
        %5096 = vmatpush1.bf16.msra.mxu0 0
        %5097 = vmatprep.subr.bf16.mxu0 0
        %5098 = vmatpush1.bf16.msra.mxu0 0
        %5099 = vmatprep.subr.bf16.mxu0 0
        %5100 = vmatpush1.bf16.msra.mxu0 0
        %5101 = vmatprep.subr.bf16.mxu0 0
        %5102 = vmatpush1.bf16.msra.mxu0 0
        %5103 = vmatprep.subr.bf16.mxu0 0
        %5104 = vmatpush1.bf16.msra.mxu0 0
        %5105 = vmatprep.subr.bf16.mxu0 0
        %5106 = vmatpush1.bf16.msra.mxu0 0
        %5107 = vmatprep.subr.bf16.mxu0 0
        %5108 = vmatpush1.bf16.msra.mxu0 0
        %5109 = vmatprep.subr.bf16.mxu0 0
        %5110 = vmatpush1.bf16.msra.mxu0 0
        %5111 = vmatprep.mubr.bf16.mxu0 0
        %5112 = vmatmul.mubr.bf16.gmra.mrb[0].mxu0 %v5074
        %v5113 = vpop.f32.mrb[0].mxu0
        %v5114 = vadd.f32 0.0, %v5113
        %v5115 = vpop.f32.mrb[0].mxu0
        %v5116 = vpop.f32.mrb[0].mxu0
        %v5117 = vadd.f32 0.0, %v5116
        %v5118 = vpop.f32.mrb[0].mxu0
        %5119 = vdwg.mxu0
        %v5120 = vadd.f32 %v5063, %v5114
        %v5121 = vadd.f32 %v5064, %v5117
        %s5122 = scalar_lea.vmem %s7, 120
        %v5123 = vld [vmem:[%s5122] sm:$0xf]
        %v5124 = vld [vmem:[%s5122 + $0x4] sm:$0x3]
        %v5127 = vunpack.c.l.b16 %v5123
        %v5128 = vunpack.c.l.b16 %v5124
        %v5129 = vpack.c.b16 %v5128, %v5127
        %5131 = vrot.lane.b32.xlu0 %v4245, 64
        %v5132 = vpop.permute.xlu0 %5131
        %v5134 = vsel %vm2146, %v5129, 0
        %v5137 = vsel %vm467, %v5132, 0
        %5139 = vmatprep.subr.bf16.mxu0 0
        %5140 = vmatpush1.bf16.msra.mxu0 %v5137
        %5141 = vmatprep.subr.bf16.mxu0 0
        %5142 = vmatpush1.bf16.msra.mxu0 0
        %5143 = vmatprep.subr.bf16.mxu0 0
        %5144 = vmatpush1.bf16.msra.mxu0 0
        %5145 = vmatprep.subr.bf16.mxu0 0
        %5146 = vmatpush1.bf16.msra.mxu0 0
        %5147 = vmatprep.subr.bf16.mxu0 0
        %5148 = vmatpush1.bf16.msra.mxu0 0
        %5149 = vmatprep.subr.bf16.mxu0 0
        %5150 = vmatpush1.bf16.msra.mxu0 0
        %5151 = vmatprep.subr.bf16.mxu0 0
        %5152 = vmatpush1.bf16.msra.mxu0 0
        %5153 = vmatprep.subr.bf16.mxu0 0
        %5154 = vmatpush1.bf16.msra.mxu0 0
        %5155 = vmatprep.subr.bf16.mxu0 0
        %5156 = vmatpush1.bf16.msra.mxu0 0
        %5157 = vmatprep.subr.bf16.mxu0 0
        %5158 = vmatpush1.bf16.msra.mxu0 0
        %5159 = vmatprep.subr.bf16.mxu0 0
        %5160 = vmatpush1.bf16.msra.mxu0 0
        %5161 = vmatprep.subr.bf16.mxu0 0
        %5162 = vmatpush1.bf16.msra.mxu0 0
        %5163 = vmatprep.subr.bf16.mxu0 0
        %5164 = vmatpush1.bf16.msra.mxu0 0
        %5165 = vmatprep.subr.bf16.mxu0 0
        %5166 = vmatpush1.bf16.msra.mxu0 0
        %5167 = vmatprep.subr.bf16.mxu0 0
        %5168 = vmatpush1.bf16.msra.mxu0 0
        %5169 = vmatprep.subr.bf16.mxu0 0
        %5170 = vmatpush1.bf16.msra.mxu0 0
        %5171 = vmatprep.mubr.bf16.mxu0 0
        %5172 = vmatmul.mubr.bf16.gmra.mrb[0].mxu0 %v5134
        %v5173 = vpop.f32.mrb[0].mxu0
        %v5174 = vadd.f32 0.0, %v5173
        %v5175 = vpop.f32.mrb[0].mxu0
        %v5176 = vpop.f32.mrb[0].mxu0
        %v5177 = vadd.f32 0.0, %v5176
        %v5178 = vpop.f32.mrb[0].mxu0
        %5179 = vdwg.mxu0
        %v5180 = vadd.f32 %v5120, %v5174
        %v5181 = vadd.f32 %v5121, %v5177
        %s5182 = scalar_lea.vmem %s7, 128
        %v5183 = vld [vmem:[%s5182] sm:$0xf]
        %v5184 = vld [vmem:[%s5182 + $0x4] sm:$0x3]
        %v5187 = vunpack.c.l.b16 %v5183
        %v5188 = vunpack.c.l.b16 %v5184
        %v5189 = vpack.c.b16 %v5188, %v5187
        %v5191 = vsel %vm2146, %v5189, 0
        %v5194 = vsel %vm467, %v4246, 0
        %5196 = vmatprep.subr.bf16.mxu0 0
        %5197 = vmatpush1.bf16.msra.mxu0 %v5194
        %5198 = vmatprep.subr.bf16.mxu0 0
        %5199 = vmatpush1.bf16.msra.mxu0 0
        %5200 = vmatprep.subr.bf16.mxu0 0
        %5201 = vmatpush1.bf16.msra.mxu0 0
        %5202 = vmatprep.subr.bf16.mxu0 0
        %5203 = vmatpush1.bf16.msra.mxu0 0
        %5204 = vmatprep.subr.bf16.mxu0 0
        %5205 = vmatpush1.bf16.msra.mxu0 0
        %5206 = vmatprep.subr.bf16.mxu0 0
        %5207 = vmatpush1.bf16.msra.mxu0 0
        %5208 = vmatprep.subr.bf16.mxu0 0
        %5209 = vmatpush1.bf16.msra.mxu0 0
        %5210 = vmatprep.subr.bf16.mxu0 0
        %5211 = vmatpush1.bf16.msra.mxu0 0
        %5212 = vmatprep.subr.bf16.mxu0 0
        %5213 = vmatpush1.bf16.msra.mxu0 0
        %5214 = vmatprep.subr.bf16.mxu0 0
        %5215 = vmatpush1.bf16.msra.mxu0 0
        %5216 = vmatprep.subr.bf16.mxu0 0
        %5217 = vmatpush1.bf16.msra.mxu0 0
        %5218 = vmatprep.subr.bf16.mxu0 0
        %5219 = vmatpush1.bf16.msra.mxu0 0
        %5220 = vmatprep.subr.bf16.mxu0 0
        %5221 = vmatpush1.bf16.msra.mxu0 0
        %5222 = vmatprep.subr.bf16.mxu0 0
        %5223 = vmatpush1.bf16.msra.mxu0 0
        %5224 = vmatprep.subr.bf16.mxu0 0
        %5225 = vmatpush1.bf16.msra.mxu0 0
        %5226 = vmatprep.subr.bf16.mxu0 0
        %5227 = vmatpush1.bf16.msra.mxu0 0
        %5228 = vmatprep.mubr.bf16.mxu0 0
        %5229 = vmatmul.mubr.bf16.gmra.mrb[0].mxu0 %v5191
        %v5230 = vpop.f32.mrb[0].mxu0
        %v5231 = vadd.f32 0.0, %v5230
        %v5232 = vpop.f32.mrb[0].mxu0
        %v5233 = vpop.f32.mrb[0].mxu0
        %v5234 = vadd.f32 0.0, %v5233
        %v5235 = vpop.f32.mrb[0].mxu0
        %5236 = vdwg.mxu0
        %v5237 = vadd.f32 %v5180, %v5231
        %v5238 = vadd.f32 %v5181, %v5234
        %s5239 = scalar_lea.vmem %s7, 136
        %v5240 = vld [vmem:[%s5239] sm:$0xf]
        %v5241 = vld [vmem:[%s5239 + $0x4] sm:$0x3]
        %v5244 = vunpack.c.l.b16 %v5240
        %v5245 = vunpack.c.l.b16 %v5241
        %v5246 = vpack.c.b16 %v5245, %v5244
        %5248 = vrot.lane.b32.xlu0 %v4246, 64
        %v5249 = vpop.permute.xlu0 %5248
        %v5251 = vsel %vm2146, %v5246, 0
        %v5254 = vsel %vm467, %v5249, 0
        %5256 = vmatprep.subr.bf16.mxu0 0
        %5257 = vmatpush1.bf16.msra.mxu0 %v5254
        %5258 = vmatprep.subr.bf16.mxu0 0
        %5259 = vmatpush1.bf16.msra.mxu0 0
        %5260 = vmatprep.subr.bf16.mxu0 0
        %5261 = vmatpush1.bf16.msra.mxu0 0
        %5262 = vmatprep.subr.bf16.mxu0 0
        %5263 = vmatpush1.bf16.msra.mxu0 0
        %5264 = vmatprep.subr.bf16.mxu0 0
        %5265 = vmatpush1.bf16.msra.mxu0 0
        %5266 = vmatprep.subr.bf16.mxu0 0
        %5267 = vmatpush1.bf16.msra.mxu0 0
        %5268 = vmatprep.subr.bf16.mxu0 0
        %5269 = vmatpush1.bf16.msra.mxu0 0
        %5270 = vmatprep.subr.bf16.mxu0 0
        %5271 = vmatpush1.bf16.msra.mxu0 0
        %5272 = vmatprep.subr.bf16.mxu0 0
        %5273 = vmatpush1.bf16.msra.mxu0 0
        %5274 = vmatprep.subr.bf16.mxu0 0
        %5275 = vmatpush1.bf16.msra.mxu0 0
        %5276 = vmatprep.subr.bf16.mxu0 0
        %5277 = vmatpush1.bf16.msra.mxu0 0
        %5278 = vmatprep.subr.bf16.mxu0 0
        %5279 = vmatpush1.bf16.msra.mxu0 0
        %5280 = vmatprep.subr.bf16.mxu0 0
        %5281 = vmatpush1.bf16.msra.mxu0 0
        %5282 = vmatprep.subr.bf16.mxu0 0
        %5283 = vmatpush1.bf16.msra.mxu0 0
        %5284 = vmatprep.subr.bf16.mxu0 0
        %5285 = vmatpush1.bf16.msra.mxu0 0
        %5286 = vmatprep.subr.bf16.mxu0 0
        %5287 = vmatpush1.bf16.msra.mxu0 0
        %5288 = vmatprep.mubr.bf16.mxu0 0
        %5289 = vmatmul.mubr.bf16.gmra.mrb[0].mxu0 %v5251
        %v5290 = vpop.f32.mrb[0].mxu0
        %v5291 = vadd.f32 0.0, %v5290
        %v5292 = vpop.f32.mrb[0].mxu0
        %v5293 = vpop.f32.mrb[0].mxu0
        %v5294 = vadd.f32 0.0, %v5293
        %v5295 = vpop.f32.mrb[0].mxu0
        %5296 = vdwg.mxu0
        %v5297 = vadd.f32 %v5237, %v5291
        %v5298 = vadd.f32 %v5238, %v5294
        %s5299 = scalar_lea.vmem %s7, 144
        %v5300 = vld [vmem:[%s5299] sm:$0xf]
        %v5301 = vld [vmem:[%s5299 + $0x4] sm:$0x3]
        %v5304 = vunpack.c.l.b16 %v5300
        %v5305 = vunpack.c.l.b16 %v5301
        %v5306 = vpack.c.b16 %v5305, %v5304
        %v5308 = vsel %vm2146, %v5306, 0
        %v5311 = vsel %vm467, %v4247, 0
        %5313 = vmatprep.subr.bf16.mxu0 0
        %5314 = vmatpush1.bf16.msra.mxu0 %v5311
        %5315 = vmatprep.subr.bf16.mxu0 0
        %5316 = vmatpush1.bf16.msra.mxu0 0
        %5317 = vmatprep.subr.bf16.mxu0 0
        %5318 = vmatpush1.bf16.msra.mxu0 0
        %5319 = vmatprep.subr.bf16.mxu0 0
        %5320 = vmatpush1.bf16.msra.mxu0 0
        %5321 = vmatprep.subr.bf16.mxu0 0
        %5322 = vmatpush1.bf16.msra.mxu0 0
        %5323 = vmatprep.subr.bf16.mxu0 0
        %5324 = vmatpush1.bf16.msra.mxu0 0
        %5325 = vmatprep.subr.bf16.mxu0 0
        %5326 = vmatpush1.bf16.msra.mxu0 0
        %5327 = vmatprep.subr.bf16.mxu0 0
        %5328 = vmatpush1.bf16.msra.mxu0 0
        %5329 = vmatprep.subr.bf16.mxu0 0
        %5330 = vmatpush1.bf16.msra.mxu0 0
        %5331 = vmatprep.subr.bf16.mxu0 0
        %5332 = vmatpush1.bf16.msra.mxu0 0
        %5333 = vmatprep.subr.bf16.mxu0 0
        %5334 = vmatpush1.bf16.msra.mxu0 0
        %5335 = vmatprep.subr.bf16.mxu0 0
        %5336 = vmatpush1.bf16.msra.mxu0 0
        %5337 = vmatprep.subr.bf16.mxu0 0
        %5338 = vmatpush1.bf16.msra.mxu0 0
        %5339 = vmatprep.subr.bf16.mxu0 0
        %5340 = vmatpush1.bf16.msra.mxu0 0
        %5341 = vmatprep.subr.bf16.mxu0 0
        %5342 = vmatpush1.bf16.msra.mxu0 0
        %5343 = vmatprep.subr.bf16.mxu0 0
        %5344 = vmatpush1.bf16.msra.mxu0 0
        %5345 = vmatprep.mubr.bf16.mxu0 0
        %5346 = vmatmul.mubr.bf16.gmra.mrb[0].mxu0 %v5308
        %v5347 = vpop.f32.mrb[0].mxu0
        %v5348 = vadd.f32 0.0, %v5347
        %v5349 = vpop.f32.mrb[0].mxu0
        %v5350 = vpop.f32.mrb[0].mxu0
        %v5351 = vadd.f32 0.0, %v5350
        %v5352 = vpop.f32.mrb[0].mxu0
        %5353 = vdwg.mxu0
        %v5354 = vadd.f32 %v5297, %v5348
        %v5355 = vadd.f32 %v5298, %v5351
        %s5356 = scalar_lea.vmem %s7, 152
        %v5357 = vld [vmem:[%s5356] sm:$0xf]
        %v5358 = vld [vmem:[%s5356 + $0x4] sm:$0x3]
        %v5361 = vunpack.c.l.b16 %v5357
        %v5362 = vunpack.c.l.b16 %v5358
        %v5363 = vpack.c.b16 %v5362, %v5361
        %5365 = vrot.lane.b32.xlu0 %v4247, 64
        %v5366 = vpop.permute.xlu0 %5365
        %v5368 = vsel %vm2146, %v5363, 0
        %v5371 = vsel %vm467, %v5366, 0
        %5373 = vmatprep.subr.bf16.mxu0 0
        %5374 = vmatpush1.bf16.msra.mxu0 %v5371
        %5375 = vmatprep.subr.bf16.mxu0 0
        %5376 = vmatpush1.bf16.msra.mxu0 0
        %5377 = vmatprep.subr.bf16.mxu0 0
        %5378 = vmatpush1.bf16.msra.mxu0 0
        %5379 = vmatprep.subr.bf16.mxu0 0
        %5380 = vmatpush1.bf16.msra.mxu0 0
        %5381 = vmatprep.subr.bf16.mxu0 0
        %5382 = vmatpush1.bf16.msra.mxu0 0
        %5383 = vmatprep.subr.bf16.mxu0 0
        %5384 = vmatpush1.bf16.msra.mxu0 0
        %5385 = vmatprep.subr.bf16.mxu0 0
        %5386 = vmatpush1.bf16.msra.mxu0 0
        %5387 = vmatprep.subr.bf16.mxu0 0
        %5388 = vmatpush1.bf16.msra.mxu0 0
        %5389 = vmatprep.subr.bf16.mxu0 0
        %5390 = vmatpush1.bf16.msra.mxu0 0
        %5391 = vmatprep.subr.bf16.mxu0 0
        %5392 = vmatpush1.bf16.msra.mxu0 0
        %5393 = vmatprep.subr.bf16.mxu0 0
        %5394 = vmatpush1.bf16.msra.mxu0 0
        %5395 = vmatprep.subr.bf16.mxu0 0
        %5396 = vmatpush1.bf16.msra.mxu0 0
        %5397 = vmatprep.subr.bf16.mxu0 0
        %5398 = vmatpush1.bf16.msra.mxu0 0
        %5399 = vmatprep.subr.bf16.mxu0 0
        %5400 = vmatpush1.bf16.msra.mxu0 0
        %5401 = vmatprep.subr.bf16.mxu0 0
        %5402 = vmatpush1.bf16.msra.mxu0 0
        %5403 = vmatprep.subr.bf16.mxu0 0
        %5404 = vmatpush1.bf16.msra.mxu0 0
        %5405 = vmatprep.mubr.bf16.mxu0 0
        %5406 = vmatmul.mubr.bf16.gmra.mrb[0].mxu0 %v5368
        %v5407 = vpop.f32.mrb[0].mxu0
        %v5408 = vadd.f32 0.0, %v5407
        %v5409 = vpop.f32.mrb[0].mxu0
        %v5410 = vpop.f32.mrb[0].mxu0
        %v5411 = vadd.f32 0.0, %v5410
        %v5412 = vpop.f32.mrb[0].mxu0
        %5413 = vdwg.mxu0
        %v5414 = vadd.f32 %v5354, %v5408
        %v5415 = vadd.f32 %v5355, %v5411
        %s5416 = scalar_lea.vmem %s7, 160
        %v5417 = vld [vmem:[%s5416] sm:$0xf]
        %v5418 = vld [vmem:[%s5416 + $0x4] sm:$0x3]
        %v5421 = vunpack.c.l.b16 %v5417
        %v5422 = vunpack.c.l.b16 %v5418
        %v5423 = vpack.c.b16 %v5422, %v5421
        %v5425 = vsel %vm2146, %v5423, 0
        %v5428 = vsel %vm467, %v4248, 0
        %5430 = vmatprep.subr.bf16.mxu0 0
        %5431 = vmatpush1.bf16.msra.mxu0 %v5428
        %5432 = vmatprep.subr.bf16.mxu0 0
        %5433 = vmatpush1.bf16.msra.mxu0 0
        %5434 = vmatprep.subr.bf16.mxu0 0
        %5435 = vmatpush1.bf16.msra.mxu0 0
        %5436 = vmatprep.subr.bf16.mxu0 0
        %5437 = vmatpush1.bf16.msra.mxu0 0
        %5438 = vmatprep.subr.bf16.mxu0 0
        %5439 = vmatpush1.bf16.msra.mxu0 0
        %5440 = vmatprep.subr.bf16.mxu0 0
        %5441 = vmatpush1.bf16.msra.mxu0 0
        %5442 = vmatprep.subr.bf16.mxu0 0
        %5443 = vmatpush1.bf16.msra.mxu0 0
        %5444 = vmatprep.subr.bf16.mxu0 0
        %5445 = vmatpush1.bf16.msra.mxu0 0
        %5446 = vmatprep.subr.bf16.mxu0 0
        %5447 = vmatpush1.bf16.msra.mxu0 0
        %5448 = vmatprep.subr.bf16.mxu0 0
        %5449 = vmatpush1.bf16.msra.mxu0 0
        %5450 = vmatprep.subr.bf16.mxu0 0
        %5451 = vmatpush1.bf16.msra.mxu0 0
        %5452 = vmatprep.subr.bf16.mxu0 0
        %5453 = vmatpush1.bf16.msra.mxu0 0
        %5454 = vmatprep.subr.bf16.mxu0 0
        %5455 = vmatpush1.bf16.msra.mxu0 0
        %5456 = vmatprep.subr.bf16.mxu0 0
        %5457 = vmatpush1.bf16.msra.mxu0 0
        %5458 = vmatprep.subr.bf16.mxu0 0
        %5459 = vmatpush1.bf16.msra.mxu0 0
        %5460 = vmatprep.subr.bf16.mxu0 0
        %5461 = vmatpush1.bf16.msra.mxu0 0
        %5462 = vmatprep.mubr.bf16.mxu0 0
        %5463 = vmatmul.mubr.bf16.gmra.mrb[0].mxu0 %v5425
        %v5464 = vpop.f32.mrb[0].mxu0
        %v5465 = vadd.f32 0.0, %v5464
        %v5466 = vpop.f32.mrb[0].mxu0
        %v5467 = vpop.f32.mrb[0].mxu0
        %v5468 = vadd.f32 0.0, %v5467
        %v5469 = vpop.f32.mrb[0].mxu0
        %5470 = vdwg.mxu0
        %v5471 = vadd.f32 %v5414, %v5465
        %v5472 = vadd.f32 %v5415, %v5468
        %s5473 = scalar_lea.vmem %s7, 168
        %v5474 = vld [vmem:[%s5473] sm:$0xf]
        %v5475 = vld [vmem:[%s5473 + $0x4] sm:$0x3]
        %v5478 = vunpack.c.l.b16 %v5474
        %v5479 = vunpack.c.l.b16 %v5475
        %v5480 = vpack.c.b16 %v5479, %v5478
        %5482 = vrot.lane.b32.xlu0 %v4248, 64
        %v5483 = vpop.permute.xlu0 %5482
        %v5485 = vsel %vm2146, %v5480, 0
        %v5488 = vsel %vm467, %v5483, 0
        %5490 = vmatprep.subr.bf16.mxu0 0
        %5491 = vmatpush1.bf16.msra.mxu0 %v5488
        %5492 = vmatprep.subr.bf16.mxu0 0
        %5493 = vmatpush1.bf16.msra.mxu0 0
        %5494 = vmatprep.subr.bf16.mxu0 0
        %5495 = vmatpush1.bf16.msra.mxu0 0
        %5496 = vmatprep.subr.bf16.mxu0 0
        %5497 = vmatpush1.bf16.msra.mxu0 0
        %5498 = vmatprep.subr.bf16.mxu0 0
        %5499 = vmatpush1.bf16.msra.mxu0 0
        %5500 = vmatprep.subr.bf16.mxu0 0
        %5501 = vmatpush1.bf16.msra.mxu0 0
        %5502 = vmatprep.subr.bf16.mxu0 0
        %5503 = vmatpush1.bf16.msra.mxu0 0
        %5504 = vmatprep.subr.bf16.mxu0 0
        %5505 = vmatpush1.bf16.msra.mxu0 0
        %5506 = vmatprep.subr.bf16.mxu0 0
        %5507 = vmatpush1.bf16.msra.mxu0 0
        %5508 = vmatprep.subr.bf16.mxu0 0
        %5509 = vmatpush1.bf16.msra.mxu0 0
        %5510 = vmatprep.subr.bf16.mxu0 0
        %5511 = vmatpush1.bf16.msra.mxu0 0
        %5512 = vmatprep.subr.bf16.mxu0 0
        %5513 = vmatpush1.bf16.msra.mxu0 0
        %5514 = vmatprep.subr.bf16.mxu0 0
        %5515 = vmatpush1.bf16.msra.mxu0 0
        %5516 = vmatprep.subr.bf16.mxu0 0
        %5517 = vmatpush1.bf16.msra.mxu0 0
        %5518 = vmatprep.subr.bf16.mxu0 0
        %5519 = vmatpush1.bf16.msra.mxu0 0
        %5520 = vmatprep.subr.bf16.mxu0 0
        %5521 = vmatpush1.bf16.msra.mxu0 0
        %5522 = vmatprep.mubr.bf16.mxu0 0
        %5523 = vmatmul.mubr.bf16.gmra.mrb[0].mxu0 %v5485
        %v5524 = vpop.f32.mrb[0].mxu0
        %v5525 = vadd.f32 0.0, %v5524
        %v5526 = vpop.f32.mrb[0].mxu0
        %v5527 = vpop.f32.mrb[0].mxu0
        %v5528 = vadd.f32 0.0, %v5527
        %v5529 = vpop.f32.mrb[0].mxu0
        %5530 = vdwg.mxu0
        %v5531 = vadd.f32 %v5471, %v5525
        %v5532 = vadd.f32 %v5472, %v5528
        %s5533 = scalar_lea.vmem %s7, 176
        %v5534 = vld [vmem:[%s5533] sm:$0xf]
        %v5535 = vld [vmem:[%s5533 + $0x4] sm:$0x3]
        %v5538 = vunpack.c.l.b16 %v5534
        %v5539 = vunpack.c.l.b16 %v5535
        %v5540 = vpack.c.b16 %v5539, %v5538
        %v5542 = vsel %vm2146, %v5540, 0
        %v5545 = vsel %vm467, %v4249, 0
        %5547 = vmatprep.subr.bf16.mxu0 0
        %5548 = vmatpush1.bf16.msra.mxu0 %v5545
        %5549 = vmatprep.subr.bf16.mxu0 0
        %5550 = vmatpush1.bf16.msra.mxu0 0
        %5551 = vmatprep.subr.bf16.mxu0 0
        %5552 = vmatpush1.bf16.msra.mxu0 0
        %5553 = vmatprep.subr.bf16.mxu0 0
        %5554 = vmatpush1.bf16.msra.mxu0 0
        %5555 = vmatprep.subr.bf16.mxu0 0
        %5556 = vmatpush1.bf16.msra.mxu0 0
        %5557 = vmatprep.subr.bf16.mxu0 0
        %5558 = vmatpush1.bf16.msra.mxu0 0
        %5559 = vmatprep.subr.bf16.mxu0 0
        %5560 = vmatpush1.bf16.msra.mxu0 0
        %5561 = vmatprep.subr.bf16.mxu0 0
        %5562 = vmatpush1.bf16.msra.mxu0 0
        %5563 = vmatprep.subr.bf16.mxu0 0
        %5564 = vmatpush1.bf16.msra.mxu0 0
        %5565 = vmatprep.subr.bf16.mxu0 0
        %5566 = vmatpush1.bf16.msra.mxu0 0
        %5567 = vmatprep.subr.bf16.mxu0 0
        %5568 = vmatpush1.bf16.msra.mxu0 0
        %5569 = vmatprep.subr.bf16.mxu0 0
        %5570 = vmatpush1.bf16.msra.mxu0 0
        %5571 = vmatprep.subr.bf16.mxu0 0
        %5572 = vmatpush1.bf16.msra.mxu0 0
        %5573 = vmatprep.subr.bf16.mxu0 0
        %5574 = vmatpush1.bf16.msra.mxu0 0
        %5575 = vmatprep.subr.bf16.mxu0 0
        %5576 = vmatpush1.bf16.msra.mxu0 0
        %5577 = vmatprep.subr.bf16.mxu0 0
        %5578 = vmatpush1.bf16.msra.mxu0 0
        %5579 = vmatprep.mubr.bf16.mxu0 0
        %5580 = vmatmul.mubr.bf16.gmra.mrb[0].mxu0 %v5542
        %v5581 = vpop.f32.mrb[0].mxu0
        %v5582 = vadd.f32 0.0, %v5581
        %v5583 = vpop.f32.mrb[0].mxu0
        %v5584 = vpop.f32.mrb[0].mxu0
        %v5585 = vadd.f32 0.0, %v5584
        %v5586 = vpop.f32.mrb[0].mxu0
        %5587 = vdwg.mxu0
        %v5588 = vadd.f32 %v5531, %v5582
        %v5589 = vadd.f32 %v5532, %v5585
        %s5590 = scalar_lea.vmem %s7, 184
        %v5591 = vld [vmem:[%s5590] sm:$0xf]
        %v5592 = vld [vmem:[%s5590 + $0x4] sm:$0x3]
        %v5595 = vunpack.c.l.b16 %v5591
        %v5596 = vunpack.c.l.b16 %v5592
        %v5597 = vpack.c.b16 %v5596, %v5595
        %5599 = vrot.lane.b32.xlu0 %v4249, 64
        %v5600 = vpop.permute.xlu0 %5599
        %v5602 = vsel %vm2146, %v5597, 0
        %v5605 = vsel %vm467, %v5600, 0
        %5607 = vmatprep.subr.bf16.mxu0 0
        %5608 = vmatpush1.bf16.msra.mxu0 %v5605
        %5609 = vmatprep.subr.bf16.mxu0 0
        %5610 = vmatpush1.bf16.msra.mxu0 0
        %5611 = vmatprep.subr.bf16.mxu0 0
        %5612 = vmatpush1.bf16.msra.mxu0 0
        %5613 = vmatprep.subr.bf16.mxu0 0
        %5614 = vmatpush1.bf16.msra.mxu0 0
        %5615 = vmatprep.subr.bf16.mxu0 0
        %5616 = vmatpush1.bf16.msra.mxu0 0
        %5617 = vmatprep.subr.bf16.mxu0 0
        %5618 = vmatpush1.bf16.msra.mxu0 0
        %5619 = vmatprep.subr.bf16.mxu0 0
        %5620 = vmatpush1.bf16.msra.mxu0 0
        %5621 = vmatprep.subr.bf16.mxu0 0
        %5622 = vmatpush1.bf16.msra.mxu0 0
        %5623 = vmatprep.subr.bf16.mxu0 0
        %5624 = vmatpush1.bf16.msra.mxu0 0
        %5625 = vmatprep.subr.bf16.mxu0 0
        %5626 = vmatpush1.bf16.msra.mxu0 0
        %5627 = vmatprep.subr.bf16.mxu0 0
        %5628 = vmatpush1.bf16.msra.mxu0 0
        %5629 = vmatprep.subr.bf16.mxu0 0
        %5630 = vmatpush1.bf16.msra.mxu0 0
        %5631 = vmatprep.subr.bf16.mxu0 0
        %5632 = vmatpush1.bf16.msra.mxu0 0
        %5633 = vmatprep.subr.bf16.mxu0 0
        %5634 = vmatpush1.bf16.msra.mxu0 0
        %5635 = vmatprep.subr.bf16.mxu0 0
        %5636 = vmatpush1.bf16.msra.mxu0 0
        %5637 = vmatprep.subr.bf16.mxu0 0
        %5638 = vmatpush1.bf16.msra.mxu0 0
        %5639 = vmatprep.mubr.bf16.mxu0 0
        %5640 = vmatmul.mubr.bf16.gmra.mrb[0].mxu0 %v5602
        %v5641 = vpop.f32.mrb[0].mxu0
        %v5642 = vadd.f32 0.0, %v5641
        %v5643 = vpop.f32.mrb[0].mxu0
        %v5644 = vpop.f32.mrb[0].mxu0
        %v5645 = vadd.f32 0.0, %v5644
        %v5646 = vpop.f32.mrb[0].mxu0
        %5647 = vdwg.mxu0
        %v5648 = vadd.f32 %v5588, %v5642
        %v5649 = vadd.f32 %v5589, %v5645
        %s5650 = scalar_lea.vmem %s7, 192
        %v5651 = vld [vmem:[%s5650] sm:$0xf]
        %v5652 = vld [vmem:[%s5650 + $0x4] sm:$0x3]
        %v5655 = vunpack.c.l.b16 %v5651
        %v5656 = vunpack.c.l.b16 %v5652
        %v5657 = vpack.c.b16 %v5656, %v5655
        %v5659 = vsel %vm2146, %v5657, 0
        %v5662 = vsel %vm467, %v4250, 0
        %5664 = vmatprep.subr.bf16.mxu0 0
        %5665 = vmatpush1.bf16.msra.mxu0 %v5662
        %5666 = vmatprep.subr.bf16.mxu0 0
        %5667 = vmatpush1.bf16.msra.mxu0 0
        %5668 = vmatprep.subr.bf16.mxu0 0
        %5669 = vmatpush1.bf16.msra.mxu0 0
        %5670 = vmatprep.subr.bf16.mxu0 0
        %5671 = vmatpush1.bf16.msra.mxu0 0
        %5672 = vmatprep.subr.bf16.mxu0 0
        %5673 = vmatpush1.bf16.msra.mxu0 0
        %5674 = vmatprep.subr.bf16.mxu0 0
        %5675 = vmatpush1.bf16.msra.mxu0 0
        %5676 = vmatprep.subr.bf16.mxu0 0
        %5677 = vmatpush1.bf16.msra.mxu0 0
        %5678 = vmatprep.subr.bf16.mxu0 0
        %5679 = vmatpush1.bf16.msra.mxu0 0
        %5680 = vmatprep.subr.bf16.mxu0 0
        %5681 = vmatpush1.bf16.msra.mxu0 0
        %5682 = vmatprep.subr.bf16.mxu0 0
        %5683 = vmatpush1.bf16.msra.mxu0 0
        %5684 = vmatprep.subr.bf16.mxu0 0
        %5685 = vmatpush1.bf16.msra.mxu0 0
        %5686 = vmatprep.subr.bf16.mxu0 0
        %5687 = vmatpush1.bf16.msra.mxu0 0
        %5688 = vmatprep.subr.bf16.mxu0 0
        %5689 = vmatpush1.bf16.msra.mxu0 0
        %5690 = vmatprep.subr.bf16.mxu0 0
        %5691 = vmatpush1.bf16.msra.mxu0 0
        %5692 = vmatprep.subr.bf16.mxu0 0
        %5693 = vmatpush1.bf16.msra.mxu0 0
        %5694 = vmatprep.subr.bf16.mxu0 0
        %5695 = vmatpush1.bf16.msra.mxu0 0
        %5696 = vmatprep.mubr.bf16.mxu0 0
        %5697 = vmatmul.mubr.bf16.gmra.mrb[0].mxu0 %v5659
        %v5698 = vpop.f32.mrb[0].mxu0
        %v5699 = vadd.f32 0.0, %v5698
        %v5700 = vpop.f32.mrb[0].mxu0
        %v5701 = vpop.f32.mrb[0].mxu0
        %v5702 = vadd.f32 0.0, %v5701
        %v5703 = vpop.f32.mrb[0].mxu0
        %5704 = vdwg.mxu0
        %v5705 = vadd.f32 %v5648, %v5699
        %v5706 = vadd.f32 %v5649, %v5702
        %v5707 = vld [vmem:[%s8] sm:$0xff]
        %v5708 = vld [vmem:[%s8 + $0x8] sm:$0xf]
        %5710 = vset.pattern.permute.xlu0 0
        %5711 = vperm.xlu0 %5710, %v5707
        %v5712 = vpop.permute.xlu0 %5711
        %5715 = vset.pattern.permute.xlu0 0
        %5716 = vperm.xlu0 %5715, %v5708
        %v5717 = vpop.permute.xlu0 %5716
        %v5719 = vadd.f32 %v5705, %v5712
        %v5720 = vadd.f32 %v5706, %v5717
        %v5721 = vsub.f32 0.0, %v5719
        %v5722 = vsub.f32 0.0, %v5720
        %v5723 = vmul.f32 %v5721, 1.442695
        %v5724 = vpow.pop %v5723
        %v5725 = vmul.f32 %v5722, 1.442695
        %v5726 = vpow.pop %v5725
        %v5727 = vadd.f32 %v5724, 1.0
        %v5728 = vadd.f32 %v5726, 1.0
        %v5729 = vrcp.pop %v5727
        %v5730 = vrcp.pop %v5728
        %v5731 = vpack.c.bf16 %v5730, %v5729
        %v5732 = vld [vmem:[%s10] sm:$0x1]
        %v5733 = vld [vmem:[%s9] sm:$0xf]
        %v5734 = vld [vmem:[%s9 + $0x4] sm:$0xf]
        %v5735 = vld [vmem:[%s9 + $0x8] sm:$0xf]
        %v5736 = vld [vmem:[%s9 + $0xc] sm:$0xf]
        %v5737 = vld [vmem:[%s9 + $0x10] sm:$0xf]
        %v5738 = vld [vmem:[%s9 + $0x14] sm:$0xf]
        %v5739 = vld [vmem:[%s9 + $0x18] sm:$0xf]
        %v5740 = vld [vmem:[%s9 + $0x1c] sm:$0xf]
        %v5749 = vunpack.c.l.b16 %v5733
        %v5750 = vunpack.c.l.b16 %v5734
        %v5751 = vunpack.c.l.b16 %v5735
        %v5752 = vunpack.c.l.b16 %v5736
        %v5753 = vunpack.c.l.b16 %v5737
        %v5754 = vunpack.c.l.b16 %v5738
        %v5755 = vunpack.c.l.b16 %v5739
        %v5756 = vunpack.c.l.b16 %v5740
        %v5757 = vpack.c.b16 %v5750, %v5749
        %v5758 = vpack.c.b16 %v5752, %v5751
        %v5759 = vpack.c.b16 %v5754, %v5753
        %v5760 = vpack.c.b16 %v5756, %v5755
        %v5766 = vsel %vm3935, %v5731, 0
        %5768 = vmatprep.subr.bf16.mxu0 0
        %5769 = vmatpush1.bf16.msra.mxu0 %v5757
        %5770 = vmatprep.subr.bf16.mxu0 0
        %5771 = vmatpush1.bf16.msra.mxu0 %v5758
        %5772 = vmatprep.subr.bf16.mxu0 0
        %5773 = vmatpush1.bf16.msra.mxu0 %v5759
        %5774 = vmatprep.subr.bf16.mxu0 0
        %5775 = vmatpush1.bf16.msra.mxu0 %v5760
        %5776 = vmatprep.subr.bf16.mxu0 0
        %5777 = vmatpush1.bf16.msra.mxu0 0
        %5778 = vmatprep.subr.bf16.mxu0 0
        %5779 = vmatpush1.bf16.msra.mxu0 0
        %5780 = vmatprep.subr.bf16.mxu0 0
        %5781 = vmatpush1.bf16.msra.mxu0 0
        %5782 = vmatprep.subr.bf16.mxu0 0
        %5783 = vmatpush1.bf16.msra.mxu0 0
        %5784 = vmatprep.subr.bf16.mxu0 0
        %5785 = vmatpush1.bf16.msra.mxu0 0
        %5786 = vmatprep.subr.bf16.mxu0 0
        %5787 = vmatpush1.bf16.msra.mxu0 0
        %5788 = vmatprep.subr.bf16.mxu0 0
        %5789 = vmatpush1.bf16.msra.mxu0 0
        %5790 = vmatprep.subr.bf16.mxu0 0
        %5791 = vmatpush1.bf16.msra.mxu0 0
        %5792 = vmatprep.subr.bf16.mxu0 0
        %5793 = vmatpush1.bf16.msra.mxu0 0
        %5794 = vmatprep.subr.bf16.mxu0 0
        %5795 = vmatpush1.bf16.msra.mxu0 0
        %5796 = vmatprep.subr.bf16.mxu0 0
        %5797 = vmatpush1.bf16.msra.mxu0 0
        %5798 = vmatprep.subr.bf16.mxu0 0
        %5799 = vmatpush1.bf16.msra.mxu0 0
        %5800 = vmatprep.mubr.bf16.mxu0 0
        %5801 = vmatmul.mubr.bf16.gmra.mrb[0].mxu0 %v5766
        %v5802 = vpop.f32.mrb[0].mxu0
        %v5803 = vadd.f32 0.0, %v5802
        %v5804 = vpop.f32.mrb[0].mxu0
        %v5805 = vpop.f32.mrb[0].mxu0
        %v5806 = vpop.f32.mrb[0].mxu0
        %5807 = vdwg.mxu0
        %v5808 = vadd.f32 %v5732, %v5803
        %s5809 = scalar_lea.vmem %s9, 32
        %v5810 = vld [vmem:[%s5809] sm:$0xf]
        %v5811 = vld [vmem:[%s5809 + $0x4] sm:$0xf]
        %v5812 = vld [vmem:[%s5809 + $0x8] sm:$0xf]
        %v5813 = vld [vmem:[%s5809 + $0xc] sm:$0xf]
        %v5814 = vld [vmem:[%s5809 + $0x10] sm:$0xf]
        %v5815 = vld [vmem:[%s5809 + $0x14] sm:$0xf]
        %v5816 = vld [vmem:[%s5809 + $0x18] sm:$0xf]
        %v5817 = vld [vmem:[%s5809 + $0x1c] sm:$0xf]
        %v5818 = vshrl.u32 %v5731, 16
        %v5828 = vunpack.c.l.b16 %v5810
        %v5829 = vunpack.c.l.b16 %v5811
        %v5830 = vunpack.c.l.b16 %v5812
        %v5831 = vunpack.c.l.b16 %v5813
        %v5832 = vunpack.c.l.b16 %v5814
        %v5833 = vunpack.c.l.b16 %v5815
        %v5834 = vunpack.c.l.b16 %v5816
        %v5835 = vunpack.c.l.b16 %v5817
        %v5836 = vpack.c.b16 %v5829, %v5828
        %v5837 = vpack.c.b16 %v5831, %v5830
        %v5838 = vpack.c.b16 %v5833, %v5832
        %v5839 = vpack.c.b16 %v5835, %v5834
        %v5845 = vsel %vm3935, %v5818, 0
        %5847 = vmatprep.subr.bf16.mxu0 0
        %5848 = vmatpush1.bf16.msra.mxu0 %v5836
        %5849 = vmatprep.subr.bf16.mxu0 0
        %5850 = vmatpush1.bf16.msra.mxu0 %v5837
        %5851 = vmatprep.subr.bf16.mxu0 0
        %5852 = vmatpush1.bf16.msra.mxu0 %v5838
        %5853 = vmatprep.subr.bf16.mxu0 0
        %5854 = vmatpush1.bf16.msra.mxu0 %v5839
        %5855 = vmatprep.subr.bf16.mxu0 0
        %5856 = vmatpush1.bf16.msra.mxu0 0
        %5857 = vmatprep.subr.bf16.mxu0 0
        %5858 = vmatpush1.bf16.msra.mxu0 0
        %5859 = vmatprep.subr.bf16.mxu0 0
        %5860 = vmatpush1.bf16.msra.mxu0 0
        %5861 = vmatprep.subr.bf16.mxu0 0
        %5862 = vmatpush1.bf16.msra.mxu0 0
        %5863 = vmatprep.subr.bf16.mxu0 0
        %5864 = vmatpush1.bf16.msra.mxu0 0
        %5865 = vmatprep.subr.bf16.mxu0 0
        %5866 = vmatpush1.bf16.msra.mxu0 0
        %5867 = vmatprep.subr.bf16.mxu0 0
        %5868 = vmatpush1.bf16.msra.mxu0 0
        %5869 = vmatprep.subr.bf16.mxu0 0
        %5870 = vmatpush1.bf16.msra.mxu0 0
        %5871 = vmatprep.subr.bf16.mxu0 0
        %5872 = vmatpush1.bf16.msra.mxu0 0
        %5873 = vmatprep.subr.bf16.mxu0 0
        %5874 = vmatpush1.bf16.msra.mxu0 0
        %5875 = vmatprep.subr.bf16.mxu0 0
        %5876 = vmatpush1.bf16.msra.mxu0 0
        %5877 = vmatprep.subr.bf16.mxu0 0
        %5878 = vmatpush1.bf16.msra.mxu0 0
        %5879 = vmatprep.mubr.bf16.mxu0 0
        %5880 = vmatmul.mubr.bf16.gmra.mrb[0].mxu0 %v5845
        %v5881 = vpop.f32.mrb[0].mxu0
        %v5882 = vadd.f32 0.0, %v5881
        %v5883 = vpop.f32.mrb[0].mxu0
        %v5884 = vpop.f32.mrb[0].mxu0
        %v5885 = vpop.f32.mrb[0].mxu0
        %5886 = vdwg.mxu0
        %v5887 = vadd.f32 %v5808, %v5882
        %s5888 = scalar_lea.vmem %s9, 64
        %v5889 = vld [vmem:[%s5888] sm:$0xf]
        %v5890 = vld [vmem:[%s5888 + $0x4] sm:$0xf]
        %v5891 = vld [vmem:[%s5888 + $0x8] sm:$0xf]
        %v5892 = vld [vmem:[%s5888 + $0xc] sm:$0xf]
        %v5893 = vld [vmem:[%s5888 + $0x10] sm:$0xf]
        %v5894 = vld [vmem:[%s5888 + $0x14] sm:$0xf]
        %v5895 = vld [vmem:[%s5888 + $0x18] sm:$0xf]
        %v5896 = vld [vmem:[%s5888 + $0x1c] sm:$0xf]
        %v5898 = vrot.slane %v5731, 1
        %v5907 = vunpack.c.l.b16 %v5889
        %v5908 = vunpack.c.l.b16 %v5890
        %v5909 = vunpack.c.l.b16 %v5891
        %v5910 = vunpack.c.l.b16 %v5892
        %v5911 = vunpack.c.l.b16 %v5893
        %v5912 = vunpack.c.l.b16 %v5894
        %v5913 = vunpack.c.l.b16 %v5895
        %v5914 = vunpack.c.l.b16 %v5896
        %v5915 = vpack.c.b16 %v5908, %v5907
        %v5916 = vpack.c.b16 %v5910, %v5909
        %v5917 = vpack.c.b16 %v5912, %v5911
        %v5918 = vpack.c.b16 %v5914, %v5913
        %v5924 = vsel %vm3935, %v5898, 0
        %5926 = vmatprep.subr.bf16.mxu0 0
        %5927 = vmatpush1.bf16.msra.mxu0 %v5915
        %5928 = vmatprep.subr.bf16.mxu0 0
        %5929 = vmatpush1.bf16.msra.mxu0 %v5916
        %5930 = vmatprep.subr.bf16.mxu0 0
        %5931 = vmatpush1.bf16.msra.mxu0 %v5917
        %5932 = vmatprep.subr.bf16.mxu0 0
        %5933 = vmatpush1.bf16.msra.mxu0 %v5918
        %5934 = vmatprep.subr.bf16.mxu0 0
        %5935 = vmatpush1.bf16.msra.mxu0 0
        %5936 = vmatprep.subr.bf16.mxu0 0
        %5937 = vmatpush1.bf16.msra.mxu0 0
        %5938 = vmatprep.subr.bf16.mxu0 0
        %5939 = vmatpush1.bf16.msra.mxu0 0
        %5940 = vmatprep.subr.bf16.mxu0 0
        %5941 = vmatpush1.bf16.msra.mxu0 0
        %5942 = vmatprep.subr.bf16.mxu0 0
        %5943 = vmatpush1.bf16.msra.mxu0 0
        %5944 = vmatprep.subr.bf16.mxu0 0
        %5945 = vmatpush1.bf16.msra.mxu0 0
        %5946 = vmatprep.subr.bf16.mxu0 0
        %5947 = vmatpush1.bf16.msra.mxu0 0
        %5948 = vmatprep.subr.bf16.mxu0 0
        %5949 = vmatpush1.bf16.msra.mxu0 0
        %5950 = vmatprep.subr.bf16.mxu0 0
        %5951 = vmatpush1.bf16.msra.mxu0 0
        %5952 = vmatprep.subr.bf16.mxu0 0
        %5953 = vmatpush1.bf16.msra.mxu0 0
        %5954 = vmatprep.subr.bf16.mxu0 0
        %5955 = vmatpush1.bf16.msra.mxu0 0
        %5956 = vmatprep.subr.bf16.mxu0 0
        %5957 = vmatpush1.bf16.msra.mxu0 0
        %5958 = vmatprep.mubr.bf16.mxu0 0
        %5959 = vmatmul.mubr.bf16.gmra.mrb[0].mxu0 %v5924
        %v5960 = vpop.f32.mrb[0].mxu0
        %v5961 = vadd.f32 0.0, %v5960
        %v5962 = vpop.f32.mrb[0].mxu0
        %v5963 = vpop.f32.mrb[0].mxu0
        %v5964 = vpop.f32.mrb[0].mxu0
        %5965 = vdwg.mxu0
        %v5966 = vadd.f32 %v5887, %v5961
        %s5967 = scalar_lea.vmem %s9, 96
        %v5968 = vld [vmem:[%s5967] sm:$0xf]
        %v5969 = vld [vmem:[%s5967 + $0x4] sm:$0xf]
        %v5970 = vld [vmem:[%s5967 + $0x8] sm:$0xf]
        %v5971 = vld [vmem:[%s5967 + $0xc] sm:$0xf]
        %v5972 = vld [vmem:[%s5967 + $0x10] sm:$0xf]
        %v5973 = vld [vmem:[%s5967 + $0x14] sm:$0xf]
        %v5974 = vld [vmem:[%s5967 + $0x18] sm:$0xf]
        %v5975 = vld [vmem:[%s5967 + $0x1c] sm:$0xf]
        %v5976 = vrot.slane %v5818, 1
        %v5985 = vunpack.c.l.b16 %v5968
        %v5986 = vunpack.c.l.b16 %v5969
        %v5987 = vunpack.c.l.b16 %v5970
        %v5988 = vunpack.c.l.b16 %v5971
        %v5989 = vunpack.c.l.b16 %v5972
        %v5990 = vunpack.c.l.b16 %v5973
        %v5991 = vunpack.c.l.b16 %v5974
        %v5992 = vunpack.c.l.b16 %v5975
        %v5993 = vpack.c.b16 %v5986, %v5985
        %v5994 = vpack.c.b16 %v5988, %v5987
        %v5995 = vpack.c.b16 %v5990, %v5989
        %v5996 = vpack.c.b16 %v5992, %v5991
        %v6002 = vsel %vm3935, %v5976, 0
        %6004 = vmatprep.subr.bf16.mxu0 0
        %6005 = vmatpush1.bf16.msra.mxu0 %v5993
        %6006 = vmatprep.subr.bf16.mxu0 0
        %6007 = vmatpush1.bf16.msra.mxu0 %v5994
        %6008 = vmatprep.subr.bf16.mxu0 0
        %6009 = vmatpush1.bf16.msra.mxu0 %v5995
        %6010 = vmatprep.subr.bf16.mxu0 0
        %6011 = vmatpush1.bf16.msra.mxu0 %v5996
        %6012 = vmatprep.subr.bf16.mxu0 0
        %6013 = vmatpush1.bf16.msra.mxu0 0
        %6014 = vmatprep.subr.bf16.mxu0 0
        %6015 = vmatpush1.bf16.msra.mxu0 0
        %6016 = vmatprep.subr.bf16.mxu0 0
        %6017 = vmatpush1.bf16.msra.mxu0 0
        %6018 = vmatprep.subr.bf16.mxu0 0
        %6019 = vmatpush1.bf16.msra.mxu0 0
        %6020 = vmatprep.subr.bf16.mxu0 0
        %6021 = vmatpush1.bf16.msra.mxu0 0
        %6022 = vmatprep.subr.bf16.mxu0 0
        %6023 = vmatpush1.bf16.msra.mxu0 0
        %6024 = vmatprep.subr.bf16.mxu0 0
        %6025 = vmatpush1.bf16.msra.mxu0 0
        %6026 = vmatprep.subr.bf16.mxu0 0
        %6027 = vmatpush1.bf16.msra.mxu0 0
        %6028 = vmatprep.subr.bf16.mxu0 0
        %6029 = vmatpush1.bf16.msra.mxu0 0
        %6030 = vmatprep.subr.bf16.mxu0 0
        %6031 = vmatpush1.bf16.msra.mxu0 0
        %6032 = vmatprep.subr.bf16.mxu0 0
        %6033 = vmatpush1.bf16.msra.mxu0 0
        %6034 = vmatprep.subr.bf16.mxu0 0
        %6035 = vmatpush1.bf16.msra.mxu0 0
        %6036 = vmatprep.mubr.bf16.mxu0 0
        %6037 = vmatmul.mubr.bf16.gmra.mrb[0].mxu0 %v6002
        %v6038 = vpop.f32.mrb[0].mxu0
        %v6039 = vadd.f32 0.0, %v6038
        %v6040 = vpop.f32.mrb[0].mxu0
        %v6041 = vpop.f32.mrb[0].mxu0
        %v6042 = vpop.f32.mrb[0].mxu0
        %6043 = vdwg.mxu0
        %v6044 = vadd.f32 %v5966, %v6039
        %s6045 = scalar_lea.vmem %s9, 128
        %v6046 = vld [vmem:[%s6045] sm:$0xf]
        %v6047 = vld [vmem:[%s6045 + $0x4] sm:$0xf]
        %v6048 = vld [vmem:[%s6045 + $0x8] sm:$0xf]
        %v6049 = vld [vmem:[%s6045 + $0xc] sm:$0xf]
        %v6050 = vld [vmem:[%s6045 + $0x10] sm:$0xf]
        %v6051 = vld [vmem:[%s6045 + $0x14] sm:$0xf]
        %v6052 = vld [vmem:[%s6045 + $0x18] sm:$0xf]
        %v6053 = vld [vmem:[%s6045 + $0x1c] sm:$0xf]
        %v6054 = vrot.slane %v5731, 2
        %v6063 = vunpack.c.l.b16 %v6046
        %v6064 = vunpack.c.l.b16 %v6047
        %v6065 = vunpack.c.l.b16 %v6048
        %v6066 = vunpack.c.l.b16 %v6049
        %v6067 = vunpack.c.l.b16 %v6050
        %v6068 = vunpack.c.l.b16 %v6051
        %v6069 = vunpack.c.l.b16 %v6052
        %v6070 = vunpack.c.l.b16 %v6053
        %v6071 = vpack.c.b16 %v6064, %v6063
        %v6072 = vpack.c.b16 %v6066, %v6065
        %v6073 = vpack.c.b16 %v6068, %v6067
        %v6074 = vpack.c.b16 %v6070, %v6069
        %v6080 = vsel %vm3935, %v6054, 0
        %6082 = vmatprep.subr.bf16.mxu0 0
        %6083 = vmatpush1.bf16.msra.mxu0 %v6071
        %6084 = vmatprep.subr.bf16.mxu0 0
        %6085 = vmatpush1.bf16.msra.mxu0 %v6072
        %6086 = vmatprep.subr.bf16.mxu0 0
        %6087 = vmatpush1.bf16.msra.mxu0 %v6073
        %6088 = vmatprep.subr.bf16.mxu0 0
        %6089 = vmatpush1.bf16.msra.mxu0 %v6074
        %6090 = vmatprep.subr.bf16.mxu0 0
        %6091 = vmatpush1.bf16.msra.mxu0 0
        %6092 = vmatprep.subr.bf16.mxu0 0
        %6093 = vmatpush1.bf16.msra.mxu0 0
        %6094 = vmatprep.subr.bf16.mxu0 0
        %6095 = vmatpush1.bf16.msra.mxu0 0
        %6096 = vmatprep.subr.bf16.mxu0 0
        %6097 = vmatpush1.bf16.msra.mxu0 0
        %6098 = vmatprep.subr.bf16.mxu0 0
        %6099 = vmatpush1.bf16.msra.mxu0 0
        %6100 = vmatprep.subr.bf16.mxu0 0
        %6101 = vmatpush1.bf16.msra.mxu0 0
        %6102 = vmatprep.subr.bf16.mxu0 0
        %6103 = vmatpush1.bf16.msra.mxu0 0
        %6104 = vmatprep.subr.bf16.mxu0 0
        %6105 = vmatpush1.bf16.msra.mxu0 0
        %6106 = vmatprep.subr.bf16.mxu0 0
        %6107 = vmatpush1.bf16.msra.mxu0 0
        %6108 = vmatprep.subr.bf16.mxu0 0
        %6109 = vmatpush1.bf16.msra.mxu0 0
        %6110 = vmatprep.subr.bf16.mxu0 0
        %6111 = vmatpush1.bf16.msra.mxu0 0
        %6112 = vmatprep.subr.bf16.mxu0 0
        %6113 = vmatpush1.bf16.msra.mxu0 0
        %6114 = vmatprep.mubr.bf16.mxu0 0
        %6115 = vmatmul.mubr.bf16.gmra.mrb[0].mxu0 %v6080
        %v6116 = vpop.f32.mrb[0].mxu0
        %v6117 = vadd.f32 0.0, %v6116
        %v6118 = vpop.f32.mrb[0].mxu0
        %v6119 = vpop.f32.mrb[0].mxu0
        %v6120 = vpop.f32.mrb[0].mxu0
        %6121 = vdwg.mxu0
        %v6122 = vadd.f32 %v6044, %v6117
        %s6123 = scalar_lea.vmem %s9, 160
        %v6124 = vld [vmem:[%s6123] sm:$0xf]
        %v6125 = vld [vmem:[%s6123 + $0x4] sm:$0xf]
        %v6126 = vld [vmem:[%s6123 + $0x8] sm:$0xf]
        %v6127 = vld [vmem:[%s6123 + $0xc] sm:$0xf]
        %v6128 = vld [vmem:[%s6123 + $0x10] sm:$0xf]
        %v6129 = vld [vmem:[%s6123 + $0x14] sm:$0xf]
        %v6130 = vld [vmem:[%s6123 + $0x18] sm:$0xf]
        %v6131 = vld [vmem:[%s6123 + $0x1c] sm:$0xf]
        %v6132 = vrot.slane %v5818, 2
        %v6141 = vunpack.c.l.b16 %v6124
        %v6142 = vunpack.c.l.b16 %v6125
        %v6143 = vunpack.c.l.b16 %v6126
        %v6144 = vunpack.c.l.b16 %v6127
        %v6145 = vunpack.c.l.b16 %v6128
        %v6146 = vunpack.c.l.b16 %v6129
        %v6147 = vunpack.c.l.b16 %v6130
        %v6148 = vunpack.c.l.b16 %v6131
        %v6149 = vpack.c.b16 %v6142, %v6141
        %v6150 = vpack.c.b16 %v6144, %v6143
        %v6151 = vpack.c.b16 %v6146, %v6145
        %v6152 = vpack.c.b16 %v6148, %v6147
        %v6158 = vsel %vm3935, %v6132, 0
        %6160 = vmatprep.subr.bf16.mxu0 0
        %6161 = vmatpush1.bf16.msra.mxu0 %v6149
        %6162 = vmatprep.subr.bf16.mxu0 0
        %6163 = vmatpush1.bf16.msra.mxu0 %v6150
        %6164 = vmatprep.subr.bf16.mxu0 0
        %6165 = vmatpush1.bf16.msra.mxu0 %v6151
        %6166 = vmatprep.subr.bf16.mxu0 0
        %6167 = vmatpush1.bf16.msra.mxu0 %v6152
        %6168 = vmatprep.subr.bf16.mxu0 0
        %6169 = vmatpush1.bf16.msra.mxu0 0
        %6170 = vmatprep.subr.bf16.mxu0 0
        %6171 = vmatpush1.bf16.msra.mxu0 0
        %6172 = vmatprep.subr.bf16.mxu0 0
        %6173 = vmatpush1.bf16.msra.mxu0 0
        %6174 = vmatprep.subr.bf16.mxu0 0
        %6175 = vmatpush1.bf16.msra.mxu0 0
        %6176 = vmatprep.subr.bf16.mxu0 0
        %6177 = vmatpush1.bf16.msra.mxu0 0
        %6178 = vmatprep.subr.bf16.mxu0 0
        %6179 = vmatpush1.bf16.msra.mxu0 0
        %6180 = vmatprep.subr.bf16.mxu0 0
        %6181 = vmatpush1.bf16.msra.mxu0 0
        %6182 = vmatprep.subr.bf16.mxu0 0
        %6183 = vmatpush1.bf16.msra.mxu0 0
        %6184 = vmatprep.subr.bf16.mxu0 0
        %6185 = vmatpush1.bf16.msra.mxu0 0
        %6186 = vmatprep.subr.bf16.mxu0 0
        %6187 = vmatpush1.bf16.msra.mxu0 0
        %6188 = vmatprep.subr.bf16.mxu0 0
        %6189 = vmatpush1.bf16.msra.mxu0 0
        %6190 = vmatprep.subr.bf16.mxu0 0
        %6191 = vmatpush1.bf16.msra.mxu0 0
        %6192 = vmatprep.mubr.bf16.mxu0 0
        %6193 = vmatmul.mubr.bf16.gmra.mrb[0].mxu0 %v6158
        %v6194 = vpop.f32.mrb[0].mxu0
        %v6195 = vadd.f32 0.0, %v6194
        %v6196 = vpop.f32.mrb[0].mxu0
        %v6197 = vpop.f32.mrb[0].mxu0
        %v6198 = vpop.f32.mrb[0].mxu0
        %6199 = vdwg.mxu0
        %v6200 = vadd.f32 %v6122, %v6195
        %s6201 = scalar_lea.vmem %s9, 192
        %v6202 = vld [vmem:[%s6201] sm:$0xf]
        %v6203 = vld [vmem:[%s6201 + $0x4] sm:$0xf]
        %v6204 = vld [vmem:[%s6201 + $0x8] sm:$0xf]
        %v6205 = vld [vmem:[%s6201 + $0xc] sm:$0xf]
        %v6206 = vld [vmem:[%s6201 + $0x10] sm:$0xf]
        %v6207 = vld [vmem:[%s6201 + $0x14] sm:$0xf]
        %v6208 = vld [vmem:[%s6201 + $0x18] sm:$0xf]
        %v6209 = vld [vmem:[%s6201 + $0x1c] sm:$0xf]
        %v6210 = vrot.slane %v5731, 3
        %v6219 = vunpack.c.l.b16 %v6202
        %v6220 = vunpack.c.l.b16 %v6203
        %v6221 = vunpack.c.l.b16 %v6204
        %v6222 = vunpack.c.l.b16 %v6205
        %v6223 = vunpack.c.l.b16 %v6206
        %v6224 = vunpack.c.l.b16 %v6207
        %v6225 = vunpack.c.l.b16 %v6208
        %v6226 = vunpack.c.l.b16 %v6209
        %v6227 = vpack.c.b16 %v6220, %v6219
        %v6228 = vpack.c.b16 %v6222, %v6221
        %v6229 = vpack.c.b16 %v6224, %v6223
        %v6230 = vpack.c.b16 %v6226, %v6225
        %v6236 = vsel %vm3935, %v6210, 0
        %6238 = vmatprep.subr.bf16.mxu0 0
        %6239 = vmatpush1.bf16.msra.mxu0 %v6227
        %6240 = vmatprep.subr.bf16.mxu0 0
        %6241 = vmatpush1.bf16.msra.mxu0 %v6228
        %6242 = vmatprep.subr.bf16.mxu0 0
        %6243 = vmatpush1.bf16.msra.mxu0 %v6229
        %6244 = vmatprep.subr.bf16.mxu0 0
        %6245 = vmatpush1.bf16.msra.mxu0 %v6230
        %6246 = vmatprep.subr.bf16.mxu0 0
        %6247 = vmatpush1.bf16.msra.mxu0 0
        %6248 = vmatprep.subr.bf16.mxu0 0
        %6249 = vmatpush1.bf16.msra.mxu0 0
        %6250 = vmatprep.subr.bf16.mxu0 0
        %6251 = vmatpush1.bf16.msra.mxu0 0
        %6252 = vmatprep.subr.bf16.mxu0 0
        %6253 = vmatpush1.bf16.msra.mxu0 0
        %6254 = vmatprep.subr.bf16.mxu0 0
        %6255 = vmatpush1.bf16.msra.mxu0 0
        %6256 = vmatprep.subr.bf16.mxu0 0
        %6257 = vmatpush1.bf16.msra.mxu0 0
        %6258 = vmatprep.subr.bf16.mxu0 0
        %6259 = vmatpush1.bf16.msra.mxu0 0
        %6260 = vmatprep.subr.bf16.mxu0 0
        %6261 = vmatpush1.bf16.msra.mxu0 0
        %6262 = vmatprep.subr.bf16.mxu0 0
        %6263 = vmatpush1.bf16.msra.mxu0 0
        %6264 = vmatprep.subr.bf16.mxu0 0
        %6265 = vmatpush1.bf16.msra.mxu0 0
        %6266 = vmatprep.subr.bf16.mxu0 0
        %6267 = vmatpush1.bf16.msra.mxu0 0
        %6268 = vmatprep.subr.bf16.mxu0 0
        %6269 = vmatpush1.bf16.msra.mxu0 0
        %6270 = vmatprep.mubr.bf16.mxu0 0
        %6271 = vmatmul.mubr.bf16.gmra.mrb[0].mxu0 %v6236
        %v6272 = vpop.f32.mrb[0].mxu0
        %v6273 = vadd.f32 0.0, %v6272
        %v6274 = vpop.f32.mrb[0].mxu0
        %v6275 = vpop.f32.mrb[0].mxu0
        %v6276 = vpop.f32.mrb[0].mxu0
        %6277 = vdwg.mxu0
        %v6278 = vadd.f32 %v6200, %v6273
        %s6279 = scalar_lea.vmem %s9, 224
        %v6280 = vld [vmem:[%s6279] sm:$0xf]
        %v6281 = vld [vmem:[%s6279 + $0x4] sm:$0xf]
        %v6282 = vld [vmem:[%s6279 + $0x8] sm:$0xf]
        %v6283 = vld [vmem:[%s6279 + $0xc] sm:$0xf]
        %v6284 = vld [vmem:[%s6279 + $0x10] sm:$0xf]
        %v6285 = vld [vmem:[%s6279 + $0x14] sm:$0xf]
        %v6286 = vld [vmem:[%s6279 + $0x18] sm:$0xf]
        %v6287 = vld [vmem:[%s6279 + $0x1c] sm:$0xf]
        %v6288 = vrot.slane %v5818, 3
        %v6297 = vunpack.c.l.b16 %v6280
        %v6298 = vunpack.c.l.b16 %v6281
        %v6299 = vunpack.c.l.b16 %v6282
        %v6300 = vunpack.c.l.b16 %v6283
        %v6301 = vunpack.c.l.b16 %v6284
        %v6302 = vunpack.c.l.b16 %v6285
        %v6303 = vunpack.c.l.b16 %v6286
        %v6304 = vunpack.c.l.b16 %v6287
        %v6305 = vpack.c.b16 %v6298, %v6297
        %v6306 = vpack.c.b16 %v6300, %v6299
        %v6307 = vpack.c.b16 %v6302, %v6301
        %v6308 = vpack.c.b16 %v6304, %v6303
        %v6314 = vsel %vm3935, %v6288, 0
        %6316 = vmatprep.subr.bf16.mxu0 0
        %6317 = vmatpush1.bf16.msra.mxu0 %v6305
        %6318 = vmatprep.subr.bf16.mxu0 0
        %6319 = vmatpush1.bf16.msra.mxu0 %v6306
        %6320 = vmatprep.subr.bf16.mxu0 0
        %6321 = vmatpush1.bf16.msra.mxu0 %v6307
        %6322 = vmatprep.subr.bf16.mxu0 0
        %6323 = vmatpush1.bf16.msra.mxu0 %v6308
        %6324 = vmatprep.subr.bf16.mxu0 0
        %6325 = vmatpush1.bf16.msra.mxu0 0
        %6326 = vmatprep.subr.bf16.mxu0 0
        %6327 = vmatpush1.bf16.msra.mxu0 0
        %6328 = vmatprep.subr.bf16.mxu0 0
        %6329 = vmatpush1.bf16.msra.mxu0 0
        %6330 = vmatprep.subr.bf16.mxu0 0
        %6331 = vmatpush1.bf16.msra.mxu0 0
        %6332 = vmatprep.subr.bf16.mxu0 0
        %6333 = vmatpush1.bf16.msra.mxu0 0
        %6334 = vmatprep.subr.bf16.mxu0 0
        %6335 = vmatpush1.bf16.msra.mxu0 0
        %6336 = vmatprep.subr.bf16.mxu0 0
        %6337 = vmatpush1.bf16.msra.mxu0 0
        %6338 = vmatprep.subr.bf16.mxu0 0
        %6339 = vmatpush1.bf16.msra.mxu0 0
        %6340 = vmatprep.subr.bf16.mxu0 0
        %6341 = vmatpush1.bf16.msra.mxu0 0
        %6342 = vmatprep.subr.bf16.mxu0 0
        %6343 = vmatpush1.bf16.msra.mxu0 0
        %6344 = vmatprep.subr.bf16.mxu0 0
        %6345 = vmatpush1.bf16.msra.mxu0 0
        %6346 = vmatprep.subr.bf16.mxu0 0
        %6347 = vmatpush1.bf16.msra.mxu0 0
        %6348 = vmatprep.mubr.bf16.mxu0 0
        %6349 = vmatmul.mubr.bf16.gmra.mrb[0].mxu0 %v6314
        %v6350 = vpop.f32.mrb[0].mxu0
        %v6351 = vadd.f32 0.0, %v6350
        %v6352 = vpop.f32.mrb[0].mxu0
        %v6353 = vpop.f32.mrb[0].mxu0
        %v6354 = vpop.f32.mrb[0].mxu0
        %6355 = vdwg.mxu0
        %v6356 = vadd.f32 %v6278, %v6351
        %s6357 = scalar_lea.vmem %s9, 256
        %v6358 = vld [vmem:[%s6357] sm:$0xf]
        %v6359 = vld [vmem:[%s6357 + $0x4] sm:$0xf]
        %v6360 = vld [vmem:[%s6357 + $0x8] sm:$0xf]
        %v6361 = vld [vmem:[%s6357 + $0xc] sm:$0xf]
        %v6362 = vld [vmem:[%s6357 + $0x10] sm:$0xf]
        %v6363 = vld [vmem:[%s6357 + $0x14] sm:$0xf]
        %v6364 = vld [vmem:[%s6357 + $0x18] sm:$0xf]
        %v6365 = vld [vmem:[%s6357 + $0x1c] sm:$0xf]
        %v6366 = vrot.slane %v5731, 4
        %v6375 = vunpack.c.l.b16 %v6358
        %v6376 = vunpack.c.l.b16 %v6359
        %v6377 = vunpack.c.l.b16 %v6360
        %v6378 = vunpack.c.l.b16 %v6361
        %v6379 = vunpack.c.l.b16 %v6362
        %v6380 = vunpack.c.l.b16 %v6363
        %v6381 = vunpack.c.l.b16 %v6364
        %v6382 = vunpack.c.l.b16 %v6365
        %v6383 = vpack.c.b16 %v6376, %v6375
        %v6384 = vpack.c.b16 %v6378, %v6377
        %v6385 = vpack.c.b16 %v6380, %v6379
        %v6386 = vpack.c.b16 %v6382, %v6381
        %v6392 = vsel %vm3935, %v6366, 0
        %6394 = vmatprep.subr.bf16.mxu0 0
        %6395 = vmatpush1.bf16.msra.mxu0 %v6383
        %6396 = vmatprep.subr.bf16.mxu0 0
        %6397 = vmatpush1.bf16.msra.mxu0 %v6384
        %6398 = vmatprep.subr.bf16.mxu0 0
        %6399 = vmatpush1.bf16.msra.mxu0 %v6385
        %6400 = vmatprep.subr.bf16.mxu0 0
        %6401 = vmatpush1.bf16.msra.mxu0 %v6386
        %6402 = vmatprep.subr.bf16.mxu0 0
        %6403 = vmatpush1.bf16.msra.mxu0 0
        %6404 = vmatprep.subr.bf16.mxu0 0
        %6405 = vmatpush1.bf16.msra.mxu0 0
        %6406 = vmatprep.subr.bf16.mxu0 0
        %6407 = vmatpush1.bf16.msra.mxu0 0
        %6408 = vmatprep.subr.bf16.mxu0 0
        %6409 = vmatpush1.bf16.msra.mxu0 0
        %6410 = vmatprep.subr.bf16.mxu0 0
        %6411 = vmatpush1.bf16.msra.mxu0 0
        %6412 = vmatprep.subr.bf16.mxu0 0
        %6413 = vmatpush1.bf16.msra.mxu0 0
        %6414 = vmatprep.subr.bf16.mxu0 0
        %6415 = vmatpush1.bf16.msra.mxu0 0
        %6416 = vmatprep.subr.bf16.mxu0 0
        %6417 = vmatpush1.bf16.msra.mxu0 0
        %6418 = vmatprep.subr.bf16.mxu0 0
        %6419 = vmatpush1.bf16.msra.mxu0 0
        %6420 = vmatprep.subr.bf16.mxu0 0
        %6421 = vmatpush1.bf16.msra.mxu0 0
        %6422 = vmatprep.subr.bf16.mxu0 0
        %6423 = vmatpush1.bf16.msra.mxu0 0
        %6424 = vmatprep.subr.bf16.mxu0 0
        %6425 = vmatpush1.bf16.msra.mxu0 0
        %6426 = vmatprep.mubr.bf16.mxu0 0
        %6427 = vmatmul.mubr.bf16.gmra.mrb[0].mxu0 %v6392
        %v6428 = vpop.f32.mrb[0].mxu0
        %v6429 = vadd.f32 0.0, %v6428
        %v6430 = vpop.f32.mrb[0].mxu0
        %v6431 = vpop.f32.mrb[0].mxu0
        %v6432 = vpop.f32.mrb[0].mxu0
        %6433 = vdwg.mxu0
        %v6434 = vadd.f32 %v6356, %v6429
        %s6435 = scalar_lea.vmem %s9, 288
        %v6436 = vld [vmem:[%s6435] sm:$0xf]
        %v6437 = vld [vmem:[%s6435 + $0x4] sm:$0xf]
        %v6438 = vld [vmem:[%s6435 + $0x8] sm:$0xf]
        %v6439 = vld [vmem:[%s6435 + $0xc] sm:$0xf]
        %v6440 = vld [vmem:[%s6435 + $0x10] sm:$0xf]
        %v6441 = vld [vmem:[%s6435 + $0x14] sm:$0xf]
        %v6442 = vld [vmem:[%s6435 + $0x18] sm:$0xf]
        %v6443 = vld [vmem:[%s6435 + $0x1c] sm:$0xf]
        %v6444 = vrot.slane %v5818, 4
        %v6453 = vunpack.c.l.b16 %v6436
        %v6454 = vunpack.c.l.b16 %v6437
        %v6455 = vunpack.c.l.b16 %v6438
        %v6456 = vunpack.c.l.b16 %v6439
        %v6457 = vunpack.c.l.b16 %v6440
        %v6458 = vunpack.c.l.b16 %v6441
        %v6459 = vunpack.c.l.b16 %v6442
        %v6460 = vunpack.c.l.b16 %v6443
        %v6461 = vpack.c.b16 %v6454, %v6453
        %v6462 = vpack.c.b16 %v6456, %v6455
        %v6463 = vpack.c.b16 %v6458, %v6457
        %v6464 = vpack.c.b16 %v6460, %v6459
        %v6470 = vsel %vm3935, %v6444, 0
        %6472 = vmatprep.subr.bf16.mxu0 0
        %6473 = vmatpush1.bf16.msra.mxu0 %v6461
        %6474 = vmatprep.subr.bf16.mxu0 0
        %6475 = vmatpush1.bf16.msra.mxu0 %v6462
        %6476 = vmatprep.subr.bf16.mxu0 0
        %6477 = vmatpush1.bf16.msra.mxu0 %v6463
        %6478 = vmatprep.subr.bf16.mxu0 0
        %6479 = vmatpush1.bf16.msra.mxu0 %v6464
        %6480 = vmatprep.subr.bf16.mxu0 0
        %6481 = vmatpush1.bf16.msra.mxu0 0
        %6482 = vmatprep.subr.bf16.mxu0 0
        %6483 = vmatpush1.bf16.msra.mxu0 0
        %6484 = vmatprep.subr.bf16.mxu0 0
        %6485 = vmatpush1.bf16.msra.mxu0 0
        %6486 = vmatprep.subr.bf16.mxu0 0
        %6487 = vmatpush1.bf16.msra.mxu0 0
        %6488 = vmatprep.subr.bf16.mxu0 0
        %6489 = vmatpush1.bf16.msra.mxu0 0
        %6490 = vmatprep.subr.bf16.mxu0 0
        %6491 = vmatpush1.bf16.msra.mxu0 0
        %6492 = vmatprep.subr.bf16.mxu0 0
        %6493 = vmatpush1.bf16.msra.mxu0 0
        %6494 = vmatprep.subr.bf16.mxu0 0
        %6495 = vmatpush1.bf16.msra.mxu0 0
        %6496 = vmatprep.subr.bf16.mxu0 0
        %6497 = vmatpush1.bf16.msra.mxu0 0
        %6498 = vmatprep.subr.bf16.mxu0 0
        %6499 = vmatpush1.bf16.msra.mxu0 0
        %6500 = vmatprep.subr.bf16.mxu0 0
        %6501 = vmatpush1.bf16.msra.mxu0 0
        %6502 = vmatprep.subr.bf16.mxu0 0
        %6503 = vmatpush1.bf16.msra.mxu0 0
        %6504 = vmatprep.mubr.bf16.mxu0 0
        %6505 = vmatmul.mubr.bf16.gmra.mrb[0].mxu0 %v6470
        %v6506 = vpop.f32.mrb[0].mxu0
        %v6507 = vadd.f32 0.0, %v6506
        %v6508 = vpop.f32.mrb[0].mxu0
        %v6509 = vpop.f32.mrb[0].mxu0
        %v6510 = vpop.f32.mrb[0].mxu0
        %6511 = vdwg.mxu0
        %v6512 = vadd.f32 %v6434, %v6507
        %s6513 = scalar_lea.vmem %s9, 320
        %v6514 = vld [vmem:[%s6513] sm:$0xf]
        %v6515 = vld [vmem:[%s6513 + $0x4] sm:$0xf]
        %v6516 = vld [vmem:[%s6513 + $0x8] sm:$0xf]
        %v6517 = vld [vmem:[%s6513 + $0xc] sm:$0xf]
        %v6518 = vld [vmem:[%s6513 + $0x10] sm:$0xf]
        %v6519 = vld [vmem:[%s6513 + $0x14] sm:$0xf]
        %v6520 = vld [vmem:[%s6513 + $0x18] sm:$0xf]
        %v6521 = vld [vmem:[%s6513 + $0x1c] sm:$0xf]
        %v6522 = vrot.slane %v5731, 5
        %v6531 = vunpack.c.l.b16 %v6514
        %v6532 = vunpack.c.l.b16 %v6515
        %v6533 = vunpack.c.l.b16 %v6516
        %v6534 = vunpack.c.l.b16 %v6517
        %v6535 = vunpack.c.l.b16 %v6518
        %v6536 = vunpack.c.l.b16 %v6519
        %v6537 = vunpack.c.l.b16 %v6520
        %v6538 = vunpack.c.l.b16 %v6521
        %v6539 = vpack.c.b16 %v6532, %v6531
        %v6540 = vpack.c.b16 %v6534, %v6533
        %v6541 = vpack.c.b16 %v6536, %v6535
        %v6542 = vpack.c.b16 %v6538, %v6537
        %v6548 = vsel %vm3935, %v6522, 0
        %6550 = vmatprep.subr.bf16.mxu0 0
        %6551 = vmatpush1.bf16.msra.mxu0 %v6539
        %6552 = vmatprep.subr.bf16.mxu0 0
        %6553 = vmatpush1.bf16.msra.mxu0 %v6540
        %6554 = vmatprep.subr.bf16.mxu0 0
        %6555 = vmatpush1.bf16.msra.mxu0 %v6541
        %6556 = vmatprep.subr.bf16.mxu0 0
        %6557 = vmatpush1.bf16.msra.mxu0 %v6542
        %6558 = vmatprep.subr.bf16.mxu0 0
        %6559 = vmatpush1.bf16.msra.mxu0 0
        %6560 = vmatprep.subr.bf16.mxu0 0
        %6561 = vmatpush1.bf16.msra.mxu0 0
        %6562 = vmatprep.subr.bf16.mxu0 0
        %6563 = vmatpush1.bf16.msra.mxu0 0
        %6564 = vmatprep.subr.bf16.mxu0 0
        %6565 = vmatpush1.bf16.msra.mxu0 0
        %6566 = vmatprep.subr.bf16.mxu0 0
        %6567 = vmatpush1.bf16.msra.mxu0 0
        %6568 = vmatprep.subr.bf16.mxu0 0
        %6569 = vmatpush1.bf16.msra.mxu0 0
        %6570 = vmatprep.subr.bf16.mxu0 0
        %6571 = vmatpush1.bf16.msra.mxu0 0
        %6572 = vmatprep.subr.bf16.mxu0 0
        %6573 = vmatpush1.bf16.msra.mxu0 0
        %6574 = vmatprep.subr.bf16.mxu0 0
        %6575 = vmatpush1.bf16.msra.mxu0 0
        %6576 = vmatprep.subr.bf16.mxu0 0
        %6577 = vmatpush1.bf16.msra.mxu0 0
        %6578 = vmatprep.subr.bf16.mxu0 0
        %6579 = vmatpush1.bf16.msra.mxu0 0
        %6580 = vmatprep.subr.bf16.mxu0 0
        %6581 = vmatpush1.bf16.msra.mxu0 0
        %6582 = vmatprep.mubr.bf16.mxu0 0
        %6583 = vmatmul.mubr.bf16.gmra.mrb[0].mxu0 %v6548
        %v6584 = vpop.f32.mrb[0].mxu0
        %v6585 = vadd.f32 0.0, %v6584
        %v6586 = vpop.f32.mrb[0].mxu0
        %v6587 = vpop.f32.mrb[0].mxu0
        %v6588 = vpop.f32.mrb[0].mxu0
        %6589 = vdwg.mxu0
        %v6590 = vadd.f32 %v6512, %v6585
        %s6591 = scalar_lea.vmem %s9, 352
        %v6592 = vld [vmem:[%s6591] sm:$0xf]
        %v6593 = vld [vmem:[%s6591 + $0x4] sm:$0xf]
        %v6594 = vld [vmem:[%s6591 + $0x8] sm:$0xf]
        %v6595 = vld [vmem:[%s6591 + $0xc] sm:$0xf]
        %v6596 = vld [vmem:[%s6591 + $0x10] sm:$0xf]
        %v6597 = vld [vmem:[%s6591 + $0x14] sm:$0xf]
        %v6598 = vld [vmem:[%s6591 + $0x18] sm:$0xf]
        %v6599 = vld [vmem:[%s6591 + $0x1c] sm:$0xf]
        %v6600 = vrot.slane %v5818, 5
        %v6609 = vunpack.c.l.b16 %v6592
        %v6610 = vunpack.c.l.b16 %v6593
        %v6611 = vunpack.c.l.b16 %v6594
        %v6612 = vunpack.c.l.b16 %v6595
        %v6613 = vunpack.c.l.b16 %v6596
        %v6614 = vunpack.c.l.b16 %v6597
        %v6615 = vunpack.c.l.b16 %v6598
        %v6616 = vunpack.c.l.b16 %v6599
        %v6617 = vpack.c.b16 %v6610, %v6609
        %v6618 = vpack.c.b16 %v6612, %v6611
        %v6619 = vpack.c.b16 %v6614, %v6613
        %v6620 = vpack.c.b16 %v6616, %v6615
        %v6626 = vsel %vm3935, %v6600, 0
        %6628 = vmatprep.subr.bf16.mxu0 0
        %6629 = vmatpush1.bf16.msra.mxu0 %v6617
        %6630 = vmatprep.subr.bf16.mxu0 0
        %6631 = vmatpush1.bf16.msra.mxu0 %v6618
        %6632 = vmatprep.subr.bf16.mxu0 0
        %6633 = vmatpush1.bf16.msra.mxu0 %v6619
        %6634 = vmatprep.subr.bf16.mxu0 0
        %6635 = vmatpush1.bf16.msra.mxu0 %v6620
        %6636 = vmatprep.subr.bf16.mxu0 0
        %6637 = vmatpush1.bf16.msra.mxu0 0
        %6638 = vmatprep.subr.bf16.mxu0 0
        %6639 = vmatpush1.bf16.msra.mxu0 0
        %6640 = vmatprep.subr.bf16.mxu0 0
        %6641 = vmatpush1.bf16.msra.mxu0 0
        %6642 = vmatprep.subr.bf16.mxu0 0
        %6643 = vmatpush1.bf16.msra.mxu0 0
        %6644 = vmatprep.subr.bf16.mxu0 0
        %6645 = vmatpush1.bf16.msra.mxu0 0
        %6646 = vmatprep.subr.bf16.mxu0 0
        %6647 = vmatpush1.bf16.msra.mxu0 0
        %6648 = vmatprep.subr.bf16.mxu0 0
        %6649 = vmatpush1.bf16.msra.mxu0 0
        %6650 = vmatprep.subr.bf16.mxu0 0
        %6651 = vmatpush1.bf16.msra.mxu0 0
        %6652 = vmatprep.subr.bf16.mxu0 0
        %6653 = vmatpush1.bf16.msra.mxu0 0
        %6654 = vmatprep.subr.bf16.mxu0 0
        %6655 = vmatpush1.bf16.msra.mxu0 0
        %6656 = vmatprep.subr.bf16.mxu0 0
        %6657 = vmatpush1.bf16.msra.mxu0 0
        %6658 = vmatprep.subr.bf16.mxu0 0
        %6659 = vmatpush1.bf16.msra.mxu0 0
        %6660 = vmatprep.mubr.bf16.mxu0 0
        %6661 = vmatmul.mubr.bf16.gmra.mrb[0].mxu0 %v6626
        %v6662 = vpop.f32.mrb[0].mxu0
        %v6663 = vadd.f32 0.0, %v6662
        %v6664 = vpop.f32.mrb[0].mxu0
        %v6665 = vpop.f32.mrb[0].mxu0
        %v6666 = vpop.f32.mrb[0].mxu0
        %6667 = vdwg.mxu0
        %v6668 = vadd.f32 %v6590, %v6663
        %vm6669 = vcmask 73728
        %6670 = vst.msk [vmem:[%s378] sm:$0x1] %vm6669, %v6668
        %s6671 = sand.u32 %s269, 1
        %s6672 = scalar_lea.sflag [#allocation3], %s6671
        %s6673 = sand.u32 %s269, 1
        %s6674 = scalar_lea.vmem [#allocation2], %s6673
        // Predicated region
        $region65: #{lenet_forward.1} parent=63 // pred_check
          %p6675 = pneg %p279
        $region66: #{lenet_forward.1} parent=63 // pred_check_branch
          %6677 = sbr.rel (%p6675) target = $region68
        $region67: #{lenet_forward.1} parent=63 // pred_region
          %s6679 = ssub.s32 16, 16
          %6680 = vsyncadd %s6672, %s6679
          %s6681 = smul.addr %s25, 16
          %s6682 = scalar_lea.hbm %s11, %s6681
          %s6684 = sshll.u32 %s6674, 4
          %s6685 = int_to_ptr.vmem [resolvable:$true] %s6684
          %6687 = dma.vmem_to_hbm [thread:$0]  %s6685, 16, %s6682, %s6672
        $region68: #{lenet_forward.1} parent=63 // pred_fallthru
          _
      $region64: #{lenet_forward.1} parent=5 // pred_fallthru
        _
      %p6688 = scmp.le.s32.totalorder 2, %s20
      // Predicated region
      $region69: #{lenet_forward.1} parent=5 // pred_check
        %p6689 = pneg %p6688
      $region70: #{lenet_forward.1} parent=5 // pred_check_branch
        %6691 = sbr.rel (%p6689) target = $region72
      $region71: #{lenet_forward.1} parent=5 // pred_region
        %s6692 = ssub.s32 %s20, 2
        // Predicated region
        $region73: #{lenet_forward.1} parent=71 // pred_check
          %p6693 = pneg %p285
        $region74: #{lenet_forward.1} parent=71 // pred_check_branch
          %6695 = sbr.rel (%p6693) target = $region76
        $region75: #{lenet_forward.1} parent=71 // pred_region
          %s6696 = sand.u32 %s270, 1
          %s6697 = scalar_lea.sflag [#allocation3], %s6696
          %s6698 = sand.u32 %s270, 1
          %s6699 = scalar_lea.vmem [#allocation2], %s6698
          %6700 = dma.done %s6697, 16
        $region76: #{lenet_forward.1} parent=71 // pred_fallthru
          _
      $region72: #{lenet_forward.1} parent=5 // pred_fallthru
        _
    $region6: #{lenet_forward.1} parent=1 // loop_footer
      %s24 = sadd.s32 1, %s20
    $region7: #{lenet_forward.1} parent=1 // loop_footer_branch
      %19 = sbr.rel target = $region3
    $region8: #{lenet_forward.1} parent=1 // loop_exit
      _
    %6701 = vsyncpa [#allocation3], 1
    %s6702 = scalar_lea.sflag [#allocation3], 1
    %6703 = vsyncpa %s6702, 1

</llo_original>
